<compile_context>
chip_gen: v6e
topology: v6e:2x2x1
jax: 0.10.0
libtpu: 0.0.40
codegen_flags: <defaults>
</compile_context>

<pallas_src>
import numpy as np
import jax
import jax.numpy as jnp
from jax import lax
from jax.experimental import pallas as pl
from jax.experimental.pallas import tpu as pltpu


# ----------------------------- parameter init ------------------------------

def _l2normalize(v, eps=1e-12):
    return v / (jnp.linalg.norm(v) + eps)


def _spectral_normalize(w_oihw, key):
    """One power iteration, matching SpectralNorm._update_u_v (power_iterations=1)."""
    # TODO(synk): PyTorch persists the u buffer across forward calls; here a fresh
    # u is drawn at init, so sigma matches the in-file reference but not a trained
    # torch checkpoint's state.
    h = w_oihw.shape[0]
    wm = w_oihw.reshape(h, -1)
    ku, kv = jax.random.split(key)
    u = _l2normalize(jax.random.normal(ku, (h,), jnp.float32))
    _ = _l2normalize(jax.random.normal(kv, (wm.shape[1],), jnp.float32))  # v init
    v = _l2normalize(wm.T @ u)
    u = _l2normalize(wm @ v)
    sigma = u @ (wm @ v)
    return w_oihw / sigma


def _xavier_uniform(key, shape_oihw, gain):
    out_ch, in_ch, kh, kw = shape_oihw
    fan_in = in_ch * kh * kw
    fan_out = out_ch * kh * kw
    a = gain * float(np.sqrt(6.0 / (fan_in + fan_out)))
    return jax.random.uniform(key, shape_oihw, jnp.float32, -a, a)


def _conv_bias(key, out_ch, fan_in):
    b = 1.0 / float(np.sqrt(fan_in))
    return jax.random.uniform(key, (out_ch,), jnp.float32, -b, b)


def init_params(key, in_ch, out_ch, stride):
    ks = jax.random.split(key, 10)
    w1 = _xavier_uniform(ks[0], (out_ch, in_ch, 3, 3), 1.0)
    b1 = _conv_bias(ks[1], out_ch, in_ch * 9)
    w2 = _xavier_uniform(ks[2], (out_ch, out_ch, 3, 3), 1.0)
    b2 = _conv_bias(ks[3], out_ch, out_ch * 9)
    w1sn = _spectral_normalize(w1, ks[4])
    w2sn = _spectral_normalize(w2, ks[5])
    p = {
        "w1_oihw": w1sn, "w2_oihw": w2sn,
        "w1_hwio": jnp.transpose(w1sn, (2, 3, 1, 0)),
        "w2_hwio": jnp.transpose(w2sn, (2, 3, 1, 0)),
        "b1": b1.reshape(1, -1), "b2": b2.reshape(1, -1),
    }
    if stride != 1:
        wb = _xavier_uniform(ks[6], (out_ch, in_ch, 1, 1), float(np.sqrt(2.0)))
        bb = _conv_bias(ks[7], out_ch, in_ch)
        wbsn = _spectral_normalize(wb, ks[8])
        p["wb_oihw"] = wbsn
        p["wb_hwio"] = jnp.transpose(wbsn, (2, 3, 1, 0))
        p["bb"] = bb.reshape(1, -1)
    return p


# ------------------------------- the kernel --------------------------------

def _make_resblock_kernel(H, W, Cin, Cout, stride):
    Cmax = max(Cin, Cout)
    HW = H * W
    Hout, Wout = (H, W) if stride == 1 else (H // 2, W // 2)

    def _zero_halo(pad_ref):
        # Only the 1-pixel border is zeroed; the interior is overwritten every step.
        pad_ref[0:1, :, :] = jnp.zeros((1, W + 2, Cmax), pad_ref.dtype)
        pad_ref[H + 1:H + 2, :, :] = jnp.zeros((1, W + 2, Cmax), pad_ref.dtype)
        pad_ref[:, 0:1, :] = jnp.zeros((H + 2, 1, Cmax), pad_ref.dtype)
        pad_ref[:, W + 1:W + 2, :] = jnp.zeros((H + 2, 1, Cmax), pad_ref.dtype)

    def _conv3x3(pad_ref, col_ref, w_ref, b_ref, cin):
        # im2col: one (HW, 9*cin) @ (9*cin, Cout) bf16 MXU matmul (f32 accumulate)
        # instead of nine K=cin matmuls.
        for t in range(9):
            i, j = divmod(t, 3)
            col_ref[:, t * cin:(t + 1) * cin] = (
                pad_ref[i:i + H, j:j + W, :cin].reshape(HW, cin))
        return jnp.dot(col_ref[:, :9 * cin], w_ref[...],
                       preferred_element_type=jnp.float32) + b_ref[...]

    def _avgpool2(v, c):
        # v: (H*W, c) in (h, w) raster order -> (Hout*Wout, c).  VPU-only:
        # leading-dim reshapes + slice adds (no pooling matrix, no minor-dim reshape).
        t = v.reshape(H * Wout, 2, c)
        t = (t[:, 0, :] + t[:, 1, :]) * 0.5            # pool over w
        t = t.reshape(Hout, 2, Wout, c)
        t = (t[:, 0, :, :] + t[:, 1, :, :]) * 0.5      # pool over h
        return t.reshape(Hout * Wout, c)

    if stride == 1:
        def kernel(x_ref, w1_ref, b1_ref, w2_ref, b2_ref, out_ref,
                   pad_ref, col_ref):
            _zero_halo(pad_ref)
            x = x_ref[0]                                             # (H, W, Cin) f32
            pad_ref[1:H + 1, 1:W + 1, :Cin] = (
                jnp.maximum(x, 0.0).astype(pad_ref.dtype))
            h1 = jnp.maximum(_conv3x3(pad_ref, col_ref, w1_ref, b1_ref, Cin), 0.0)
            pad_ref[1:H + 1, 1:W + 1, :Cout] = (
                h1.reshape(H, W, Cout).astype(pad_ref.dtype))
            h2 = _conv3x3(pad_ref, col_ref, w2_ref, b2_ref, Cout)    # (HW, Cout) f32
            out_ref[...] = (h2 + x.reshape(HW, Cin)).astype(out_ref.dtype)
        return kernel

    def kernel(x_ref, w1_ref, b1_ref, w2_ref, b2_ref, wb_ref, bb_ref, out_ref,
               pad_ref, col_ref):
        _zero_halo(pad_ref)
        x = x_ref[0]                                                 # (H, W, Cin) f32
        pad_ref[1:H + 1, 1:W + 1, :Cin] = (
            jnp.maximum(x, 0.0).astype(pad_ref.dtype))
        h1 = jnp.maximum(_conv3x3(pad_ref, col_ref, w1_ref, b1_ref, Cin), 0.0)
        pad_ref[1:H + 1, 1:W + 1, :Cout] = (
            h1.reshape(H, W, Cout).astype(pad_ref.dtype))
        h2 = _conv3x3(pad_ref, col_ref, w2_ref, b2_ref, Cout)        # (HW, Cout) f32
        main = _avgpool2(h2, Cout)                                   # (Hout*Wout, Cout)
        # bypass: avgpool2(x) first, then SN 1x1 conv + bias (linear + pointwise
        # => they commute; 4x fewer matmul rows).
        xp = _avgpool2(x.reshape(HW, Cin), Cin)                      # (Hout*Wout, Cin)
        byp = jnp.dot(xp.astype(jnp.bfloat16), wb_ref[...],
                      preferred_element_type=jnp.float32) + bb_ref[...]
        out_ref[...] = (main + byp).astype(out_ref.dtype)
    return kernel


# ------------------------------ JAX wrapper ---------------------------------

def resblock_discriminator(x_nchw, params, stride):
    assert stride in (1, 2)  # module only ever uses AvgPool2d(2, stride=2)
    N, Cin, H, W = x_nchw.shape
    Cout = params["w1_hwio"].shape[-1]
    if stride == 1:
        assert Cin == Cout, "stride=1 bypass is identity; channels must match"
        Hout, Wout = H, W
    else:
        assert H % 2 == 0 and W % 2 == 0, "AvgPool2d(2, 2) requires even spatial dims"
        Hout, Wout = H // 2, W // 2
    Cmax = max(Cin, Cout)

    x_nhwc = jnp.transpose(x_nchw, (0, 2, 3, 1)).astype(jnp.float32)
    # im2col weight layout: row (kh*3 + kw)*C + c; bf16 for native MXU mode.
    w1 = params["w1_hwio"].reshape(9 * Cin, Cout).astype(jnp.bfloat16)
    w2 = params["w2_hwio"].reshape(9 * Cout, Cout).astype(jnp.bfloat16)
    b1 = params["b1"].astype(jnp.float32)
    b2 = params["b2"].astype(jnp.float32)

    def rep_spec(shape):
        zeros = (0,) * len(shape)
        return pl.BlockSpec(shape, lambda n, z=zeros: z)

    x_spec = pl.BlockSpec((1, H, W, Cin), lambda n: (n, 0, 0, 0))
    if stride == 1:
        inputs = (x_nhwc, w1, b1, w2, b2)
    else:
        wb = params["wb_hwio"].reshape(Cin, Cout).astype(jnp.bfloat16)
        bb = params["bb"].astype(jnp.float32)
        inputs = (x_nhwc, w1, b1, w2, b2, wb, bb)

    in_specs = [x_spec] + [rep_spec(a.shape) for a in inputs[1:]]
    rows_per_img = Hout * Wout
    out_shape = jax.ShapeDtypeStruct((N * rows_per_img, Cout), jnp.float32)
    out_spec = pl.BlockSpec((rows_per_img, Cout), lambda n: (n, 0))

    kernel = _make_resblock_kernel(H, W, Cin, Cout, stride)
    out_flat = pl.pallas_call(
        kernel,
        out_shape=out_shape,
        grid=(N,),
        in_specs=in_specs,
        out_specs=out_spec,
        scratch_shapes=[
            pltpu.VMEM((H + 2, W + 2, Cmax), jnp.bfloat16),   # shared padded activation
            pltpu.VMEM((H * W, 9 * Cmax), jnp.bfloat16),      # im2col buffer
        ],
        compiler_params=pltpu.CompilerParams(
            dimension_semantics=("parallel",),
            vmem_limit_bytes=32 * 1024 * 1024),
    )(*inputs)

    out_nhwc = out_flat.reshape(N, Hout, Wout, Cout)
    return jnp.transpose(out_nhwc, (0, 3, 1, 2))  # back to NCHW like PyTorch


# --------------------------- pure-JAX reference ------------------------------

def reference_forward(x, p, stride):
    def conv(x, w, b, pad):
        y = lax.conv_general_dilated(
            x, w, (1, 1), [(pad, pad), (pad, pad)],
            dimension_numbers=("NCHW", "OIHW", "NCHW"),
            precision=lax.Precision.HIGHEST)
        return y + b.reshape(1, -1, 1, 1)

    def avgpool2(x):
        n, c, h, w = x.shape
        return x.reshape(n, c, h // 2, 2, w // 2, 2).mean(axis=(3, 5))

    h = conv(jnp.maximum(x, 0.0), p["w1_oihw"], p["b1"], 1)
    h = conv(jnp.maximum(h, 0.0), p["w2_oihw"], p["b2"], 1)
    if stride == 1:
        return h + x
    return avgpool2(h) + avgpool2(conv(x, p["wb_oihw"], p["bb"], 0))


# ---------------------------------- main -------------------------------------

if __name__ == "__main__":
    key = jax.random.PRNGKey(0)
    kx, kp1, kp2 = jax.random.split(key, 3)

    # Input matching the PyTorch module's NCHW convention.
    x = jax.random.normal(kx, (2, 4, 16, 16), jnp.float32)

    # Tolerance: kernel uses native bf16-in / f32-accumulate MXU matmuls, the
    # reference uses f32 HIGHEST, so compare at bf16-appropriate tolerances.
    RTOL = ATOL = 5e-2

    # stride=2 block (downsampling, with SN 1x1 bypass conv): in=4 -> out=8
    p2 = init_params(kp1, 4, 8, stride=2)
    y2 = jax.block_until_ready(resblock_discriminator(x, p2, stride=2))
    r2 = reference_forward(x, p2, 2)
    assert y2.shape == (2, 8, 8, 8)
    np.testing.assert_allclose(np.asarray(y2), np.asarray(r2), rtol=RTOL, atol=ATOL)

    # stride=1 block (identity bypass): in=out=4
    p1 = init_params(kp2, 4, 4, stride=1)
    y1 = jax.block_until_ready(resblock_discriminator(x, p1, stride=1))
    r1 = reference_forward(x, p1, 1)
    assert y1.shape == (2, 4, 16, 16)
    np.testing.assert_allclose(np.asarray(y1), np.asarray(r1), rtol=RTOL, atol=ATOL)

    print("KERNEL_OK")
</pallas_src>

<mosaic_0001>
module attributes {stable_mosaic.version = 11 : i64} {
  func.func @kernel(%arg0: i32, %arg1: memref<1x16x16x4xf32, #tpu.memory_space<vmem>>, %arg2: memref<36x8xbf16, #tpu.memory_space<vmem>>, %arg3: memref<1x8xf32, #tpu.memory_space<vmem>>, %arg4: memref<72x8xbf16, #tpu.memory_space<vmem>>, %arg5: memref<1x8xf32, #tpu.memory_space<vmem>>, %arg6: memref<4x8xbf16, #tpu.memory_space<vmem>>, %arg7: memref<1x8xf32, #tpu.memory_space<vmem>>, %arg8: memref<64x8xf32, #tpu.memory_space<vmem>>, %arg9: memref<18x18x8xbf16, #tpu.memory_space<vmem>>, %arg10: memref<256x72xbf16, #tpu.memory_space<vmem>>) attributes {dimension_semantics = [#tpu.dimension_semantics<parallel>], iteration_bounds = array<i64: 2>, scalar_prefetch = 0 : i64, scratch_operands = 2 : i64, tpu.core_type = #tpu.core_type<tc>, window_params = [{transform_indices = @transform_0, window_bounds = array<i64: 1, 16, 16, 4>}, {pipeline_mode = #tpu.pipeline_mode<synchronous>, transform_indices = @transform_1, window_bounds = array<i64: 36, 8>}, {pipeline_mode = #tpu.pipeline_mode<synchronous>, transform_indices = @transform_2, window_bounds = array<i64: 1, 8>}, {pipeline_mode = #tpu.pipeline_mode<synchronous>, transform_indices = @transform_3, window_bounds = array<i64: 72, 8>}, {pipeline_mode = #tpu.pipeline_mode<synchronous>, transform_indices = @transform_4, window_bounds = array<i64: 1, 8>}, {pipeline_mode = #tpu.pipeline_mode<synchronous>, transform_indices = @transform_5, window_bounds = array<i64: 4, 8>}, {pipeline_mode = #tpu.pipeline_mode<synchronous>, transform_indices = @transform_6, window_bounds = array<i64: 1, 8>}, {transform_indices = @transform_7, window_bounds = array<i64: 64, 8>}]} {
    %cst = arith.constant 0.000000e+00 : bf16
    %0 = vector.broadcast %cst : bf16 to vector<1x18x8xbf16>
    %c0 = arith.constant 0 : index
    %c0_0 = arith.constant 0 : index
    %c0_1 = arith.constant 0 : index
    %1 = vector.load %arg9[%c0, %c0_0, %c0_1] : memref<18x18x8xbf16, #tpu.memory_space<vmem>>, vector<1x18x8xbf16>
    tpu.vector_store %arg9[%c0, %c0_0, %c0_1], %0 {strides = array<i32>} : memref<18x18x8xbf16, #tpu.memory_space<vmem>>, vector<1x18x8xbf16>,
    %cst_2 = arith.constant 0.000000e+00 : bf16
    %2 = vector.broadcast %cst_2 : bf16 to vector<1x18x8xbf16>
    %c17 = arith.constant 17 : index
    %c0_3 = arith.constant 0 : index
    %c0_4 = arith.constant 0 : index
    %3 = vector.load %arg9[%c17, %c0_3, %c0_4] : memref<18x18x8xbf16, #tpu.memory_space<vmem>>, vector<1x18x8xbf16>
    tpu.vector_store %arg9[%c17, %c0_3, %c0_4], %2 {strides = array<i32>} : memref<18x18x8xbf16, #tpu.memory_space<vmem>>, vector<1x18x8xbf16>,
    %cst_5 = arith.constant 0.000000e+00 : bf16
    %4 = vector.broadcast %cst_5 : bf16 to vector<18x1x8xbf16>
    %c0_6 = arith.constant 0 : index
    %c0_7 = arith.constant 0 : index
    %c0_8 = arith.constant 0 : index
    %5 = vector.load %arg9[%c0_6, %c0_7, %c0_8] : memref<18x18x8xbf16, #tpu.memory_space<vmem>>, vector<18x1x8xbf16>
    tpu.vector_store %arg9[%c0_6, %c0_7, %c0_8], %4 {strides = array<i32>} : memref<18x18x8xbf16, #tpu.memory_space<vmem>>, vector<18x1x8xbf16>,
    %cst_9 = arith.constant 0.000000e+00 : bf16
    %6 = vector.broadcast %cst_9 : bf16 to vector<18x1x8xbf16>
    %c0_10 = arith.constant 0 : index
    %c17_11 = arith.constant 17 : index
    %c0_12 = arith.constant 0 : index
    %7 = vector.load %arg9[%c0_10, %c17_11, %c0_12] : memref<18x18x8xbf16, #tpu.memory_space<vmem>>, vector<18x1x8xbf16>
    tpu.vector_store %arg9[%c0_10, %c17_11, %c0_12], %6 {strides = array<i32>} : memref<18x18x8xbf16, #tpu.memory_space<vmem>>, vector<18x1x8xbf16>,
    %c0_13 = arith.constant 0 : index
    %c0_14 = arith.constant 0 : index
    %c0_15 = arith.constant 0 : index
    %c0_16 = arith.constant 0 : index
    %8 = vector.load %arg1[%c0_13, %c0_14, %c0_15, %c0_16] : memref<1x16x16x4xf32, #tpu.memory_space<vmem>>, vector<1x16x16x4xf32>
    %9 = vector.shape_cast %8 : vector<1x16x16x4xf32> to vector<16x16x4xf32>
    %cst_17 = arith.constant 0.000000e+00 : f32
    %10 = vector.broadcast %cst_17 : f32 to vector<16x16x4xf32>
    %11 = arith.maximumf %9, %10 : vector<16x16x4xf32>
    %12 = arith.truncf %11 : vector<16x16x4xf32> to vector<16x16x4xbf16>
    %c1 = arith.constant 1 : index
    %c1_18 = arith.constant 1 : index
    %c0_19 = arith.constant 0 : index
    %13 = vector.load %arg9[%c1, %c1_18, %c0_19] : memref<18x18x8xbf16, #tpu.memory_space<vmem>>, vector<16x16x4xbf16>
    tpu.vector_store %arg9[%c1, %c1_18, %c0_19], %12 {strides = array<i32>} : memref<18x18x8xbf16, #tpu.memory_space<vmem>>, vector<16x16x4xbf16>,
    %c0_20 = arith.constant 0 : index
    %c0_21 = arith.constant 0 : index
    %c0_22 = arith.constant 0 : index
    %14 = vector.load %arg9[%c0_20, %c0_21, %c0_22] : memref<18x18x8xbf16, #tpu.memory_space<vmem>>, vector<16x16x4xbf16>
    %15 = vector.shape_cast %14 : vector<16x16x4xbf16> to vector<256x4xbf16>
    %c0_23 = arith.constant 0 : index
    %c0_24 = arith.constant 0 : index
    %16 = vector.load %arg10[%c0_23, %c0_24] : memref<256x72xbf16, #tpu.memory_space<vmem>>, vector<256x4xbf16>
    tpu.vector_store %arg10[%c0_23, %c0_24], %15 {strides = array<i32>} : memref<256x72xbf16, #tpu.memory_space<vmem>>, vector<256x4xbf16>,
    %c0_25 = arith.constant 0 : index
    %c1_26 = arith.constant 1 : index
    %c0_27 = arith.constant 0 : index
    %17 = vector.load %arg9[%c0_25, %c1_26, %c0_27] : memref<18x18x8xbf16, #tpu.memory_space<vmem>>, vector<16x16x4xbf16>
    %18 = vector.shape_cast %17 : vector<16x16x4xbf16> to vector<256x4xbf16>
    %c0_28 = arith.constant 0 : index
    %c4 = arith.constant 4 : index
    %19 = vector.load %arg10[%c0_28, %c4] : memref<256x72xbf16, #tpu.memory_space<vmem>>, vector<256x4xbf16>
    tpu.vector_store %arg10[%c0_28, %c4], %18 {strides = array<i32>} : memref<256x72xbf16, #tpu.memory_space<vmem>>, vector<256x4xbf16>,
    %c0_29 = arith.constant 0 : index
    %c2 = arith.constant 2 : index
    %c0_30 = arith.constant 0 : index
    %20 = vector.load %arg9[%c0_29, %c2, %c0_30] : memref<18x18x8xbf16, #tpu.memory_space<vmem>>, vector<16x16x4xbf16>
    %21 = vector.shape_cast %20 : vector<16x16x4xbf16> to vector<256x4xbf16>
    %c0_31 = arith.constant 0 : index
    %c8 = arith.constant 8 : index
    %22 = vector.load %arg10[%c0_31, %c8] : memref<256x72xbf16, #tpu.memory_space<vmem>>, vector<256x4xbf16>
    tpu.vector_store %arg10[%c0_31, %c8], %21 {strides = array<i32>} : memref<256x72xbf16, #tpu.memory_space<vmem>>, vector<256x4xbf16>,
    %c1_32 = arith.constant 1 : index
    %c0_33 = arith.constant 0 : index
    %c0_34 = arith.constant 0 : index
    %23 = vector.load %arg9[%c1_32, %c0_33, %c0_34] : memref<18x18x8xbf16, #tpu.memory_space<vmem>>, vector<16x16x4xbf16>
    %24 = vector.shape_cast %23 : vector<16x16x4xbf16> to vector<256x4xbf16>
    %c0_35 = arith.constant 0 : index
    %c12 = arith.constant 12 : index
    %25 = vector.load %arg10[%c0_35, %c12] : memref<256x72xbf16, #tpu.memory_space<vmem>>, vector<256x4xbf16>
    tpu.vector_store %arg10[%c0_35, %c12], %24 {strides = array<i32>} : memref<256x72xbf16, #tpu.memory_space<vmem>>, vector<256x4xbf16>,
    %c1_36 = arith.constant 1 : index
    %c1_37 = arith.constant 1 : index
    %c0_38 = arith.constant 0 : index
    %26 = vector.load %arg9[%c1_36, %c1_37, %c0_38] : memref<18x18x8xbf16, #tpu.memory_space<vmem>>, vector<16x16x4xbf16>
    %27 = vector.shape_cast %26 : vector<16x16x4xbf16> to vector<256x4xbf16>
    %c0_39 = arith.constant 0 : index
    %c16 = arith.constant 16 : index
    %28 = vector.load %arg10[%c0_39, %c16] : memref<256x72xbf16, #tpu.memory_space<vmem>>, vector<256x4xbf16>
    tpu.vector_store %arg10[%c0_39, %c16], %27 {strides = array<i32>} : memref<256x72xbf16, #tpu.memory_space<vmem>>, vector<256x4xbf16>,
    %c1_40 = arith.constant 1 : index
    %c2_41 = arith.constant 2 : index
    %c0_42 = arith.constant 0 : index
    %29 = vector.load %arg9[%c1_40, %c2_41, %c0_42] : memref<18x18x8xbf16, #tpu.memory_space<vmem>>, vector<16x16x4xbf16>
    %30 = vector.shape_cast %29 : vector<16x16x4xbf16> to vector<256x4xbf16>
    %c0_43 = arith.constant 0 : index
    %c20 = arith.constant 20 : index
    %31 = vector.load %arg10[%c0_43, %c20] : memref<256x72xbf16, #tpu.memory_space<vmem>>, vector<256x4xbf16>
    tpu.vector_store %arg10[%c0_43, %c20], %30 {strides = array<i32>} : memref<256x72xbf16, #tpu.memory_space<vmem>>, vector<256x4xbf16>,
    %c2_44 = arith.constant 2 : index
    %c0_45 = arith.constant 0 : index
    %c0_46 = arith.constant 0 : index
    %32 = vector.load %arg9[%c2_44, %c0_45, %c0_46] : memref<18x18x8xbf16, #tpu.memory_space<vmem>>, vector<16x16x4xbf16>
    %33 = vector.shape_cast %32 : vector<16x16x4xbf16> to vector<256x4xbf16>
    %c0_47 = arith.constant 0 : index
    %c24 = arith.constant 24 : index
    %34 = vector.load %arg10[%c0_47, %c24] : memref<256x72xbf16, #tpu.memory_space<vmem>>, vector<256x4xbf16>
    tpu.vector_store %arg10[%c0_47, %c24], %33 {strides = array<i32>} : memref<256x72xbf16, #tpu.memory_space<vmem>>, vector<256x4xbf16>,
    %c2_48 = arith.constant 2 : index
    %c1_49 = arith.constant 1 : index
    %c0_50 = arith.constant 0 : index
    %35 = vector.load %arg9[%c2_48, %c1_49, %c0_50] : memref<18x18x8xbf16, #tpu.memory_space<vmem>>, vector<16x16x4xbf16>
    %36 = vector.shape_cast %35 : vector<16x16x4xbf16> to vector<256x4xbf16>
    %c0_51 = arith.constant 0 : index
    %c28 = arith.constant 28 : index
    %37 = vector.load %arg10[%c0_51, %c28] : memref<256x72xbf16, #tpu.memory_space<vmem>>, vector<256x4xbf16>
    tpu.vector_store %arg10[%c0_51, %c28], %36 {strides = array<i32>} : memref<256x72xbf16, #tpu.memory_space<vmem>>, vector<256x4xbf16>,
    %c2_52 = arith.constant 2 : index
    %c2_53 = arith.constant 2 : index
    %c0_54 = arith.constant 0 : index
    %38 = vector.load %arg9[%c2_52, %c2_53, %c0_54] : memref<18x18x8xbf16, #tpu.memory_space<vmem>>, vector<16x16x4xbf16>
    %39 = vector.shape_cast %38 : vector<16x16x4xbf16> to vector<256x4xbf16>
    %c0_55 = arith.constant 0 : index
    %c32 = arith.constant 32 : index
    %40 = vector.load %arg10[%c0_55, %c32] : memref<256x72xbf16, #tpu.memory_space<vmem>>, vector<256x4xbf16>
    tpu.vector_store %arg10[%c0_55, %c32], %39 {strides = array<i32>} : memref<256x72xbf16, #tpu.memory_space<vmem>>, vector<256x4xbf16>,
    %c0_56 = arith.constant 0 : index
    %c0_57 = arith.constant 0 : index
    %41 = vector.load %arg10[%c0_56, %c0_57] : memref<256x72xbf16, #tpu.memory_space<vmem>>, vector<256x36xbf16>
    %c0_58 = arith.constant 0 : index
    %c0_59 = arith.constant 0 : index
    %42 = vector.load %arg2[%c0_58, %c0_59] : memref<36x8xbf16, #tpu.memory_space<vmem>>, vector<36x8xbf16>
    %cst_60 = arith.constant dense<0.000000e+00> : vector<256x8xf32>
    %43 = tpu.matmul %41, %42, %cst_60 {dimension_numbers = #tpu.dot_dimension_numbers<[1], [0], [0], [1], [0, 0, 1, 1], [], []>} : vector<256x36xbf16>, vector<36x8xbf16>, vector<256x8xf32> -> vector<256x8xf32>
    %c0_61 = arith.constant 0 : index
    %c0_62 = arith.constant 0 : index
    %44 = vector.load %arg3[%c0_61, %c0_62] : memref<1x8xf32, #tpu.memory_space<vmem>>, vector<1x8xf32>
    %45 = vector.broadcast %44 : vector<1x8xf32> to vector<256x8xf32>
    %46 = arith.addf %43, %45 : vector<256x8xf32>
    %cst_63 = arith.constant 0.000000e+00 : f32
    %47 = vector.broadcast %cst_63 : f32 to vector<256x8xf32>
    %48 = arith.maximumf %46, %47 : vector<256x8xf32>
    %49 = vector.shape_cast %48 : vector<256x8xf32> to vector<16x16x8xf32>
    %50 = arith.truncf %49 : vector<16x16x8xf32> to vector<16x16x8xbf16>
    %c1_64 = arith.constant 1 : index
    %c1_65 = arith.constant 1 : index
    %c0_66 = arith.constant 0 : index
    %51 = vector.load %arg9[%c1_64, %c1_65, %c0_66] : memref<18x18x8xbf16, #tpu.memory_space<vmem>>, vector<16x16x8xbf16>
    tpu.vector_store %arg9[%c1_64, %c1_65, %c0_66], %50 {strides = array<i32>} : memref<18x18x8xbf16, #tpu.memory_space<vmem>>, vector<16x16x8xbf16>,
    %c0_67 = arith.constant 0 : index
    %c0_68 = arith.constant 0 : index
    %c0_69 = arith.constant 0 : index
    %52 = vector.load %arg9[%c0_67, %c0_68, %c0_69] : memref<18x18x8xbf16, #tpu.memory_space<vmem>>, vector<16x16x8xbf16>
    %53 = vector.shape_cast %52 : vector<16x16x8xbf16> to vector<256x8xbf16>
    %c0_70 = arith.constant 0 : index
    %c0_71 = arith.constant 0 : index
    %54 = vector.load %arg10[%c0_70, %c0_71] : memref<256x72xbf16, #tpu.memory_space<vmem>>, vector<256x8xbf16>
    tpu.vector_store %arg10[%c0_70, %c0_71], %53 {strides = array<i32>} : memref<256x72xbf16, #tpu.memory_space<vmem>>, vector<256x8xbf16>,
    %c0_72 = arith.constant 0 : index
    %c1_73 = arith.constant 1 : index
    %c0_74 = arith.constant 0 : index
    %55 = vector.load %arg9[%c0_72, %c1_73, %c0_74] : memref<18x18x8xbf16, #tpu.memory_space<vmem>>, vector<16x16x8xbf16>
    %56 = vector.shape_cast %55 : vector<16x16x8xbf16> to vector<256x8xbf16>
    %c0_75 = arith.constant 0 : index
    %c8_76 = arith.constant 8 : index
    %57 = vector.load %arg10[%c0_75, %c8_76] : memref<256x72xbf16, #tpu.memory_space<vmem>>, vector<256x8xbf16>
    tpu.vector_store %arg10[%c0_75, %c8_76], %56 {strides = array<i32>} : memref<256x72xbf16, #tpu.memory_space<vmem>>, vector<256x8xbf16>,
    %c0_77 = arith.constant 0 : index
    %c2_78 = arith.constant 2 : index
    %c0_79 = arith.constant 0 : index
    %58 = vector.load %arg9[%c0_77, %c2_78, %c0_79] : memref<18x18x8xbf16, #tpu.memory_space<vmem>>, vector<16x16x8xbf16>
    %59 = vector.shape_cast %58 : vector<16x16x8xbf16> to vector<256x8xbf16>
    %c0_80 = arith.constant 0 : index
    %c16_81 = arith.constant 16 : index
    %60 = vector.load %arg10[%c0_80, %c16_81] : memref<256x72xbf16, #tpu.memory_space<vmem>>, vector<256x8xbf16>
    tpu.vector_store %arg10[%c0_80, %c16_81], %59 {strides = array<i32>} : memref<256x72xbf16, #tpu.memory_space<vmem>>, vector<256x8xbf16>,
    %c1_82 = arith.constant 1 : index
    %c0_83 = arith.constant 0 : index
    %c0_84 = arith.constant 0 : index
    %61 = vector.load %arg9[%c1_82, %c0_83, %c0_84] : memref<18x18x8xbf16, #tpu.memory_space<vmem>>, vector<16x16x8xbf16>
    %62 = vector.shape_cast %61 : vector<16x16x8xbf16> to vector<256x8xbf16>
    %c0_85 = arith.constant 0 : index
    %c24_86 = arith.constant 24 : index
    %63 = vector.load %arg10[%c0_85, %c24_86] : memref<256x72xbf16, #tpu.memory_space<vmem>>, vector<256x8xbf16>
    tpu.vector_store %arg10[%c0_85, %c24_86], %62 {strides = array<i32>} : memref<256x72xbf16, #tpu.memory_space<vmem>>, vector<256x8xbf16>,
    %c1_87 = arith.constant 1 : index
    %c1_88 = arith.constant 1 : index
    %c0_89 = arith.constant 0 : index
    %64 = vector.load %arg9[%c1_87, %c1_88, %c0_89] : memref<18x18x8xbf16, #tpu.memory_space<vmem>>, vector<16x16x8xbf16>
    %65 = vector.shape_cast %64 : vector<16x16x8xbf16> to vector<256x8xbf16>
    %c0_90 = arith.constant 0 : index
    %c32_91 = arith.constant 32 : index
    %66 = vector.load %arg10[%c0_90, %c32_91] : memref<256x72xbf16, #tpu.memory_space<vmem>>, vector<256x8xbf16>
    tpu.vector_store %arg10[%c0_90, %c32_91], %65 {strides = array<i32>} : memref<256x72xbf16, #tpu.memory_space<vmem>>, vector<256x8xbf16>,
    %c1_92 = arith.constant 1 : index
    %c2_93 = arith.constant 2 : index
    %c0_94 = arith.constant 0 : index
    %67 = vector.load %arg9[%c1_92, %c2_93, %c0_94] : memref<18x18x8xbf16, #tpu.memory_space<vmem>>, vector<16x16x8xbf16>
    %68 = vector.shape_cast %67 : vector<16x16x8xbf16> to vector<256x8xbf16>
    %c0_95 = arith.constant 0 : index
    %c40 = arith.constant 40 : index
    %69 = vector.load %arg10[%c0_95, %c40] : memref<256x72xbf16, #tpu.memory_space<vmem>>, vector<256x8xbf16>
    tpu.vector_store %arg10[%c0_95, %c40], %68 {strides = array<i32>} : memref<256x72xbf16, #tpu.memory_space<vmem>>, vector<256x8xbf16>,
    %c2_96 = arith.constant 2 : index
    %c0_97 = arith.constant 0 : index
    %c0_98 = arith.constant 0 : index
    %70 = vector.load %arg9[%c2_96, %c0_97, %c0_98] : memref<18x18x8xbf16, #tpu.memory_space<vmem>>, vector<16x16x8xbf16>
    %71 = vector.shape_cast %70 : vector<16x16x8xbf16> to vector<256x8xbf16>
    %c0_99 = arith.constant 0 : index
    %c48 = arith.constant 48 : index
    %72 = vector.load %arg10[%c0_99, %c48] : memref<256x72xbf16, #tpu.memory_space<vmem>>, vector<256x8xbf16>
    tpu.vector_store %arg10[%c0_99, %c48], %71 {strides = array<i32>} : memref<256x72xbf16, #tpu.memory_space<vmem>>, vector<256x8xbf16>,
    %c2_100 = arith.constant 2 : index
    %c1_101 = arith.constant 1 : index
    %c0_102 = arith.constant 0 : index
    %73 = vector.load %arg9[%c2_100, %c1_101, %c0_102] : memref<18x18x8xbf16, #tpu.memory_space<vmem>>, vector<16x16x8xbf16>
    %74 = vector.shape_cast %73 : vector<16x16x8xbf16> to vector<256x8xbf16>
    %c0_103 = arith.constant 0 : index
    %c56 = arith.constant 56 : index
    %75 = vector.load %arg10[%c0_103, %c56] : memref<256x72xbf16, #tpu.memory_space<vmem>>, vector<256x8xbf16>
    tpu.vector_store %arg10[%c0_103, %c56], %74 {strides = array<i32>} : memref<256x72xbf16, #tpu.memory_space<vmem>>, vector<256x8xbf16>,
    %c2_104 = arith.constant 2 : index
    %c2_105 = arith.constant 2 : index
    %c0_106 = arith.constant 0 : index
    %76 = vector.load %arg9[%c2_104, %c2_105, %c0_106] : memref<18x18x8xbf16, #tpu.memory_space<vmem>>, vector<16x16x8xbf16>
    %77 = vector.shape_cast %76 : vector<16x16x8xbf16> to vector<256x8xbf16>
    %c0_107 = arith.constant 0 : index
    %c64 = arith.constant 64 : index
    %78 = vector.load %arg10[%c0_107, %c64] : memref<256x72xbf16, #tpu.memory_space<vmem>>, vector<256x8xbf16>
    tpu.vector_store %arg10[%c0_107, %c64], %77 {strides = array<i32>} : memref<256x72xbf16, #tpu.memory_space<vmem>>, vector<256x8xbf16>,
    %c0_108 = arith.constant 0 : index
    %c0_109 = arith.constant 0 : index
    %79 = vector.load %arg10[%c0_108, %c0_109] : memref<256x72xbf16, #tpu.memory_space<vmem>>, vector<256x72xbf16>
    %c0_110 = arith.constant 0 : index
    %c0_111 = arith.constant 0 : index
    %80 = vector.load %arg4[%c0_110, %c0_111] : memref<72x8xbf16, #tpu.memory_space<vmem>>, vector<72x8xbf16>
    %cst_112 = arith.constant dense<0.000000e+00> : vector<256x8xf32>
    %81 = tpu.matmul %79, %80, %cst_112 {dimension_numbers = #tpu.dot_dimension_numbers<[1], [0], [0], [1], [0, 0, 1, 1], [], []>} : vector<256x72xbf16>, vector<72x8xbf16>, vector<256x8xf32> -> vector<256x8xf32>
    %c0_113 = arith.constant 0 : index
    %c0_114 = arith.constant 0 : index
    %82 = vector.load %arg5[%c0_113, %c0_114] : memref<1x8xf32, #tpu.memory_space<vmem>>, vector<1x8xf32>
    %83 = vector.broadcast %82 : vector<1x8xf32> to vector<256x8xf32>
    %84 = arith.addf %81, %83 : vector<256x8xf32>
    %85 = vector.shape_cast %84 : vector<256x8xf32> to vector<128x2x8xf32>
    %86 = vector.extract_strided_slice %85 {offsets = [0, 0, 0], sizes = [128, 1, 8], strides = [1, 1, 1]} : vector<128x2x8xf32> to vector<128x1x8xf32>
    %87 = vector.shape_cast %86 : vector<128x1x8xf32> to vector<128x8xf32>
    %88 = vector.extract_strided_slice %85 {offsets = [0, 1, 0], sizes = [128, 1, 8], strides = [1, 1, 1]} : vector<128x2x8xf32> to vector<128x1x8xf32>
    %89 = vector.shape_cast %88 : vector<128x1x8xf32> to vector<128x8xf32>
    %90 = arith.addf %87, %89 : vector<128x8xf32>
    %cst_115 = arith.constant 5.000000e-01 : f32
    %91 = vector.broadcast %cst_115 : f32 to vector<128x8xf32>
    %92 = arith.mulf %90, %91 : vector<128x8xf32>
    %93 = vector.shape_cast %92 : vector<128x8xf32> to vector<8x2x8x8xf32>
    %94 = vector.extract_strided_slice %93 {offsets = [0, 0, 0, 0], sizes = [8, 1, 8, 8], strides = [1, 1, 1, 1]} : vector<8x2x8x8xf32> to vector<8x1x8x8xf32>
    %95 = vector.shape_cast %94 : vector<8x1x8x8xf32> to vector<8x8x8xf32>
    %96 = vector.extract_strided_slice %93 {offsets = [0, 1, 0, 0], sizes = [8, 1, 8, 8], strides = [1, 1, 1, 1]} : vector<8x2x8x8xf32> to vector<8x1x8x8xf32>
    %97 = vector.shape_cast %96 : vector<8x1x8x8xf32> to vector<8x8x8xf32>
    %98 = arith.addf %95, %97 : vector<8x8x8xf32>
    %cst_116 = arith.constant 5.000000e-01 : f32
    %99 = vector.broadcast %cst_116 : f32 to vector<8x8x8xf32>
    %100 = arith.mulf %98, %99 : vector<8x8x8xf32>
    %101 = vector.shape_cast %100 : vector<8x8x8xf32> to vector<64x8xf32>
    %102 = vector.shape_cast %9 : vector<16x16x4xf32> to vector<256x4xf32>
    %103 = vector.shape_cast %102 : vector<256x4xf32> to vector<128x2x4xf32>
    %104 = vector.extract_strided_slice %103 {offsets = [0, 0, 0], sizes = [128, 1, 4], strides = [1, 1, 1]} : vector<128x2x4xf32> to vector<128x1x4xf32>
    %105 = vector.shape_cast %104 : vector<128x1x4xf32> to vector<128x4xf32>
    %106 = vector.extract_strided_slice %103 {offsets = [0, 1, 0], sizes = [128, 1, 4], strides = [1, 1, 1]} : vector<128x2x4xf32> to vector<128x1x4xf32>
    %107 = vector.shape_cast %106 : vector<128x1x4xf32> to vector<128x4xf32>
    %108 = arith.addf %105, %107 : vector<128x4xf32>
    %cst_117 = arith.constant 5.000000e-01 : f32
    %109 = vector.broadcast %cst_117 : f32 to vector<128x4xf32>
    %110 = arith.mulf %108, %109 : vector<128x4xf32>
    %111 = vector.shape_cast %110 : vector<128x4xf32> to vector<8x2x8x4xf32>
    %112 = vector.extract_strided_slice %111 {offsets = [0, 0, 0, 0], sizes = [8, 1, 8, 4], strides = [1, 1, 1, 1]} : vector<8x2x8x4xf32> to vector<8x1x8x4xf32>
    %113 = vector.shape_cast %112 : vector<8x1x8x4xf32> to vector<8x8x4xf32>
    %114 = vector.extract_strided_slice %111 {offsets = [0, 1, 0, 0], sizes = [8, 1, 8, 4], strides = [1, 1, 1, 1]} : vector<8x2x8x4xf32> to vector<8x1x8x4xf32>
    %115 = vector.shape_cast %114 : vector<8x1x8x4xf32> to vector<8x8x4xf32>
    %116 = arith.addf %113, %115 : vector<8x8x4xf32>
    %cst_118 = arith.constant 5.000000e-01 : f32
    %117 = vector.broadcast %cst_118 : f32 to vector<8x8x4xf32>
    %118 = arith.mulf %116, %117 : vector<8x8x4xf32>
    %119 = vector.shape_cast %118 : vector<8x8x4xf32> to vector<64x4xf32>
    %120 = arith.truncf %119 : vector<64x4xf32> to vector<64x4xbf16>
    %c0_119 = arith.constant 0 : index
    %c0_120 = arith.constant 0 : index
    %121 = vector.load %arg6[%c0_119, %c0_120] : memref<4x8xbf16, #tpu.memory_space<vmem>>, vector<4x8xbf16>
    %cst_121 = arith.constant dense<0.000000e+00> : vector<64x8xf32>
    %122 = tpu.matmul %120, %121, %cst_121 {dimension_numbers = #tpu.dot_dimension_numbers<[1], [0], [0], [1], [0, 0, 1, 1], [], []>} : vector<64x4xbf16>, vector<4x8xbf16>, vector<64x8xf32> -> vector<64x8xf32>
    %c0_122 = arith.constant 0 : index
    %c0_123 = arith.constant 0 : index
    %123 = vector.load %arg7[%c0_122, %c0_123] : memref<1x8xf32, #tpu.memory_space<vmem>>, vector<1x8xf32>
    %124 = vector.broadcast %123 : vector<1x8xf32> to vector<64x8xf32>
    %125 = arith.addf %122, %124 : vector<64x8xf32>
    %126 = arith.addf %101, %125 : vector<64x8xf32>
    %c0_124 = arith.constant 0 : index
    %c0_125 = arith.constant 0 : index
    %127 = vector.load %arg8[%c0_124, %c0_125] : memref<64x8xf32, #tpu.memory_space<vmem>>, vector<64x8xf32>
    tpu.vector_store %arg8[%c0_124, %c0_125], %126 {strides = array<i32>} : memref<64x8xf32, #tpu.memory_space<vmem>>, vector<64x8xf32>,
    return
  }
  func.func @transform_0(%arg0: i32) -> (i32, i32, i32, i32) {
    %c0_i32 = arith.constant 0 : i32
    %c0_i32_0 = arith.constant 0 : i32
    %c0_i32_1 = arith.constant 0 : i32
    %c0_i32_2 = arith.constant 0 : i32
    return %arg0, %c0_i32, %c0_i32_0, %c0_i32_1 : i32, i32, i32, i32
  }
  func.func @transform_1(%arg0: i32) -> (i32, i32) {
    %c0_i32 = arith.constant 0 : i32
    %c0_i32_0 = arith.constant 0 : i32
    %c0_i32_1 = arith.constant 0 : i32
    return %c0_i32, %c0_i32_0 : i32, i32
  }
  func.func @transform_2(%arg0: i32) -> (i32, i32) {
    %c0_i32 = arith.constant 0 : i32
    %c0_i32_0 = arith.constant 0 : i32
    %c0_i32_1 = arith.constant 0 : i32
    return %c0_i32, %c0_i32_0 : i32, i32
  }
  func.func @transform_3(%arg0: i32) -> (i32, i32) {
    %c0_i32 = arith.constant 0 : i32
    %c0_i32_0 = arith.constant 0 : i32
    %c0_i32_1 = arith.constant 0 : i32
    return %c0_i32, %c0_i32_0 : i32, i32
  }
  func.func @transform_4(%arg0: i32) -> (i32, i32) {
    %c0_i32 = arith.constant 0 : i32
    %c0_i32_0 = arith.constant 0 : i32
    %c0_i32_1 = arith.constant 0 : i32
    return %c0_i32, %c0_i32_0 : i32, i32
  }
  func.func @transform_5(%arg0: i32) -> (i32, i32) {
    %c0_i32 = arith.constant 0 : i32
    %c0_i32_0 = arith.constant 0 : i32
    %c0_i32_1 = arith.constant 0 : i32
    return %c0_i32, %c0_i32_0 : i32, i32
  }
  func.func @transform_6(%arg0: i32) -> (i32, i32) {
    %c0_i32 = arith.constant 0 : i32
    %c0_i32_0 = arith.constant 0 : i32
    %c0_i32_1 = arith.constant 0 : i32
    return %c0_i32, %c0_i32_0 : i32, i32
  }
  func.func @transform_7(%arg0: i32) -> (i32, i32) {
    %c0_i32 = arith.constant 0 : i32
    %c0_i32_0 = arith.constant 0 : i32
    return %arg0, %c0_i32 : i32, i32
  }
}

</mosaic_0001>

<llo_original>
// kernel: tpu_custom_call.1
$region0: #{tpu_custom_call.1}
  #allocation0 [shape = 'u32[]', space=smem, size = 0x4, offset = 0x4, fixed_abs, tag = 'smem constant byte address 0x4 - core index']
  #allocation1 [shape = 'u32[144,128]{1,0:T(1,128)}', space=vmem, size = 0x12000, scoped, tag = 'internal scratch']
  #allocation2 [shape = 'bf16[18,18,8]{2,1,0:T(8,128)(2,1)}', space=vmem, size = 0x1b000, scoped, tag = 'scratch operand']
  #allocation3 [shape = 'bf16[256,72]{1,0:T(8,128)(2,1)}', space=vmem, size = 0x10000, scoped, tag = 'scratch operand']
  %s0 = inlined_call_operand.vmem [shape: f32[2,16,16,4], index: 0, kind: input, shape index: {}]
  %s1 = inlined_call_operand.vmem [shape: bf16[36,8], index: 1, kind: input, shape index: {}]
  %s2 = inlined_call_operand.vmem [shape: f32[1,8], index: 2, kind: input, shape index: {}]
  %s3 = inlined_call_operand.vmem [shape: bf16[72,8], index: 3, kind: input, shape index: {}]
  %s4 = inlined_call_operand.vmem [shape: f32[1,8], index: 4, kind: input, shape index: {}]
  %s5 = inlined_call_operand.vmem [shape: bf16[4,8], index: 5, kind: input, shape index: {}]
  %s6 = inlined_call_operand.vmem [shape: f32[1,8], index: 6, kind: input, shape index: {}]
  %s7 = inlined_call_operand.vmem [shape: f32[128,8], index: 7, kind: output, shape index: {}]
  %s8 = sld [smem:[#allocation0]]
  $region61: #{tpu_custom_call.1} parent=0
    _
  %s10 = ssub.s32 1, %s8
  %s11 = scalar_select 0, %s10, %s8
  loop: start=0, step=1, limit=4
  $region2: #{tpu_custom_call.1} parent=0 // loop_pre_header
    _
  $region3: #{tpu_custom_call.1} parent=0 // loop_header
    %s13 = sphi 0, %s17
    %p14 = scmp.ge.s32.totalorder %s13, 4
    %s23 = sphi 0, %s25
    %s26 = sphi 0, %s23
    %s27 = sphi 0, %s26
    %s43 = sphi 0, %s27
    %s47 = sphi 0, %s47
    %s49 = sphi 0, %s47
    %s50 = sphi 0, %s49
    %s64 = sphi 0, %s50
    %s68 = sphi 0, %s68
    %s70 = sphi 0, %s68
    %s71 = sphi 0, %s70
    %s85 = sphi 0, %s71
    %s89 = sphi 0, %s89
    %s91 = sphi 0, %s89
    %s92 = sphi 0, %s91
    %s106 = sphi 0, %s92
    %s110 = sphi 0, %s110
    %s112 = sphi 0, %s110
    %s113 = sphi 0, %s112
    %s127 = sphi 0, %s113
    %s131 = sphi 0, %s131
    %s133 = sphi 0, %s131
    %s134 = sphi 0, %s133
    %s148 = sphi 0, %s134
    %s152 = sphi 0, %s152
    %s154 = sphi 0, %s152
    %s155 = sphi 0, %s154
    %s169 = sphi 0, %s155
    %s175 = sphi 0, %s177
    %s178 = sphi 0, %s175
    %s179 = sphi 0, %s178
    %s195 = sphi 0, %s179
  $region4: #{tpu_custom_call.1} parent=0 // loop_header_branch
    %16 = sbr.rel (%p14) target = $region8
  $region5: #{tpu_custom_call.1} parent=0 // loop_body
    %s18 = ssub.s32 %s13, 1
    %s19 = ssub.s32 %s13, 2
    %s20 = sadd.s32 %s13, 1
    %s21 = ssub.s32 %s13, %s20
    %p22 = scmp.eq.s32.totalorder %s21, 0
    %s24 = sadd.s32 %s23, 1
    %s25 = scalar_select %p22, %s23, %s24
    %p28 = pneg %p22
    %p29 = scmp.eq.s32.totalorder %s13, 1
    %p30 = por %p28, %p29
    %p31 = scmp.ne.s32.totalorder %s23, %s26
    %p32 = scmp.eq.s32.totalorder %s13, 0
    %p33 = por %p31, %p32
    %p34 = scmp.ne.s32.totalorder %s23, %s26
    %p35 = scmp.eq.s32.totalorder %s18, 1
    %p36 = por %p34, %p35
    %p37 = scmp.ne.s32.totalorder %s26, %s27
    %p38 = scmp.eq.s32.totalorder %s18, 0
    %p39 = por %p37, %p38
    %p40 = scmp.ne.s32.totalorder %s26, %s27
    %p41 = scmp.eq.s32.totalorder %s19, 1
    %p42 = por %p40, %p41
    %p44 = scmp.ne.s32.totalorder %s27, %s43
    %p45 = scmp.eq.s32.totalorder %s19, 0
    %p46 = por %p44, %p45
    %s48 = sadd.s32 %s47, 1
    %p51 = scmp.eq.s32.totalorder %s13, 1
    %p52 = scmp.ne.s32.totalorder %s47, %s49
    %p53 = scmp.eq.s32.totalorder %s13, 0
    %p54 = por %p52, %p53
    %p55 = scmp.ne.s32.totalorder %s47, %s49
    %p56 = scmp.eq.s32.totalorder %s18, 1
    %p57 = por %p55, %p56
    %p58 = scmp.ne.s32.totalorder %s49, %s50
    %p59 = scmp.eq.s32.totalorder %s18, 0
    %p60 = por %p58, %p59
    %p61 = scmp.ne.s32.totalorder %s49, %s50
    %p62 = scmp.eq.s32.totalorder %s19, 1
    %p63 = por %p61, %p62
    %p65 = scmp.ne.s32.totalorder %s50, %s64
    %p66 = scmp.eq.s32.totalorder %s19, 0
    %p67 = por %p65, %p66
    %s69 = sadd.s32 %s68, 1
    %p72 = scmp.eq.s32.totalorder %s13, 1
    %p73 = scmp.ne.s32.totalorder %s68, %s70
    %p74 = scmp.eq.s32.totalorder %s13, 0
    %p75 = por %p73, %p74
    %p76 = scmp.ne.s32.totalorder %s68, %s70
    %p77 = scmp.eq.s32.totalorder %s18, 1
    %p78 = por %p76, %p77
    %p79 = scmp.ne.s32.totalorder %s70, %s71
    %p80 = scmp.eq.s32.totalorder %s18, 0
    %p81 = por %p79, %p80
    %p82 = scmp.ne.s32.totalorder %s70, %s71
    %p83 = scmp.eq.s32.totalorder %s19, 1
    %p84 = por %p82, %p83
    %p86 = scmp.ne.s32.totalorder %s71, %s85
    %p87 = scmp.eq.s32.totalorder %s19, 0
    %p88 = por %p86, %p87
    %s90 = sadd.s32 %s89, 1
    %p93 = scmp.eq.s32.totalorder %s13, 1
    %p94 = scmp.ne.s32.totalorder %s89, %s91
    %p95 = scmp.eq.s32.totalorder %s13, 0
    %p96 = por %p94, %p95
    %p97 = scmp.ne.s32.totalorder %s89, %s91
    %p98 = scmp.eq.s32.totalorder %s18, 1
    %p99 = por %p97, %p98
    %p100 = scmp.ne.s32.totalorder %s91, %s92
    %p101 = scmp.eq.s32.totalorder %s18, 0
    %p102 = por %p100, %p101
    %p103 = scmp.ne.s32.totalorder %s91, %s92
    %p104 = scmp.eq.s32.totalorder %s19, 1
    %p105 = por %p103, %p104
    %p107 = scmp.ne.s32.totalorder %s92, %s106
    %p108 = scmp.eq.s32.totalorder %s19, 0
    %p109 = por %p107, %p108
    %s111 = sadd.s32 %s110, 1
    %p114 = scmp.eq.s32.totalorder %s13, 1
    %p115 = scmp.ne.s32.totalorder %s110, %s112
    %p116 = scmp.eq.s32.totalorder %s13, 0
    %p117 = por %p115, %p116
    %p118 = scmp.ne.s32.totalorder %s110, %s112
    %p119 = scmp.eq.s32.totalorder %s18, 1
    %p120 = por %p118, %p119
    %p121 = scmp.ne.s32.totalorder %s112, %s113
    %p122 = scmp.eq.s32.totalorder %s18, 0
    %p123 = por %p121, %p122
    %p124 = scmp.ne.s32.totalorder %s112, %s113
    %p125 = scmp.eq.s32.totalorder %s19, 1
    %p126 = por %p124, %p125
    %p128 = scmp.ne.s32.totalorder %s113, %s127
    %p129 = scmp.eq.s32.totalorder %s19, 0
    %p130 = por %p128, %p129
    %s132 = sadd.s32 %s131, 1
    %p135 = scmp.eq.s32.totalorder %s13, 1
    %p136 = scmp.ne.s32.totalorder %s131, %s133
    %p137 = scmp.eq.s32.totalorder %s13, 0
    %p138 = por %p136, %p137
    %p139 = scmp.ne.s32.totalorder %s131, %s133
    %p140 = scmp.eq.s32.totalorder %s18, 1
    %p141 = por %p139, %p140
    %p142 = scmp.ne.s32.totalorder %s133, %s134
    %p143 = scmp.eq.s32.totalorder %s18, 0
    %p144 = por %p142, %p143
    %p145 = scmp.ne.s32.totalorder %s133, %s134
    %p146 = scmp.eq.s32.totalorder %s19, 1
    %p147 = por %p145, %p146
    %p149 = scmp.ne.s32.totalorder %s134, %s148
    %p150 = scmp.eq.s32.totalorder %s19, 0
    %p151 = por %p149, %p150
    %s153 = sadd.s32 %s152, 1
    %p156 = scmp.eq.s32.totalorder %s13, 1
    %p157 = scmp.ne.s32.totalorder %s152, %s154
    %p158 = scmp.eq.s32.totalorder %s13, 0
    %p159 = por %p157, %p158
    %p160 = scmp.ne.s32.totalorder %s152, %s154
    %p161 = scmp.eq.s32.totalorder %s18, 1
    %p162 = por %p160, %p161
    %p163 = scmp.ne.s32.totalorder %s154, %s155
    %p164 = scmp.eq.s32.totalorder %s18, 0
    %p165 = por %p163, %p164
    %p166 = scmp.ne.s32.totalorder %s154, %s155
    %p167 = scmp.eq.s32.totalorder %s19, 1
    %p168 = por %p166, %p167
    %p170 = scmp.ne.s32.totalorder %s155, %s169
    %p171 = scmp.eq.s32.totalorder %s19, 0
    %p172 = por %p170, %p171
    %s173 = ssub.s32 %s13, %s20
    %p174 = scmp.eq.s32.totalorder %s173, 0
    %s176 = sadd.s32 %s175, 1
    %s177 = scalar_select %p174, %s175, %s176
    %p180 = pneg %p174
    %p181 = scmp.eq.s32.totalorder %s13, 1
    %p182 = por %p180, %p181
    %p183 = scmp.ne.s32.totalorder %s175, %s178
    %p184 = scmp.eq.s32.totalorder %s13, 0
    %p185 = por %p183, %p184
    %p186 = scmp.ne.s32.totalorder %s175, %s178
    %p187 = scmp.eq.s32.totalorder %s18, 1
    %p188 = por %p186, %p187
    %p189 = scmp.ne.s32.totalorder %s178, %s179
    %p190 = scmp.eq.s32.totalorder %s18, 0
    %p191 = por %p189, %p190
    %p192 = scmp.ne.s32.totalorder %s178, %s179
    %p193 = scmp.eq.s32.totalorder %s19, 1
    %p194 = por %p192, %p193
    %p196 = scmp.ne.s32.totalorder %s179, %s195
    %p197 = scmp.eq.s32.totalorder %s19, 0
    %p198 = por %p196, %p197
    %p199 = scmp.le.s32.totalorder 1, %s13
    %p200 = scmp.lt.s32.totalorder %s13, 3
    %p201 = pnand %p199, %p200
    %p202 = pneg %p201
    // Predicated region
    $region9: #{tpu_custom_call.1} parent=5 // pred_check
      _
    $region10: #{tpu_custom_call.1} parent=5 // pred_check_branch
      %204 = sbr.rel (%p201) target = $region12
    $region11: #{tpu_custom_call.1} parent=5 // pred_region
      %s205 = ssub.s32 %s13, 1
      // Predicated region
      $region13: #{tpu_custom_call.1} parent=11 // pred_check
        %p206 = pneg %p60
      $region14: #{tpu_custom_call.1} parent=11 // pred_check_branch
        %208 = sbr.rel (%p206) target = $region16
      $region15: #{tpu_custom_call.1} parent=11 // pred_region
        _
      $region16: #{tpu_custom_call.1} parent=11 // pred_fallthru
        _
      // Predicated region
      $region17: #{tpu_custom_call.1} parent=11 // pred_check
        %p209 = pneg %p81
      $region18: #{tpu_custom_call.1} parent=11 // pred_check_branch
        %211 = sbr.rel (%p209) target = $region20
      $region19: #{tpu_custom_call.1} parent=11 // pred_region
        _
      $region20: #{tpu_custom_call.1} parent=11 // pred_fallthru
        _
      // Predicated region
      $region21: #{tpu_custom_call.1} parent=11 // pred_check
        %p212 = pneg %p102
      $region22: #{tpu_custom_call.1} parent=11 // pred_check_branch
        %214 = sbr.rel (%p212) target = $region24
      $region23: #{tpu_custom_call.1} parent=11 // pred_region
        _
      $region24: #{tpu_custom_call.1} parent=11 // pred_fallthru
        _
      // Predicated region
      $region25: #{tpu_custom_call.1} parent=11 // pred_check
        %p215 = pneg %p123
      $region26: #{tpu_custom_call.1} parent=11 // pred_check_branch
        %217 = sbr.rel (%p215) target = $region28
      $region27: #{tpu_custom_call.1} parent=11 // pred_region
        _
      $region28: #{tpu_custom_call.1} parent=11 // pred_fallthru
        _
      // Predicated region
      $region29: #{tpu_custom_call.1} parent=11 // pred_check
        %p218 = pneg %p144
      $region30: #{tpu_custom_call.1} parent=11 // pred_check_branch
        %220 = sbr.rel (%p218) target = $region32
      $region31: #{tpu_custom_call.1} parent=11 // pred_region
        _
      $region32: #{tpu_custom_call.1} parent=11 // pred_fallthru
        _
      // Predicated region
      $region33: #{tpu_custom_call.1} parent=11 // pred_check
        %p221 = pneg %p165
      $region34: #{tpu_custom_call.1} parent=11 // pred_check_branch
        %223 = sbr.rel (%p221) target = $region36
      $region35: #{tpu_custom_call.1} parent=11 // pred_region
        _
      $region36: #{tpu_custom_call.1} parent=11 // pred_fallthru
        _
    $region12: #{tpu_custom_call.1} parent=5 // pred_fallthru
      _
    %p224 = scmp.lt.s32.totalorder %s13, 2
    // Predicated region
    $region37: #{tpu_custom_call.1} parent=5 // pred_check
      %p225 = pneg %p224
    $region38: #{tpu_custom_call.1} parent=5 // pred_check_branch
      %227 = sbr.rel (%p225) target = $region40
    $region39: #{tpu_custom_call.1} parent=5 // pred_region
      // Predicated region
      $region41: #{tpu_custom_call.1} parent=39 // pred_check
        %p228 = pneg %p33
      $region42: #{tpu_custom_call.1} parent=39 // pred_check_branch
        %230 = sbr.rel (%p228) target = $region44
      $region43: #{tpu_custom_call.1} parent=39 // pred_region
        %p231 = scmp.lt.s32.totalorder %s13, 1
        %s232 = scalar_select %p231, %s13, 1
        %s233 = smul.addr %s232, 32
        %s234 = smul.addr %s233, 8
        %s235 = scalar_lea.vmem %s0, %s234
      $region44: #{tpu_custom_call.1} parent=39 // pred_fallthru
        _
    $region40: #{tpu_custom_call.1} parent=5 // pred_fallthru
      _
    %p236 = scmp.le.s32.totalorder 1, %s13
    %p237 = scmp.lt.s32.totalorder %s13, 3
    %p238 = pnand %p236, %p237
    %p239 = pneg %p238
    // Predicated region
    $region45: #{tpu_custom_call.1} parent=5 // pred_check
      _
    $region46: #{tpu_custom_call.1} parent=5 // pred_check_branch
      %241 = sbr.rel (%p238) target = $region48
    $region47: #{tpu_custom_call.1} parent=5 // pred_region
      %s242 = ssub.s32 %s13, 1
      %p243 = scmp.lt.s32.totalorder %s18, 1
      %s244 = scalar_select %p243, %s18, 1
      %s245 = smul.addr %s244, 32
      %s246 = smul.addr %s245, 8
      %s247 = scalar_lea.vmem %s0, %s246
      %p248 = pneg %p39
      %p249 = pneg %p36
      %p250 = pneg %p60
      %p251 = pneg %p57
      %p252 = pneg %p81
      %p253 = pneg %p78
      %p254 = pneg %p102
      %p255 = pneg %p99
      %p256 = pneg %p123
      %p257 = pneg %p120
      %p258 = pneg %p144
      %p259 = pneg %p141
      %p260 = pneg %p165
      %p261 = pneg %p162
      %p262 = pneg %p191
      %p263 = pneg %p188
      %s264 = smul.u32 8, %s18
      %p265 = scmp.lt.s32.totalorder %s264, 15
      %s266 = scalar_select %p265, %s264, 15
      %s267 = smul.addr %s266, 8
      %s268 = scalar_lea.vmem %s7, %s267
      %p269 = scmp.lt.s32.totalorder %s18, 1
      %s270 = scalar_select %p269, %s18, 1
      %s271 = smul.addr %s270, 32
      %s272 = smul.addr %s271, 8
      %s273 = scalar_lea.vmem %s0, %s272
      %s274 = smul.u32 8, %s18
      %p275 = scmp.lt.s32.totalorder %s274, 15
      %s276 = scalar_select %p275, %s274, 15
      %s277 = smul.addr %s276, 8
      %s278 = scalar_lea.vmem %s7, %s277
      %s279 = smul.u32 8, %s18
      %vm281 = vcmask 60416
      %282 = vst.msk [vmem:[#allocation2] sm:$0xf] %vm281, 0
      %283 = vst.msk [vmem:[#allocation2 + $0x4] sm:$0xf] %vm281, 0
      %vm284 = vcmask 57344
      %285 = vst.msk [vmem:[#allocation2 + $0x8] sm:$0x1] %vm284, 0
      %s286 = scalar_lea.vmem [#allocation2], 204
      %287 = vst.msk [vmem:[%s286] sm:$0xf] %vm281, 0
      %288 = vst.msk [vmem:[%s286 + $0x4] sm:$0xf] %vm281, 0
      %289 = vst.msk [vmem:[%s286 + $0x8] sm:$0x1] %vm284, 0
      %vm290 = vcmask 57344
      %vm291 = vsmask.f32 256
      %vm292 = vmand %vm290, %vm291
      %v293 = vld [vmem:[#allocation2] sm:$0x1]
      %v294 = vsel %vm292, 0, %v293
      %295 = vst [vmem:[#allocation2] sm:$0x1] %v294
      %v296 = vld [vmem:[#allocation2 + $0xc] sm:$0x1]
      %v297 = vsel %vm292, 0, %v296
      %298 = vst [vmem:[#allocation2 + $0xc] sm:$0x1] %v297
      %v299 = vld [vmem:[#allocation2 + $0x18] sm:$0x1]
      %v300 = vsel %vm292, 0, %v299
      %301 = vst [vmem:[#allocation2 + $0x18] sm:$0x1] %v300
      %v302 = vld [vmem:[#allocation2 + $0x24] sm:$0x1]
      %v303 = vsel %vm292, 0, %v302
      %304 = vst [vmem:[#allocation2 + $0x24] sm:$0x1] %v303
      %v305 = vld [vmem:[#allocation2 + $0x30] sm:$0x1]
      %v306 = vsel %vm292, 0, %v305
      %307 = vst [vmem:[#allocation2 + $0x30] sm:$0x1] %v306
      %v308 = vld [vmem:[#allocation2 + $0x3c] sm:$0x1]
      %v309 = vsel %vm292, 0, %v308
      %310 = vst [vmem:[#allocation2 + $0x3c] sm:$0x1] %v309
      %v311 = vld [vmem:[#allocation2 + $0x48] sm:$0x1]
      %v312 = vsel %vm292, 0, %v311
      %313 = vst [vmem:[#allocation2 + $0x48] sm:$0x1] %v312
      %v314 = vld [vmem:[#allocation2 + $0x54] sm:$0x1]
      %v315 = vsel %vm292, 0, %v314
      %316 = vst [vmem:[#allocation2 + $0x54] sm:$0x1] %v315
      %v317 = vld [vmem:[#allocation2 + $0x60] sm:$0x1]
      %v318 = vsel %vm292, 0, %v317
      %319 = vst [vmem:[#allocation2 + $0x60] sm:$0x1] %v318
      %v320 = vld [vmem:[#allocation2 + $0x6c] sm:$0x1]
      %v321 = vsel %vm292, 0, %v320
      %322 = vst [vmem:[#allocation2 + $0x6c] sm:$0x1] %v321
      %v323 = vld [vmem:[#allocation2 + $0x78] sm:$0x1]
      %v324 = vsel %vm292, 0, %v323
      %325 = vst [vmem:[#allocation2 + $0x78] sm:$0x1] %v324
      %v326 = vld [vmem:[#allocation2 + $0x84] sm:$0x1]
      %v327 = vsel %vm292, 0, %v326
      %328 = vst [vmem:[#allocation2 + $0x84] sm:$0x1] %v327
      %v329 = vld [vmem:[#allocation2 + $0x90] sm:$0x1]
      %v330 = vsel %vm292, 0, %v329
      %331 = vst [vmem:[#allocation2 + $0x90] sm:$0x1] %v330
      %v332 = vld [vmem:[#allocation2 + $0x9c] sm:$0x1]
      %v333 = vsel %vm292, 0, %v332
      %334 = vst [vmem:[#allocation2 + $0x9c] sm:$0x1] %v333
      %v335 = vld [vmem:[#allocation2 + $0xa8] sm:$0x1]
      %v336 = vsel %vm292, 0, %v335
      %337 = vst [vmem:[#allocation2 + $0xa8] sm:$0x1] %v336
      %v338 = vld [vmem:[#allocation2 + $0xb4] sm:$0x1]
      %v339 = vsel %vm292, 0, %v338
      %340 = vst [vmem:[#allocation2 + $0xb4] sm:$0x1] %v339
      %v341 = vld [vmem:[#allocation2 + $0xc0] sm:$0x1]
      %v342 = vsel %vm292, 0, %v341
      %343 = vst [vmem:[#allocation2 + $0xc0] sm:$0x1] %v342
      %v344 = vld [vmem:[#allocation2 + $0xcc] sm:$0x1]
      %v345 = vsel %vm292, 0, %v344
      %346 = vst [vmem:[#allocation2 + $0xcc] sm:$0x1] %v345
      %vm347 = vsmask.f32 7938
      %vm348 = vmand %vm290, %vm347
      %v349 = vld [vmem:[#allocation2 + $0x8] sm:$0x1]
      %v350 = vsel %vm348, 0, %v349
      %351 = vst [vmem:[#allocation2 + $0x8] sm:$0x1] %v350
      %v352 = vld [vmem:[#allocation2 + $0x14] sm:$0x1]
      %v353 = vsel %vm348, 0, %v352
      %354 = vst [vmem:[#allocation2 + $0x14] sm:$0x1] %v353
      %v355 = vld [vmem:[#allocation2 + $0x20] sm:$0x1]
      %v356 = vsel %vm348, 0, %v355
      %357 = vst [vmem:[#allocation2 + $0x20] sm:$0x1] %v356
      %v358 = vld [vmem:[#allocation2 + $0x2c] sm:$0x1]
      %v359 = vsel %vm348, 0, %v358
      %360 = vst [vmem:[#allocation2 + $0x2c] sm:$0x1] %v359
      %v361 = vld [vmem:[#allocation2 + $0x38] sm:$0x1]
      %v362 = vsel %vm348, 0, %v361
      %363 = vst [vmem:[#allocation2 + $0x38] sm:$0x1] %v362
      %v364 = vld [vmem:[#allocation2 + $0x44] sm:$0x1]
      %v365 = vsel %vm348, 0, %v364
      %366 = vst [vmem:[#allocation2 + $0x44] sm:$0x1] %v365
      %v367 = vld [vmem:[#allocation2 + $0x50] sm:$0x1]
      %v368 = vsel %vm348, 0, %v367
      %369 = vst [vmem:[#allocation2 + $0x50] sm:$0x1] %v368
      %v370 = vld [vmem:[#allocation2 + $0x5c] sm:$0x1]
      %v371 = vsel %vm348, 0, %v370
      %372 = vst [vmem:[#allocation2 + $0x5c] sm:$0x1] %v371
      %v373 = vld [vmem:[#allocation2 + $0x68] sm:$0x1]
      %v374 = vsel %vm348, 0, %v373
      %375 = vst [vmem:[#allocation2 + $0x68] sm:$0x1] %v374
      %v376 = vld [vmem:[#allocation2 + $0x74] sm:$0x1]
      %v377 = vsel %vm348, 0, %v376
      %378 = vst [vmem:[#allocation2 + $0x74] sm:$0x1] %v377
      %v379 = vld [vmem:[#allocation2 + $0x80] sm:$0x1]
      %v380 = vsel %vm348, 0, %v379
      %381 = vst [vmem:[#allocation2 + $0x80] sm:$0x1] %v380
      %v382 = vld [vmem:[#allocation2 + $0x8c] sm:$0x1]
      %v383 = vsel %vm348, 0, %v382
      %384 = vst [vmem:[#allocation2 + $0x8c] sm:$0x1] %v383
      %v385 = vld [vmem:[#allocation2 + $0x98] sm:$0x1]
      %v386 = vsel %vm348, 0, %v385
      %387 = vst [vmem:[#allocation2 + $0x98] sm:$0x1] %v386
      %v388 = vld [vmem:[#allocation2 + $0xa4] sm:$0x1]
      %v389 = vsel %vm348, 0, %v388
      %390 = vst [vmem:[#allocation2 + $0xa4] sm:$0x1] %v389
      %v391 = vld [vmem:[#allocation2 + $0xb0] sm:$0x1]
      %v392 = vsel %vm348, 0, %v391
      %393 = vst [vmem:[#allocation2 + $0xb0] sm:$0x1] %v392
      %v394 = vld [vmem:[#allocation2 + $0xbc] sm:$0x1]
      %v395 = vsel %vm348, 0, %v394
      %396 = vst [vmem:[#allocation2 + $0xbc] sm:$0x1] %v395
      %v397 = vld [vmem:[#allocation2 + $0xc8] sm:$0x1]
      %v398 = vsel %vm348, 0, %v397
      %399 = vst [vmem:[#allocation2 + $0xc8] sm:$0x1] %v398
      %v400 = vld [vmem:[#allocation2 + $0xd4] sm:$0x1]
      %v401 = vsel %vm348, 0, %v400
      %402 = vst [vmem:[#allocation2 + $0xd4] sm:$0x1] %v401
      %v403 = vld [vmem:[%s273] sm:$0xff]
      %v404 = vld [vmem:[%s273 + $0x8] sm:$0xff]
      %v405 = vld [vmem:[%s273 + $0x10] sm:$0xff]
      %v406 = vld [vmem:[%s273 + $0x18] sm:$0xff]
      %v407 = vld [vmem:[%s273 + $0x20] sm:$0xff]
      %v408 = vld [vmem:[%s273 + $0x28] sm:$0xff]
      %v409 = vld [vmem:[%s273 + $0x30] sm:$0xff]
      %v410 = vld [vmem:[%s273 + $0x38] sm:$0xff]
      %v411 = vld [vmem:[%s273 + $0x40] sm:$0xff]
      %v412 = vld [vmem:[%s273 + $0x48] sm:$0xff]
      %v413 = vld [vmem:[%s273 + $0x50] sm:$0xff]
      %v414 = vld [vmem:[%s273 + $0x58] sm:$0xff]
      %v415 = vld [vmem:[%s273 + $0x60] sm:$0xff]
      %v416 = vld [vmem:[%s273 + $0x68] sm:$0xff]
      %v417 = vld [vmem:[%s273 + $0x70] sm:$0xff]
      %v418 = vld [vmem:[%s273 + $0x78] sm:$0xff]
      %v419 = vld [vmem:[%s273 + $0x80] sm:$0xff]
      %v420 = vld [vmem:[%s273 + $0x88] sm:$0xff]
      %v421 = vld [vmem:[%s273 + $0x90] sm:$0xff]
      %v422 = vld [vmem:[%s273 + $0x98] sm:$0xff]
      %v423 = vld [vmem:[%s273 + $0xa0] sm:$0xff]
      %v424 = vld [vmem:[%s273 + $0xa8] sm:$0xff]
      %v425 = vld [vmem:[%s273 + $0xb0] sm:$0xff]
      %v426 = vld [vmem:[%s273 + $0xb8] sm:$0xff]
      %v427 = vld [vmem:[%s273 + $0xc0] sm:$0xff]
      %v428 = vld [vmem:[%s273 + $0xc8] sm:$0xff]
      %v429 = vld [vmem:[%s273 + $0xd0] sm:$0xff]
      %v430 = vld [vmem:[%s273 + $0xd8] sm:$0xff]
      %v431 = vld [vmem:[%s273 + $0xe0] sm:$0xff]
      %v432 = vld [vmem:[%s273 + $0xe8] sm:$0xff]
      %v433 = vld [vmem:[%s273 + $0xf0] sm:$0xff]
      %v434 = vld [vmem:[%s273 + $0xf8] sm:$0xff]
      %v435 = vmax.f32 %v403, 0.0
      %v436 = vmax.f32 %v404, 0.0
      %v437 = vmax.f32 %v405, 0.0
      %v438 = vmax.f32 %v406, 0.0
      %v439 = vmax.f32 %v407, 0.0
      %v440 = vmax.f32 %v408, 0.0
      %v441 = vmax.f32 %v409, 0.0
      %v442 = vmax.f32 %v410, 0.0
      %v443 = vmax.f32 %v411, 0.0
      %v444 = vmax.f32 %v412, 0.0
      %v445 = vmax.f32 %v413, 0.0
      %v446 = vmax.f32 %v414, 0.0
      %v447 = vmax.f32 %v415, 0.0
      %v448 = vmax.f32 %v416, 0.0
      %v449 = vmax.f32 %v417, 0.0
      %v450 = vmax.f32 %v418, 0.0
      %v451 = vmax.f32 %v419, 0.0
      %v452 = vmax.f32 %v420, 0.0
      %v453 = vmax.f32 %v421, 0.0
      %v454 = vmax.f32 %v422, 0.0
      %v455 = vmax.f32 %v423, 0.0
      %v456 = vmax.f32 %v424, 0.0
      %v457 = vmax.f32 %v425, 0.0
      %v458 = vmax.f32 %v426, 0.0
      %v459 = vmax.f32 %v427, 0.0
      %v460 = vmax.f32 %v428, 0.0
      %v461 = vmax.f32 %v429, 0.0
      %v462 = vmax.f32 %v430, 0.0
      %v463 = vmax.f32 %v431, 0.0
      %v464 = vmax.f32 %v432, 0.0
      %v465 = vmax.f32 %v433, 0.0
      %v466 = vmax.f32 %v434, 0.0
      %v467 = vpack.c.bf16 %v436, %v435
      %v468 = vpack.c.bf16 %v438, %v437
      %v469 = vpack.c.bf16 %v440, %v439
      %v470 = vpack.c.bf16 %v442, %v441
      %v471 = vpack.c.bf16 %v444, %v443
      %v472 = vpack.c.bf16 %v446, %v445
      %v473 = vpack.c.bf16 %v448, %v447
      %v474 = vpack.c.bf16 %v450, %v449
      %v475 = vpack.c.bf16 %v452, %v451
      %v476 = vpack.c.bf16 %v454, %v453
      %v477 = vpack.c.bf16 %v456, %v455
      %v478 = vpack.c.bf16 %v458, %v457
      %v479 = vpack.c.bf16 %v460, %v459
      %v480 = vpack.c.bf16 %v462, %v461
      %v481 = vpack.c.bf16 %v464, %v463
      %v482 = vpack.c.bf16 %v466, %v465
      %v499 = vunpack.c.l.b16 %v467
      %v500 = vunpack.c.h.b16 %v467
      %v501 = vunpack.c.l.b16 %v468
      %v502 = vunpack.c.h.b16 %v468
      %v503 = vunpack.c.l.b16 %v469
      %v504 = vunpack.c.h.b16 %v469
      %v505 = vunpack.c.l.b16 %v470
      %v506 = vunpack.c.h.b16 %v470
      %v507 = vunpack.c.l.b16 %v471
      %v508 = vunpack.c.h.b16 %v471
      %v509 = vunpack.c.l.b16 %v472
      %v510 = vunpack.c.h.b16 %v472
      %v511 = vunpack.c.l.b16 %v473
      %v512 = vunpack.c.h.b16 %v473
      %v513 = vunpack.c.l.b16 %v474
      %v514 = vunpack.c.h.b16 %v474
      %v515 = vunpack.c.l.b16 %v475
      %v516 = vunpack.c.h.b16 %v475
      %v517 = vunpack.c.l.b16 %v476
      %v518 = vunpack.c.h.b16 %v476
      %v519 = vunpack.c.l.b16 %v477
      %v520 = vunpack.c.h.b16 %v477
      %v521 = vunpack.c.l.b16 %v478
      %v522 = vunpack.c.h.b16 %v478
      %v523 = vunpack.c.l.b16 %v479
      %v524 = vunpack.c.h.b16 %v479
      %v525 = vunpack.c.l.b16 %v480
      %v526 = vunpack.c.h.b16 %v480
      %v527 = vunpack.c.l.b16 %v481
      %v528 = vunpack.c.h.b16 %v481
      %v529 = vunpack.c.l.b16 %v482
      %v530 = vunpack.c.h.b16 %v482
      %v531 = vpack.c.b16 %v499, %v499
      %v532 = vpack.c.b16 %v500, %v500
      %v533 = vpack.c.b16 %v501, %v501
      %v534 = vpack.c.b16 %v502, %v502
      %v535 = vpack.c.b16 %v503, %v503
      %v536 = vpack.c.b16 %v504, %v504
      %v537 = vpack.c.b16 %v505, %v505
      %v538 = vpack.c.b16 %v506, %v506
      %v539 = vpack.c.b16 %v507, %v507
      %v540 = vpack.c.b16 %v508, %v508
      %v541 = vpack.c.b16 %v509, %v509
      %v542 = vpack.c.b16 %v510, %v510
      %v543 = vpack.c.b16 %v511, %v511
      %v544 = vpack.c.b16 %v512, %v512
      %v545 = vpack.c.b16 %v513, %v513
      %v546 = vpack.c.b16 %v514, %v514
      %v547 = vpack.c.b16 %v515, %v515
      %v548 = vpack.c.b16 %v516, %v516
      %v549 = vpack.c.b16 %v517, %v517
      %v550 = vpack.c.b16 %v518, %v518
      %v551 = vpack.c.b16 %v519, %v519
      %v552 = vpack.c.b16 %v520, %v520
      %v553 = vpack.c.b16 %v521, %v521
      %v554 = vpack.c.b16 %v522, %v522
      %v555 = vpack.c.b16 %v523, %v523
      %v556 = vpack.c.b16 %v524, %v524
      %v557 = vpack.c.b16 %v525, %v525
      %v558 = vpack.c.b16 %v526, %v526
      %v559 = vpack.c.b16 %v527, %v527
      %v560 = vpack.c.b16 %v528, %v528
      %v561 = vpack.c.b16 %v529, %v529
      %v562 = vpack.c.b16 %v530, %v530
      %vm563 = vsmask.f32 4368
      %vm564 = vmor %vm291, %vm563
      %v566 = vshrl.u32 %v531, 16
      %v568 = vrot.slane %v566, 7
      %v569 = vshll.u32 %v531, 16
      %v571 = vor.u32 %v568, %v569
      %v572 = vrot.slane %v568, 4
      %v574 = vshrl.u32 %v532, 16
      %v576 = vrot.slane %v574, 7
      %v577 = vshll.u32 %v532, 16
      %v579 = vor.u32 %v576, %v577
      %v580 = vsel %vm564, %v572, %v579
      %v581 = vrot.slane %v576, 4
      %v583 = vshrl.u32 %v533, 16
      %v585 = vrot.slane %v583, 7
      %v586 = vshll.u32 %v533, 16
      %v588 = vor.u32 %v585, %v586
      %v589 = vrot.slane %v585, 4
      %v591 = vshrl.u32 %v534, 16
      %v593 = vrot.slane %v591, 7
      %v594 = vshll.u32 %v534, 16
      %v596 = vor.u32 %v593, %v594
      %v597 = vsel %vm564, %v589, %v596
      %v598 = vrot.slane %v593, 4
      %v600 = vshrl.u32 %v535, 16
      %v602 = vrot.slane %v600, 7
      %v603 = vshll.u32 %v535, 16
      %v605 = vor.u32 %v602, %v603
      %v606 = vrot.slane %v602, 4
      %v608 = vshrl.u32 %v536, 16
      %v610 = vrot.slane %v608, 7
      %v611 = vshll.u32 %v536, 16
      %v613 = vor.u32 %v610, %v611
      %v614 = vsel %vm564, %v606, %v613
      %v615 = vrot.slane %v610, 4
      %v617 = vshrl.u32 %v537, 16
      %v619 = vrot.slane %v617, 7
      %v620 = vshll.u32 %v537, 16
      %v622 = vor.u32 %v619, %v620
      %v623 = vrot.slane %v619, 4
      %v625 = vshrl.u32 %v538, 16
      %v627 = vrot.slane %v625, 7
      %v628 = vshll.u32 %v538, 16
      %v630 = vor.u32 %v627, %v628
      %v631 = vsel %vm564, %v623, %v630
      %v632 = vrot.slane %v627, 4
      %v634 = vshrl.u32 %v539, 16
      %v636 = vrot.slane %v634, 7
      %v637 = vshll.u32 %v539, 16
      %v639 = vor.u32 %v636, %v637
      %v640 = vrot.slane %v636, 4
      %v642 = vshrl.u32 %v540, 16
      %v644 = vrot.slane %v642, 7
      %v645 = vshll.u32 %v540, 16
      %v647 = vor.u32 %v644, %v645
      %v648 = vsel %vm564, %v640, %v647
      %v649 = vrot.slane %v644, 4
      %v651 = vshrl.u32 %v541, 16
      %v653 = vrot.slane %v651, 7
      %v654 = vshll.u32 %v541, 16
      %v656 = vor.u32 %v653, %v654
      %v657 = vrot.slane %v653, 4
      %v659 = vshrl.u32 %v542, 16
      %v661 = vrot.slane %v659, 7
      %v662 = vshll.u32 %v542, 16
      %v664 = vor.u32 %v661, %v662
      %v665 = vsel %vm564, %v657, %v664
      %v666 = vrot.slane %v661, 4
      %v668 = vshrl.u32 %v543, 16
      %v670 = vrot.slane %v668, 7
      %v671 = vshll.u32 %v543, 16
      %v673 = vor.u32 %v670, %v671
      %v674 = vrot.slane %v670, 4
      %v676 = vshrl.u32 %v544, 16
      %v678 = vrot.slane %v676, 7
      %v679 = vshll.u32 %v544, 16
      %v681 = vor.u32 %v678, %v679
      %v682 = vsel %vm564, %v674, %v681
      %v683 = vrot.slane %v678, 4
      %v685 = vshrl.u32 %v545, 16
      %v687 = vrot.slane %v685, 7
      %v688 = vshll.u32 %v545, 16
      %v690 = vor.u32 %v687, %v688
      %v691 = vrot.slane %v687, 4
      %v693 = vshrl.u32 %v546, 16
      %v695 = vrot.slane %v693, 7
      %v696 = vshll.u32 %v546, 16
      %v698 = vor.u32 %v695, %v696
      %v699 = vsel %vm564, %v691, %v698
      %v700 = vrot.slane %v695, 4
      %v702 = vshrl.u32 %v547, 16
      %v704 = vrot.slane %v702, 7
      %v705 = vshll.u32 %v547, 16
      %v707 = vor.u32 %v704, %v705
      %v708 = vrot.slane %v704, 4
      %v710 = vshrl.u32 %v548, 16
      %v712 = vrot.slane %v710, 7
      %v713 = vshll.u32 %v548, 16
      %v715 = vor.u32 %v712, %v713
      %v716 = vsel %vm564, %v708, %v715
      %v717 = vrot.slane %v712, 4
      %v719 = vshrl.u32 %v549, 16
      %v721 = vrot.slane %v719, 7
      %v722 = vshll.u32 %v549, 16
      %v724 = vor.u32 %v721, %v722
      %v725 = vrot.slane %v721, 4
      %v727 = vshrl.u32 %v550, 16
      %v729 = vrot.slane %v727, 7
      %v730 = vshll.u32 %v550, 16
      %v732 = vor.u32 %v729, %v730
      %v733 = vsel %vm564, %v725, %v732
      %v734 = vrot.slane %v729, 4
      %v736 = vshrl.u32 %v551, 16
      %v738 = vrot.slane %v736, 7
      %v739 = vshll.u32 %v551, 16
      %v741 = vor.u32 %v738, %v739
      %v742 = vrot.slane %v738, 4
      %v744 = vshrl.u32 %v552, 16
      %v746 = vrot.slane %v744, 7
      %v747 = vshll.u32 %v552, 16
      %v749 = vor.u32 %v746, %v747
      %v750 = vsel %vm564, %v742, %v749
      %v751 = vrot.slane %v746, 4
      %v753 = vshrl.u32 %v553, 16
      %v755 = vrot.slane %v753, 7
      %v756 = vshll.u32 %v553, 16
      %v758 = vor.u32 %v755, %v756
      %v759 = vrot.slane %v755, 4
      %v761 = vshrl.u32 %v554, 16
      %v763 = vrot.slane %v761, 7
      %v764 = vshll.u32 %v554, 16
      %v766 = vor.u32 %v763, %v764
      %v767 = vsel %vm564, %v759, %v766
      %v768 = vrot.slane %v763, 4
      %v770 = vshrl.u32 %v555, 16
      %v772 = vrot.slane %v770, 7
      %v773 = vshll.u32 %v555, 16
      %v775 = vor.u32 %v772, %v773
      %v776 = vrot.slane %v772, 4
      %v778 = vshrl.u32 %v556, 16
      %v780 = vrot.slane %v778, 7
      %v781 = vshll.u32 %v556, 16
      %v783 = vor.u32 %v780, %v781
      %v784 = vsel %vm564, %v776, %v783
      %v785 = vrot.slane %v780, 4
      %v787 = vshrl.u32 %v557, 16
      %v789 = vrot.slane %v787, 7
      %v790 = vshll.u32 %v557, 16
      %v792 = vor.u32 %v789, %v790
      %v793 = vrot.slane %v789, 4
      %v795 = vshrl.u32 %v558, 16
      %v797 = vrot.slane %v795, 7
      %v798 = vshll.u32 %v558, 16
      %v800 = vor.u32 %v797, %v798
      %v801 = vsel %vm564, %v793, %v800
      %v802 = vrot.slane %v797, 4
      %v804 = vshrl.u32 %v559, 16
      %v806 = vrot.slane %v804, 7
      %v807 = vshll.u32 %v559, 16
      %v809 = vor.u32 %v806, %v807
      %v810 = vrot.slane %v806, 4
      %v812 = vshrl.u32 %v560, 16
      %v814 = vrot.slane %v812, 7
      %v815 = vshll.u32 %v560, 16
      %v817 = vor.u32 %v814, %v815
      %v818 = vsel %vm564, %v810, %v817
      %v819 = vrot.slane %v814, 4
      %v821 = vshrl.u32 %v561, 16
      %v823 = vrot.slane %v821, 7
      %v824 = vshll.u32 %v561, 16
      %v826 = vor.u32 %v823, %v824
      %v827 = vrot.slane %v823, 4
      %v829 = vshrl.u32 %v562, 16
      %v831 = vrot.slane %v829, 7
      %v832 = vshll.u32 %v562, 16
      %v834 = vor.u32 %v831, %v832
      %v835 = vsel %vm564, %v827, %v834
      %v836 = vrot.slane %v831, 4
      %s885 = scalar_lea.vmem [#allocation2], 12
      %vm886 = vcmask 27648
      %vm887 = vmand %vm886, %vm347
      %v888 = vld [vmem:[%s885] sm:$0xf]
      %v889 = vsel %vm887, %v571, %v888
      %890 = vst [vmem:[%s885] sm:$0xf] %v889
      %vm891 = vcmask 27648
      %892 = vst.msk [vmem:[%s885 + $0x4] sm:$0xf] %vm891, %v580
      %vm893 = vcmask 24576
      %vm894 = vmand %vm893, %vm291
      %v895 = vld [vmem:[%s885 + $0x8] sm:$0x1]
      %v896 = vsel %vm894, %v581, %v895
      %897 = vst [vmem:[%s885 + $0x8] sm:$0x1] %v896
      %v898 = vld [vmem:[%s885 + $0xc] sm:$0xf]
      %v899 = vsel %vm887, %v588, %v898
      %900 = vst [vmem:[%s885 + $0xc] sm:$0xf] %v899
      %901 = vst.msk [vmem:[%s885 + $0x10] sm:$0xf] %vm891, %v597
      %v902 = vld [vmem:[%s885 + $0x14] sm:$0x1]
      %v903 = vsel %vm894, %v598, %v902
      %904 = vst [vmem:[%s885 + $0x14] sm:$0x1] %v903
      %v905 = vld [vmem:[%s885 + $0x18] sm:$0xf]
      %v906 = vsel %vm887, %v605, %v905
      %907 = vst [vmem:[%s885 + $0x18] sm:$0xf] %v906
      %908 = vst.msk [vmem:[%s885 + $0x1c] sm:$0xf] %vm891, %v614
      %v909 = vld [vmem:[%s885 + $0x20] sm:$0x1]
      %v910 = vsel %vm894, %v615, %v909
      %911 = vst [vmem:[%s885 + $0x20] sm:$0x1] %v910
      %v912 = vld [vmem:[%s885 + $0x24] sm:$0xf]
      %v913 = vsel %vm887, %v622, %v912
      %914 = vst [vmem:[%s885 + $0x24] sm:$0xf] %v913
      %915 = vst.msk [vmem:[%s885 + $0x28] sm:$0xf] %vm891, %v631
      %v916 = vld [vmem:[%s885 + $0x2c] sm:$0x1]
      %v917 = vsel %vm894, %v632, %v916
      %918 = vst [vmem:[%s885 + $0x2c] sm:$0x1] %v917
      %v919 = vld [vmem:[%s885 + $0x30] sm:$0xf]
      %v920 = vsel %vm887, %v639, %v919
      %921 = vst [vmem:[%s885 + $0x30] sm:$0xf] %v920
      %922 = vst.msk [vmem:[%s885 + $0x34] sm:$0xf] %vm891, %v648
      %v923 = vld [vmem:[%s885 + $0x38] sm:$0x1]
      %v924 = vsel %vm894, %v649, %v923
      %925 = vst [vmem:[%s885 + $0x38] sm:$0x1] %v924
      %v926 = vld [vmem:[%s885 + $0x3c] sm:$0xf]
      %v927 = vsel %vm887, %v656, %v926
      %928 = vst [vmem:[%s885 + $0x3c] sm:$0xf] %v927
      %929 = vst.msk [vmem:[%s885 + $0x40] sm:$0xf] %vm891, %v665
      %v930 = vld [vmem:[%s885 + $0x44] sm:$0x1]
      %v931 = vsel %vm894, %v666, %v930
      %932 = vst [vmem:[%s885 + $0x44] sm:$0x1] %v931
      %v933 = vld [vmem:[%s885 + $0x48] sm:$0xf]
      %v934 = vsel %vm887, %v673, %v933
      %935 = vst [vmem:[%s885 + $0x48] sm:$0xf] %v934
      %936 = vst.msk [vmem:[%s885 + $0x4c] sm:$0xf] %vm891, %v682
      %v937 = vld [vmem:[%s885 + $0x50] sm:$0x1]
      %v938 = vsel %vm894, %v683, %v937
      %939 = vst [vmem:[%s885 + $0x50] sm:$0x1] %v938
      %v940 = vld [vmem:[%s885 + $0x54] sm:$0xf]
      %v941 = vsel %vm887, %v690, %v940
      %942 = vst [vmem:[%s885 + $0x54] sm:$0xf] %v941
      %943 = vst.msk [vmem:[%s885 + $0x58] sm:$0xf] %vm891, %v699
      %v944 = vld [vmem:[%s885 + $0x5c] sm:$0x1]
      %v945 = vsel %vm894, %v700, %v944
      %946 = vst [vmem:[%s885 + $0x5c] sm:$0x1] %v945
      %v947 = vld [vmem:[%s885 + $0x60] sm:$0xf]
      %v948 = vsel %vm887, %v707, %v947
      %949 = vst [vmem:[%s885 + $0x60] sm:$0xf] %v948
      %950 = vst.msk [vmem:[%s885 + $0x64] sm:$0xf] %vm891, %v716
      %v951 = vld [vmem:[%s885 + $0x68] sm:$0x1]
      %v952 = vsel %vm894, %v717, %v951
      %953 = vst [vmem:[%s885 + $0x68] sm:$0x1] %v952
      %v954 = vld [vmem:[%s885 + $0x6c] sm:$0xf]
      %v955 = vsel %vm887, %v724, %v954
      %956 = vst [vmem:[%s885 + $0x6c] sm:$0xf] %v955
      %957 = vst.msk [vmem:[%s885 + $0x70] sm:$0xf] %vm891, %v733
      %v958 = vld [vmem:[%s885 + $0x74] sm:$0x1]
      %v959 = vsel %vm894, %v734, %v958
      %960 = vst [vmem:[%s885 + $0x74] sm:$0x1] %v959
      %v961 = vld [vmem:[%s885 + $0x78] sm:$0xf]
      %v962 = vsel %vm887, %v741, %v961
      %963 = vst [vmem:[%s885 + $0x78] sm:$0xf] %v962
      %964 = vst.msk [vmem:[%s885 + $0x7c] sm:$0xf] %vm891, %v750
      %v965 = vld [vmem:[%s885 + $0x80] sm:$0x1]
      %v966 = vsel %vm894, %v751, %v965
      %967 = vst [vmem:[%s885 + $0x80] sm:$0x1] %v966
      %v968 = vld [vmem:[%s885 + $0x84] sm:$0xf]
      %v969 = vsel %vm887, %v758, %v968
      %970 = vst [vmem:[%s885 + $0x84] sm:$0xf] %v969
      %971 = vst.msk [vmem:[%s885 + $0x88] sm:$0xf] %vm891, %v767
      %v972 = vld [vmem:[%s885 + $0x8c] sm:$0x1]
      %v973 = vsel %vm894, %v768, %v972
      %974 = vst [vmem:[%s885 + $0x8c] sm:$0x1] %v973
      %v975 = vld [vmem:[%s885 + $0x90] sm:$0xf]
      %v976 = vsel %vm887, %v775, %v975
      %977 = vst [vmem:[%s885 + $0x90] sm:$0xf] %v976
      %978 = vst.msk [vmem:[%s885 + $0x94] sm:$0xf] %vm891, %v784
      %v979 = vld [vmem:[%s885 + $0x98] sm:$0x1]
      %v980 = vsel %vm894, %v785, %v979
      %981 = vst [vmem:[%s885 + $0x98] sm:$0x1] %v980
      %v982 = vld [vmem:[%s885 + $0x9c] sm:$0xf]
      %v983 = vsel %vm887, %v792, %v982
      %984 = vst [vmem:[%s885 + $0x9c] sm:$0xf] %v983
      %985 = vst.msk [vmem:[%s885 + $0xa0] sm:$0xf] %vm891, %v801
      %v986 = vld [vmem:[%s885 + $0xa4] sm:$0x1]
      %v987 = vsel %vm894, %v802, %v986
      %988 = vst [vmem:[%s885 + $0xa4] sm:$0x1] %v987
      %v989 = vld [vmem:[%s885 + $0xa8] sm:$0xf]
      %v990 = vsel %vm887, %v809, %v989
      %991 = vst [vmem:[%s885 + $0xa8] sm:$0xf] %v990
      %992 = vst.msk [vmem:[%s885 + $0xac] sm:$0xf] %vm891, %v818
      %v993 = vld [vmem:[%s885 + $0xb0] sm:$0x1]
      %v994 = vsel %vm894, %v819, %v993
      %995 = vst [vmem:[%s885 + $0xb0] sm:$0x1] %v994
      %v996 = vld [vmem:[%s885 + $0xb4] sm:$0xf]
      %v997 = vsel %vm887, %v826, %v996
      %998 = vst [vmem:[%s885 + $0xb4] sm:$0xf] %v997
      %999 = vst.msk [vmem:[%s885 + $0xb8] sm:$0xf] %vm891, %v835
      %v1000 = vld [vmem:[%s885 + $0xbc] sm:$0x1]
      %v1001 = vsel %vm894, %v836, %v1000
      %1002 = vst [vmem:[%s885 + $0xbc] sm:$0x1] %v1001
      %v1003 = vld [vmem:[#allocation2] sm:$0xf]
      %v1004 = vld [vmem:[#allocation2 + $0x4] sm:$0xf]
      %v1005 = vld [vmem:[#allocation2 + $0xc] sm:$0xf]
      %v1006 = vld [vmem:[#allocation2 + $0x10] sm:$0xf]
      %v1007 = vld [vmem:[#allocation2 + $0x18] sm:$0xf]
      %v1008 = vld [vmem:[#allocation2 + $0x1c] sm:$0xf]
      %v1009 = vld [vmem:[#allocation2 + $0x24] sm:$0xf]
      %v1010 = vld [vmem:[#allocation2 + $0x28] sm:$0xf]
      %v1011 = vld [vmem:[#allocation2 + $0x30] sm:$0xf]
      %v1012 = vld [vmem:[#allocation2 + $0x34] sm:$0xf]
      %v1013 = vld [vmem:[#allocation2 + $0x3c] sm:$0xf]
      %v1014 = vld [vmem:[#allocation2 + $0x40] sm:$0xf]
      %v1015 = vld [vmem:[#allocation2 + $0x48] sm:$0xf]
      %v1016 = vld [vmem:[#allocation2 + $0x4c] sm:$0xf]
      %v1017 = vld [vmem:[#allocation2 + $0x54] sm:$0xf]
      %v1018 = vld [vmem:[#allocation2 + $0x58] sm:$0xf]
      %v1019 = vld [vmem:[#allocation2 + $0x60] sm:$0xf]
      %v1020 = vld [vmem:[#allocation2 + $0x64] sm:$0xf]
      %v1021 = vld [vmem:[#allocation2 + $0x6c] sm:$0xf]
      %v1022 = vld [vmem:[#allocation2 + $0x70] sm:$0xf]
      %v1023 = vld [vmem:[#allocation2 + $0x78] sm:$0xf]
      %v1024 = vld [vmem:[#allocation2 + $0x7c] sm:$0xf]
      %v1025 = vld [vmem:[#allocation2 + $0x84] sm:$0xf]
      %v1026 = vld [vmem:[#allocation2 + $0x88] sm:$0xf]
      %v1027 = vld [vmem:[#allocation2 + $0x90] sm:$0xf]
      %v1028 = vld [vmem:[#allocation2 + $0x94] sm:$0xf]
      %v1029 = vld [vmem:[#allocation2 + $0x9c] sm:$0xf]
      %v1030 = vld [vmem:[#allocation2 + $0xa0] sm:$0xf]
      %v1031 = vld [vmem:[#allocation2 + $0xa8] sm:$0xf]
      %v1032 = vld [vmem:[#allocation2 + $0xac] sm:$0xf]
      %v1033 = vld [vmem:[#allocation2 + $0xb4] sm:$0xf]
      %v1034 = vld [vmem:[#allocation2 + $0xb8] sm:$0xf]
      %1035 = vst.msk [vmem:[#allocation3] sm:$0xf] %vm891, %v1003
      %1036 = vst.msk [vmem:[#allocation3 + $0x4] sm:$0xf] %vm891, %v1004
      %1037 = vst.msk [vmem:[#allocation3 + $0x8] sm:$0xf] %vm891, %v1005
      %1038 = vst.msk [vmem:[#allocation3 + $0xc] sm:$0xf] %vm891, %v1006
      %1039 = vst.msk [vmem:[#allocation3 + $0x10] sm:$0xf] %vm891, %v1007
      %1040 = vst.msk [vmem:[#allocation3 + $0x14] sm:$0xf] %vm891, %v1008
      %1041 = vst.msk [vmem:[#allocation3 + $0x18] sm:$0xf] %vm891, %v1009
      %1042 = vst.msk [vmem:[#allocation3 + $0x1c] sm:$0xf] %vm891, %v1010
      %1043 = vst.msk [vmem:[#allocation3 + $0x20] sm:$0xf] %vm891, %v1011
      %1044 = vst.msk [vmem:[#allocation3 + $0x24] sm:$0xf] %vm891, %v1012
      %1045 = vst.msk [vmem:[#allocation3 + $0x28] sm:$0xf] %vm891, %v1013
      %1046 = vst.msk [vmem:[#allocation3 + $0x2c] sm:$0xf] %vm891, %v1014
      %1047 = vst.msk [vmem:[#allocation3 + $0x30] sm:$0xf] %vm891, %v1015
      %1048 = vst.msk [vmem:[#allocation3 + $0x34] sm:$0xf] %vm891, %v1016
      %1049 = vst.msk [vmem:[#allocation3 + $0x38] sm:$0xf] %vm891, %v1017
      %1050 = vst.msk [vmem:[#allocation3 + $0x3c] sm:$0xf] %vm891, %v1018
      %1051 = vst.msk [vmem:[#allocation3 + $0x40] sm:$0xf] %vm891, %v1019
      %1052 = vst.msk [vmem:[#allocation3 + $0x44] sm:$0xf] %vm891, %v1020
      %1053 = vst.msk [vmem:[#allocation3 + $0x48] sm:$0xf] %vm891, %v1021
      %1054 = vst.msk [vmem:[#allocation3 + $0x4c] sm:$0xf] %vm891, %v1022
      %1055 = vst.msk [vmem:[#allocation3 + $0x50] sm:$0xf] %vm891, %v1023
      %1056 = vst.msk [vmem:[#allocation3 + $0x54] sm:$0xf] %vm891, %v1024
      %1057 = vst.msk [vmem:[#allocation3 + $0x58] sm:$0xf] %vm891, %v1025
      %1058 = vst.msk [vmem:[#allocation3 + $0x5c] sm:$0xf] %vm891, %v1026
      %1059 = vst.msk [vmem:[#allocation3 + $0x60] sm:$0xf] %vm891, %v1027
      %1060 = vst.msk [vmem:[#allocation3 + $0x64] sm:$0xf] %vm891, %v1028
      %1061 = vst.msk [vmem:[#allocation3 + $0x68] sm:$0xf] %vm891, %v1029
      %1062 = vst.msk [vmem:[#allocation3 + $0x6c] sm:$0xf] %vm891, %v1030
      %1063 = vst.msk [vmem:[#allocation3 + $0x70] sm:$0xf] %vm891, %v1031
      %1064 = vst.msk [vmem:[#allocation3 + $0x74] sm:$0xf] %vm891, %v1032
      %1065 = vst.msk [vmem:[#allocation3 + $0x78] sm:$0xf] %vm891, %v1033
      %1066 = vst.msk [vmem:[#allocation3 + $0x7c] sm:$0xf] %vm891, %v1034
      %v1067 = vld [vmem:[#allocation2] sm:$0xf]
      %v1068 = vld [vmem:[#allocation2 + $0x4] sm:$0xf]
      %v1069 = vld [vmem:[#allocation2 + $0x8] sm:$0x1]
      %v1070 = vld [vmem:[#allocation2 + $0xc] sm:$0xf]
      %v1071 = vld [vmem:[#allocation2 + $0x10] sm:$0xf]
      %v1072 = vld [vmem:[#allocation2 + $0x14] sm:$0x1]
      %v1073 = vld [vmem:[#allocation2 + $0x18] sm:$0xf]
      %v1074 = vld [vmem:[#allocation2 + $0x1c] sm:$0xf]
      %v1075 = vld [vmem:[#allocation2 + $0x20] sm:$0x1]
      %v1076 = vld [vmem:[#allocation2 + $0x24] sm:$0xf]
      %v1077 = vld [vmem:[#allocation2 + $0x28] sm:$0xf]
      %v1078 = vld [vmem:[#allocation2 + $0x2c] sm:$0x1]
      %v1079 = vld [vmem:[#allocation2 + $0x30] sm:$0xf]
      %v1080 = vld [vmem:[#allocation2 + $0x34] sm:$0xf]
      %v1081 = vld [vmem:[#allocation2 + $0x38] sm:$0x1]
      %v1082 = vld [vmem:[#allocation2 + $0x3c] sm:$0xf]
      %v1083 = vld [vmem:[#allocation2 + $0x40] sm:$0xf]
      %v1084 = vld [vmem:[#allocation2 + $0x44] sm:$0x1]
      %v1085 = vld [vmem:[#allocation2 + $0x48] sm:$0xf]
      %v1086 = vld [vmem:[#allocation2 + $0x4c] sm:$0xf]
      %v1087 = vld [vmem:[#allocation2 + $0x50] sm:$0x1]
      %v1088 = vld [vmem:[#allocation2 + $0x54] sm:$0xf]
      %v1089 = vld [vmem:[#allocation2 + $0x58] sm:$0xf]
      %v1090 = vld [vmem:[#allocation2 + $0x5c] sm:$0x1]
      %v1091 = vld [vmem:[#allocation2 + $0x60] sm:$0xf]
      %v1092 = vld [vmem:[#allocation2 + $0x64] sm:$0xf]
      %v1093 = vld [vmem:[#allocation2 + $0x68] sm:$0x1]
      %v1094 = vld [vmem:[#allocation2 + $0x6c] sm:$0xf]
      %v1095 = vld [vmem:[#allocation2 + $0x70] sm:$0xf]
      %v1096 = vld [vmem:[#allocation2 + $0x74] sm:$0x1]
      %v1097 = vld [vmem:[#allocation2 + $0x78] sm:$0xf]
      %v1098 = vld [vmem:[#allocation2 + $0x7c] sm:$0xf]
      %v1099 = vld [vmem:[#allocation2 + $0x80] sm:$0x1]
      %v1100 = vld [vmem:[#allocation2 + $0x84] sm:$0xf]
      %v1101 = vld [vmem:[#allocation2 + $0x88] sm:$0xf]
      %v1102 = vld [vmem:[#allocation2 + $0x8c] sm:$0x1]
      %v1103 = vld [vmem:[#allocation2 + $0x90] sm:$0xf]
      %v1104 = vld [vmem:[#allocation2 + $0x94] sm:$0xf]
      %v1105 = vld [vmem:[#allocation2 + $0x98] sm:$0x1]
      %v1106 = vld [vmem:[#allocation2 + $0x9c] sm:$0xf]
      %v1107 = vld [vmem:[#allocation2 + $0xa0] sm:$0xf]
      %v1108 = vld [vmem:[#allocation2 + $0xa4] sm:$0x1]
      %v1109 = vld [vmem:[#allocation2 + $0xa8] sm:$0xf]
      %v1110 = vld [vmem:[#allocation2 + $0xac] sm:$0xf]
      %v1111 = vld [vmem:[#allocation2 + $0xb0] sm:$0x1]
      %v1112 = vld [vmem:[#allocation2 + $0xb4] sm:$0xf]
      %v1113 = vld [vmem:[#allocation2 + $0xb8] sm:$0xf]
      %v1114 = vld [vmem:[#allocation2 + $0xbc] sm:$0x1]
      %vm1115 = vsmask.f32 3328
      %vm1116 = vsmask.f32 7440
      %vm1117 = vmor %vm1115, %vm1116
      %v1119 = vshrl.u32 %v1067, 16
      %v1121 = vrot.slane %v1119, 4
      %v1122 = vshll.u32 %v1067, 16
      %v1124 = vrot.slane %v1122, 5
      %v1125 = vor.u32 %v1121, %v1124
      %v1126 = vrot.slane %v1125, 4
      %v1128 = vshll.u32 %v1068, 16
      %v1130 = vrot.slane %v1128, 5
      %v1131 = vsel %vm1117, %v1126, %v1130
      %v1132 = vshrl.u32 %v1068, 16
      %v1134 = vrot.slane %v1132, 4
      %v1135 = vor.u32 %v1134, %v1130
      %v1136 = vrot.slane %v1135, 4
      %v1138 = vshll.u32 %v1069, 16
      %v1140 = vrot.slane %v1138, 5
      %v1141 = vsel %vm1117, %v1136, %v1140
      %v1143 = vshrl.u32 %v1070, 16
      %v1145 = vrot.slane %v1143, 4
      %v1146 = vshll.u32 %v1070, 16
      %v1148 = vrot.slane %v1146, 5
      %v1149 = vor.u32 %v1145, %v1148
      %v1150 = vrot.slane %v1149, 4
      %v1152 = vshll.u32 %v1071, 16
      %v1154 = vrot.slane %v1152, 5
      %v1155 = vsel %vm1117, %v1150, %v1154
      %v1156 = vshrl.u32 %v1071, 16
      %v1158 = vrot.slane %v1156, 4
      %v1159 = vor.u32 %v1158, %v1154
      %v1160 = vrot.slane %v1159, 4
      %v1162 = vshll.u32 %v1072, 16
      %v1164 = vrot.slane %v1162, 5
      %v1165 = vsel %vm1117, %v1160, %v1164
      %v1167 = vshrl.u32 %v1073, 16
      %v1169 = vrot.slane %v1167, 4
      %v1170 = vshll.u32 %v1073, 16
      %v1172 = vrot.slane %v1170, 5
      %v1173 = vor.u32 %v1169, %v1172
      %v1174 = vrot.slane %v1173, 4
      %v1176 = vshll.u32 %v1074, 16
      %v1178 = vrot.slane %v1176, 5
      %v1179 = vsel %vm1117, %v1174, %v1178
      %v1180 = vshrl.u32 %v1074, 16
      %v1182 = vrot.slane %v1180, 4
      %v1183 = vor.u32 %v1182, %v1178
      %v1184 = vrot.slane %v1183, 4
      %v1186 = vshll.u32 %v1075, 16
      %v1188 = vrot.slane %v1186, 5
      %v1189 = vsel %vm1117, %v1184, %v1188
      %v1191 = vshrl.u32 %v1076, 16
      %v1193 = vrot.slane %v1191, 4
      %v1194 = vshll.u32 %v1076, 16
      %v1196 = vrot.slane %v1194, 5
      %v1197 = vor.u32 %v1193, %v1196
      %v1198 = vrot.slane %v1197, 4
      %v1200 = vshll.u32 %v1077, 16
      %v1202 = vrot.slane %v1200, 5
      %v1203 = vsel %vm1117, %v1198, %v1202
      %v1204 = vshrl.u32 %v1077, 16
      %v1206 = vrot.slane %v1204, 4
      %v1207 = vor.u32 %v1206, %v1202
      %v1208 = vrot.slane %v1207, 4
      %v1210 = vshll.u32 %v1078, 16
      %v1212 = vrot.slane %v1210, 5
      %v1213 = vsel %vm1117, %v1208, %v1212
      %v1215 = vshrl.u32 %v1079, 16
      %v1217 = vrot.slane %v1215, 4
      %v1218 = vshll.u32 %v1079, 16
      %v1220 = vrot.slane %v1218, 5
      %v1221 = vor.u32 %v1217, %v1220
      %v1222 = vrot.slane %v1221, 4
      %v1224 = vshll.u32 %v1080, 16
      %v1226 = vrot.slane %v1224, 5
      %v1227 = vsel %vm1117, %v1222, %v1226
      %v1228 = vshrl.u32 %v1080, 16
      %v1230 = vrot.slane %v1228, 4
      %v1231 = vor.u32 %v1230, %v1226
      %v1232 = vrot.slane %v1231, 4
      %v1234 = vshll.u32 %v1081, 16
      %v1236 = vrot.slane %v1234, 5
      %v1237 = vsel %vm1117, %v1232, %v1236
      %v1239 = vshrl.u32 %v1082, 16
      %v1241 = vrot.slane %v1239, 4
      %v1242 = vshll.u32 %v1082, 16
      %v1244 = vrot.slane %v1242, 5
      %v1245 = vor.u32 %v1241, %v1244
      %v1246 = vrot.slane %v1245, 4
      %v1248 = vshll.u32 %v1083, 16
      %v1250 = vrot.slane %v1248, 5
      %v1251 = vsel %vm1117, %v1246, %v1250
      %v1252 = vshrl.u32 %v1083, 16
      %v1254 = vrot.slane %v1252, 4
      %v1255 = vor.u32 %v1254, %v1250
      %v1256 = vrot.slane %v1255, 4
      %v1258 = vshll.u32 %v1084, 16
      %v1260 = vrot.slane %v1258, 5
      %v1261 = vsel %vm1117, %v1256, %v1260
      %v1263 = vshrl.u32 %v1085, 16
      %v1265 = vrot.slane %v1263, 4
      %v1266 = vshll.u32 %v1085, 16
      %v1268 = vrot.slane %v1266, 5
      %v1269 = vor.u32 %v1265, %v1268
      %v1270 = vrot.slane %v1269, 4
      %v1272 = vshll.u32 %v1086, 16
      %v1274 = vrot.slane %v1272, 5
      %v1275 = vsel %vm1117, %v1270, %v1274
      %v1276 = vshrl.u32 %v1086, 16
      %v1278 = vrot.slane %v1276, 4
      %v1279 = vor.u32 %v1278, %v1274
      %v1280 = vrot.slane %v1279, 4
      %v1282 = vshll.u32 %v1087, 16
      %v1284 = vrot.slane %v1282, 5
      %v1285 = vsel %vm1117, %v1280, %v1284
      %v1287 = vshrl.u32 %v1088, 16
      %v1289 = vrot.slane %v1287, 4
      %v1290 = vshll.u32 %v1088, 16
      %v1292 = vrot.slane %v1290, 5
      %v1293 = vor.u32 %v1289, %v1292
      %v1294 = vrot.slane %v1293, 4
      %v1296 = vshll.u32 %v1089, 16
      %v1298 = vrot.slane %v1296, 5
      %v1299 = vsel %vm1117, %v1294, %v1298
      %v1300 = vshrl.u32 %v1089, 16
      %v1302 = vrot.slane %v1300, 4
      %v1303 = vor.u32 %v1302, %v1298
      %v1304 = vrot.slane %v1303, 4
      %v1306 = vshll.u32 %v1090, 16
      %v1308 = vrot.slane %v1306, 5
      %v1309 = vsel %vm1117, %v1304, %v1308
      %v1311 = vshrl.u32 %v1091, 16
      %v1313 = vrot.slane %v1311, 4
      %v1314 = vshll.u32 %v1091, 16
      %v1316 = vrot.slane %v1314, 5
      %v1317 = vor.u32 %v1313, %v1316
      %v1318 = vrot.slane %v1317, 4
      %v1320 = vshll.u32 %v1092, 16
      %v1322 = vrot.slane %v1320, 5
      %v1323 = vsel %vm1117, %v1318, %v1322
      %v1324 = vshrl.u32 %v1092, 16
      %v1326 = vrot.slane %v1324, 4
      %v1327 = vor.u32 %v1326, %v1322
      %v1328 = vrot.slane %v1327, 4
      %v1330 = vshll.u32 %v1093, 16
      %v1332 = vrot.slane %v1330, 5
      %v1333 = vsel %vm1117, %v1328, %v1332
      %v1335 = vshrl.u32 %v1094, 16
      %v1337 = vrot.slane %v1335, 4
      %v1338 = vshll.u32 %v1094, 16
      %v1340 = vrot.slane %v1338, 5
      %v1341 = vor.u32 %v1337, %v1340
      %v1342 = vrot.slane %v1341, 4
      %v1344 = vshll.u32 %v1095, 16
      %v1346 = vrot.slane %v1344, 5
      %v1347 = vsel %vm1117, %v1342, %v1346
      %v1348 = vshrl.u32 %v1095, 16
      %v1350 = vrot.slane %v1348, 4
      %v1351 = vor.u32 %v1350, %v1346
      %v1352 = vrot.slane %v1351, 4
      %v1354 = vshll.u32 %v1096, 16
      %v1356 = vrot.slane %v1354, 5
      %v1357 = vsel %vm1117, %v1352, %v1356
      %v1359 = vshrl.u32 %v1097, 16
      %v1361 = vrot.slane %v1359, 4
      %v1362 = vshll.u32 %v1097, 16
      %v1364 = vrot.slane %v1362, 5
      %v1365 = vor.u32 %v1361, %v1364
      %v1366 = vrot.slane %v1365, 4
      %v1368 = vshll.u32 %v1098, 16
      %v1370 = vrot.slane %v1368, 5
      %v1371 = vsel %vm1117, %v1366, %v1370
      %v1372 = vshrl.u32 %v1098, 16
      %v1374 = vrot.slane %v1372, 4
      %v1375 = vor.u32 %v1374, %v1370
      %v1376 = vrot.slane %v1375, 4
      %v1378 = vshll.u32 %v1099, 16
      %v1380 = vrot.slane %v1378, 5
      %v1381 = vsel %vm1117, %v1376, %v1380
      %v1383 = vshrl.u32 %v1100, 16
      %v1385 = vrot.slane %v1383, 4
      %v1386 = vshll.u32 %v1100, 16
      %v1388 = vrot.slane %v1386, 5
      %v1389 = vor.u32 %v1385, %v1388
      %v1390 = vrot.slane %v1389, 4
      %v1392 = vshll.u32 %v1101, 16
      %v1394 = vrot.slane %v1392, 5
      %v1395 = vsel %vm1117, %v1390, %v1394
      %v1396 = vshrl.u32 %v1101, 16
      %v1398 = vrot.slane %v1396, 4
      %v1399 = vor.u32 %v1398, %v1394
      %v1400 = vrot.slane %v1399, 4
      %v1402 = vshll.u32 %v1102, 16
      %v1404 = vrot.slane %v1402, 5
      %v1405 = vsel %vm1117, %v1400, %v1404
      %v1407 = vshrl.u32 %v1103, 16
      %v1409 = vrot.slane %v1407, 4
      %v1410 = vshll.u32 %v1103, 16
      %v1412 = vrot.slane %v1410, 5
      %v1413 = vor.u32 %v1409, %v1412
      %v1414 = vrot.slane %v1413, 4
      %v1416 = vshll.u32 %v1104, 16
      %v1418 = vrot.slane %v1416, 5
      %v1419 = vsel %vm1117, %v1414, %v1418
      %v1420 = vshrl.u32 %v1104, 16
      %v1422 = vrot.slane %v1420, 4
      %v1423 = vor.u32 %v1422, %v1418
      %v1424 = vrot.slane %v1423, 4
      %v1426 = vshll.u32 %v1105, 16
      %v1428 = vrot.slane %v1426, 5
      %v1429 = vsel %vm1117, %v1424, %v1428
      %v1431 = vshrl.u32 %v1106, 16
      %v1433 = vrot.slane %v1431, 4
      %v1434 = vshll.u32 %v1106, 16
      %v1436 = vrot.slane %v1434, 5
      %v1437 = vor.u32 %v1433, %v1436
      %v1438 = vrot.slane %v1437, 4
      %v1440 = vshll.u32 %v1107, 16
      %v1442 = vrot.slane %v1440, 5
      %v1443 = vsel %vm1117, %v1438, %v1442
      %v1444 = vshrl.u32 %v1107, 16
      %v1446 = vrot.slane %v1444, 4
      %v1447 = vor.u32 %v1446, %v1442
      %v1448 = vrot.slane %v1447, 4
      %v1450 = vshll.u32 %v1108, 16
      %v1452 = vrot.slane %v1450, 5
      %v1453 = vsel %vm1117, %v1448, %v1452
      %v1455 = vshrl.u32 %v1109, 16
      %v1457 = vrot.slane %v1455, 4
      %v1458 = vshll.u32 %v1109, 16
      %v1460 = vrot.slane %v1458, 5
      %v1461 = vor.u32 %v1457, %v1460
      %v1462 = vrot.slane %v1461, 4
      %v1464 = vshll.u32 %v1110, 16
      %v1466 = vrot.slane %v1464, 5
      %v1467 = vsel %vm1117, %v1462, %v1466
      %v1468 = vshrl.u32 %v1110, 16
      %v1470 = vrot.slane %v1468, 4
      %v1471 = vor.u32 %v1470, %v1466
      %v1472 = vrot.slane %v1471, 4
      %v1474 = vshll.u32 %v1111, 16
      %v1476 = vrot.slane %v1474, 5
      %v1477 = vsel %vm1117, %v1472, %v1476
      %v1479 = vshrl.u32 %v1112, 16
      %v1481 = vrot.slane %v1479, 4
      %v1482 = vshll.u32 %v1112, 16
      %v1484 = vrot.slane %v1482, 5
      %v1485 = vor.u32 %v1481, %v1484
      %v1486 = vrot.slane %v1485, 4
      %v1488 = vshll.u32 %v1113, 16
      %v1490 = vrot.slane %v1488, 5
      %v1491 = vsel %vm1117, %v1486, %v1490
      %v1492 = vshrl.u32 %v1113, 16
      %v1494 = vrot.slane %v1492, 4
      %v1495 = vor.u32 %v1494, %v1490
      %v1496 = vrot.slane %v1495, 4
      %v1498 = vshll.u32 %v1114, 16
      %v1500 = vrot.slane %v1498, 5
      %v1501 = vsel %vm1117, %v1496, %v1500
      %1502 = vrot.lane.b32.xlu0 %v1131, 4
      %v1503 = vpop.permute.xlu0 %1502
      %1504 = vrot.lane.b32.xlu0 %v1141, 4
      %v1505 = vpop.permute.xlu0 %1504
      %1506 = vrot.lane.b32.xlu0 %v1155, 4
      %v1507 = vpop.permute.xlu0 %1506
      %1508 = vrot.lane.b32.xlu0 %v1165, 4
      %v1509 = vpop.permute.xlu0 %1508
      %1510 = vrot.lane.b32.xlu0 %v1179, 4
      %v1511 = vpop.permute.xlu0 %1510
      %1512 = vrot.lane.b32.xlu0 %v1189, 4
      %v1513 = vpop.permute.xlu0 %1512
      %1514 = vrot.lane.b32.xlu0 %v1203, 4
      %v1515 = vpop.permute.xlu0 %1514
      %1516 = vrot.lane.b32.xlu0 %v1213, 4
      %v1517 = vpop.permute.xlu0 %1516
      %1518 = vrot.lane.b32.xlu0 %v1227, 4
      %v1519 = vpop.permute.xlu0 %1518
      %1520 = vrot.lane.b32.xlu0 %v1237, 4
      %v1521 = vpop.permute.xlu0 %1520
      %1522 = vrot.lane.b32.xlu0 %v1251, 4
      %v1523 = vpop.permute.xlu0 %1522
      %1524 = vrot.lane.b32.xlu0 %v1261, 4
      %v1525 = vpop.permute.xlu0 %1524
      %1526 = vrot.lane.b32.xlu0 %v1275, 4
      %v1527 = vpop.permute.xlu0 %1526
      %1528 = vrot.lane.b32.xlu0 %v1285, 4
      %v1529 = vpop.permute.xlu0 %1528
      %1530 = vrot.lane.b32.xlu0 %v1299, 4
      %v1531 = vpop.permute.xlu0 %1530
      %1532 = vrot.lane.b32.xlu0 %v1309, 4
      %v1533 = vpop.permute.xlu0 %1532
      %1534 = vrot.lane.b32.xlu0 %v1323, 4
      %v1535 = vpop.permute.xlu0 %1534
      %1536 = vrot.lane.b32.xlu0 %v1333, 4
      %v1537 = vpop.permute.xlu0 %1536
      %1538 = vrot.lane.b32.xlu0 %v1347, 4
      %v1539 = vpop.permute.xlu0 %1538
      %1540 = vrot.lane.b32.xlu0 %v1357, 4
      %v1541 = vpop.permute.xlu0 %1540
      %1542 = vrot.lane.b32.xlu0 %v1371, 4
      %v1543 = vpop.permute.xlu0 %1542
      %1544 = vrot.lane.b32.xlu0 %v1381, 4
      %v1545 = vpop.permute.xlu0 %1544
      %1546 = vrot.lane.b32.xlu0 %v1395, 4
      %v1547 = vpop.permute.xlu0 %1546
      %1548 = vrot.lane.b32.xlu0 %v1405, 4
      %v1549 = vpop.permute.xlu0 %1548
      %1550 = vrot.lane.b32.xlu0 %v1419, 4
      %v1551 = vpop.permute.xlu0 %1550
      %1552 = vrot.lane.b32.xlu0 %v1429, 4
      %v1553 = vpop.permute.xlu0 %1552
      %1554 = vrot.lane.b32.xlu0 %v1443, 4
      %v1555 = vpop.permute.xlu0 %1554
      %1556 = vrot.lane.b32.xlu0 %v1453, 4
      %v1557 = vpop.permute.xlu0 %1556
      %1558 = vrot.lane.b32.xlu0 %v1467, 4
      %v1559 = vpop.permute.xlu0 %1558
      %1560 = vrot.lane.b32.xlu0 %v1477, 4
      %v1561 = vpop.permute.xlu0 %1560
      %1562 = vrot.lane.b32.xlu0 %v1491, 4
      %v1563 = vpop.permute.xlu0 %1562
      %1564 = vrot.lane.b32.xlu0 %v1501, 4
      %v1565 = vpop.permute.xlu0 %1564
      %vm1598 = vcmask 60448
      %1599 = vst.msk [vmem:[#allocation3] sm:$0xf] %vm1598, %v1503
      %1600 = vst.msk [vmem:[#allocation3 + $0x4] sm:$0xf] %vm1598, %v1505
      %1601 = vst.msk [vmem:[#allocation3 + $0x8] sm:$0xf] %vm1598, %v1507
      %1602 = vst.msk [vmem:[#allocation3 + $0xc] sm:$0xf] %vm1598, %v1509
      %1603 = vst.msk [vmem:[#allocation3 + $0x10] sm:$0xf] %vm1598, %v1511
      %1604 = vst.msk [vmem:[#allocation3 + $0x14] sm:$0xf] %vm1598, %v1513
      %1605 = vst.msk [vmem:[#allocation3 + $0x18] sm:$0xf] %vm1598, %v1515
      %1606 = vst.msk [vmem:[#allocation3 + $0x1c] sm:$0xf] %vm1598, %v1517
      %1607 = vst.msk [vmem:[#allocation3 + $0x20] sm:$0xf] %vm1598, %v1519
      %1608 = vst.msk [vmem:[#allocation3 + $0x24] sm:$0xf] %vm1598, %v1521
      %1609 = vst.msk [vmem:[#allocation3 + $0x28] sm:$0xf] %vm1598, %v1523
      %1610 = vst.msk [vmem:[#allocation3 + $0x2c] sm:$0xf] %vm1598, %v1525
      %1611 = vst.msk [vmem:[#allocation3 + $0x30] sm:$0xf] %vm1598, %v1527
      %1612 = vst.msk [vmem:[#allocation3 + $0x34] sm:$0xf] %vm1598, %v1529
      %1613 = vst.msk [vmem:[#allocation3 + $0x38] sm:$0xf] %vm1598, %v1531
      %1614 = vst.msk [vmem:[#allocation3 + $0x3c] sm:$0xf] %vm1598, %v1533
      %1615 = vst.msk [vmem:[#allocation3 + $0x40] sm:$0xf] %vm1598, %v1535
      %1616 = vst.msk [vmem:[#allocation3 + $0x44] sm:$0xf] %vm1598, %v1537
      %1617 = vst.msk [vmem:[#allocation3 + $0x48] sm:$0xf] %vm1598, %v1539
      %1618 = vst.msk [vmem:[#allocation3 + $0x4c] sm:$0xf] %vm1598, %v1541
      %1619 = vst.msk [vmem:[#allocation3 + $0x50] sm:$0xf] %vm1598, %v1543
      %1620 = vst.msk [vmem:[#allocation3 + $0x54] sm:$0xf] %vm1598, %v1545
      %1621 = vst.msk [vmem:[#allocation3 + $0x58] sm:$0xf] %vm1598, %v1547
      %1622 = vst.msk [vmem:[#allocation3 + $0x5c] sm:$0xf] %vm1598, %v1549
      %1623 = vst.msk [vmem:[#allocation3 + $0x60] sm:$0xf] %vm1598, %v1551
      %1624 = vst.msk [vmem:[#allocation3 + $0x64] sm:$0xf] %vm1598, %v1553
      %1625 = vst.msk [vmem:[#allocation3 + $0x68] sm:$0xf] %vm1598, %v1555
      %1626 = vst.msk [vmem:[#allocation3 + $0x6c] sm:$0xf] %vm1598, %v1557
      %1627 = vst.msk [vmem:[#allocation3 + $0x70] sm:$0xf] %vm1598, %v1559
      %1628 = vst.msk [vmem:[#allocation3 + $0x74] sm:$0xf] %vm1598, %v1561
      %1629 = vst.msk [vmem:[#allocation3 + $0x78] sm:$0xf] %vm1598, %v1563
      %1630 = vst.msk [vmem:[#allocation3 + $0x7c] sm:$0xf] %vm1598, %v1565
      %v1631 = vld [vmem:[#allocation2] sm:$0xe]
      %v1632 = vld [vmem:[#allocation2 + $0x4] sm:$0xf]
      %v1633 = vld [vmem:[#allocation2 + $0x8] sm:$0x1]
      %v1634 = vld [vmem:[#allocation2 + $0xc] sm:$0xe]
      %v1635 = vld [vmem:[#allocation2 + $0x10] sm:$0xf]
      %v1636 = vld [vmem:[#allocation2 + $0x14] sm:$0x1]
      %v1637 = vld [vmem:[#allocation2 + $0x18] sm:$0xe]
      %v1638 = vld [vmem:[#allocation2 + $0x1c] sm:$0xf]
      %v1639 = vld [vmem:[#allocation2 + $0x20] sm:$0x1]
      %v1640 = vld [vmem:[#allocation2 + $0x24] sm:$0xe]
      %v1641 = vld [vmem:[#allocation2 + $0x28] sm:$0xf]
      %v1642 = vld [vmem:[#allocation2 + $0x2c] sm:$0x1]
      %v1643 = vld [vmem:[#allocation2 + $0x30] sm:$0xe]
      %v1644 = vld [vmem:[#allocation2 + $0x34] sm:$0xf]
      %v1645 = vld [vmem:[#allocation2 + $0x38] sm:$0x1]
      %v1646 = vld [vmem:[#allocation2 + $0x3c] sm:$0xe]
      %v1647 = vld [vmem:[#allocation2 + $0x40] sm:$0xf]
      %v1648 = vld [vmem:[#allocation2 + $0x44] sm:$0x1]
      %v1649 = vld [vmem:[#allocation2 + $0x48] sm:$0xe]
      %v1650 = vld [vmem:[#allocation2 + $0x4c] sm:$0xf]
      %v1651 = vld [vmem:[#allocation2 + $0x50] sm:$0x1]
      %v1652 = vld [vmem:[#allocation2 + $0x54] sm:$0xe]
      %v1653 = vld [vmem:[#allocation2 + $0x58] sm:$0xf]
      %v1654 = vld [vmem:[#allocation2 + $0x5c] sm:$0x1]
      %v1655 = vld [vmem:[#allocation2 + $0x60] sm:$0xe]
      %v1656 = vld [vmem:[#allocation2 + $0x64] sm:$0xf]
      %v1657 = vld [vmem:[#allocation2 + $0x68] sm:$0x1]
      %v1658 = vld [vmem:[#allocation2 + $0x6c] sm:$0xe]
      %v1659 = vld [vmem:[#allocation2 + $0x70] sm:$0xf]
      %v1660 = vld [vmem:[#allocation2 + $0x74] sm:$0x1]
      %v1661 = vld [vmem:[#allocation2 + $0x78] sm:$0xe]
      %v1662 = vld [vmem:[#allocation2 + $0x7c] sm:$0xf]
      %v1663 = vld [vmem:[#allocation2 + $0x80] sm:$0x1]
      %v1664 = vld [vmem:[#allocation2 + $0x84] sm:$0xe]
      %v1665 = vld [vmem:[#allocation2 + $0x88] sm:$0xf]
      %v1666 = vld [vmem:[#allocation2 + $0x8c] sm:$0x1]
      %v1667 = vld [vmem:[#allocation2 + $0x90] sm:$0xe]
      %v1668 = vld [vmem:[#allocation2 + $0x94] sm:$0xf]
      %v1669 = vld [vmem:[#allocation2 + $0x98] sm:$0x1]
      %v1670 = vld [vmem:[#allocation2 + $0x9c] sm:$0xe]
      %v1671 = vld [vmem:[#allocation2 + $0xa0] sm:$0xf]
      %v1672 = vld [vmem:[#allocation2 + $0xa4] sm:$0x1]
      %v1673 = vld [vmem:[#allocation2 + $0xa8] sm:$0xe]
      %v1674 = vld [vmem:[#allocation2 + $0xac] sm:$0xf]
      %v1675 = vld [vmem:[#allocation2 + $0xb0] sm:$0x1]
      %v1676 = vld [vmem:[#allocation2 + $0xb4] sm:$0xe]
      %v1677 = vld [vmem:[#allocation2 + $0xb8] sm:$0xf]
      %v1678 = vld [vmem:[#allocation2 + $0xbc] sm:$0x1]
      %vm1727 = vcmask 1042432
      %vm1728 = vcmask 1046532
      %vm1729 = vmor %vm1727, %vm1728
      %v1730 = vrot.slane %v1631, 5
      %v1731 = vrot.slane %v1730, 4
      %v1732 = vrot.slane %v1632, 5
      %v1733 = vsel %vm1729, %v1731, %v1732
      %v1734 = vrot.slane %v1732, 4
      %v1735 = vrot.slane %v1633, 5
      %v1736 = vsel %vm1729, %v1734, %v1735
      %v1737 = vrot.slane %v1634, 5
      %v1738 = vrot.slane %v1737, 4
      %v1739 = vrot.slane %v1635, 5
      %v1740 = vsel %vm1729, %v1738, %v1739
      %v1741 = vrot.slane %v1739, 4
      %v1742 = vrot.slane %v1636, 5
      %v1743 = vsel %vm1729, %v1741, %v1742
      %v1744 = vrot.slane %v1637, 5
      %v1745 = vrot.slane %v1744, 4
      %v1746 = vrot.slane %v1638, 5
      %v1747 = vsel %vm1729, %v1745, %v1746
      %v1748 = vrot.slane %v1746, 4
      %v1749 = vrot.slane %v1639, 5
      %v1750 = vsel %vm1729, %v1748, %v1749
      %v1751 = vrot.slane %v1640, 5
      %v1752 = vrot.slane %v1751, 4
      %v1753 = vrot.slane %v1641, 5
      %v1754 = vsel %vm1729, %v1752, %v1753
      %v1755 = vrot.slane %v1753, 4
      %v1756 = vrot.slane %v1642, 5
      %v1757 = vsel %vm1729, %v1755, %v1756
      %v1758 = vrot.slane %v1643, 5
      %v1759 = vrot.slane %v1758, 4
      %v1760 = vrot.slane %v1644, 5
      %v1761 = vsel %vm1729, %v1759, %v1760
      %v1762 = vrot.slane %v1760, 4
      %v1763 = vrot.slane %v1645, 5
      %v1764 = vsel %vm1729, %v1762, %v1763
      %v1765 = vrot.slane %v1646, 5
      %v1766 = vrot.slane %v1765, 4
      %v1767 = vrot.slane %v1647, 5
      %v1768 = vsel %vm1729, %v1766, %v1767
      %v1769 = vrot.slane %v1767, 4
      %v1770 = vrot.slane %v1648, 5
      %v1771 = vsel %vm1729, %v1769, %v1770
      %v1772 = vrot.slane %v1649, 5
      %v1773 = vrot.slane %v1772, 4
      %v1774 = vrot.slane %v1650, 5
      %v1775 = vsel %vm1729, %v1773, %v1774
      %v1776 = vrot.slane %v1774, 4
      %v1777 = vrot.slane %v1651, 5
      %v1778 = vsel %vm1729, %v1776, %v1777
      %v1779 = vrot.slane %v1652, 5
      %v1780 = vrot.slane %v1779, 4
      %v1781 = vrot.slane %v1653, 5
      %v1782 = vsel %vm1729, %v1780, %v1781
      %v1783 = vrot.slane %v1781, 4
      %v1784 = vrot.slane %v1654, 5
      %v1785 = vsel %vm1729, %v1783, %v1784
      %v1786 = vrot.slane %v1655, 5
      %v1787 = vrot.slane %v1786, 4
      %v1788 = vrot.slane %v1656, 5
      %v1789 = vsel %vm1729, %v1787, %v1788
      %v1790 = vrot.slane %v1788, 4
      %v1791 = vrot.slane %v1657, 5
      %v1792 = vsel %vm1729, %v1790, %v1791
      %v1793 = vrot.slane %v1658, 5
      %v1794 = vrot.slane %v1793, 4
      %v1795 = vrot.slane %v1659, 5
      %v1796 = vsel %vm1729, %v1794, %v1795
      %v1797 = vrot.slane %v1795, 4
      %v1798 = vrot.slane %v1660, 5
      %v1799 = vsel %vm1729, %v1797, %v1798
      %v1800 = vrot.slane %v1661, 5
      %v1801 = vrot.slane %v1800, 4
      %v1802 = vrot.slane %v1662, 5
      %v1803 = vsel %vm1729, %v1801, %v1802
      %v1804 = vrot.slane %v1802, 4
      %v1805 = vrot.slane %v1663, 5
      %v1806 = vsel %vm1729, %v1804, %v1805
      %v1807 = vrot.slane %v1664, 5
      %v1808 = vrot.slane %v1807, 4
      %v1809 = vrot.slane %v1665, 5
      %v1810 = vsel %vm1729, %v1808, %v1809
      %v1811 = vrot.slane %v1809, 4
      %v1812 = vrot.slane %v1666, 5
      %v1813 = vsel %vm1729, %v1811, %v1812
      %v1814 = vrot.slane %v1667, 5
      %v1815 = vrot.slane %v1814, 4
      %v1816 = vrot.slane %v1668, 5
      %v1817 = vsel %vm1729, %v1815, %v1816
      %v1818 = vrot.slane %v1816, 4
      %v1819 = vrot.slane %v1669, 5
      %v1820 = vsel %vm1729, %v1818, %v1819
      %v1821 = vrot.slane %v1670, 5
      %v1822 = vrot.slane %v1821, 4
      %v1823 = vrot.slane %v1671, 5
      %v1824 = vsel %vm1729, %v1822, %v1823
      %v1825 = vrot.slane %v1823, 4
      %v1826 = vrot.slane %v1672, 5
      %v1827 = vsel %vm1729, %v1825, %v1826
      %v1828 = vrot.slane %v1673, 5
      %v1829 = vrot.slane %v1828, 4
      %v1830 = vrot.slane %v1674, 5
      %v1831 = vsel %vm1729, %v1829, %v1830
      %v1832 = vrot.slane %v1830, 4
      %v1833 = vrot.slane %v1675, 5
      %v1834 = vsel %vm1729, %v1832, %v1833
      %v1835 = vrot.slane %v1676, 5
      %v1836 = vrot.slane %v1835, 4
      %v1837 = vrot.slane %v1677, 5
      %v1838 = vsel %vm1729, %v1836, %v1837
      %v1839 = vrot.slane %v1837, 4
      %v1840 = vrot.slane %v1678, 5
      %v1841 = vsel %vm1729, %v1839, %v1840
      %1842 = vrot.lane.b32.xlu0 %v1733, 8
      %v1843 = vpop.permute.xlu0 %1842
      %1844 = vrot.lane.b32.xlu0 %v1736, 8
      %v1845 = vpop.permute.xlu0 %1844
      %1846 = vrot.lane.b32.xlu0 %v1740, 8
      %v1847 = vpop.permute.xlu0 %1846
      %1848 = vrot.lane.b32.xlu0 %v1743, 8
      %v1849 = vpop.permute.xlu0 %1848
      %1850 = vrot.lane.b32.xlu0 %v1747, 8
      %v1851 = vpop.permute.xlu0 %1850
      %1852 = vrot.lane.b32.xlu0 %v1750, 8
      %v1853 = vpop.permute.xlu0 %1852
      %1854 = vrot.lane.b32.xlu0 %v1754, 8
      %v1855 = vpop.permute.xlu0 %1854
      %1856 = vrot.lane.b32.xlu0 %v1757, 8
      %v1857 = vpop.permute.xlu0 %1856
      %1858 = vrot.lane.b32.xlu0 %v1761, 8
      %v1859 = vpop.permute.xlu0 %1858
      %1860 = vrot.lane.b32.xlu0 %v1764, 8
      %v1861 = vpop.permute.xlu0 %1860
      %1862 = vrot.lane.b32.xlu0 %v1768, 8
      %v1863 = vpop.permute.xlu0 %1862
      %1864 = vrot.lane.b32.xlu0 %v1771, 8
      %v1865 = vpop.permute.xlu0 %1864
      %1866 = vrot.lane.b32.xlu0 %v1775, 8
      %v1867 = vpop.permute.xlu0 %1866
      %1868 = vrot.lane.b32.xlu0 %v1778, 8
      %v1869 = vpop.permute.xlu0 %1868
      %1870 = vrot.lane.b32.xlu0 %v1782, 8
      %v1871 = vpop.permute.xlu0 %1870
      %1872 = vrot.lane.b32.xlu0 %v1785, 8
      %v1873 = vpop.permute.xlu0 %1872
      %1874 = vrot.lane.b32.xlu0 %v1789, 8
      %v1875 = vpop.permute.xlu0 %1874
      %1876 = vrot.lane.b32.xlu0 %v1792, 8
      %v1877 = vpop.permute.xlu0 %1876
      %1878 = vrot.lane.b32.xlu0 %v1796, 8
      %v1879 = vpop.permute.xlu0 %1878
      %1880 = vrot.lane.b32.xlu0 %v1799, 8
      %v1881 = vpop.permute.xlu0 %1880
      %1882 = vrot.lane.b32.xlu0 %v1803, 8
      %v1883 = vpop.permute.xlu0 %1882
      %1884 = vrot.lane.b32.xlu0 %v1806, 8
      %v1885 = vpop.permute.xlu0 %1884
      %1886 = vrot.lane.b32.xlu0 %v1810, 8
      %v1887 = vpop.permute.xlu0 %1886
      %1888 = vrot.lane.b32.xlu0 %v1813, 8
      %v1889 = vpop.permute.xlu0 %1888
      %1890 = vrot.lane.b32.xlu0 %v1817, 8
      %v1891 = vpop.permute.xlu0 %1890
      %1892 = vrot.lane.b32.xlu0 %v1820, 8
      %v1893 = vpop.permute.xlu0 %1892
      %1894 = vrot.lane.b32.xlu0 %v1824, 8
      %v1895 = vpop.permute.xlu0 %1894
      %1896 = vrot.lane.b32.xlu0 %v1827, 8
      %v1897 = vpop.permute.xlu0 %1896
      %1898 = vrot.lane.b32.xlu0 %v1831, 8
      %v1899 = vpop.permute.xlu0 %1898
      %1900 = vrot.lane.b32.xlu0 %v1834, 8
      %v1901 = vpop.permute.xlu0 %1900
      %1902 = vrot.lane.b32.xlu0 %v1838, 8
      %v1903 = vpop.permute.xlu0 %1902
      %1904 = vrot.lane.b32.xlu0 %v1841, 8
      %v1905 = vpop.permute.xlu0 %1904
      %vm1938 = vcmask 93248
      %1939 = vst.msk [vmem:[#allocation3] sm:$0xf] %vm1938, %v1843
      %1940 = vst.msk [vmem:[#allocation3 + $0x4] sm:$0xf] %vm1938, %v1845
      %1941 = vst.msk [vmem:[#allocation3 + $0x8] sm:$0xf] %vm1938, %v1847
      %1942 = vst.msk [vmem:[#allocation3 + $0xc] sm:$0xf] %vm1938, %v1849
      %1943 = vst.msk [vmem:[#allocation3 + $0x10] sm:$0xf] %vm1938, %v1851
      %1944 = vst.msk [vmem:[#allocation3 + $0x14] sm:$0xf] %vm1938, %v1853
      %1945 = vst.msk [vmem:[#allocation3 + $0x18] sm:$0xf] %vm1938, %v1855
      %1946 = vst.msk [vmem:[#allocation3 + $0x1c] sm:$0xf] %vm1938, %v1857
      %1947 = vst.msk [vmem:[#allocation3 + $0x20] sm:$0xf] %vm1938, %v1859
      %1948 = vst.msk [vmem:[#allocation3 + $0x24] sm:$0xf] %vm1938, %v1861
      %1949 = vst.msk [vmem:[#allocation3 + $0x28] sm:$0xf] %vm1938, %v1863
      %1950 = vst.msk [vmem:[#allocation3 + $0x2c] sm:$0xf] %vm1938, %v1865
      %1951 = vst.msk [vmem:[#allocation3 + $0x30] sm:$0xf] %vm1938, %v1867
      %1952 = vst.msk [vmem:[#allocation3 + $0x34] sm:$0xf] %vm1938, %v1869
      %1953 = vst.msk [vmem:[#allocation3 + $0x38] sm:$0xf] %vm1938, %v1871
      %1954 = vst.msk [vmem:[#allocation3 + $0x3c] sm:$0xf] %vm1938, %v1873
      %1955 = vst.msk [vmem:[#allocation3 + $0x40] sm:$0xf] %vm1938, %v1875
      %1956 = vst.msk [vmem:[#allocation3 + $0x44] sm:$0xf] %vm1938, %v1877
      %1957 = vst.msk [vmem:[#allocation3 + $0x48] sm:$0xf] %vm1938, %v1879
      %1958 = vst.msk [vmem:[#allocation3 + $0x4c] sm:$0xf] %vm1938, %v1881
      %1959 = vst.msk [vmem:[#allocation3 + $0x50] sm:$0xf] %vm1938, %v1883
      %1960 = vst.msk [vmem:[#allocation3 + $0x54] sm:$0xf] %vm1938, %v1885
      %1961 = vst.msk [vmem:[#allocation3 + $0x58] sm:$0xf] %vm1938, %v1887
      %1962 = vst.msk [vmem:[#allocation3 + $0x5c] sm:$0xf] %vm1938, %v1889
      %1963 = vst.msk [vmem:[#allocation3 + $0x60] sm:$0xf] %vm1938, %v1891
      %1964 = vst.msk [vmem:[#allocation3 + $0x64] sm:$0xf] %vm1938, %v1893
      %1965 = vst.msk [vmem:[#allocation3 + $0x68] sm:$0xf] %vm1938, %v1895
      %1966 = vst.msk [vmem:[#allocation3 + $0x6c] sm:$0xf] %vm1938, %v1897
      %1967 = vst.msk [vmem:[#allocation3 + $0x70] sm:$0xf] %vm1938, %v1899
      %1968 = vst.msk [vmem:[#allocation3 + $0x74] sm:$0xf] %vm1938, %v1901
      %1969 = vst.msk [vmem:[#allocation3 + $0x78] sm:$0xf] %vm1938, %v1903
      %1970 = vst.msk [vmem:[#allocation3 + $0x7c] sm:$0xf] %vm1938, %v1905
      %v1971 = vld [vmem:[%s885] sm:$0xf]
      %v1972 = vld [vmem:[%s885 + $0x4] sm:$0xf]
      %v1973 = vld [vmem:[%s885 + $0xc] sm:$0xf]
      %v1974 = vld [vmem:[%s885 + $0x10] sm:$0xf]
      %v1975 = vld [vmem:[%s885 + $0x18] sm:$0xf]
      %v1976 = vld [vmem:[%s885 + $0x1c] sm:$0xf]
      %v1977 = vld [vmem:[%s885 + $0x24] sm:$0xf]
      %v1978 = vld [vmem:[%s885 + $0x28] sm:$0xf]
      %v1979 = vld [vmem:[%s885 + $0x30] sm:$0xf]
      %v1980 = vld [vmem:[%s885 + $0x34] sm:$0xf]
      %v1981 = vld [vmem:[%s885 + $0x3c] sm:$0xf]
      %v1982 = vld [vmem:[%s885 + $0x40] sm:$0xf]
      %v1983 = vld [vmem:[%s885 + $0x48] sm:$0xf]
      %v1984 = vld [vmem:[%s885 + $0x4c] sm:$0xf]
      %v1985 = vld [vmem:[%s885 + $0x54] sm:$0xf]
      %v1986 = vld [vmem:[%s885 + $0x58] sm:$0xf]
      %v1987 = vld [vmem:[%s885 + $0x60] sm:$0xf]
      %v1988 = vld [vmem:[%s885 + $0x64] sm:$0xf]
      %v1989 = vld [vmem:[%s885 + $0x6c] sm:$0xf]
      %v1990 = vld [vmem:[%s885 + $0x70] sm:$0xf]
      %v1991 = vld [vmem:[%s885 + $0x78] sm:$0xf]
      %v1992 = vld [vmem:[%s885 + $0x7c] sm:$0xf]
      %v1993 = vld [vmem:[%s885 + $0x84] sm:$0xf]
      %v1994 = vld [vmem:[%s885 + $0x88] sm:$0xf]
      %v1995 = vld [vmem:[%s885 + $0x90] sm:$0xf]
      %v1996 = vld [vmem:[%s885 + $0x94] sm:$0xf]
      %v1997 = vld [vmem:[%s885 + $0x9c] sm:$0xf]
      %v1998 = vld [vmem:[%s885 + $0xa0] sm:$0xf]
      %v1999 = vld [vmem:[%s885 + $0xa8] sm:$0xf]
      %v2000 = vld [vmem:[%s885 + $0xac] sm:$0xf]
      %v2001 = vld [vmem:[%s885 + $0xb4] sm:$0xf]
      %v2002 = vld [vmem:[%s885 + $0xb8] sm:$0xf]
      %2035 = vrot.lane.b32.xlu0 %v1971, 12
      %v2036 = vpop.permute.xlu0 %2035
      %2037 = vrot.lane.b32.xlu0 %v1972, 12
      %v2038 = vpop.permute.xlu0 %2037
      %2039 = vrot.lane.b32.xlu0 %v1973, 12
      %v2040 = vpop.permute.xlu0 %2039
      %2041 = vrot.lane.b32.xlu0 %v1974, 12
      %v2042 = vpop.permute.xlu0 %2041
      %2043 = vrot.lane.b32.xlu0 %v1975, 12
      %v2044 = vpop.permute.xlu0 %2043
      %2045 = vrot.lane.b32.xlu0 %v1976, 12
      %v2046 = vpop.permute.xlu0 %2045
      %2047 = vrot.lane.b32.xlu0 %v1977, 12
      %v2048 = vpop.permute.xlu0 %2047
      %2049 = vrot.lane.b32.xlu0 %v1978, 12
      %v2050 = vpop.permute.xlu0 %2049
      %2051 = vrot.lane.b32.xlu0 %v1979, 12
      %v2052 = vpop.permute.xlu0 %2051
      %2053 = vrot.lane.b32.xlu0 %v1980, 12
      %v2054 = vpop.permute.xlu0 %2053
      %2055 = vrot.lane.b32.xlu0 %v1981, 12
      %v2056 = vpop.permute.xlu0 %2055
      %2057 = vrot.lane.b32.xlu0 %v1982, 12
      %v2058 = vpop.permute.xlu0 %2057
      %2059 = vrot.lane.b32.xlu0 %v1983, 12
      %v2060 = vpop.permute.xlu0 %2059
      %2061 = vrot.lane.b32.xlu0 %v1984, 12
      %v2062 = vpop.permute.xlu0 %2061
      %2063 = vrot.lane.b32.xlu0 %v1985, 12
      %v2064 = vpop.permute.xlu0 %2063
      %2065 = vrot.lane.b32.xlu0 %v1986, 12
      %v2066 = vpop.permute.xlu0 %2065
      %2067 = vrot.lane.b32.xlu0 %v1987, 12
      %v2068 = vpop.permute.xlu0 %2067
      %2069 = vrot.lane.b32.xlu0 %v1988, 12
      %v2070 = vpop.permute.xlu0 %2069
      %2071 = vrot.lane.b32.xlu0 %v1989, 12
      %v2072 = vpop.permute.xlu0 %2071
      %2073 = vrot.lane.b32.xlu0 %v1990, 12
      %v2074 = vpop.permute.xlu0 %2073
      %2075 = vrot.lane.b32.xlu0 %v1991, 12
      %v2076 = vpop.permute.xlu0 %2075
      %2077 = vrot.lane.b32.xlu0 %v1992, 12
      %v2078 = vpop.permute.xlu0 %2077
      %2079 = vrot.lane.b32.xlu0 %v1993, 12
      %v2080 = vpop.permute.xlu0 %2079
      %2081 = vrot.lane.b32.xlu0 %v1994, 12
      %v2082 = vpop.permute.xlu0 %2081
      %2083 = vrot.lane.b32.xlu0 %v1995, 12
      %v2084 = vpop.permute.xlu0 %2083
      %2085 = vrot.lane.b32.xlu0 %v1996, 12
      %v2086 = vpop.permute.xlu0 %2085
      %2087 = vrot.lane.b32.xlu0 %v1997, 12
      %v2088 = vpop.permute.xlu0 %2087
      %2089 = vrot.lane.b32.xlu0 %v1998, 12
      %v2090 = vpop.permute.xlu0 %2089
      %2091 = vrot.lane.b32.xlu0 %v1999, 12
      %v2092 = vpop.permute.xlu0 %2091
      %2093 = vrot.lane.b32.xlu0 %v2000, 12
      %v2094 = vpop.permute.xlu0 %2093
      %2095 = vrot.lane.b32.xlu0 %v2001, 12
      %v2096 = vpop.permute.xlu0 %2095
      %2097 = vrot.lane.b32.xlu0 %v2002, 12
      %v2098 = vpop.permute.xlu0 %2097
      %vm2131 = vcmask 126048
      %2132 = vst.msk [vmem:[#allocation3] sm:$0xf] %vm2131, %v2036
      %2133 = vst.msk [vmem:[#allocation3 + $0x4] sm:$0xf] %vm2131, %v2038
      %2134 = vst.msk [vmem:[#allocation3 + $0x8] sm:$0xf] %vm2131, %v2040
      %2135 = vst.msk [vmem:[#allocation3 + $0xc] sm:$0xf] %vm2131, %v2042
      %2136 = vst.msk [vmem:[#allocation3 + $0x10] sm:$0xf] %vm2131, %v2044
      %2137 = vst.msk [vmem:[#allocation3 + $0x14] sm:$0xf] %vm2131, %v2046
      %2138 = vst.msk [vmem:[#allocation3 + $0x18] sm:$0xf] %vm2131, %v2048
      %2139 = vst.msk [vmem:[#allocation3 + $0x1c] sm:$0xf] %vm2131, %v2050
      %2140 = vst.msk [vmem:[#allocation3 + $0x20] sm:$0xf] %vm2131, %v2052
      %2141 = vst.msk [vmem:[#allocation3 + $0x24] sm:$0xf] %vm2131, %v2054
      %2142 = vst.msk [vmem:[#allocation3 + $0x28] sm:$0xf] %vm2131, %v2056
      %2143 = vst.msk [vmem:[#allocation3 + $0x2c] sm:$0xf] %vm2131, %v2058
      %2144 = vst.msk [vmem:[#allocation3 + $0x30] sm:$0xf] %vm2131, %v2060
      %2145 = vst.msk [vmem:[#allocation3 + $0x34] sm:$0xf] %vm2131, %v2062
      %2146 = vst.msk [vmem:[#allocation3 + $0x38] sm:$0xf] %vm2131, %v2064
      %2147 = vst.msk [vmem:[#allocation3 + $0x3c] sm:$0xf] %vm2131, %v2066
      %2148 = vst.msk [vmem:[#allocation3 + $0x40] sm:$0xf] %vm2131, %v2068
      %2149 = vst.msk [vmem:[#allocation3 + $0x44] sm:$0xf] %vm2131, %v2070
      %2150 = vst.msk [vmem:[#allocation3 + $0x48] sm:$0xf] %vm2131, %v2072
      %2151 = vst.msk [vmem:[#allocation3 + $0x4c] sm:$0xf] %vm2131, %v2074
      %2152 = vst.msk [vmem:[#allocation3 + $0x50] sm:$0xf] %vm2131, %v2076
      %2153 = vst.msk [vmem:[#allocation3 + $0x54] sm:$0xf] %vm2131, %v2078
      %2154 = vst.msk [vmem:[#allocation3 + $0x58] sm:$0xf] %vm2131, %v2080
      %2155 = vst.msk [vmem:[#allocation3 + $0x5c] sm:$0xf] %vm2131, %v2082
      %2156 = vst.msk [vmem:[#allocation3 + $0x60] sm:$0xf] %vm2131, %v2084
      %2157 = vst.msk [vmem:[#allocation3 + $0x64] sm:$0xf] %vm2131, %v2086
      %2158 = vst.msk [vmem:[#allocation3 + $0x68] sm:$0xf] %vm2131, %v2088
      %2159 = vst.msk [vmem:[#allocation3 + $0x6c] sm:$0xf] %vm2131, %v2090
      %2160 = vst.msk [vmem:[#allocation3 + $0x70] sm:$0xf] %vm2131, %v2092
      %2161 = vst.msk [vmem:[#allocation3 + $0x74] sm:$0xf] %vm2131, %v2094
      %2162 = vst.msk [vmem:[#allocation3 + $0x78] sm:$0xf] %vm2131, %v2096
      %2163 = vst.msk [vmem:[#allocation3 + $0x7c] sm:$0xf] %vm2131, %v2098
      %v2164 = vld [vmem:[%s885] sm:$0xf]
      %v2165 = vld [vmem:[%s885 + $0x4] sm:$0xf]
      %v2166 = vld [vmem:[%s885 + $0x8] sm:$0x1]
      %v2167 = vld [vmem:[%s885 + $0xc] sm:$0xf]
      %v2168 = vld [vmem:[%s885 + $0x10] sm:$0xf]
      %v2169 = vld [vmem:[%s885 + $0x14] sm:$0x1]
      %v2170 = vld [vmem:[%s885 + $0x18] sm:$0xf]
      %v2171 = vld [vmem:[%s885 + $0x1c] sm:$0xf]
      %v2172 = vld [vmem:[%s885 + $0x20] sm:$0x1]
      %v2173 = vld [vmem:[%s885 + $0x24] sm:$0xf]
      %v2174 = vld [vmem:[%s885 + $0x28] sm:$0xf]
      %v2175 = vld [vmem:[%s885 + $0x2c] sm:$0x1]
      %v2176 = vld [vmem:[%s885 + $0x30] sm:$0xf]
      %v2177 = vld [vmem:[%s885 + $0x34] sm:$0xf]
      %v2178 = vld [vmem:[%s885 + $0x38] sm:$0x1]
      %v2179 = vld [vmem:[%s885 + $0x3c] sm:$0xf]
      %v2180 = vld [vmem:[%s885 + $0x40] sm:$0xf]
      %v2181 = vld [vmem:[%s885 + $0x44] sm:$0x1]
      %v2182 = vld [vmem:[%s885 + $0x48] sm:$0xf]
      %v2183 = vld [vmem:[%s885 + $0x4c] sm:$0xf]
      %v2184 = vld [vmem:[%s885 + $0x50] sm:$0x1]
      %v2185 = vld [vmem:[%s885 + $0x54] sm:$0xf]
      %v2186 = vld [vmem:[%s885 + $0x58] sm:$0xf]
      %v2187 = vld [vmem:[%s885 + $0x5c] sm:$0x1]
      %v2188 = vld [vmem:[%s885 + $0x60] sm:$0xf]
      %v2189 = vld [vmem:[%s885 + $0x64] sm:$0xf]
      %v2190 = vld [vmem:[%s885 + $0x68] sm:$0x1]
      %v2191 = vld [vmem:[%s885 + $0x6c] sm:$0xf]
      %v2192 = vld [vmem:[%s885 + $0x70] sm:$0xf]
      %v2193 = vld [vmem:[%s885 + $0x74] sm:$0x1]
      %v2194 = vld [vmem:[%s885 + $0x78] sm:$0xf]
      %v2195 = vld [vmem:[%s885 + $0x7c] sm:$0xf]
      %v2196 = vld [vmem:[%s885 + $0x80] sm:$0x1]
      %v2197 = vld [vmem:[%s885 + $0x84] sm:$0xf]
      %v2198 = vld [vmem:[%s885 + $0x88] sm:$0xf]
      %v2199 = vld [vmem:[%s885 + $0x8c] sm:$0x1]
      %v2200 = vld [vmem:[%s885 + $0x90] sm:$0xf]
      %v2201 = vld [vmem:[%s885 + $0x94] sm:$0xf]
      %v2202 = vld [vmem:[%s885 + $0x98] sm:$0x1]
      %v2203 = vld [vmem:[%s885 + $0x9c] sm:$0xf]
      %v2204 = vld [vmem:[%s885 + $0xa0] sm:$0xf]
      %v2205 = vld [vmem:[%s885 + $0xa4] sm:$0x1]
      %v2206 = vld [vmem:[%s885 + $0xa8] sm:$0xf]
      %v2207 = vld [vmem:[%s885 + $0xac] sm:$0xf]
      %v2208 = vld [vmem:[%s885 + $0xb0] sm:$0x1]
      %v2209 = vld [vmem:[%s885 + $0xb4] sm:$0xf]
      %v2210 = vld [vmem:[%s885 + $0xb8] sm:$0xf]
      %v2211 = vld [vmem:[%s885 + $0xbc] sm:$0x1]
      %v2213 = vshrl.u32 %v2164, 16
      %v2215 = vrot.slane %v2213, 4
      %v2216 = vshll.u32 %v2164, 16
      %v2218 = vrot.slane %v2216, 5
      %v2219 = vor.u32 %v2215, %v2218
      %v2220 = vrot.slane %v2219, 4
      %v2222 = vshll.u32 %v2165, 16
      %v2224 = vrot.slane %v2222, 5
      %v2225 = vsel %vm1117, %v2220, %v2224
      %v2226 = vshrl.u32 %v2165, 16
      %v2228 = vrot.slane %v2226, 4
      %v2229 = vor.u32 %v2228, %v2224
      %v2230 = vrot.slane %v2229, 4
      %v2232 = vshll.u32 %v2166, 16
      %v2234 = vrot.slane %v2232, 5
      %v2235 = vsel %vm1117, %v2230, %v2234
      %v2237 = vshrl.u32 %v2167, 16
      %v2239 = vrot.slane %v2237, 4
      %v2240 = vshll.u32 %v2167, 16
      %v2242 = vrot.slane %v2240, 5
      %v2243 = vor.u32 %v2239, %v2242
      %v2244 = vrot.slane %v2243, 4
      %v2246 = vshll.u32 %v2168, 16
      %v2248 = vrot.slane %v2246, 5
      %v2249 = vsel %vm1117, %v2244, %v2248
      %v2250 = vshrl.u32 %v2168, 16
      %v2252 = vrot.slane %v2250, 4
      %v2253 = vor.u32 %v2252, %v2248
      %v2254 = vrot.slane %v2253, 4
      %v2256 = vshll.u32 %v2169, 16
      %v2258 = vrot.slane %v2256, 5
      %v2259 = vsel %vm1117, %v2254, %v2258
      %v2261 = vshrl.u32 %v2170, 16
      %v2263 = vrot.slane %v2261, 4
      %v2264 = vshll.u32 %v2170, 16
      %v2266 = vrot.slane %v2264, 5
      %v2267 = vor.u32 %v2263, %v2266
      %v2268 = vrot.slane %v2267, 4
      %v2270 = vshll.u32 %v2171, 16
      %v2272 = vrot.slane %v2270, 5
      %v2273 = vsel %vm1117, %v2268, %v2272
      %v2274 = vshrl.u32 %v2171, 16
      %v2276 = vrot.slane %v2274, 4
      %v2277 = vor.u32 %v2276, %v2272
      %v2278 = vrot.slane %v2277, 4
      %v2280 = vshll.u32 %v2172, 16
      %v2282 = vrot.slane %v2280, 5
      %v2283 = vsel %vm1117, %v2278, %v2282
      %v2285 = vshrl.u32 %v2173, 16
      %v2287 = vrot.slane %v2285, 4
      %v2288 = vshll.u32 %v2173, 16
      %v2290 = vrot.slane %v2288, 5
      %v2291 = vor.u32 %v2287, %v2290
      %v2292 = vrot.slane %v2291, 4
      %v2294 = vshll.u32 %v2174, 16
      %v2296 = vrot.slane %v2294, 5
      %v2297 = vsel %vm1117, %v2292, %v2296
      %v2298 = vshrl.u32 %v2174, 16
      %v2300 = vrot.slane %v2298, 4
      %v2301 = vor.u32 %v2300, %v2296
      %v2302 = vrot.slane %v2301, 4
      %v2304 = vshll.u32 %v2175, 16
      %v2306 = vrot.slane %v2304, 5
      %v2307 = vsel %vm1117, %v2302, %v2306
      %v2309 = vshrl.u32 %v2176, 16
      %v2311 = vrot.slane %v2309, 4
      %v2312 = vshll.u32 %v2176, 16
      %v2314 = vrot.slane %v2312, 5
      %v2315 = vor.u32 %v2311, %v2314
      %v2316 = vrot.slane %v2315, 4
      %v2318 = vshll.u32 %v2177, 16
      %v2320 = vrot.slane %v2318, 5
      %v2321 = vsel %vm1117, %v2316, %v2320
      %v2322 = vshrl.u32 %v2177, 16
      %v2324 = vrot.slane %v2322, 4
      %v2325 = vor.u32 %v2324, %v2320
      %v2326 = vrot.slane %v2325, 4
      %v2328 = vshll.u32 %v2178, 16
      %v2330 = vrot.slane %v2328, 5
      %v2331 = vsel %vm1117, %v2326, %v2330
      %v2333 = vshrl.u32 %v2179, 16
      %v2335 = vrot.slane %v2333, 4
      %v2336 = vshll.u32 %v2179, 16
      %v2338 = vrot.slane %v2336, 5
      %v2339 = vor.u32 %v2335, %v2338
      %v2340 = vrot.slane %v2339, 4
      %v2342 = vshll.u32 %v2180, 16
      %v2344 = vrot.slane %v2342, 5
      %v2345 = vsel %vm1117, %v2340, %v2344
      %v2346 = vshrl.u32 %v2180, 16
      %v2348 = vrot.slane %v2346, 4
      %v2349 = vor.u32 %v2348, %v2344
      %v2350 = vrot.slane %v2349, 4
      %v2352 = vshll.u32 %v2181, 16
      %v2354 = vrot.slane %v2352, 5
      %v2355 = vsel %vm1117, %v2350, %v2354
      %v2357 = vshrl.u32 %v2182, 16
      %v2359 = vrot.slane %v2357, 4
      %v2360 = vshll.u32 %v2182, 16
      %v2362 = vrot.slane %v2360, 5
      %v2363 = vor.u32 %v2359, %v2362
      %v2364 = vrot.slane %v2363, 4
      %v2366 = vshll.u32 %v2183, 16
      %v2368 = vrot.slane %v2366, 5
      %v2369 = vsel %vm1117, %v2364, %v2368
      %v2370 = vshrl.u32 %v2183, 16
      %v2372 = vrot.slane %v2370, 4
      %v2373 = vor.u32 %v2372, %v2368
      %v2374 = vrot.slane %v2373, 4
      %v2376 = vshll.u32 %v2184, 16
      %v2378 = vrot.slane %v2376, 5
      %v2379 = vsel %vm1117, %v2374, %v2378
      %v2381 = vshrl.u32 %v2185, 16
      %v2383 = vrot.slane %v2381, 4
      %v2384 = vshll.u32 %v2185, 16
      %v2386 = vrot.slane %v2384, 5
      %v2387 = vor.u32 %v2383, %v2386
      %v2388 = vrot.slane %v2387, 4
      %v2390 = vshll.u32 %v2186, 16
      %v2392 = vrot.slane %v2390, 5
      %v2393 = vsel %vm1117, %v2388, %v2392
      %v2394 = vshrl.u32 %v2186, 16
      %v2396 = vrot.slane %v2394, 4
      %v2397 = vor.u32 %v2396, %v2392
      %v2398 = vrot.slane %v2397, 4
      %v2400 = vshll.u32 %v2187, 16
      %v2402 = vrot.slane %v2400, 5
      %v2403 = vsel %vm1117, %v2398, %v2402
      %v2405 = vshrl.u32 %v2188, 16
      %v2407 = vrot.slane %v2405, 4
      %v2408 = vshll.u32 %v2188, 16
      %v2410 = vrot.slane %v2408, 5
      %v2411 = vor.u32 %v2407, %v2410
      %v2412 = vrot.slane %v2411, 4
      %v2414 = vshll.u32 %v2189, 16
      %v2416 = vrot.slane %v2414, 5
      %v2417 = vsel %vm1117, %v2412, %v2416
      %v2418 = vshrl.u32 %v2189, 16
      %v2420 = vrot.slane %v2418, 4
      %v2421 = vor.u32 %v2420, %v2416
      %v2422 = vrot.slane %v2421, 4
      %v2424 = vshll.u32 %v2190, 16
      %v2426 = vrot.slane %v2424, 5
      %v2427 = vsel %vm1117, %v2422, %v2426
      %v2429 = vshrl.u32 %v2191, 16
      %v2431 = vrot.slane %v2429, 4
      %v2432 = vshll.u32 %v2191, 16
      %v2434 = vrot.slane %v2432, 5
      %v2435 = vor.u32 %v2431, %v2434
      %v2436 = vrot.slane %v2435, 4
      %v2438 = vshll.u32 %v2192, 16
      %v2440 = vrot.slane %v2438, 5
      %v2441 = vsel %vm1117, %v2436, %v2440
      %v2442 = vshrl.u32 %v2192, 16
      %v2444 = vrot.slane %v2442, 4
      %v2445 = vor.u32 %v2444, %v2440
      %v2446 = vrot.slane %v2445, 4
      %v2448 = vshll.u32 %v2193, 16
      %v2450 = vrot.slane %v2448, 5
      %v2451 = vsel %vm1117, %v2446, %v2450
      %v2453 = vshrl.u32 %v2194, 16
      %v2455 = vrot.slane %v2453, 4
      %v2456 = vshll.u32 %v2194, 16
      %v2458 = vrot.slane %v2456, 5
      %v2459 = vor.u32 %v2455, %v2458
      %v2460 = vrot.slane %v2459, 4
      %v2462 = vshll.u32 %v2195, 16
      %v2464 = vrot.slane %v2462, 5
      %v2465 = vsel %vm1117, %v2460, %v2464
      %v2466 = vshrl.u32 %v2195, 16
      %v2468 = vrot.slane %v2466, 4
      %v2469 = vor.u32 %v2468, %v2464
      %v2470 = vrot.slane %v2469, 4
      %v2472 = vshll.u32 %v2196, 16
      %v2474 = vrot.slane %v2472, 5
      %v2475 = vsel %vm1117, %v2470, %v2474
      %v2477 = vshrl.u32 %v2197, 16
      %v2479 = vrot.slane %v2477, 4
      %v2480 = vshll.u32 %v2197, 16
      %v2482 = vrot.slane %v2480, 5
      %v2483 = vor.u32 %v2479, %v2482
      %v2484 = vrot.slane %v2483, 4
      %v2486 = vshll.u32 %v2198, 16
      %v2488 = vrot.slane %v2486, 5
      %v2489 = vsel %vm1117, %v2484, %v2488
      %v2490 = vshrl.u32 %v2198, 16
      %v2492 = vrot.slane %v2490, 4
      %v2493 = vor.u32 %v2492, %v2488
      %v2494 = vrot.slane %v2493, 4
      %v2496 = vshll.u32 %v2199, 16
      %v2498 = vrot.slane %v2496, 5
      %v2499 = vsel %vm1117, %v2494, %v2498
      %v2501 = vshrl.u32 %v2200, 16
      %v2503 = vrot.slane %v2501, 4
      %v2504 = vshll.u32 %v2200, 16
      %v2506 = vrot.slane %v2504, 5
      %v2507 = vor.u32 %v2503, %v2506
      %v2508 = vrot.slane %v2507, 4
      %v2510 = vshll.u32 %v2201, 16
      %v2512 = vrot.slane %v2510, 5
      %v2513 = vsel %vm1117, %v2508, %v2512
      %v2514 = vshrl.u32 %v2201, 16
      %v2516 = vrot.slane %v2514, 4
      %v2517 = vor.u32 %v2516, %v2512
      %v2518 = vrot.slane %v2517, 4
      %v2520 = vshll.u32 %v2202, 16
      %v2522 = vrot.slane %v2520, 5
      %v2523 = vsel %vm1117, %v2518, %v2522
      %v2525 = vshrl.u32 %v2203, 16
      %v2527 = vrot.slane %v2525, 4
      %v2528 = vshll.u32 %v2203, 16
      %v2530 = vrot.slane %v2528, 5
      %v2531 = vor.u32 %v2527, %v2530
      %v2532 = vrot.slane %v2531, 4
      %v2534 = vshll.u32 %v2204, 16
      %v2536 = vrot.slane %v2534, 5
      %v2537 = vsel %vm1117, %v2532, %v2536
      %v2538 = vshrl.u32 %v2204, 16
      %v2540 = vrot.slane %v2538, 4
      %v2541 = vor.u32 %v2540, %v2536
      %v2542 = vrot.slane %v2541, 4
      %v2544 = vshll.u32 %v2205, 16
      %v2546 = vrot.slane %v2544, 5
      %v2547 = vsel %vm1117, %v2542, %v2546
      %v2549 = vshrl.u32 %v2206, 16
      %v2551 = vrot.slane %v2549, 4
      %v2552 = vshll.u32 %v2206, 16
      %v2554 = vrot.slane %v2552, 5
      %v2555 = vor.u32 %v2551, %v2554
      %v2556 = vrot.slane %v2555, 4
      %v2558 = vshll.u32 %v2207, 16
      %v2560 = vrot.slane %v2558, 5
      %v2561 = vsel %vm1117, %v2556, %v2560
      %v2562 = vshrl.u32 %v2207, 16
      %v2564 = vrot.slane %v2562, 4
      %v2565 = vor.u32 %v2564, %v2560
      %v2566 = vrot.slane %v2565, 4
      %v2568 = vshll.u32 %v2208, 16
      %v2570 = vrot.slane %v2568, 5
      %v2571 = vsel %vm1117, %v2566, %v2570
      %v2573 = vshrl.u32 %v2209, 16
      %v2575 = vrot.slane %v2573, 4
      %v2576 = vshll.u32 %v2209, 16
      %v2578 = vrot.slane %v2576, 5
      %v2579 = vor.u32 %v2575, %v2578
      %v2580 = vrot.slane %v2579, 4
      %v2582 = vshll.u32 %v2210, 16
      %v2584 = vrot.slane %v2582, 5
      %v2585 = vsel %vm1117, %v2580, %v2584
      %v2586 = vshrl.u32 %v2210, 16
      %v2588 = vrot.slane %v2586, 4
      %v2589 = vor.u32 %v2588, %v2584
      %v2590 = vrot.slane %v2589, 4
      %v2592 = vshll.u32 %v2211, 16
      %v2594 = vrot.slane %v2592, 5
      %v2595 = vsel %vm1117, %v2590, %v2594
      %2596 = vrot.lane.b32.xlu0 %v2225, 16
      %v2597 = vpop.permute.xlu0 %2596
      %2598 = vrot.lane.b32.xlu0 %v2235, 16
      %v2599 = vpop.permute.xlu0 %2598
      %2600 = vrot.lane.b32.xlu0 %v2249, 16
      %v2601 = vpop.permute.xlu0 %2600
      %2602 = vrot.lane.b32.xlu0 %v2259, 16
      %v2603 = vpop.permute.xlu0 %2602
      %2604 = vrot.lane.b32.xlu0 %v2273, 16
      %v2605 = vpop.permute.xlu0 %2604
      %2606 = vrot.lane.b32.xlu0 %v2283, 16
      %v2607 = vpop.permute.xlu0 %2606
      %2608 = vrot.lane.b32.xlu0 %v2297, 16
      %v2609 = vpop.permute.xlu0 %2608
      %2610 = vrot.lane.b32.xlu0 %v2307, 16
      %v2611 = vpop.permute.xlu0 %2610
      %2612 = vrot.lane.b32.xlu0 %v2321, 16
      %v2613 = vpop.permute.xlu0 %2612
      %2614 = vrot.lane.b32.xlu0 %v2331, 16
      %v2615 = vpop.permute.xlu0 %2614
      %2616 = vrot.lane.b32.xlu0 %v2345, 16
      %v2617 = vpop.permute.xlu0 %2616
      %2618 = vrot.lane.b32.xlu0 %v2355, 16
      %v2619 = vpop.permute.xlu0 %2618
      %2620 = vrot.lane.b32.xlu0 %v2369, 16
      %v2621 = vpop.permute.xlu0 %2620
      %2622 = vrot.lane.b32.xlu0 %v2379, 16
      %v2623 = vpop.permute.xlu0 %2622
      %2624 = vrot.lane.b32.xlu0 %v2393, 16
      %v2625 = vpop.permute.xlu0 %2624
      %2626 = vrot.lane.b32.xlu0 %v2403, 16
      %v2627 = vpop.permute.xlu0 %2626
      %2628 = vrot.lane.b32.xlu0 %v2417, 16
      %v2629 = vpop.permute.xlu0 %2628
      %2630 = vrot.lane.b32.xlu0 %v2427, 16
      %v2631 = vpop.permute.xlu0 %2630
      %2632 = vrot.lane.b32.xlu0 %v2441, 16
      %v2633 = vpop.permute.xlu0 %2632
      %2634 = vrot.lane.b32.xlu0 %v2451, 16
      %v2635 = vpop.permute.xlu0 %2634
      %2636 = vrot.lane.b32.xlu0 %v2465, 16
      %v2637 = vpop.permute.xlu0 %2636
      %2638 = vrot.lane.b32.xlu0 %v2475, 16
      %v2639 = vpop.permute.xlu0 %2638
      %2640 = vrot.lane.b32.xlu0 %v2489, 16
      %v2641 = vpop.permute.xlu0 %2640
      %2642 = vrot.lane.b32.xlu0 %v2499, 16
      %v2643 = vpop.permute.xlu0 %2642
      %2644 = vrot.lane.b32.xlu0 %v2513, 16
      %v2645 = vpop.permute.xlu0 %2644
      %2646 = vrot.lane.b32.xlu0 %v2523, 16
      %v2647 = vpop.permute.xlu0 %2646
      %2648 = vrot.lane.b32.xlu0 %v2537, 16
      %v2649 = vpop.permute.xlu0 %2648
      %2650 = vrot.lane.b32.xlu0 %v2547, 16
      %v2651 = vpop.permute.xlu0 %2650
      %2652 = vrot.lane.b32.xlu0 %v2561, 16
      %v2653 = vpop.permute.xlu0 %2652
      %2654 = vrot.lane.b32.xlu0 %v2571, 16
      %v2655 = vpop.permute.xlu0 %2654
      %2656 = vrot.lane.b32.xlu0 %v2585, 16
      %v2657 = vpop.permute.xlu0 %2656
      %2658 = vrot.lane.b32.xlu0 %v2595, 16
      %v2659 = vpop.permute.xlu0 %2658
      %vm2692 = vcmask 158848
      %2693 = vst.msk [vmem:[#allocation3] sm:$0xf] %vm2692, %v2597
      %2694 = vst.msk [vmem:[#allocation3 + $0x4] sm:$0xf] %vm2692, %v2599
      %2695 = vst.msk [vmem:[#allocation3 + $0x8] sm:$0xf] %vm2692, %v2601
      %2696 = vst.msk [vmem:[#allocation3 + $0xc] sm:$0xf] %vm2692, %v2603
      %2697 = vst.msk [vmem:[#allocation3 + $0x10] sm:$0xf] %vm2692, %v2605
      %2698 = vst.msk [vmem:[#allocation3 + $0x14] sm:$0xf] %vm2692, %v2607
      %2699 = vst.msk [vmem:[#allocation3 + $0x18] sm:$0xf] %vm2692, %v2609
      %2700 = vst.msk [vmem:[#allocation3 + $0x1c] sm:$0xf] %vm2692, %v2611
      %2701 = vst.msk [vmem:[#allocation3 + $0x20] sm:$0xf] %vm2692, %v2613
      %2702 = vst.msk [vmem:[#allocation3 + $0x24] sm:$0xf] %vm2692, %v2615
      %2703 = vst.msk [vmem:[#allocation3 + $0x28] sm:$0xf] %vm2692, %v2617
      %2704 = vst.msk [vmem:[#allocation3 + $0x2c] sm:$0xf] %vm2692, %v2619
      %2705 = vst.msk [vmem:[#allocation3 + $0x30] sm:$0xf] %vm2692, %v2621
      %2706 = vst.msk [vmem:[#allocation3 + $0x34] sm:$0xf] %vm2692, %v2623
      %2707 = vst.msk [vmem:[#allocation3 + $0x38] sm:$0xf] %vm2692, %v2625
      %2708 = vst.msk [vmem:[#allocation3 + $0x3c] sm:$0xf] %vm2692, %v2627
      %2709 = vst.msk [vmem:[#allocation3 + $0x40] sm:$0xf] %vm2692, %v2629
      %2710 = vst.msk [vmem:[#allocation3 + $0x44] sm:$0xf] %vm2692, %v2631
      %2711 = vst.msk [vmem:[#allocation3 + $0x48] sm:$0xf] %vm2692, %v2633
      %2712 = vst.msk [vmem:[#allocation3 + $0x4c] sm:$0xf] %vm2692, %v2635
      %2713 = vst.msk [vmem:[#allocation3 + $0x50] sm:$0xf] %vm2692, %v2637
      %2714 = vst.msk [vmem:[#allocation3 + $0x54] sm:$0xf] %vm2692, %v2639
      %2715 = vst.msk [vmem:[#allocation3 + $0x58] sm:$0xf] %vm2692, %v2641
      %2716 = vst.msk [vmem:[#allocation3 + $0x5c] sm:$0xf] %vm2692, %v2643
      %2717 = vst.msk [vmem:[#allocation3 + $0x60] sm:$0xf] %vm2692, %v2645
      %2718 = vst.msk [vmem:[#allocation3 + $0x64] sm:$0xf] %vm2692, %v2647
      %2719 = vst.msk [vmem:[#allocation3 + $0x68] sm:$0xf] %vm2692, %v2649
      %2720 = vst.msk [vmem:[#allocation3 + $0x6c] sm:$0xf] %vm2692, %v2651
      %2721 = vst.msk [vmem:[#allocation3 + $0x70] sm:$0xf] %vm2692, %v2653
      %2722 = vst.msk [vmem:[#allocation3 + $0x74] sm:$0xf] %vm2692, %v2655
      %2723 = vst.msk [vmem:[#allocation3 + $0x78] sm:$0xf] %vm2692, %v2657
      %2724 = vst.msk [vmem:[#allocation3 + $0x7c] sm:$0xf] %vm2692, %v2659
      %v2725 = vld [vmem:[%s885] sm:$0xe]
      %v2726 = vld [vmem:[%s885 + $0x4] sm:$0xf]
      %v2727 = vld [vmem:[%s885 + $0x8] sm:$0x1]
      %v2728 = vld [vmem:[%s885 + $0xc] sm:$0xe]
      %v2729 = vld [vmem:[%s885 + $0x10] sm:$0xf]
      %v2730 = vld [vmem:[%s885 + $0x14] sm:$0x1]
      %v2731 = vld [vmem:[%s885 + $0x18] sm:$0xe]
      %v2732 = vld [vmem:[%s885 + $0x1c] sm:$0xf]
      %v2733 = vld [vmem:[%s885 + $0x20] sm:$0x1]
      %v2734 = vld [vmem:[%s885 + $0x24] sm:$0xe]
      %v2735 = vld [vmem:[%s885 + $0x28] sm:$0xf]
      %v2736 = vld [vmem:[%s885 + $0x2c] sm:$0x1]
      %v2737 = vld [vmem:[%s885 + $0x30] sm:$0xe]
      %v2738 = vld [vmem:[%s885 + $0x34] sm:$0xf]
      %v2739 = vld [vmem:[%s885 + $0x38] sm:$0x1]
      %v2740 = vld [vmem:[%s885 + $0x3c] sm:$0xe]
      %v2741 = vld [vmem:[%s885 + $0x40] sm:$0xf]
      %v2742 = vld [vmem:[%s885 + $0x44] sm:$0x1]
      %v2743 = vld [vmem:[%s885 + $0x48] sm:$0xe]
      %v2744 = vld [vmem:[%s885 + $0x4c] sm:$0xf]
      %v2745 = vld [vmem:[%s885 + $0x50] sm:$0x1]
      %v2746 = vld [vmem:[%s885 + $0x54] sm:$0xe]
      %v2747 = vld [vmem:[%s885 + $0x58] sm:$0xf]
      %v2748 = vld [vmem:[%s885 + $0x5c] sm:$0x1]
      %v2749 = vld [vmem:[%s885 + $0x60] sm:$0xe]
      %v2750 = vld [vmem:[%s885 + $0x64] sm:$0xf]
      %v2751 = vld [vmem:[%s885 + $0x68] sm:$0x1]
      %v2752 = vld [vmem:[%s885 + $0x6c] sm:$0xe]
      %v2753 = vld [vmem:[%s885 + $0x70] sm:$0xf]
      %v2754 = vld [vmem:[%s885 + $0x74] sm:$0x1]
      %v2755 = vld [vmem:[%s885 + $0x78] sm:$0xe]
      %v2756 = vld [vmem:[%s885 + $0x7c] sm:$0xf]
      %v2757 = vld [vmem:[%s885 + $0x80] sm:$0x1]
      %v2758 = vld [vmem:[%s885 + $0x84] sm:$0xe]
      %v2759 = vld [vmem:[%s885 + $0x88] sm:$0xf]
      %v2760 = vld [vmem:[%s885 + $0x8c] sm:$0x1]
      %v2761 = vld [vmem:[%s885 + $0x90] sm:$0xe]
      %v2762 = vld [vmem:[%s885 + $0x94] sm:$0xf]
      %v2763 = vld [vmem:[%s885 + $0x98] sm:$0x1]
      %v2764 = vld [vmem:[%s885 + $0x9c] sm:$0xe]
      %v2765 = vld [vmem:[%s885 + $0xa0] sm:$0xf]
      %v2766 = vld [vmem:[%s885 + $0xa4] sm:$0x1]
      %v2767 = vld [vmem:[%s885 + $0xa8] sm:$0xe]
      %v2768 = vld [vmem:[%s885 + $0xac] sm:$0xf]
      %v2769 = vld [vmem:[%s885 + $0xb0] sm:$0x1]
      %v2770 = vld [vmem:[%s885 + $0xb4] sm:$0xe]
      %v2771 = vld [vmem:[%s885 + $0xb8] sm:$0xf]
      %v2772 = vld [vmem:[%s885 + $0xbc] sm:$0x1]
      %v2821 = vrot.slane %v2725, 5
      %v2822 = vrot.slane %v2821, 4
      %v2823 = vrot.slane %v2726, 5
      %v2824 = vsel %vm1729, %v2822, %v2823
      %v2825 = vrot.slane %v2823, 4
      %v2826 = vrot.slane %v2727, 5
      %v2827 = vsel %vm1729, %v2825, %v2826
      %v2828 = vrot.slane %v2728, 5
      %v2829 = vrot.slane %v2828, 4
      %v2830 = vrot.slane %v2729, 5
      %v2831 = vsel %vm1729, %v2829, %v2830
      %v2832 = vrot.slane %v2830, 4
      %v2833 = vrot.slane %v2730, 5
      %v2834 = vsel %vm1729, %v2832, %v2833
      %v2835 = vrot.slane %v2731, 5
      %v2836 = vrot.slane %v2835, 4
      %v2837 = vrot.slane %v2732, 5
      %v2838 = vsel %vm1729, %v2836, %v2837
      %v2839 = vrot.slane %v2837, 4
      %v2840 = vrot.slane %v2733, 5
      %v2841 = vsel %vm1729, %v2839, %v2840
      %v2842 = vrot.slane %v2734, 5
      %v2843 = vrot.slane %v2842, 4
      %v2844 = vrot.slane %v2735, 5
      %v2845 = vsel %vm1729, %v2843, %v2844
      %v2846 = vrot.slane %v2844, 4
      %v2847 = vrot.slane %v2736, 5
      %v2848 = vsel %vm1729, %v2846, %v2847
      %v2849 = vrot.slane %v2737, 5
      %v2850 = vrot.slane %v2849, 4
      %v2851 = vrot.slane %v2738, 5
      %v2852 = vsel %vm1729, %v2850, %v2851
      %v2853 = vrot.slane %v2851, 4
      %v2854 = vrot.slane %v2739, 5
      %v2855 = vsel %vm1729, %v2853, %v2854
      %v2856 = vrot.slane %v2740, 5
      %v2857 = vrot.slane %v2856, 4
      %v2858 = vrot.slane %v2741, 5
      %v2859 = vsel %vm1729, %v2857, %v2858
      %v2860 = vrot.slane %v2858, 4
      %v2861 = vrot.slane %v2742, 5
      %v2862 = vsel %vm1729, %v2860, %v2861
      %v2863 = vrot.slane %v2743, 5
      %v2864 = vrot.slane %v2863, 4
      %v2865 = vrot.slane %v2744, 5
      %v2866 = vsel %vm1729, %v2864, %v2865
      %v2867 = vrot.slane %v2865, 4
      %v2868 = vrot.slane %v2745, 5
      %v2869 = vsel %vm1729, %v2867, %v2868
      %v2870 = vrot.slane %v2746, 5
      %v2871 = vrot.slane %v2870, 4
      %v2872 = vrot.slane %v2747, 5
      %v2873 = vsel %vm1729, %v2871, %v2872
      %v2874 = vrot.slane %v2872, 4
      %v2875 = vrot.slane %v2748, 5
      %v2876 = vsel %vm1729, %v2874, %v2875
      %v2877 = vrot.slane %v2749, 5
      %v2878 = vrot.slane %v2877, 4
      %v2879 = vrot.slane %v2750, 5
      %v2880 = vsel %vm1729, %v2878, %v2879
      %v2881 = vrot.slane %v2879, 4
      %v2882 = vrot.slane %v2751, 5
      %v2883 = vsel %vm1729, %v2881, %v2882
      %v2884 = vrot.slane %v2752, 5
      %v2885 = vrot.slane %v2884, 4
      %v2886 = vrot.slane %v2753, 5
      %v2887 = vsel %vm1729, %v2885, %v2886
      %v2888 = vrot.slane %v2886, 4
      %v2889 = vrot.slane %v2754, 5
      %v2890 = vsel %vm1729, %v2888, %v2889
      %v2891 = vrot.slane %v2755, 5
      %v2892 = vrot.slane %v2891, 4
      %v2893 = vrot.slane %v2756, 5
      %v2894 = vsel %vm1729, %v2892, %v2893
      %v2895 = vrot.slane %v2893, 4
      %v2896 = vrot.slane %v2757, 5
      %v2897 = vsel %vm1729, %v2895, %v2896
      %v2898 = vrot.slane %v2758, 5
      %v2899 = vrot.slane %v2898, 4
      %v2900 = vrot.slane %v2759, 5
      %v2901 = vsel %vm1729, %v2899, %v2900
      %v2902 = vrot.slane %v2900, 4
      %v2903 = vrot.slane %v2760, 5
      %v2904 = vsel %vm1729, %v2902, %v2903
      %v2905 = vrot.slane %v2761, 5
      %v2906 = vrot.slane %v2905, 4
      %v2907 = vrot.slane %v2762, 5
      %v2908 = vsel %vm1729, %v2906, %v2907
      %v2909 = vrot.slane %v2907, 4
      %v2910 = vrot.slane %v2763, 5
      %v2911 = vsel %vm1729, %v2909, %v2910
      %v2912 = vrot.slane %v2764, 5
      %v2913 = vrot.slane %v2912, 4
      %v2914 = vrot.slane %v2765, 5
      %v2915 = vsel %vm1729, %v2913, %v2914
      %v2916 = vrot.slane %v2914, 4
      %v2917 = vrot.slane %v2766, 5
      %v2918 = vsel %vm1729, %v2916, %v2917
      %v2919 = vrot.slane %v2767, 5
      %v2920 = vrot.slane %v2919, 4
      %v2921 = vrot.slane %v2768, 5
      %v2922 = vsel %vm1729, %v2920, %v2921
      %v2923 = vrot.slane %v2921, 4
      %v2924 = vrot.slane %v2769, 5
      %v2925 = vsel %vm1729, %v2923, %v2924
      %v2926 = vrot.slane %v2770, 5
      %v2927 = vrot.slane %v2926, 4
      %v2928 = vrot.slane %v2771, 5
      %v2929 = vsel %vm1729, %v2927, %v2928
      %v2930 = vrot.slane %v2928, 4
      %v2931 = vrot.slane %v2772, 5
      %v2932 = vsel %vm1729, %v2930, %v2931
      %2933 = vrot.lane.b32.xlu0 %v2824, 20
      %v2934 = vpop.permute.xlu0 %2933
      %2935 = vrot.lane.b32.xlu0 %v2827, 20
      %v2936 = vpop.permute.xlu0 %2935
      %2937 = vrot.lane.b32.xlu0 %v2831, 20
      %v2938 = vpop.permute.xlu0 %2937
      %2939 = vrot.lane.b32.xlu0 %v2834, 20
      %v2940 = vpop.permute.xlu0 %2939
      %2941 = vrot.lane.b32.xlu0 %v2838, 20
      %v2942 = vpop.permute.xlu0 %2941
      %2943 = vrot.lane.b32.xlu0 %v2841, 20
      %v2944 = vpop.permute.xlu0 %2943
      %2945 = vrot.lane.b32.xlu0 %v2845, 20
      %v2946 = vpop.permute.xlu0 %2945
      %2947 = vrot.lane.b32.xlu0 %v2848, 20
      %v2948 = vpop.permute.xlu0 %2947
      %2949 = vrot.lane.b32.xlu0 %v2852, 20
      %v2950 = vpop.permute.xlu0 %2949
      %2951 = vrot.lane.b32.xlu0 %v2855, 20
      %v2952 = vpop.permute.xlu0 %2951
      %2953 = vrot.lane.b32.xlu0 %v2859, 20
      %v2954 = vpop.permute.xlu0 %2953
      %2955 = vrot.lane.b32.xlu0 %v2862, 20
      %v2956 = vpop.permute.xlu0 %2955
      %2957 = vrot.lane.b32.xlu0 %v2866, 20
      %v2958 = vpop.permute.xlu0 %2957
      %2959 = vrot.lane.b32.xlu0 %v2869, 20
      %v2960 = vpop.permute.xlu0 %2959
      %2961 = vrot.lane.b32.xlu0 %v2873, 20
      %v2962 = vpop.permute.xlu0 %2961
      %2963 = vrot.lane.b32.xlu0 %v2876, 20
      %v2964 = vpop.permute.xlu0 %2963
      %2965 = vrot.lane.b32.xlu0 %v2880, 20
      %v2966 = vpop.permute.xlu0 %2965
      %2967 = vrot.lane.b32.xlu0 %v2883, 20
      %v2968 = vpop.permute.xlu0 %2967
      %2969 = vrot.lane.b32.xlu0 %v2887, 20
      %v2970 = vpop.permute.xlu0 %2969
      %2971 = vrot.lane.b32.xlu0 %v2890, 20
      %v2972 = vpop.permute.xlu0 %2971
      %2973 = vrot.lane.b32.xlu0 %v2894, 20
      %v2974 = vpop.permute.xlu0 %2973
      %2975 = vrot.lane.b32.xlu0 %v2897, 20
      %v2976 = vpop.permute.xlu0 %2975
      %2977 = vrot.lane.b32.xlu0 %v2901, 20
      %v2978 = vpop.permute.xlu0 %2977
      %2979 = vrot.lane.b32.xlu0 %v2904, 20
      %v2980 = vpop.permute.xlu0 %2979
      %2981 = vrot.lane.b32.xlu0 %v2908, 20
      %v2982 = vpop.permute.xlu0 %2981
      %2983 = vrot.lane.b32.xlu0 %v2911, 20
      %v2984 = vpop.permute.xlu0 %2983
      %2985 = vrot.lane.b32.xlu0 %v2915, 20
      %v2986 = vpop.permute.xlu0 %2985
      %2987 = vrot.lane.b32.xlu0 %v2918, 20
      %v2988 = vpop.permute.xlu0 %2987
      %2989 = vrot.lane.b32.xlu0 %v2922, 20
      %v2990 = vpop.permute.xlu0 %2989
      %2991 = vrot.lane.b32.xlu0 %v2925, 20
      %v2992 = vpop.permute.xlu0 %2991
      %2993 = vrot.lane.b32.xlu0 %v2929, 20
      %v2994 = vpop.permute.xlu0 %2993
      %2995 = vrot.lane.b32.xlu0 %v2932, 20
      %v2996 = vpop.permute.xlu0 %2995
      %vm3029 = vcmask 191648
      %3030 = vst.msk [vmem:[#allocation3] sm:$0xf] %vm3029, %v2934
      %3031 = vst.msk [vmem:[#allocation3 + $0x4] sm:$0xf] %vm3029, %v2936
      %3032 = vst.msk [vmem:[#allocation3 + $0x8] sm:$0xf] %vm3029, %v2938
      %3033 = vst.msk [vmem:[#allocation3 + $0xc] sm:$0xf] %vm3029, %v2940
      %3034 = vst.msk [vmem:[#allocation3 + $0x10] sm:$0xf] %vm3029, %v2942
      %3035 = vst.msk [vmem:[#allocation3 + $0x14] sm:$0xf] %vm3029, %v2944
      %3036 = vst.msk [vmem:[#allocation3 + $0x18] sm:$0xf] %vm3029, %v2946
      %3037 = vst.msk [vmem:[#allocation3 + $0x1c] sm:$0xf] %vm3029, %v2948
      %3038 = vst.msk [vmem:[#allocation3 + $0x20] sm:$0xf] %vm3029, %v2950
      %3039 = vst.msk [vmem:[#allocation3 + $0x24] sm:$0xf] %vm3029, %v2952
      %3040 = vst.msk [vmem:[#allocation3 + $0x28] sm:$0xf] %vm3029, %v2954
      %3041 = vst.msk [vmem:[#allocation3 + $0x2c] sm:$0xf] %vm3029, %v2956
      %3042 = vst.msk [vmem:[#allocation3 + $0x30] sm:$0xf] %vm3029, %v2958
      %3043 = vst.msk [vmem:[#allocation3 + $0x34] sm:$0xf] %vm3029, %v2960
      %3044 = vst.msk [vmem:[#allocation3 + $0x38] sm:$0xf] %vm3029, %v2962
      %3045 = vst.msk [vmem:[#allocation3 + $0x3c] sm:$0xf] %vm3029, %v2964
      %3046 = vst.msk [vmem:[#allocation3 + $0x40] sm:$0xf] %vm3029, %v2966
      %3047 = vst.msk [vmem:[#allocation3 + $0x44] sm:$0xf] %vm3029, %v2968
      %3048 = vst.msk [vmem:[#allocation3 + $0x48] sm:$0xf] %vm3029, %v2970
      %3049 = vst.msk [vmem:[#allocation3 + $0x4c] sm:$0xf] %vm3029, %v2972
      %3050 = vst.msk [vmem:[#allocation3 + $0x50] sm:$0xf] %vm3029, %v2974
      %3051 = vst.msk [vmem:[#allocation3 + $0x54] sm:$0xf] %vm3029, %v2976
      %3052 = vst.msk [vmem:[#allocation3 + $0x58] sm:$0xf] %vm3029, %v2978
      %3053 = vst.msk [vmem:[#allocation3 + $0x5c] sm:$0xf] %vm3029, %v2980
      %3054 = vst.msk [vmem:[#allocation3 + $0x60] sm:$0xf] %vm3029, %v2982
      %3055 = vst.msk [vmem:[#allocation3 + $0x64] sm:$0xf] %vm3029, %v2984
      %3056 = vst.msk [vmem:[#allocation3 + $0x68] sm:$0xf] %vm3029, %v2986
      %3057 = vst.msk [vmem:[#allocation3 + $0x6c] sm:$0xf] %vm3029, %v2988
      %3058 = vst.msk [vmem:[#allocation3 + $0x70] sm:$0xf] %vm3029, %v2990
      %3059 = vst.msk [vmem:[#allocation3 + $0x74] sm:$0xf] %vm3029, %v2992
      %3060 = vst.msk [vmem:[#allocation3 + $0x78] sm:$0xf] %vm3029, %v2994
      %3061 = vst.msk [vmem:[#allocation3 + $0x7c] sm:$0xf] %vm3029, %v2996
      %s3062 = scalar_lea.vmem [#allocation2], 24
      %v3063 = vld [vmem:[%s3062] sm:$0xf]
      %v3064 = vld [vmem:[%s3062 + $0x4] sm:$0xf]
      %v3065 = vld [vmem:[%s3062 + $0xc] sm:$0xf]
      %v3066 = vld [vmem:[%s3062 + $0x10] sm:$0xf]
      %v3067 = vld [vmem:[%s3062 + $0x18] sm:$0xf]
      %v3068 = vld [vmem:[%s3062 + $0x1c] sm:$0xf]
      %v3069 = vld [vmem:[%s3062 + $0x24] sm:$0xf]
      %v3070 = vld [vmem:[%s3062 + $0x28] sm:$0xf]
      %v3071 = vld [vmem:[%s3062 + $0x30] sm:$0xf]
      %v3072 = vld [vmem:[%s3062 + $0x34] sm:$0xf]
      %v3073 = vld [vmem:[%s3062 + $0x3c] sm:$0xf]
      %v3074 = vld [vmem:[%s3062 + $0x40] sm:$0xf]
      %v3075 = vld [vmem:[%s3062 + $0x48] sm:$0xf]
      %v3076 = vld [vmem:[%s3062 + $0x4c] sm:$0xf]
      %v3077 = vld [vmem:[%s3062 + $0x54] sm:$0xf]
      %v3078 = vld [vmem:[%s3062 + $0x58] sm:$0xf]
      %v3079 = vld [vmem:[%s3062 + $0x60] sm:$0xf]
      %v3080 = vld [vmem:[%s3062 + $0x64] sm:$0xf]
      %v3081 = vld [vmem:[%s3062 + $0x6c] sm:$0xf]
      %v3082 = vld [vmem:[%s3062 + $0x70] sm:$0xf]
      %v3083 = vld [vmem:[%s3062 + $0x78] sm:$0xf]
      %v3084 = vld [vmem:[%s3062 + $0x7c] sm:$0xf]
      %v3085 = vld [vmem:[%s3062 + $0x84] sm:$0xf]
      %v3086 = vld [vmem:[%s3062 + $0x88] sm:$0xf]
      %v3087 = vld [vmem:[%s3062 + $0x90] sm:$0xf]
      %v3088 = vld [vmem:[%s3062 + $0x94] sm:$0xf]
      %v3089 = vld [vmem:[%s3062 + $0x9c] sm:$0xf]
      %v3090 = vld [vmem:[%s3062 + $0xa0] sm:$0xf]
      %v3091 = vld [vmem:[%s3062 + $0xa8] sm:$0xf]
      %v3092 = vld [vmem:[%s3062 + $0xac] sm:$0xf]
      %v3093 = vld [vmem:[%s3062 + $0xb4] sm:$0xf]
      %v3094 = vld [vmem:[%s3062 + $0xb8] sm:$0xf]
      %3127 = vrot.lane.b32.xlu0 %v3063, 24
      %v3128 = vpop.permute.xlu0 %3127
      %3129 = vrot.lane.b32.xlu0 %v3064, 24
      %v3130 = vpop.permute.xlu0 %3129
      %3131 = vrot.lane.b32.xlu0 %v3065, 24
      %v3132 = vpop.permute.xlu0 %3131
      %3133 = vrot.lane.b32.xlu0 %v3066, 24
      %v3134 = vpop.permute.xlu0 %3133
      %3135 = vrot.lane.b32.xlu0 %v3067, 24
      %v3136 = vpop.permute.xlu0 %3135
      %3137 = vrot.lane.b32.xlu0 %v3068, 24
      %v3138 = vpop.permute.xlu0 %3137
      %3139 = vrot.lane.b32.xlu0 %v3069, 24
      %v3140 = vpop.permute.xlu0 %3139
      %3141 = vrot.lane.b32.xlu0 %v3070, 24
      %v3142 = vpop.permute.xlu0 %3141
      %3143 = vrot.lane.b32.xlu0 %v3071, 24
      %v3144 = vpop.permute.xlu0 %3143
      %3145 = vrot.lane.b32.xlu0 %v3072, 24
      %v3146 = vpop.permute.xlu0 %3145
      %3147 = vrot.lane.b32.xlu0 %v3073, 24
      %v3148 = vpop.permute.xlu0 %3147
      %3149 = vrot.lane.b32.xlu0 %v3074, 24
      %v3150 = vpop.permute.xlu0 %3149
      %3151 = vrot.lane.b32.xlu0 %v3075, 24
      %v3152 = vpop.permute.xlu0 %3151
      %3153 = vrot.lane.b32.xlu0 %v3076, 24
      %v3154 = vpop.permute.xlu0 %3153
      %3155 = vrot.lane.b32.xlu0 %v3077, 24
      %v3156 = vpop.permute.xlu0 %3155
      %3157 = vrot.lane.b32.xlu0 %v3078, 24
      %v3158 = vpop.permute.xlu0 %3157
      %3159 = vrot.lane.b32.xlu0 %v3079, 24
      %v3160 = vpop.permute.xlu0 %3159
      %3161 = vrot.lane.b32.xlu0 %v3080, 24
      %v3162 = vpop.permute.xlu0 %3161
      %3163 = vrot.lane.b32.xlu0 %v3081, 24
      %v3164 = vpop.permute.xlu0 %3163
      %3165 = vrot.lane.b32.xlu0 %v3082, 24
      %v3166 = vpop.permute.xlu0 %3165
      %3167 = vrot.lane.b32.xlu0 %v3083, 24
      %v3168 = vpop.permute.xlu0 %3167
      %3169 = vrot.lane.b32.xlu0 %v3084, 24
      %v3170 = vpop.permute.xlu0 %3169
      %3171 = vrot.lane.b32.xlu0 %v3085, 24
      %v3172 = vpop.permute.xlu0 %3171
      %3173 = vrot.lane.b32.xlu0 %v3086, 24
      %v3174 = vpop.permute.xlu0 %3173
      %3175 = vrot.lane.b32.xlu0 %v3087, 24
      %v3176 = vpop.permute.xlu0 %3175
      %3177 = vrot.lane.b32.xlu0 %v3088, 24
      %v3178 = vpop.permute.xlu0 %3177
      %3179 = vrot.lane.b32.xlu0 %v3089, 24
      %v3180 = vpop.permute.xlu0 %3179
      %3181 = vrot.lane.b32.xlu0 %v3090, 24
      %v3182 = vpop.permute.xlu0 %3181
      %3183 = vrot.lane.b32.xlu0 %v3091, 24
      %v3184 = vpop.permute.xlu0 %3183
      %3185 = vrot.lane.b32.xlu0 %v3092, 24
      %v3186 = vpop.permute.xlu0 %3185
      %3187 = vrot.lane.b32.xlu0 %v3093, 24
      %v3188 = vpop.permute.xlu0 %3187
      %3189 = vrot.lane.b32.xlu0 %v3094, 24
      %v3190 = vpop.permute.xlu0 %3189
      %vm3223 = vcmask 224448
      %3224 = vst.msk [vmem:[#allocation3] sm:$0xf] %vm3223, %v3128
      %3225 = vst.msk [vmem:[#allocation3 + $0x4] sm:$0xf] %vm3223, %v3130
      %3226 = vst.msk [vmem:[#allocation3 + $0x8] sm:$0xf] %vm3223, %v3132
      %3227 = vst.msk [vmem:[#allocation3 + $0xc] sm:$0xf] %vm3223, %v3134
      %3228 = vst.msk [vmem:[#allocation3 + $0x10] sm:$0xf] %vm3223, %v3136
      %3229 = vst.msk [vmem:[#allocation3 + $0x14] sm:$0xf] %vm3223, %v3138
      %3230 = vst.msk [vmem:[#allocation3 + $0x18] sm:$0xf] %vm3223, %v3140
      %3231 = vst.msk [vmem:[#allocation3 + $0x1c] sm:$0xf] %vm3223, %v3142
      %3232 = vst.msk [vmem:[#allocation3 + $0x20] sm:$0xf] %vm3223, %v3144
      %3233 = vst.msk [vmem:[#allocation3 + $0x24] sm:$0xf] %vm3223, %v3146
      %3234 = vst.msk [vmem:[#allocation3 + $0x28] sm:$0xf] %vm3223, %v3148
      %3235 = vst.msk [vmem:[#allocation3 + $0x2c] sm:$0xf] %vm3223, %v3150
      %3236 = vst.msk [vmem:[#allocation3 + $0x30] sm:$0xf] %vm3223, %v3152
      %3237 = vst.msk [vmem:[#allocation3 + $0x34] sm:$0xf] %vm3223, %v3154
      %3238 = vst.msk [vmem:[#allocation3 + $0x38] sm:$0xf] %vm3223, %v3156
      %3239 = vst.msk [vmem:[#allocation3 + $0x3c] sm:$0xf] %vm3223, %v3158
      %3240 = vst.msk [vmem:[#allocation3 + $0x40] sm:$0xf] %vm3223, %v3160
      %3241 = vst.msk [vmem:[#allocation3 + $0x44] sm:$0xf] %vm3223, %v3162
      %3242 = vst.msk [vmem:[#allocation3 + $0x48] sm:$0xf] %vm3223, %v3164
      %3243 = vst.msk [vmem:[#allocation3 + $0x4c] sm:$0xf] %vm3223, %v3166
      %3244 = vst.msk [vmem:[#allocation3 + $0x50] sm:$0xf] %vm3223, %v3168
      %3245 = vst.msk [vmem:[#allocation3 + $0x54] sm:$0xf] %vm3223, %v3170
      %3246 = vst.msk [vmem:[#allocation3 + $0x58] sm:$0xf] %vm3223, %v3172
      %3247 = vst.msk [vmem:[#allocation3 + $0x5c] sm:$0xf] %vm3223, %v3174
      %3248 = vst.msk [vmem:[#allocation3 + $0x60] sm:$0xf] %vm3223, %v3176
      %3249 = vst.msk [vmem:[#allocation3 + $0x64] sm:$0xf] %vm3223, %v3178
      %3250 = vst.msk [vmem:[#allocation3 + $0x68] sm:$0xf] %vm3223, %v3180
      %3251 = vst.msk [vmem:[#allocation3 + $0x6c] sm:$0xf] %vm3223, %v3182
      %3252 = vst.msk [vmem:[#allocation3 + $0x70] sm:$0xf] %vm3223, %v3184
      %3253 = vst.msk [vmem:[#allocation3 + $0x74] sm:$0xf] %vm3223, %v3186
      %3254 = vst.msk [vmem:[#allocation3 + $0x78] sm:$0xf] %vm3223, %v3188
      %3255 = vst.msk [vmem:[#allocation3 + $0x7c] sm:$0xf] %vm3223, %v3190
      %v3256 = vld [vmem:[%s3062] sm:$0xf]
      %v3257 = vld [vmem:[%s3062 + $0x4] sm:$0xf]
      %v3258 = vld [vmem:[%s3062 + $0x8] sm:$0x1]
      %v3259 = vld [vmem:[%s3062 + $0xc] sm:$0xf]
      %v3260 = vld [vmem:[%s3062 + $0x10] sm:$0xf]
      %v3261 = vld [vmem:[%s3062 + $0x14] sm:$0x1]
      %v3262 = vld [vmem:[%s3062 + $0x18] sm:$0xf]
      %v3263 = vld [vmem:[%s3062 + $0x1c] sm:$0xf]
      %v3264 = vld [vmem:[%s3062 + $0x20] sm:$0x1]
      %v3265 = vld [vmem:[%s3062 + $0x24] sm:$0xf]
      %v3266 = vld [vmem:[%s3062 + $0x28] sm:$0xf]
      %v3267 = vld [vmem:[%s3062 + $0x2c] sm:$0x1]
      %v3268 = vld [vmem:[%s3062 + $0x30] sm:$0xf]
      %v3269 = vld [vmem:[%s3062 + $0x34] sm:$0xf]
      %v3270 = vld [vmem:[%s3062 + $0x38] sm:$0x1]
      %v3271 = vld [vmem:[%s3062 + $0x3c] sm:$0xf]
      %v3272 = vld [vmem:[%s3062 + $0x40] sm:$0xf]
      %v3273 = vld [vmem:[%s3062 + $0x44] sm:$0x1]
      %v3274 = vld [vmem:[%s3062 + $0x48] sm:$0xf]
      %v3275 = vld [vmem:[%s3062 + $0x4c] sm:$0xf]
      %v3276 = vld [vmem:[%s3062 + $0x50] sm:$0x1]
      %v3277 = vld [vmem:[%s3062 + $0x54] sm:$0xf]
      %v3278 = vld [vmem:[%s3062 + $0x58] sm:$0xf]
      %v3279 = vld [vmem:[%s3062 + $0x5c] sm:$0x1]
      %v3280 = vld [vmem:[%s3062 + $0x60] sm:$0xf]
      %v3281 = vld [vmem:[%s3062 + $0x64] sm:$0xf]
      %v3282 = vld [vmem:[%s3062 + $0x68] sm:$0x1]
      %v3283 = vld [vmem:[%s3062 + $0x6c] sm:$0xf]
      %v3284 = vld [vmem:[%s3062 + $0x70] sm:$0xf]
      %v3285 = vld [vmem:[%s3062 + $0x74] sm:$0x1]
      %v3286 = vld [vmem:[%s3062 + $0x78] sm:$0xf]
      %v3287 = vld [vmem:[%s3062 + $0x7c] sm:$0xf]
      %v3288 = vld [vmem:[%s3062 + $0x80] sm:$0x1]
      %v3289 = vld [vmem:[%s3062 + $0x84] sm:$0xf]
      %v3290 = vld [vmem:[%s3062 + $0x88] sm:$0xf]
      %v3291 = vld [vmem:[%s3062 + $0x8c] sm:$0x1]
      %v3292 = vld [vmem:[%s3062 + $0x90] sm:$0xf]
      %v3293 = vld [vmem:[%s3062 + $0x94] sm:$0xf]
      %v3294 = vld [vmem:[%s3062 + $0x98] sm:$0x1]
      %v3295 = vld [vmem:[%s3062 + $0x9c] sm:$0xf]
      %v3296 = vld [vmem:[%s3062 + $0xa0] sm:$0xf]
      %v3297 = vld [vmem:[%s3062 + $0xa4] sm:$0x1]
      %v3298 = vld [vmem:[%s3062 + $0xa8] sm:$0xf]
      %v3299 = vld [vmem:[%s3062 + $0xac] sm:$0xf]
      %v3300 = vld [vmem:[%s3062 + $0xb0] sm:$0x1]
      %v3301 = vld [vmem:[%s3062 + $0xb4] sm:$0xf]
      %v3302 = vld [vmem:[%s3062 + $0xb8] sm:$0xf]
      %v3303 = vld [vmem:[%s3062 + $0xbc] sm:$0x1]
      %v3305 = vshrl.u32 %v3256, 16
      %v3307 = vrot.slane %v3305, 4
      %v3308 = vshll.u32 %v3256, 16
      %v3310 = vrot.slane %v3308, 5
      %v3311 = vor.u32 %v3307, %v3310
      %v3312 = vrot.slane %v3311, 4
      %v3314 = vshll.u32 %v3257, 16
      %v3316 = vrot.slane %v3314, 5
      %v3317 = vsel %vm1117, %v3312, %v3316
      %v3318 = vshrl.u32 %v3257, 16
      %v3320 = vrot.slane %v3318, 4
      %v3321 = vor.u32 %v3320, %v3316
      %v3322 = vrot.slane %v3321, 4
      %v3324 = vshll.u32 %v3258, 16
      %v3326 = vrot.slane %v3324, 5
      %v3327 = vsel %vm1117, %v3322, %v3326
      %v3329 = vshrl.u32 %v3259, 16
      %v3331 = vrot.slane %v3329, 4
      %v3332 = vshll.u32 %v3259, 16
      %v3334 = vrot.slane %v3332, 5
      %v3335 = vor.u32 %v3331, %v3334
      %v3336 = vrot.slane %v3335, 4
      %v3338 = vshll.u32 %v3260, 16
      %v3340 = vrot.slane %v3338, 5
      %v3341 = vsel %vm1117, %v3336, %v3340
      %v3342 = vshrl.u32 %v3260, 16
      %v3344 = vrot.slane %v3342, 4
      %v3345 = vor.u32 %v3344, %v3340
      %v3346 = vrot.slane %v3345, 4
      %v3348 = vshll.u32 %v3261, 16
      %v3350 = vrot.slane %v3348, 5
      %v3351 = vsel %vm1117, %v3346, %v3350
      %v3353 = vshrl.u32 %v3262, 16
      %v3355 = vrot.slane %v3353, 4
      %v3356 = vshll.u32 %v3262, 16
      %v3358 = vrot.slane %v3356, 5
      %v3359 = vor.u32 %v3355, %v3358
      %v3360 = vrot.slane %v3359, 4
      %v3362 = vshll.u32 %v3263, 16
      %v3364 = vrot.slane %v3362, 5
      %v3365 = vsel %vm1117, %v3360, %v3364
      %v3366 = vshrl.u32 %v3263, 16
      %v3368 = vrot.slane %v3366, 4
      %v3369 = vor.u32 %v3368, %v3364
      %v3370 = vrot.slane %v3369, 4
      %v3372 = vshll.u32 %v3264, 16
      %v3374 = vrot.slane %v3372, 5
      %v3375 = vsel %vm1117, %v3370, %v3374
      %v3377 = vshrl.u32 %v3265, 16
      %v3379 = vrot.slane %v3377, 4
      %v3380 = vshll.u32 %v3265, 16
      %v3382 = vrot.slane %v3380, 5
      %v3383 = vor.u32 %v3379, %v3382
      %v3384 = vrot.slane %v3383, 4
      %v3386 = vshll.u32 %v3266, 16
      %v3388 = vrot.slane %v3386, 5
      %v3389 = vsel %vm1117, %v3384, %v3388
      %v3390 = vshrl.u32 %v3266, 16
      %v3392 = vrot.slane %v3390, 4
      %v3393 = vor.u32 %v3392, %v3388
      %v3394 = vrot.slane %v3393, 4
      %v3396 = vshll.u32 %v3267, 16
      %v3398 = vrot.slane %v3396, 5
      %v3399 = vsel %vm1117, %v3394, %v3398
      %v3401 = vshrl.u32 %v3268, 16
      %v3403 = vrot.slane %v3401, 4
      %v3404 = vshll.u32 %v3268, 16
      %v3406 = vrot.slane %v3404, 5
      %v3407 = vor.u32 %v3403, %v3406
      %v3408 = vrot.slane %v3407, 4
      %v3410 = vshll.u32 %v3269, 16
      %v3412 = vrot.slane %v3410, 5
      %v3413 = vsel %vm1117, %v3408, %v3412
      %v3414 = vshrl.u32 %v3269, 16
      %v3416 = vrot.slane %v3414, 4
      %v3417 = vor.u32 %v3416, %v3412
      %v3418 = vrot.slane %v3417, 4
      %v3420 = vshll.u32 %v3270, 16
      %v3422 = vrot.slane %v3420, 5
      %v3423 = vsel %vm1117, %v3418, %v3422
      %v3425 = vshrl.u32 %v3271, 16
      %v3427 = vrot.slane %v3425, 4
      %v3428 = vshll.u32 %v3271, 16
      %v3430 = vrot.slane %v3428, 5
      %v3431 = vor.u32 %v3427, %v3430
      %v3432 = vrot.slane %v3431, 4
      %v3434 = vshll.u32 %v3272, 16
      %v3436 = vrot.slane %v3434, 5
      %v3437 = vsel %vm1117, %v3432, %v3436
      %v3438 = vshrl.u32 %v3272, 16
      %v3440 = vrot.slane %v3438, 4
      %v3441 = vor.u32 %v3440, %v3436
      %v3442 = vrot.slane %v3441, 4
      %v3444 = vshll.u32 %v3273, 16
      %v3446 = vrot.slane %v3444, 5
      %v3447 = vsel %vm1117, %v3442, %v3446
      %v3449 = vshrl.u32 %v3274, 16
      %v3451 = vrot.slane %v3449, 4
      %v3452 = vshll.u32 %v3274, 16
      %v3454 = vrot.slane %v3452, 5
      %v3455 = vor.u32 %v3451, %v3454
      %v3456 = vrot.slane %v3455, 4
      %v3458 = vshll.u32 %v3275, 16
      %v3460 = vrot.slane %v3458, 5
      %v3461 = vsel %vm1117, %v3456, %v3460
      %v3462 = vshrl.u32 %v3275, 16
      %v3464 = vrot.slane %v3462, 4
      %v3465 = vor.u32 %v3464, %v3460
      %v3466 = vrot.slane %v3465, 4
      %v3468 = vshll.u32 %v3276, 16
      %v3470 = vrot.slane %v3468, 5
      %v3471 = vsel %vm1117, %v3466, %v3470
      %v3473 = vshrl.u32 %v3277, 16
      %v3475 = vrot.slane %v3473, 4
      %v3476 = vshll.u32 %v3277, 16
      %v3478 = vrot.slane %v3476, 5
      %v3479 = vor.u32 %v3475, %v3478
      %v3480 = vrot.slane %v3479, 4
      %v3482 = vshll.u32 %v3278, 16
      %v3484 = vrot.slane %v3482, 5
      %v3485 = vsel %vm1117, %v3480, %v3484
      %v3486 = vshrl.u32 %v3278, 16
      %v3488 = vrot.slane %v3486, 4
      %v3489 = vor.u32 %v3488, %v3484
      %v3490 = vrot.slane %v3489, 4
      %v3492 = vshll.u32 %v3279, 16
      %v3494 = vrot.slane %v3492, 5
      %v3495 = vsel %vm1117, %v3490, %v3494
      %v3497 = vshrl.u32 %v3280, 16
      %v3499 = vrot.slane %v3497, 4
      %v3500 = vshll.u32 %v3280, 16
      %v3502 = vrot.slane %v3500, 5
      %v3503 = vor.u32 %v3499, %v3502
      %v3504 = vrot.slane %v3503, 4
      %v3506 = vshll.u32 %v3281, 16
      %v3508 = vrot.slane %v3506, 5
      %v3509 = vsel %vm1117, %v3504, %v3508
      %v3510 = vshrl.u32 %v3281, 16
      %v3512 = vrot.slane %v3510, 4
      %v3513 = vor.u32 %v3512, %v3508
      %v3514 = vrot.slane %v3513, 4
      %v3516 = vshll.u32 %v3282, 16
      %v3518 = vrot.slane %v3516, 5
      %v3519 = vsel %vm1117, %v3514, %v3518
      %v3521 = vshrl.u32 %v3283, 16
      %v3523 = vrot.slane %v3521, 4
      %v3524 = vshll.u32 %v3283, 16
      %v3526 = vrot.slane %v3524, 5
      %v3527 = vor.u32 %v3523, %v3526
      %v3528 = vrot.slane %v3527, 4
      %v3530 = vshll.u32 %v3284, 16
      %v3532 = vrot.slane %v3530, 5
      %v3533 = vsel %vm1117, %v3528, %v3532
      %v3534 = vshrl.u32 %v3284, 16
      %v3536 = vrot.slane %v3534, 4
      %v3537 = vor.u32 %v3536, %v3532
      %v3538 = vrot.slane %v3537, 4
      %v3540 = vshll.u32 %v3285, 16
      %v3542 = vrot.slane %v3540, 5
      %v3543 = vsel %vm1117, %v3538, %v3542
      %v3545 = vshrl.u32 %v3286, 16
      %v3547 = vrot.slane %v3545, 4
      %v3548 = vshll.u32 %v3286, 16
      %v3550 = vrot.slane %v3548, 5
      %v3551 = vor.u32 %v3547, %v3550
      %v3552 = vrot.slane %v3551, 4
      %v3554 = vshll.u32 %v3287, 16
      %v3556 = vrot.slane %v3554, 5
      %v3557 = vsel %vm1117, %v3552, %v3556
      %v3558 = vshrl.u32 %v3287, 16
      %v3560 = vrot.slane %v3558, 4
      %v3561 = vor.u32 %v3560, %v3556
      %v3562 = vrot.slane %v3561, 4
      %v3564 = vshll.u32 %v3288, 16
      %v3566 = vrot.slane %v3564, 5
      %v3567 = vsel %vm1117, %v3562, %v3566
      %v3569 = vshrl.u32 %v3289, 16
      %v3571 = vrot.slane %v3569, 4
      %v3572 = vshll.u32 %v3289, 16
      %v3574 = vrot.slane %v3572, 5
      %v3575 = vor.u32 %v3571, %v3574
      %v3576 = vrot.slane %v3575, 4
      %v3578 = vshll.u32 %v3290, 16
      %v3580 = vrot.slane %v3578, 5
      %v3581 = vsel %vm1117, %v3576, %v3580
      %v3582 = vshrl.u32 %v3290, 16
      %v3584 = vrot.slane %v3582, 4
      %v3585 = vor.u32 %v3584, %v3580
      %v3586 = vrot.slane %v3585, 4
      %v3588 = vshll.u32 %v3291, 16
      %v3590 = vrot.slane %v3588, 5
      %v3591 = vsel %vm1117, %v3586, %v3590
      %v3593 = vshrl.u32 %v3292, 16
      %v3595 = vrot.slane %v3593, 4
      %v3596 = vshll.u32 %v3292, 16
      %v3598 = vrot.slane %v3596, 5
      %v3599 = vor.u32 %v3595, %v3598
      %v3600 = vrot.slane %v3599, 4
      %v3602 = vshll.u32 %v3293, 16
      %v3604 = vrot.slane %v3602, 5
      %v3605 = vsel %vm1117, %v3600, %v3604
      %v3606 = vshrl.u32 %v3293, 16
      %v3608 = vrot.slane %v3606, 4
      %v3609 = vor.u32 %v3608, %v3604
      %v3610 = vrot.slane %v3609, 4
      %v3612 = vshll.u32 %v3294, 16
      %v3614 = vrot.slane %v3612, 5
      %v3615 = vsel %vm1117, %v3610, %v3614
      %v3617 = vshrl.u32 %v3295, 16
      %v3619 = vrot.slane %v3617, 4
      %v3620 = vshll.u32 %v3295, 16
      %v3622 = vrot.slane %v3620, 5
      %v3623 = vor.u32 %v3619, %v3622
      %v3624 = vrot.slane %v3623, 4
      %v3626 = vshll.u32 %v3296, 16
      %v3628 = vrot.slane %v3626, 5
      %v3629 = vsel %vm1117, %v3624, %v3628
      %v3630 = vshrl.u32 %v3296, 16
      %v3632 = vrot.slane %v3630, 4
      %v3633 = vor.u32 %v3632, %v3628
      %v3634 = vrot.slane %v3633, 4
      %v3636 = vshll.u32 %v3297, 16
      %v3638 = vrot.slane %v3636, 5
      %v3639 = vsel %vm1117, %v3634, %v3638
      %v3641 = vshrl.u32 %v3298, 16
      %v3643 = vrot.slane %v3641, 4
      %v3644 = vshll.u32 %v3298, 16
      %v3646 = vrot.slane %v3644, 5
      %v3647 = vor.u32 %v3643, %v3646
      %v3648 = vrot.slane %v3647, 4
      %v3650 = vshll.u32 %v3299, 16
      %v3652 = vrot.slane %v3650, 5
      %v3653 = vsel %vm1117, %v3648, %v3652
      %v3654 = vshrl.u32 %v3299, 16
      %v3656 = vrot.slane %v3654, 4
      %v3657 = vor.u32 %v3656, %v3652
      %v3658 = vrot.slane %v3657, 4
      %v3660 = vshll.u32 %v3300, 16
      %v3662 = vrot.slane %v3660, 5
      %v3663 = vsel %vm1117, %v3658, %v3662
      %v3665 = vshrl.u32 %v3301, 16
      %v3667 = vrot.slane %v3665, 4
      %v3668 = vshll.u32 %v3301, 16
      %v3670 = vrot.slane %v3668, 5
      %v3671 = vor.u32 %v3667, %v3670
      %v3672 = vrot.slane %v3671, 4
      %v3674 = vshll.u32 %v3302, 16
      %v3676 = vrot.slane %v3674, 5
      %v3677 = vsel %vm1117, %v3672, %v3676
      %v3678 = vshrl.u32 %v3302, 16
      %v3680 = vrot.slane %v3678, 4
      %v3681 = vor.u32 %v3680, %v3676
      %v3682 = vrot.slane %v3681, 4
      %v3684 = vshll.u32 %v3303, 16
      %v3686 = vrot.slane %v3684, 5
      %v3687 = vsel %vm1117, %v3682, %v3686
      %3688 = vrot.lane.b32.xlu0 %v3317, 28
      %v3689 = vpop.permute.xlu0 %3688
      %3690 = vrot.lane.b32.xlu0 %v3327, 28
      %v3691 = vpop.permute.xlu0 %3690
      %3692 = vrot.lane.b32.xlu0 %v3341, 28
      %v3693 = vpop.permute.xlu0 %3692
      %3694 = vrot.lane.b32.xlu0 %v3351, 28
      %v3695 = vpop.permute.xlu0 %3694
      %3696 = vrot.lane.b32.xlu0 %v3365, 28
      %v3697 = vpop.permute.xlu0 %3696
      %3698 = vrot.lane.b32.xlu0 %v3375, 28
      %v3699 = vpop.permute.xlu0 %3698
      %3700 = vrot.lane.b32.xlu0 %v3389, 28
      %v3701 = vpop.permute.xlu0 %3700
      %3702 = vrot.lane.b32.xlu0 %v3399, 28
      %v3703 = vpop.permute.xlu0 %3702
      %3704 = vrot.lane.b32.xlu0 %v3413, 28
      %v3705 = vpop.permute.xlu0 %3704
      %3706 = vrot.lane.b32.xlu0 %v3423, 28
      %v3707 = vpop.permute.xlu0 %3706
      %3708 = vrot.lane.b32.xlu0 %v3437, 28
      %v3709 = vpop.permute.xlu0 %3708
      %3710 = vrot.lane.b32.xlu0 %v3447, 28
      %v3711 = vpop.permute.xlu0 %3710
      %3712 = vrot.lane.b32.xlu0 %v3461, 28
      %v3713 = vpop.permute.xlu0 %3712
      %3714 = vrot.lane.b32.xlu0 %v3471, 28
      %v3715 = vpop.permute.xlu0 %3714
      %3716 = vrot.lane.b32.xlu0 %v3485, 28
      %v3717 = vpop.permute.xlu0 %3716
      %3718 = vrot.lane.b32.xlu0 %v3495, 28
      %v3719 = vpop.permute.xlu0 %3718
      %3720 = vrot.lane.b32.xlu0 %v3509, 28
      %v3721 = vpop.permute.xlu0 %3720
      %3722 = vrot.lane.b32.xlu0 %v3519, 28
      %v3723 = vpop.permute.xlu0 %3722
      %3724 = vrot.lane.b32.xlu0 %v3533, 28
      %v3725 = vpop.permute.xlu0 %3724
      %3726 = vrot.lane.b32.xlu0 %v3543, 28
      %v3727 = vpop.permute.xlu0 %3726
      %3728 = vrot.lane.b32.xlu0 %v3557, 28
      %v3729 = vpop.permute.xlu0 %3728
      %3730 = vrot.lane.b32.xlu0 %v3567, 28
      %v3731 = vpop.permute.xlu0 %3730
      %3732 = vrot.lane.b32.xlu0 %v3581, 28
      %v3733 = vpop.permute.xlu0 %3732
      %3734 = vrot.lane.b32.xlu0 %v3591, 28
      %v3735 = vpop.permute.xlu0 %3734
      %3736 = vrot.lane.b32.xlu0 %v3605, 28
      %v3737 = vpop.permute.xlu0 %3736
      %3738 = vrot.lane.b32.xlu0 %v3615, 28
      %v3739 = vpop.permute.xlu0 %3738
      %3740 = vrot.lane.b32.xlu0 %v3629, 28
      %v3741 = vpop.permute.xlu0 %3740
      %3742 = vrot.lane.b32.xlu0 %v3639, 28
      %v3743 = vpop.permute.xlu0 %3742
      %3744 = vrot.lane.b32.xlu0 %v3653, 28
      %v3745 = vpop.permute.xlu0 %3744
      %3746 = vrot.lane.b32.xlu0 %v3663, 28
      %v3747 = vpop.permute.xlu0 %3746
      %3748 = vrot.lane.b32.xlu0 %v3677, 28
      %v3749 = vpop.permute.xlu0 %3748
      %3750 = vrot.lane.b32.xlu0 %v3687, 28
      %v3751 = vpop.permute.xlu0 %3750
      %vm3784 = vcmask 257248
      %3785 = vst.msk [vmem:[#allocation3] sm:$0xf] %vm3784, %v3689
      %3786 = vst.msk [vmem:[#allocation3 + $0x4] sm:$0xf] %vm3784, %v3691
      %3787 = vst.msk [vmem:[#allocation3 + $0x8] sm:$0xf] %vm3784, %v3693
      %3788 = vst.msk [vmem:[#allocation3 + $0xc] sm:$0xf] %vm3784, %v3695
      %3789 = vst.msk [vmem:[#allocation3 + $0x10] sm:$0xf] %vm3784, %v3697
      %3790 = vst.msk [vmem:[#allocation3 + $0x14] sm:$0xf] %vm3784, %v3699
      %3791 = vst.msk [vmem:[#allocation3 + $0x18] sm:$0xf] %vm3784, %v3701
      %3792 = vst.msk [vmem:[#allocation3 + $0x1c] sm:$0xf] %vm3784, %v3703
      %3793 = vst.msk [vmem:[#allocation3 + $0x20] sm:$0xf] %vm3784, %v3705
      %3794 = vst.msk [vmem:[#allocation3 + $0x24] sm:$0xf] %vm3784, %v3707
      %3795 = vst.msk [vmem:[#allocation3 + $0x28] sm:$0xf] %vm3784, %v3709
      %3796 = vst.msk [vmem:[#allocation3 + $0x2c] sm:$0xf] %vm3784, %v3711
      %3797 = vst.msk [vmem:[#allocation3 + $0x30] sm:$0xf] %vm3784, %v3713
      %3798 = vst.msk [vmem:[#allocation3 + $0x34] sm:$0xf] %vm3784, %v3715
      %3799 = vst.msk [vmem:[#allocation3 + $0x38] sm:$0xf] %vm3784, %v3717
      %3800 = vst.msk [vmem:[#allocation3 + $0x3c] sm:$0xf] %vm3784, %v3719
      %3801 = vst.msk [vmem:[#allocation3 + $0x40] sm:$0xf] %vm3784, %v3721
      %3802 = vst.msk [vmem:[#allocation3 + $0x44] sm:$0xf] %vm3784, %v3723
      %3803 = vst.msk [vmem:[#allocation3 + $0x48] sm:$0xf] %vm3784, %v3725
      %3804 = vst.msk [vmem:[#allocation3 + $0x4c] sm:$0xf] %vm3784, %v3727
      %3805 = vst.msk [vmem:[#allocation3 + $0x50] sm:$0xf] %vm3784, %v3729
      %3806 = vst.msk [vmem:[#allocation3 + $0x54] sm:$0xf] %vm3784, %v3731
      %3807 = vst.msk [vmem:[#allocation3 + $0x58] sm:$0xf] %vm3784, %v3733
      %3808 = vst.msk [vmem:[#allocation3 + $0x5c] sm:$0xf] %vm3784, %v3735
      %3809 = vst.msk [vmem:[#allocation3 + $0x60] sm:$0xf] %vm3784, %v3737
      %3810 = vst.msk [vmem:[#allocation3 + $0x64] sm:$0xf] %vm3784, %v3739
      %3811 = vst.msk [vmem:[#allocation3 + $0x68] sm:$0xf] %vm3784, %v3741
      %3812 = vst.msk [vmem:[#allocation3 + $0x6c] sm:$0xf] %vm3784, %v3743
      %3813 = vst.msk [vmem:[#allocation3 + $0x70] sm:$0xf] %vm3784, %v3745
      %3814 = vst.msk [vmem:[#allocation3 + $0x74] sm:$0xf] %vm3784, %v3747
      %3815 = vst.msk [vmem:[#allocation3 + $0x78] sm:$0xf] %vm3784, %v3749
      %3816 = vst.msk [vmem:[#allocation3 + $0x7c] sm:$0xf] %vm3784, %v3751
      %v3817 = vld [vmem:[%s3062] sm:$0xe]
      %v3818 = vld [vmem:[%s3062 + $0x4] sm:$0xf]
      %v3819 = vld [vmem:[%s3062 + $0x8] sm:$0x1]
      %v3820 = vld [vmem:[%s3062 + $0xc] sm:$0xe]
      %v3821 = vld [vmem:[%s3062 + $0x10] sm:$0xf]
      %v3822 = vld [vmem:[%s3062 + $0x14] sm:$0x1]
      %v3823 = vld [vmem:[%s3062 + $0x18] sm:$0xe]
      %v3824 = vld [vmem:[%s3062 + $0x1c] sm:$0xf]
      %v3825 = vld [vmem:[%s3062 + $0x20] sm:$0x1]
      %v3826 = vld [vmem:[%s3062 + $0x24] sm:$0xe]
      %v3827 = vld [vmem:[%s3062 + $0x28] sm:$0xf]
      %v3828 = vld [vmem:[%s3062 + $0x2c] sm:$0x1]
      %v3829 = vld [vmem:[%s3062 + $0x30] sm:$0xe]
      %v3830 = vld [vmem:[%s3062 + $0x34] sm:$0xf]
      %v3831 = vld [vmem:[%s3062 + $0x38] sm:$0x1]
      %v3832 = vld [vmem:[%s3062 + $0x3c] sm:$0xe]
      %v3833 = vld [vmem:[%s3062 + $0x40] sm:$0xf]
      %v3834 = vld [vmem:[%s3062 + $0x44] sm:$0x1]
      %v3835 = vld [vmem:[%s3062 + $0x48] sm:$0xe]
      %v3836 = vld [vmem:[%s3062 + $0x4c] sm:$0xf]
      %v3837 = vld [vmem:[%s3062 + $0x50] sm:$0x1]
      %v3838 = vld [vmem:[%s3062 + $0x54] sm:$0xe]
      %v3839 = vld [vmem:[%s3062 + $0x58] sm:$0xf]
      %v3840 = vld [vmem:[%s3062 + $0x5c] sm:$0x1]
      %v3841 = vld [vmem:[%s3062 + $0x60] sm:$0xe]
      %v3842 = vld [vmem:[%s3062 + $0x64] sm:$0xf]
      %v3843 = vld [vmem:[%s3062 + $0x68] sm:$0x1]
      %v3844 = vld [vmem:[%s3062 + $0x6c] sm:$0xe]
      %v3845 = vld [vmem:[%s3062 + $0x70] sm:$0xf]
      %v3846 = vld [vmem:[%s3062 + $0x74] sm:$0x1]
      %v3847 = vld [vmem:[%s3062 + $0x78] sm:$0xe]
      %v3848 = vld [vmem:[%s3062 + $0x7c] sm:$0xf]
      %v3849 = vld [vmem:[%s3062 + $0x80] sm:$0x1]
      %v3850 = vld [vmem:[%s3062 + $0x84] sm:$0xe]
      %v3851 = vld [vmem:[%s3062 + $0x88] sm:$0xf]
      %v3852 = vld [vmem:[%s3062 + $0x8c] sm:$0x1]
      %v3853 = vld [vmem:[%s3062 + $0x90] sm:$0xe]
      %v3854 = vld [vmem:[%s3062 + $0x94] sm:$0xf]
      %v3855 = vld [vmem:[%s3062 + $0x98] sm:$0x1]
      %v3856 = vld [vmem:[%s3062 + $0x9c] sm:$0xe]
      %v3857 = vld [vmem:[%s3062 + $0xa0] sm:$0xf]
      %v3858 = vld [vmem:[%s3062 + $0xa4] sm:$0x1]
      %v3859 = vld [vmem:[%s3062 + $0xa8] sm:$0xe]
      %v3860 = vld [vmem:[%s3062 + $0xac] sm:$0xf]
      %v3861 = vld [vmem:[%s3062 + $0xb0] sm:$0x1]
      %v3862 = vld [vmem:[%s3062 + $0xb4] sm:$0xe]
      %v3863 = vld [vmem:[%s3062 + $0xb8] sm:$0xf]
      %v3864 = vld [vmem:[%s3062 + $0xbc] sm:$0x1]
      %v3913 = vrot.slane %v3817, 5
      %v3914 = vrot.slane %v3913, 4
      %v3915 = vrot.slane %v3818, 5
      %v3916 = vsel %vm1729, %v3914, %v3915
      %v3917 = vrot.slane %v3915, 4
      %v3918 = vrot.slane %v3819, 5
      %v3919 = vsel %vm1729, %v3917, %v3918
      %v3920 = vrot.slane %v3820, 5
      %v3921 = vrot.slane %v3920, 4
      %v3922 = vrot.slane %v3821, 5
      %v3923 = vsel %vm1729, %v3921, %v3922
      %v3924 = vrot.slane %v3922, 4
      %v3925 = vrot.slane %v3822, 5
      %v3926 = vsel %vm1729, %v3924, %v3925
      %v3927 = vrot.slane %v3823, 5
      %v3928 = vrot.slane %v3927, 4
      %v3929 = vrot.slane %v3824, 5
      %v3930 = vsel %vm1729, %v3928, %v3929
      %v3931 = vrot.slane %v3929, 4
      %v3932 = vrot.slane %v3825, 5
      %v3933 = vsel %vm1729, %v3931, %v3932
      %v3934 = vrot.slane %v3826, 5
      %v3935 = vrot.slane %v3934, 4
      %v3936 = vrot.slane %v3827, 5
      %v3937 = vsel %vm1729, %v3935, %v3936
      %v3938 = vrot.slane %v3936, 4
      %v3939 = vrot.slane %v3828, 5
      %v3940 = vsel %vm1729, %v3938, %v3939
      %v3941 = vrot.slane %v3829, 5
      %v3942 = vrot.slane %v3941, 4
      %v3943 = vrot.slane %v3830, 5
      %v3944 = vsel %vm1729, %v3942, %v3943
      %v3945 = vrot.slane %v3943, 4
      %v3946 = vrot.slane %v3831, 5
      %v3947 = vsel %vm1729, %v3945, %v3946
      %v3948 = vrot.slane %v3832, 5
      %v3949 = vrot.slane %v3948, 4
      %v3950 = vrot.slane %v3833, 5
      %v3951 = vsel %vm1729, %v3949, %v3950
      %v3952 = vrot.slane %v3950, 4
      %v3953 = vrot.slane %v3834, 5
      %v3954 = vsel %vm1729, %v3952, %v3953
      %v3955 = vrot.slane %v3835, 5
      %v3956 = vrot.slane %v3955, 4
      %v3957 = vrot.slane %v3836, 5
      %v3958 = vsel %vm1729, %v3956, %v3957
      %v3959 = vrot.slane %v3957, 4
      %v3960 = vrot.slane %v3837, 5
      %v3961 = vsel %vm1729, %v3959, %v3960
      %v3962 = vrot.slane %v3838, 5
      %v3963 = vrot.slane %v3962, 4
      %v3964 = vrot.slane %v3839, 5
      %v3965 = vsel %vm1729, %v3963, %v3964
      %v3966 = vrot.slane %v3964, 4
      %v3967 = vrot.slane %v3840, 5
      %v3968 = vsel %vm1729, %v3966, %v3967
      %v3969 = vrot.slane %v3841, 5
      %v3970 = vrot.slane %v3969, 4
      %v3971 = vrot.slane %v3842, 5
      %v3972 = vsel %vm1729, %v3970, %v3971
      %v3973 = vrot.slane %v3971, 4
      %v3974 = vrot.slane %v3843, 5
      %v3975 = vsel %vm1729, %v3973, %v3974
      %v3976 = vrot.slane %v3844, 5
      %v3977 = vrot.slane %v3976, 4
      %v3978 = vrot.slane %v3845, 5
      %v3979 = vsel %vm1729, %v3977, %v3978
      %v3980 = vrot.slane %v3978, 4
      %v3981 = vrot.slane %v3846, 5
      %v3982 = vsel %vm1729, %v3980, %v3981
      %v3983 = vrot.slane %v3847, 5
      %v3984 = vrot.slane %v3983, 4
      %v3985 = vrot.slane %v3848, 5
      %v3986 = vsel %vm1729, %v3984, %v3985
      %v3987 = vrot.slane %v3985, 4
      %v3988 = vrot.slane %v3849, 5
      %v3989 = vsel %vm1729, %v3987, %v3988
      %v3990 = vrot.slane %v3850, 5
      %v3991 = vrot.slane %v3990, 4
      %v3992 = vrot.slane %v3851, 5
      %v3993 = vsel %vm1729, %v3991, %v3992
      %v3994 = vrot.slane %v3992, 4
      %v3995 = vrot.slane %v3852, 5
      %v3996 = vsel %vm1729, %v3994, %v3995
      %v3997 = vrot.slane %v3853, 5
      %v3998 = vrot.slane %v3997, 4
      %v3999 = vrot.slane %v3854, 5
      %v4000 = vsel %vm1729, %v3998, %v3999
      %v4001 = vrot.slane %v3999, 4
      %v4002 = vrot.slane %v3855, 5
      %v4003 = vsel %vm1729, %v4001, %v4002
      %v4004 = vrot.slane %v3856, 5
      %v4005 = vrot.slane %v4004, 4
      %v4006 = vrot.slane %v3857, 5
      %v4007 = vsel %vm1729, %v4005, %v4006
      %v4008 = vrot.slane %v4006, 4
      %v4009 = vrot.slane %v3858, 5
      %v4010 = vsel %vm1729, %v4008, %v4009
      %v4011 = vrot.slane %v3859, 5
      %v4012 = vrot.slane %v4011, 4
      %v4013 = vrot.slane %v3860, 5
      %v4014 = vsel %vm1729, %v4012, %v4013
      %v4015 = vrot.slane %v4013, 4
      %v4016 = vrot.slane %v3861, 5
      %v4017 = vsel %vm1729, %v4015, %v4016
      %v4018 = vrot.slane %v3862, 5
      %v4019 = vrot.slane %v4018, 4
      %v4020 = vrot.slane %v3863, 5
      %v4021 = vsel %vm1729, %v4019, %v4020
      %v4022 = vrot.slane %v4020, 4
      %v4023 = vrot.slane %v3864, 5
      %v4024 = vsel %vm1729, %v4022, %v4023
      %4025 = vrot.lane.b32.xlu0 %v3916, 32
      %v4026 = vpop.permute.xlu0 %4025
      %4027 = vrot.lane.b32.xlu0 %v3919, 32
      %v4028 = vpop.permute.xlu0 %4027
      %4029 = vrot.lane.b32.xlu0 %v3923, 32
      %v4030 = vpop.permute.xlu0 %4029
      %4031 = vrot.lane.b32.xlu0 %v3926, 32
      %v4032 = vpop.permute.xlu0 %4031
      %4033 = vrot.lane.b32.xlu0 %v3930, 32
      %v4034 = vpop.permute.xlu0 %4033
      %4035 = vrot.lane.b32.xlu0 %v3933, 32
      %v4036 = vpop.permute.xlu0 %4035
      %4037 = vrot.lane.b32.xlu0 %v3937, 32
      %v4038 = vpop.permute.xlu0 %4037
      %4039 = vrot.lane.b32.xlu0 %v3940, 32
      %v4040 = vpop.permute.xlu0 %4039
      %4041 = vrot.lane.b32.xlu0 %v3944, 32
      %v4042 = vpop.permute.xlu0 %4041
      %4043 = vrot.lane.b32.xlu0 %v3947, 32
      %v4044 = vpop.permute.xlu0 %4043
      %4045 = vrot.lane.b32.xlu0 %v3951, 32
      %v4046 = vpop.permute.xlu0 %4045
      %4047 = vrot.lane.b32.xlu0 %v3954, 32
      %v4048 = vpop.permute.xlu0 %4047
      %4049 = vrot.lane.b32.xlu0 %v3958, 32
      %v4050 = vpop.permute.xlu0 %4049
      %4051 = vrot.lane.b32.xlu0 %v3961, 32
      %v4052 = vpop.permute.xlu0 %4051
      %4053 = vrot.lane.b32.xlu0 %v3965, 32
      %v4054 = vpop.permute.xlu0 %4053
      %4055 = vrot.lane.b32.xlu0 %v3968, 32
      %v4056 = vpop.permute.xlu0 %4055
      %4057 = vrot.lane.b32.xlu0 %v3972, 32
      %v4058 = vpop.permute.xlu0 %4057
      %4059 = vrot.lane.b32.xlu0 %v3975, 32
      %v4060 = vpop.permute.xlu0 %4059
      %4061 = vrot.lane.b32.xlu0 %v3979, 32
      %v4062 = vpop.permute.xlu0 %4061
      %4063 = vrot.lane.b32.xlu0 %v3982, 32
      %v4064 = vpop.permute.xlu0 %4063
      %4065 = vrot.lane.b32.xlu0 %v3986, 32
      %v4066 = vpop.permute.xlu0 %4065
      %4067 = vrot.lane.b32.xlu0 %v3989, 32
      %v4068 = vpop.permute.xlu0 %4067
      %4069 = vrot.lane.b32.xlu0 %v3993, 32
      %v4070 = vpop.permute.xlu0 %4069
      %4071 = vrot.lane.b32.xlu0 %v3996, 32
      %v4072 = vpop.permute.xlu0 %4071
      %4073 = vrot.lane.b32.xlu0 %v4000, 32
      %v4074 = vpop.permute.xlu0 %4073
      %4075 = vrot.lane.b32.xlu0 %v4003, 32
      %v4076 = vpop.permute.xlu0 %4075
      %4077 = vrot.lane.b32.xlu0 %v4007, 32
      %v4078 = vpop.permute.xlu0 %4077
      %4079 = vrot.lane.b32.xlu0 %v4010, 32
      %v4080 = vpop.permute.xlu0 %4079
      %4081 = vrot.lane.b32.xlu0 %v4014, 32
      %v4082 = vpop.permute.xlu0 %4081
      %4083 = vrot.lane.b32.xlu0 %v4017, 32
      %v4084 = vpop.permute.xlu0 %4083
      %4085 = vrot.lane.b32.xlu0 %v4021, 32
      %v4086 = vpop.permute.xlu0 %4085
      %4087 = vrot.lane.b32.xlu0 %v4024, 32
      %v4088 = vpop.permute.xlu0 %4087
      %vm4121 = vcmask 290048
      %4122 = vst.msk [vmem:[#allocation3] sm:$0xf] %vm4121, %v4026
      %4123 = vst.msk [vmem:[#allocation3 + $0x4] sm:$0xf] %vm4121, %v4028
      %4124 = vst.msk [vmem:[#allocation3 + $0x8] sm:$0xf] %vm4121, %v4030
      %4125 = vst.msk [vmem:[#allocation3 + $0xc] sm:$0xf] %vm4121, %v4032
      %4126 = vst.msk [vmem:[#allocation3 + $0x10] sm:$0xf] %vm4121, %v4034
      %4127 = vst.msk [vmem:[#allocation3 + $0x14] sm:$0xf] %vm4121, %v4036
      %4128 = vst.msk [vmem:[#allocation3 + $0x18] sm:$0xf] %vm4121, %v4038
      %4129 = vst.msk [vmem:[#allocation3 + $0x1c] sm:$0xf] %vm4121, %v4040
      %4130 = vst.msk [vmem:[#allocation3 + $0x20] sm:$0xf] %vm4121, %v4042
      %4131 = vst.msk [vmem:[#allocation3 + $0x24] sm:$0xf] %vm4121, %v4044
      %4132 = vst.msk [vmem:[#allocation3 + $0x28] sm:$0xf] %vm4121, %v4046
      %4133 = vst.msk [vmem:[#allocation3 + $0x2c] sm:$0xf] %vm4121, %v4048
      %4134 = vst.msk [vmem:[#allocation3 + $0x30] sm:$0xf] %vm4121, %v4050
      %4135 = vst.msk [vmem:[#allocation3 + $0x34] sm:$0xf] %vm4121, %v4052
      %4136 = vst.msk [vmem:[#allocation3 + $0x38] sm:$0xf] %vm4121, %v4054
      %4137 = vst.msk [vmem:[#allocation3 + $0x3c] sm:$0xf] %vm4121, %v4056
      %4138 = vst.msk [vmem:[#allocation3 + $0x40] sm:$0xf] %vm4121, %v4058
      %4139 = vst.msk [vmem:[#allocation3 + $0x44] sm:$0xf] %vm4121, %v4060
      %4140 = vst.msk [vmem:[#allocation3 + $0x48] sm:$0xf] %vm4121, %v4062
      %4141 = vst.msk [vmem:[#allocation3 + $0x4c] sm:$0xf] %vm4121, %v4064
      %4142 = vst.msk [vmem:[#allocation3 + $0x50] sm:$0xf] %vm4121, %v4066
      %4143 = vst.msk [vmem:[#allocation3 + $0x54] sm:$0xf] %vm4121, %v4068
      %4144 = vst.msk [vmem:[#allocation3 + $0x58] sm:$0xf] %vm4121, %v4070
      %4145 = vst.msk [vmem:[#allocation3 + $0x5c] sm:$0xf] %vm4121, %v4072
      %4146 = vst.msk [vmem:[#allocation3 + $0x60] sm:$0xf] %vm4121, %v4074
      %4147 = vst.msk [vmem:[#allocation3 + $0x64] sm:$0xf] %vm4121, %v4076
      %4148 = vst.msk [vmem:[#allocation3 + $0x68] sm:$0xf] %vm4121, %v4078
      %4149 = vst.msk [vmem:[#allocation3 + $0x6c] sm:$0xf] %vm4121, %v4080
      %4150 = vst.msk [vmem:[#allocation3 + $0x70] sm:$0xf] %vm4121, %v4082
      %4151 = vst.msk [vmem:[#allocation3 + $0x74] sm:$0xf] %vm4121, %v4084
      %4152 = vst.msk [vmem:[#allocation3 + $0x78] sm:$0xf] %vm4121, %v4086
      %4153 = vst.msk [vmem:[#allocation3 + $0x7c] sm:$0xf] %vm4121, %v4088
      %v4154 = vld [vmem:[#allocation3] sm:$0xf]
      %v4155 = vld [vmem:[#allocation3 + $0x4] sm:$0xf]
      %v4156 = vld [vmem:[#allocation3 + $0x8] sm:$0xf]
      %v4157 = vld [vmem:[#allocation3 + $0xc] sm:$0xf]
      %v4158 = vld [vmem:[#allocation3 + $0x10] sm:$0xf]
      %v4159 = vld [vmem:[#allocation3 + $0x14] sm:$0xf]
      %v4160 = vld [vmem:[#allocation3 + $0x18] sm:$0xf]
      %v4161 = vld [vmem:[#allocation3 + $0x1c] sm:$0xf]
      %v4162 = vld [vmem:[#allocation3 + $0x20] sm:$0xf]
      %v4163 = vld [vmem:[#allocation3 + $0x24] sm:$0xf]
      %v4164 = vld [vmem:[#allocation3 + $0x28] sm:$0xf]
      %v4165 = vld [vmem:[#allocation3 + $0x2c] sm:$0xf]
      %v4166 = vld [vmem:[#allocation3 + $0x30] sm:$0xf]
      %v4167 = vld [vmem:[#allocation3 + $0x34] sm:$0xf]
      %v4168 = vld [vmem:[#allocation3 + $0x38] sm:$0xf]
      %v4169 = vld [vmem:[#allocation3 + $0x3c] sm:$0xf]
      %v4170 = vld [vmem:[#allocation3 + $0x40] sm:$0xf]
      %v4171 = vld [vmem:[#allocation3 + $0x44] sm:$0xf]
      %v4172 = vld [vmem:[#allocation3 + $0x48] sm:$0xf]
      %v4173 = vld [vmem:[#allocation3 + $0x4c] sm:$0xf]
      %v4174 = vld [vmem:[#allocation3 + $0x50] sm:$0xf]
      %v4175 = vld [vmem:[#allocation3 + $0x54] sm:$0xf]
      %v4176 = vld [vmem:[#allocation3 + $0x58] sm:$0xf]
      %v4177 = vld [vmem:[#allocation3 + $0x5c] sm:$0xf]
      %v4178 = vld [vmem:[#allocation3 + $0x60] sm:$0xf]
      %v4179 = vld [vmem:[#allocation3 + $0x64] sm:$0xf]
      %v4180 = vld [vmem:[#allocation3 + $0x68] sm:$0xf]
      %v4181 = vld [vmem:[#allocation3 + $0x6c] sm:$0xf]
      %v4182 = vld [vmem:[#allocation3 + $0x70] sm:$0xf]
      %v4183 = vld [vmem:[#allocation3 + $0x74] sm:$0xf]
      %v4184 = vld [vmem:[#allocation3 + $0x78] sm:$0xf]
      %v4185 = vld [vmem:[#allocation3 + $0x7c] sm:$0xf]
      %v4186 = vld [vmem:[%s1] sm:$0xf]
      %v4187 = vld [vmem:[%s1 + $0x4] sm:$0xf]
      %v4188 = vld [vmem:[%s1 + $0x8] sm:$0xf]
      %v4189 = vld [vmem:[%s1 + $0xc] sm:$0xf]
      %v4190 = vld [vmem:[%s1 + $0x10] sm:$0x3]
      %v4191 = vld [vmem:[%s2] sm:$0x1]
      %v4193 = vlaneseq
      %v4194 = vshrl.u32 %v4193, 7
      %v4195 = vsub.s32 0, %v4194
      %v4196 = vrot.slane %v4191, %v4195
      %v4230 = vunpack.c.l.b16 %v4154
      %v4231 = vunpack.c.l.b16 %v4155
      %v4232 = vunpack.c.l.b16 %v4156
      %v4233 = vunpack.c.l.b16 %v4157
      %v4234 = vunpack.c.l.b16 %v4158
      %v4235 = vunpack.c.l.b16 %v4159
      %v4236 = vunpack.c.l.b16 %v4160
      %v4237 = vunpack.c.l.b16 %v4161
      %v4238 = vunpack.c.l.b16 %v4162
      %v4239 = vunpack.c.l.b16 %v4163
      %v4240 = vunpack.c.l.b16 %v4164
      %v4241 = vunpack.c.l.b16 %v4165
      %v4242 = vunpack.c.l.b16 %v4166
      %v4243 = vunpack.c.l.b16 %v4167
      %v4244 = vunpack.c.l.b16 %v4168
      %v4245 = vunpack.c.l.b16 %v4169
      %v4246 = vunpack.c.l.b16 %v4170
      %v4247 = vunpack.c.l.b16 %v4171
      %v4248 = vunpack.c.l.b16 %v4172
      %v4249 = vunpack.c.l.b16 %v4173
      %v4250 = vunpack.c.l.b16 %v4174
      %v4251 = vunpack.c.l.b16 %v4175
      %v4252 = vunpack.c.l.b16 %v4176
      %v4253 = vunpack.c.l.b16 %v4177
      %v4254 = vunpack.c.l.b16 %v4178
      %v4255 = vunpack.c.l.b16 %v4179
      %v4256 = vunpack.c.l.b16 %v4180
      %v4257 = vunpack.c.l.b16 %v4181
      %v4258 = vunpack.c.l.b16 %v4182
      %v4259 = vunpack.c.l.b16 %v4183
      %v4260 = vunpack.c.l.b16 %v4184
      %v4261 = vunpack.c.l.b16 %v4185
      %v4262 = vpack.c.b16 %v4231, %v4230
      %v4263 = vpack.c.b16 %v4233, %v4232
      %v4264 = vpack.c.b16 %v4235, %v4234
      %v4265 = vpack.c.b16 %v4237, %v4236
      %v4266 = vpack.c.b16 %v4239, %v4238
      %v4267 = vpack.c.b16 %v4241, %v4240
      %v4268 = vpack.c.b16 %v4243, %v4242
      %v4269 = vpack.c.b16 %v4245, %v4244
      %v4270 = vpack.c.b16 %v4247, %v4246
      %v4271 = vpack.c.b16 %v4249, %v4248
      %v4272 = vpack.c.b16 %v4251, %v4250
      %v4273 = vpack.c.b16 %v4253, %v4252
      %v4274 = vpack.c.b16 %v4255, %v4254
      %v4275 = vpack.c.b16 %v4257, %v4256
      %v4276 = vpack.c.b16 %v4259, %v4258
      %v4277 = vpack.c.b16 %v4261, %v4260
      %v4283 = vunpack.c.l.b16 %v4186
      %v4284 = vunpack.c.l.b16 %v4187
      %v4285 = vunpack.c.l.b16 %v4188
      %v4286 = vunpack.c.l.b16 %v4189
      %v4287 = vunpack.c.l.b16 %v4190
      %v4288 = vpack.c.b16 %v4284, %v4283
      %v4289 = vpack.c.b16 %v4286, %v4285
      %v4290 = vpack.c.b16 %v4287, %v4287
      %vm4293 = vcmask 293888
      %v4295 = vsel %vm4293, %v4262, 0
      %v4298 = vsel %vm4293, %v4263, 0
      %v4301 = vsel %vm4293, %v4264, 0
      %v4304 = vsel %vm4293, %v4265, 0
      %v4307 = vsel %vm4293, %v4266, 0
      %v4310 = vsel %vm4293, %v4267, 0
      %v4313 = vsel %vm4293, %v4268, 0
      %v4316 = vsel %vm4293, %v4269, 0
      %v4319 = vsel %vm4293, %v4270, 0
      %v4322 = vsel %vm4293, %v4271, 0
      %v4325 = vsel %vm4293, %v4272, 0
      %v4328 = vsel %vm4293, %v4273, 0
      %v4331 = vsel %vm4293, %v4274, 0
      %v4334 = vsel %vm4293, %v4275, 0
      %v4337 = vsel %vm4293, %v4276, 0
      %v4340 = vsel %vm4293, %v4277, 0
      %vm4342 = vcmask 1041408
      %v4344 = vsel %vm4342, %v4290, 0
      %4346 = vmatprep.subr.bf16.mxu0 0
      %4347 = vmatpush1.bf16.msra.mxu0 0
      %4348 = vmatprep.subr.bf16.mxu0 0
      %4349 = vmatpush1.bf16.msra.mxu0 0
      %4350 = vmatprep.subr.bf16.mxu0 0
      %4351 = vmatpush1.bf16.msra.mxu0 0
      %4352 = vmatprep.subr.bf16.mxu0 0
      %4353 = vmatpush1.bf16.msra.mxu0 0
      %4354 = vmatprep.subr.bf16.mxu0 0
      %4355 = vmatpush1.bf16.msra.mxu0 0
      %4356 = vmatprep.subr.bf16.mxu0 0
      %4357 = vmatpush1.bf16.msra.mxu0 %v4344
      %4358 = vmatprep.subr.bf16.mxu0 0
      %4359 = vmatpush1.bf16.msra.mxu0 %v4289
      %4360 = vmatprep.subr.bf16.mxu0 0
      %4361 = vmatpush1.bf16.msra.mxu0 %v4288
      %4362 = vmatprep.subr.bf16.mxu0 0
      %4363 = vmatpush2.bf16.msra.mxu0 0
      %4364 = vmatprep.subr.bf16.mxu0 0
      %4365 = vmatpush2.bf16.msra.mxu0 0
      %4366 = vmatprep.subr.bf16.mxu0 0
      %4367 = vmatpush2.bf16.msra.mxu0 0
      %4368 = vmatprep.subr.bf16.mxu0 0
      %4369 = vmatpush2.bf16.msra.mxu0 0
      %4370 = vmatprep.subr.bf16.mxu0 0
      %4371 = vmatpush2.bf16.msra.mxu0 0
      %4372 = vmatprep.subr.bf16.mxu0 0
      %4373 = vmatpush2.bf16.msra.mxu0 0
      %4374 = vmatprep.subr.bf16.mxu0 0
      %4375 = vmatpush2.bf16.msra.mxu0 0
      %4376 = vmatprep.subr.bf16.mxu0 0
      %4377 = vmatpush2.bf16.msra.mxu0 0
      %4378 = vmatprep.mubr.bf16.mxu0 0
      %4379 = vmatmul.mubr.bf16.gmra.mxu0 %v4295
      %v4380 = vpop.f32.mrf.mxu0
      %v4381 = vadd.f32 %v4196, %v4380
      %v4382 = vpop.f32.mrf.mxu0
      %v4383 = vpop.f32.mrf.mxu0
      %v4384 = vadd.f32 %v4196, %v4383
      %v4385 = vpop.f32.mrf.mxu0
      %4386 = vmatprep.mubr.bf16.mxu0 0
      %4387 = vmatmul.mubr.bf16.gmra.mxu0 %v4298
      %v4388 = vpop.f32.mrf.mxu0
      %v4389 = vadd.f32 %v4196, %v4388
      %v4390 = vpop.f32.mrf.mxu0
      %v4391 = vpop.f32.mrf.mxu0
      %v4392 = vadd.f32 %v4196, %v4391
      %v4393 = vpop.f32.mrf.mxu0
      %4394 = vmatprep.mubr.bf16.mxu0 0
      %4395 = vmatmul.mubr.bf16.gmra.mxu0 %v4301
      %v4396 = vpop.f32.mrf.mxu0
      %v4397 = vadd.f32 %v4196, %v4396
      %v4398 = vpop.f32.mrf.mxu0
      %v4399 = vpop.f32.mrf.mxu0
      %v4400 = vadd.f32 %v4196, %v4399
      %v4401 = vpop.f32.mrf.mxu0
      %4402 = vmatprep.mubr.bf16.mxu0 0
      %4403 = vmatmul.mubr.bf16.gmra.mxu0 %v4304
      %v4404 = vpop.f32.mrf.mxu0
      %v4405 = vadd.f32 %v4196, %v4404
      %v4406 = vpop.f32.mrf.mxu0
      %v4407 = vpop.f32.mrf.mxu0
      %v4408 = vadd.f32 %v4196, %v4407
      %v4409 = vpop.f32.mrf.mxu0
      %4410 = vmatprep.mubr.bf16.mxu0 0
      %4411 = vmatmul.mubr.bf16.gmra.mxu0 %v4307
      %v4412 = vpop.f32.mrf.mxu0
      %v4413 = vadd.f32 %v4196, %v4412
      %v4414 = vpop.f32.mrf.mxu0
      %v4415 = vpop.f32.mrf.mxu0
      %v4416 = vadd.f32 %v4196, %v4415
      %v4417 = vpop.f32.mrf.mxu0
      %4418 = vmatprep.mubr.bf16.mxu0 0
      %4419 = vmatmul.mubr.bf16.gmra.mxu0 %v4310
      %v4420 = vpop.f32.mrf.mxu0
      %v4421 = vadd.f32 %v4196, %v4420
      %v4422 = vpop.f32.mrf.mxu0
      %v4423 = vpop.f32.mrf.mxu0
      %v4424 = vadd.f32 %v4196, %v4423
      %v4425 = vpop.f32.mrf.mxu0
      %4426 = vmatprep.mubr.bf16.mxu0 0
      %4427 = vmatmul.mubr.bf16.gmra.mxu0 %v4313
      %v4428 = vpop.f32.mrf.mxu0
      %v4429 = vadd.f32 %v4196, %v4428
      %v4430 = vpop.f32.mrf.mxu0
      %v4431 = vpop.f32.mrf.mxu0
      %v4432 = vadd.f32 %v4196, %v4431
      %v4433 = vpop.f32.mrf.mxu0
      %4434 = vmatprep.mubr.bf16.mxu0 0
      %4435 = vmatmul.mubr.bf16.gmra.mxu0 %v4316
      %v4436 = vpop.f32.mrf.mxu0
      %v4437 = vadd.f32 %v4196, %v4436
      %v4438 = vpop.f32.mrf.mxu0
      %v4439 = vpop.f32.mrf.mxu0
      %v4440 = vadd.f32 %v4196, %v4439
      %v4441 = vpop.f32.mrf.mxu0
      %4442 = vmatprep.mubr.bf16.mxu0 0
      %4443 = vmatmul.mubr.bf16.gmra.mxu0 %v4319
      %v4444 = vpop.f32.mrf.mxu0
      %v4445 = vadd.f32 %v4196, %v4444
      %v4446 = vpop.f32.mrf.mxu0
      %v4447 = vpop.f32.mrf.mxu0
      %v4448 = vadd.f32 %v4196, %v4447
      %v4449 = vpop.f32.mrf.mxu0
      %4450 = vmatprep.mubr.bf16.mxu0 0
      %4451 = vmatmul.mubr.bf16.gmra.mxu0 %v4322
      %v4452 = vpop.f32.mrf.mxu0
      %v4453 = vadd.f32 %v4196, %v4452
      %v4454 = vpop.f32.mrf.mxu0
      %v4455 = vpop.f32.mrf.mxu0
      %v4456 = vadd.f32 %v4196, %v4455
      %v4457 = vpop.f32.mrf.mxu0
      %4458 = vmatprep.mubr.bf16.mxu0 0
      %4459 = vmatmul.mubr.bf16.gmra.mxu0 %v4325
      %v4460 = vpop.f32.mrf.mxu0
      %v4461 = vadd.f32 %v4196, %v4460
      %v4462 = vpop.f32.mrf.mxu0
      %v4463 = vpop.f32.mrf.mxu0
      %v4464 = vadd.f32 %v4196, %v4463
      %v4465 = vpop.f32.mrf.mxu0
      %4466 = vmatprep.mubr.bf16.mxu0 0
      %4467 = vmatmul.mubr.bf16.gmra.mxu0 %v4328
      %v4468 = vpop.f32.mrf.mxu0
      %v4469 = vadd.f32 %v4196, %v4468
      %v4470 = vpop.f32.mrf.mxu0
      %v4471 = vpop.f32.mrf.mxu0
      %v4472 = vadd.f32 %v4196, %v4471
      %v4473 = vpop.f32.mrf.mxu0
      %4474 = vmatprep.mubr.bf16.mxu0 0
      %4475 = vmatmul.mubr.bf16.gmra.mxu0 %v4331
      %v4476 = vpop.f32.mrf.mxu0
      %v4477 = vadd.f32 %v4196, %v4476
      %v4478 = vpop.f32.mrf.mxu0
      %v4479 = vpop.f32.mrf.mxu0
      %v4480 = vadd.f32 %v4196, %v4479
      %v4481 = vpop.f32.mrf.mxu0
      %4482 = vmatprep.mubr.bf16.mxu0 0
      %4483 = vmatmul.mubr.bf16.gmra.mxu0 %v4334
      %v4484 = vpop.f32.mrf.mxu0
      %v4485 = vadd.f32 %v4196, %v4484
      %v4486 = vpop.f32.mrf.mxu0
      %v4487 = vpop.f32.mrf.mxu0
      %v4488 = vadd.f32 %v4196, %v4487
      %v4489 = vpop.f32.mrf.mxu0
      %4490 = vmatprep.mubr.bf16.mxu0 0
      %4491 = vmatmul.mubr.bf16.gmra.mxu0 %v4337
      %v4492 = vpop.f32.mrf.mxu0
      %v4493 = vadd.f32 %v4196, %v4492
      %v4494 = vpop.f32.mrf.mxu0
      %v4495 = vpop.f32.mrf.mxu0
      %v4496 = vadd.f32 %v4196, %v4495
      %v4497 = vpop.f32.mrf.mxu0
      %4498 = vmatprep.mubr.bf16.mxu0 0
      %4499 = vmatmul.mubr.bf16.gmra.mxu0 %v4340
      %v4500 = vpop.f32.mrf.mxu0
      %v4501 = vadd.f32 %v4196, %v4500
      %v4502 = vpop.f32.mrf.mxu0
      %v4503 = vpop.f32.mrf.mxu0
      %v4504 = vadd.f32 %v4196, %v4503
      %v4505 = vpop.f32.mrf.mxu0
      %4506 = vdwg.mxu0
      %v4507 = vmax.f32 %v4381, 0.0
      %v4508 = vmax.f32 %v4384, 0.0
      %v4509 = vmax.f32 %v4389, 0.0
      %v4510 = vmax.f32 %v4392, 0.0
      %v4511 = vmax.f32 %v4397, 0.0
      %v4512 = vmax.f32 %v4400, 0.0
      %v4513 = vmax.f32 %v4405, 0.0
      %v4514 = vmax.f32 %v4408, 0.0
      %v4515 = vmax.f32 %v4413, 0.0
      %v4516 = vmax.f32 %v4416, 0.0
      %v4517 = vmax.f32 %v4421, 0.0
      %v4518 = vmax.f32 %v4424, 0.0
      %v4519 = vmax.f32 %v4429, 0.0
      %v4520 = vmax.f32 %v4432, 0.0
      %v4521 = vmax.f32 %v4437, 0.0
      %v4522 = vmax.f32 %v4440, 0.0
      %v4523 = vmax.f32 %v4445, 0.0
      %v4524 = vmax.f32 %v4448, 0.0
      %v4525 = vmax.f32 %v4453, 0.0
      %v4526 = vmax.f32 %v4456, 0.0
      %v4527 = vmax.f32 %v4461, 0.0
      %v4528 = vmax.f32 %v4464, 0.0
      %v4529 = vmax.f32 %v4469, 0.0
      %v4530 = vmax.f32 %v4472, 0.0
      %v4531 = vmax.f32 %v4477, 0.0
      %v4532 = vmax.f32 %v4480, 0.0
      %v4533 = vmax.f32 %v4485, 0.0
      %v4534 = vmax.f32 %v4488, 0.0
      %v4535 = vmax.f32 %v4493, 0.0
      %v4536 = vmax.f32 %v4496, 0.0
      %v4537 = vmax.f32 %v4501, 0.0
      %v4538 = vmax.f32 %v4504, 0.0
      %v4539 = vpack.c.bf16 %v4508, %v4507
      %v4540 = vpack.c.bf16 %v4510, %v4509
      %v4541 = vpack.c.bf16 %v4512, %v4511
      %v4542 = vpack.c.bf16 %v4514, %v4513
      %v4543 = vpack.c.bf16 %v4516, %v4515
      %v4544 = vpack.c.bf16 %v4518, %v4517
      %v4545 = vpack.c.bf16 %v4520, %v4519
      %v4546 = vpack.c.bf16 %v4522, %v4521
      %v4547 = vpack.c.bf16 %v4524, %v4523
      %v4548 = vpack.c.bf16 %v4526, %v4525
      %v4549 = vpack.c.bf16 %v4528, %v4527
      %v4550 = vpack.c.bf16 %v4530, %v4529
      %v4551 = vpack.c.bf16 %v4532, %v4531
      %v4552 = vpack.c.bf16 %v4534, %v4533
      %v4553 = vpack.c.bf16 %v4536, %v4535
      %v4554 = vpack.c.bf16 %v4538, %v4537
      %v4571 = vunpack.c.l.b16 %v4539
      %v4572 = vunpack.c.h.b16 %v4539
      %v4573 = vunpack.c.l.b16 %v4540
      %v4574 = vunpack.c.h.b16 %v4540
      %v4575 = vunpack.c.l.b16 %v4541
      %v4576 = vunpack.c.h.b16 %v4541
      %v4577 = vunpack.c.l.b16 %v4542
      %v4578 = vunpack.c.h.b16 %v4542
      %v4579 = vunpack.c.l.b16 %v4543
      %v4580 = vunpack.c.h.b16 %v4543
      %v4581 = vunpack.c.l.b16 %v4544
      %v4582 = vunpack.c.h.b16 %v4544
      %v4583 = vunpack.c.l.b16 %v4545
      %v4584 = vunpack.c.h.b16 %v4545
      %v4585 = vunpack.c.l.b16 %v4546
      %v4586 = vunpack.c.h.b16 %v4546
      %v4587 = vunpack.c.l.b16 %v4547
      %v4588 = vunpack.c.h.b16 %v4547
      %v4589 = vunpack.c.l.b16 %v4548
      %v4590 = vunpack.c.h.b16 %v4548
      %v4591 = vunpack.c.l.b16 %v4549
      %v4592 = vunpack.c.h.b16 %v4549
      %v4593 = vunpack.c.l.b16 %v4550
      %v4594 = vunpack.c.h.b16 %v4550
      %v4595 = vunpack.c.l.b16 %v4551
      %v4596 = vunpack.c.h.b16 %v4551
      %v4597 = vunpack.c.l.b16 %v4552
      %v4598 = vunpack.c.h.b16 %v4552
      %v4599 = vunpack.c.l.b16 %v4553
      %v4600 = vunpack.c.h.b16 %v4553
      %v4601 = vunpack.c.l.b16 %v4554
      %v4602 = vunpack.c.h.b16 %v4554
      %v4603 = vpack.c.b16 %v4571, %v4571
      %v4604 = vpack.c.b16 %v4572, %v4572
      %v4605 = vpack.c.b16 %v4573, %v4573
      %v4606 = vpack.c.b16 %v4574, %v4574
      %v4607 = vpack.c.b16 %v4575, %v4575
      %v4608 = vpack.c.b16 %v4576, %v4576
      %v4609 = vpack.c.b16 %v4577, %v4577
      %v4610 = vpack.c.b16 %v4578, %v4578
      %v4611 = vpack.c.b16 %v4579, %v4579
      %v4612 = vpack.c.b16 %v4580, %v4580
      %v4613 = vpack.c.b16 %v4581, %v4581
      %v4614 = vpack.c.b16 %v4582, %v4582
      %v4615 = vpack.c.b16 %v4583, %v4583
      %v4616 = vpack.c.b16 %v4584, %v4584
      %v4617 = vpack.c.b16 %v4585, %v4585
      %v4618 = vpack.c.b16 %v4586, %v4586
      %v4619 = vpack.c.b16 %v4587, %v4587
      %v4620 = vpack.c.b16 %v4588, %v4588
      %v4621 = vpack.c.b16 %v4589, %v4589
      %v4622 = vpack.c.b16 %v4590, %v4590
      %v4623 = vpack.c.b16 %v4591, %v4591
      %v4624 = vpack.c.b16 %v4592, %v4592
      %v4625 = vpack.c.b16 %v4593, %v4593
      %v4626 = vpack.c.b16 %v4594, %v4594
      %v4627 = vpack.c.b16 %v4595, %v4595
      %v4628 = vpack.c.b16 %v4596, %v4596
      %v4629 = vpack.c.b16 %v4597, %v4597
      %v4630 = vpack.c.b16 %v4598, %v4598
      %v4631 = vpack.c.b16 %v4599, %v4599
      %v4632 = vpack.c.b16 %v4600, %v4600
      %v4633 = vpack.c.b16 %v4601, %v4601
      %v4634 = vpack.c.b16 %v4602, %v4602
      %v4636 = vshrl.u32 %v4603, 16
      %v4638 = vrot.slane %v4636, 7
      %v4639 = vshll.u32 %v4603, 16
      %v4641 = vor.u32 %v4638, %v4639
      %v4642 = vrot.slane %v4638, 4
      %v4644 = vshrl.u32 %v4604, 16
      %v4646 = vrot.slane %v4644, 7
      %v4647 = vshll.u32 %v4604, 16
      %v4649 = vor.u32 %v4646, %v4647
      %v4650 = vsel %vm564, %v4642, %v4649
      %v4651 = vrot.slane %v4646, 4
      %v4653 = vshrl.u32 %v4605, 16
      %v4655 = vrot.slane %v4653, 7
      %v4656 = vshll.u32 %v4605, 16
      %v4658 = vor.u32 %v4655, %v4656
      %v4659 = vrot.slane %v4655, 4
      %v4661 = vshrl.u32 %v4606, 16
      %v4663 = vrot.slane %v4661, 7
      %v4664 = vshll.u32 %v4606, 16
      %v4666 = vor.u32 %v4663, %v4664
      %v4667 = vsel %vm564, %v4659, %v4666
      %v4668 = vrot.slane %v4663, 4
      %v4670 = vshrl.u32 %v4607, 16
      %v4672 = vrot.slane %v4670, 7
      %v4673 = vshll.u32 %v4607, 16
      %v4675 = vor.u32 %v4672, %v4673
      %v4676 = vrot.slane %v4672, 4
      %v4678 = vshrl.u32 %v4608, 16
      %v4680 = vrot.slane %v4678, 7
      %v4681 = vshll.u32 %v4608, 16
      %v4683 = vor.u32 %v4680, %v4681
      %v4684 = vsel %vm564, %v4676, %v4683
      %v4685 = vrot.slane %v4680, 4
      %v4687 = vshrl.u32 %v4609, 16
      %v4689 = vrot.slane %v4687, 7
      %v4690 = vshll.u32 %v4609, 16
      %v4692 = vor.u32 %v4689, %v4690
      %v4693 = vrot.slane %v4689, 4
      %v4695 = vshrl.u32 %v4610, 16
      %v4697 = vrot.slane %v4695, 7
      %v4698 = vshll.u32 %v4610, 16
      %v4700 = vor.u32 %v4697, %v4698
      %v4701 = vsel %vm564, %v4693, %v4700
      %v4702 = vrot.slane %v4697, 4
      %v4704 = vshrl.u32 %v4611, 16
      %v4706 = vrot.slane %v4704, 7
      %v4707 = vshll.u32 %v4611, 16
      %v4709 = vor.u32 %v4706, %v4707
      %v4710 = vrot.slane %v4706, 4
      %v4712 = vshrl.u32 %v4612, 16
      %v4714 = vrot.slane %v4712, 7
      %v4715 = vshll.u32 %v4612, 16
      %v4717 = vor.u32 %v4714, %v4715
      %v4718 = vsel %vm564, %v4710, %v4717
      %v4719 = vrot.slane %v4714, 4
      %v4721 = vshrl.u32 %v4613, 16
      %v4723 = vrot.slane %v4721, 7
      %v4724 = vshll.u32 %v4613, 16
      %v4726 = vor.u32 %v4723, %v4724
      %v4727 = vrot.slane %v4723, 4
      %v4729 = vshrl.u32 %v4614, 16
      %v4731 = vrot.slane %v4729, 7
      %v4732 = vshll.u32 %v4614, 16
      %v4734 = vor.u32 %v4731, %v4732
      %v4735 = vsel %vm564, %v4727, %v4734
      %v4736 = vrot.slane %v4731, 4
      %v4738 = vshrl.u32 %v4615, 16
      %v4740 = vrot.slane %v4738, 7
      %v4741 = vshll.u32 %v4615, 16
      %v4743 = vor.u32 %v4740, %v4741
      %v4744 = vrot.slane %v4740, 4
      %v4746 = vshrl.u32 %v4616, 16
      %v4748 = vrot.slane %v4746, 7
      %v4749 = vshll.u32 %v4616, 16
      %v4751 = vor.u32 %v4748, %v4749
      %v4752 = vsel %vm564, %v4744, %v4751
      %v4753 = vrot.slane %v4748, 4
      %v4755 = vshrl.u32 %v4617, 16
      %v4757 = vrot.slane %v4755, 7
      %v4758 = vshll.u32 %v4617, 16
      %v4760 = vor.u32 %v4757, %v4758
      %v4761 = vrot.slane %v4757, 4
      %v4763 = vshrl.u32 %v4618, 16
      %v4765 = vrot.slane %v4763, 7
      %v4766 = vshll.u32 %v4618, 16
      %v4768 = vor.u32 %v4765, %v4766
      %v4769 = vsel %vm564, %v4761, %v4768
      %v4770 = vrot.slane %v4765, 4
      %v4772 = vshrl.u32 %v4619, 16
      %v4774 = vrot.slane %v4772, 7
      %v4775 = vshll.u32 %v4619, 16
      %v4777 = vor.u32 %v4774, %v4775
      %v4778 = vrot.slane %v4774, 4
      %v4780 = vshrl.u32 %v4620, 16
      %v4782 = vrot.slane %v4780, 7
      %v4783 = vshll.u32 %v4620, 16
      %v4785 = vor.u32 %v4782, %v4783
      %v4786 = vsel %vm564, %v4778, %v4785
      %v4787 = vrot.slane %v4782, 4
      %v4789 = vshrl.u32 %v4621, 16
      %v4791 = vrot.slane %v4789, 7
      %v4792 = vshll.u32 %v4621, 16
      %v4794 = vor.u32 %v4791, %v4792
      %v4795 = vrot.slane %v4791, 4
      %v4797 = vshrl.u32 %v4622, 16
      %v4799 = vrot.slane %v4797, 7
      %v4800 = vshll.u32 %v4622, 16
      %v4802 = vor.u32 %v4799, %v4800
      %v4803 = vsel %vm564, %v4795, %v4802
      %v4804 = vrot.slane %v4799, 4
      %v4806 = vshrl.u32 %v4623, 16
      %v4808 = vrot.slane %v4806, 7
      %v4809 = vshll.u32 %v4623, 16
      %v4811 = vor.u32 %v4808, %v4809
      %v4812 = vrot.slane %v4808, 4
      %v4814 = vshrl.u32 %v4624, 16
      %v4816 = vrot.slane %v4814, 7
      %v4817 = vshll.u32 %v4624, 16
      %v4819 = vor.u32 %v4816, %v4817
      %v4820 = vsel %vm564, %v4812, %v4819
      %v4821 = vrot.slane %v4816, 4
      %v4823 = vshrl.u32 %v4625, 16
      %v4825 = vrot.slane %v4823, 7
      %v4826 = vshll.u32 %v4625, 16
      %v4828 = vor.u32 %v4825, %v4826
      %v4829 = vrot.slane %v4825, 4
      %v4831 = vshrl.u32 %v4626, 16
      %v4833 = vrot.slane %v4831, 7
      %v4834 = vshll.u32 %v4626, 16
      %v4836 = vor.u32 %v4833, %v4834
      %v4837 = vsel %vm564, %v4829, %v4836
      %v4838 = vrot.slane %v4833, 4
      %v4840 = vshrl.u32 %v4627, 16
      %v4842 = vrot.slane %v4840, 7
      %v4843 = vshll.u32 %v4627, 16
      %v4845 = vor.u32 %v4842, %v4843
      %v4846 = vrot.slane %v4842, 4
      %v4848 = vshrl.u32 %v4628, 16
      %v4850 = vrot.slane %v4848, 7
      %v4851 = vshll.u32 %v4628, 16
      %v4853 = vor.u32 %v4850, %v4851
      %v4854 = vsel %vm564, %v4846, %v4853
      %v4855 = vrot.slane %v4850, 4
      %v4857 = vshrl.u32 %v4629, 16
      %v4859 = vrot.slane %v4857, 7
      %v4860 = vshll.u32 %v4629, 16
      %v4862 = vor.u32 %v4859, %v4860
      %v4863 = vrot.slane %v4859, 4
      %v4865 = vshrl.u32 %v4630, 16
      %v4867 = vrot.slane %v4865, 7
      %v4868 = vshll.u32 %v4630, 16
      %v4870 = vor.u32 %v4867, %v4868
      %v4871 = vsel %vm564, %v4863, %v4870
      %v4872 = vrot.slane %v4867, 4
      %v4874 = vshrl.u32 %v4631, 16
      %v4876 = vrot.slane %v4874, 7
      %v4877 = vshll.u32 %v4631, 16
      %v4879 = vor.u32 %v4876, %v4877
      %v4880 = vrot.slane %v4876, 4
      %v4882 = vshrl.u32 %v4632, 16
      %v4884 = vrot.slane %v4882, 7
      %v4885 = vshll.u32 %v4632, 16
      %v4887 = vor.u32 %v4884, %v4885
      %v4888 = vsel %vm564, %v4880, %v4887
      %v4889 = vrot.slane %v4884, 4
      %v4891 = vshrl.u32 %v4633, 16
      %v4893 = vrot.slane %v4891, 7
      %v4894 = vshll.u32 %v4633, 16
      %v4896 = vor.u32 %v4893, %v4894
      %v4897 = vrot.slane %v4893, 4
      %v4899 = vshrl.u32 %v4634, 16
      %v4901 = vrot.slane %v4899, 7
      %v4902 = vshll.u32 %v4634, 16
      %v4904 = vor.u32 %v4901, %v4902
      %v4905 = vsel %vm564, %v4897, %v4904
      %v4906 = vrot.slane %v4901, 4
      %vm4955 = vcmask 60416
      %vm4956 = vmand %vm4955, %vm347
      %v4957 = vld [vmem:[%s885] sm:$0xf]
      %v4958 = vsel %vm4956, %v4641, %v4957
      %4959 = vst [vmem:[%s885] sm:$0xf] %v4958
      %4960 = vst.msk [vmem:[%s885 + $0x4] sm:$0xf] %vm281, %v4650
      %v4961 = vld [vmem:[%s885 + $0x8] sm:$0x1]
      %v4962 = vsel %vm292, %v4651, %v4961
      %4963 = vst [vmem:[%s885 + $0x8] sm:$0x1] %v4962
      %v4964 = vld [vmem:[%s885 + $0xc] sm:$0xf]
      %v4965 = vsel %vm4956, %v4658, %v4964
      %4966 = vst [vmem:[%s885 + $0xc] sm:$0xf] %v4965
      %4967 = vst.msk [vmem:[%s885 + $0x10] sm:$0xf] %vm281, %v4667
      %v4968 = vld [vmem:[%s885 + $0x14] sm:$0x1]
      %v4969 = vsel %vm292, %v4668, %v4968
      %4970 = vst [vmem:[%s885 + $0x14] sm:$0x1] %v4969
      %v4971 = vld [vmem:[%s885 + $0x18] sm:$0xf]
      %v4972 = vsel %vm4956, %v4675, %v4971
      %4973 = vst [vmem:[%s885 + $0x18] sm:$0xf] %v4972
      %4974 = vst.msk [vmem:[%s885 + $0x1c] sm:$0xf] %vm281, %v4684
      %v4975 = vld [vmem:[%s885 + $0x20] sm:$0x1]
      %v4976 = vsel %vm292, %v4685, %v4975
      %4977 = vst [vmem:[%s885 + $0x20] sm:$0x1] %v4976
      %v4978 = vld [vmem:[%s885 + $0x24] sm:$0xf]
      %v4979 = vsel %vm4956, %v4692, %v4978
      %4980 = vst [vmem:[%s885 + $0x24] sm:$0xf] %v4979
      %4981 = vst.msk [vmem:[%s885 + $0x28] sm:$0xf] %vm281, %v4701
      %v4982 = vld [vmem:[%s885 + $0x2c] sm:$0x1]
      %v4983 = vsel %vm292, %v4702, %v4982
      %4984 = vst [vmem:[%s885 + $0x2c] sm:$0x1] %v4983
      %v4985 = vld [vmem:[%s885 + $0x30] sm:$0xf]
      %v4986 = vsel %vm4956, %v4709, %v4985
      %4987 = vst [vmem:[%s885 + $0x30] sm:$0xf] %v4986
      %4988 = vst.msk [vmem:[%s885 + $0x34] sm:$0xf] %vm281, %v4718
      %v4989 = vld [vmem:[%s885 + $0x38] sm:$0x1]
      %v4990 = vsel %vm292, %v4719, %v4989
      %4991 = vst [vmem:[%s885 + $0x38] sm:$0x1] %v4990
      %v4992 = vld [vmem:[%s885 + $0x3c] sm:$0xf]
      %v4993 = vsel %vm4956, %v4726, %v4992
      %4994 = vst [vmem:[%s885 + $0x3c] sm:$0xf] %v4993
      %4995 = vst.msk [vmem:[%s885 + $0x40] sm:$0xf] %vm281, %v4735
      %v4996 = vld [vmem:[%s885 + $0x44] sm:$0x1]
      %v4997 = vsel %vm292, %v4736, %v4996
      %4998 = vst [vmem:[%s885 + $0x44] sm:$0x1] %v4997
      %v4999 = vld [vmem:[%s885 + $0x48] sm:$0xf]
      %v5000 = vsel %vm4956, %v4743, %v4999
      %5001 = vst [vmem:[%s885 + $0x48] sm:$0xf] %v5000
      %5002 = vst.msk [vmem:[%s885 + $0x4c] sm:$0xf] %vm281, %v4752
      %v5003 = vld [vmem:[%s885 + $0x50] sm:$0x1]
      %v5004 = vsel %vm292, %v4753, %v5003
      %5005 = vst [vmem:[%s885 + $0x50] sm:$0x1] %v5004
      %v5006 = vld [vmem:[%s885 + $0x54] sm:$0xf]
      %v5007 = vsel %vm4956, %v4760, %v5006
      %5008 = vst [vmem:[%s885 + $0x54] sm:$0xf] %v5007
      %5009 = vst.msk [vmem:[%s885 + $0x58] sm:$0xf] %vm281, %v4769
      %v5010 = vld [vmem:[%s885 + $0x5c] sm:$0x1]
      %v5011 = vsel %vm292, %v4770, %v5010
      %5012 = vst [vmem:[%s885 + $0x5c] sm:$0x1] %v5011
      %v5013 = vld [vmem:[%s885 + $0x60] sm:$0xf]
      %v5014 = vsel %vm4956, %v4777, %v5013
      %5015 = vst [vmem:[%s885 + $0x60] sm:$0xf] %v5014
      %5016 = vst.msk [vmem:[%s885 + $0x64] sm:$0xf] %vm281, %v4786
      %v5017 = vld [vmem:[%s885 + $0x68] sm:$0x1]
      %v5018 = vsel %vm292, %v4787, %v5017
      %5019 = vst [vmem:[%s885 + $0x68] sm:$0x1] %v5018
      %v5020 = vld [vmem:[%s885 + $0x6c] sm:$0xf]
      %v5021 = vsel %vm4956, %v4794, %v5020
      %5022 = vst [vmem:[%s885 + $0x6c] sm:$0xf] %v5021
      %5023 = vst.msk [vmem:[%s885 + $0x70] sm:$0xf] %vm281, %v4803
      %v5024 = vld [vmem:[%s885 + $0x74] sm:$0x1]
      %v5025 = vsel %vm292, %v4804, %v5024
      %5026 = vst [vmem:[%s885 + $0x74] sm:$0x1] %v5025
      %v5027 = vld [vmem:[%s885 + $0x78] sm:$0xf]
      %v5028 = vsel %vm4956, %v4811, %v5027
      %5029 = vst [vmem:[%s885 + $0x78] sm:$0xf] %v5028
      %5030 = vst.msk [vmem:[%s885 + $0x7c] sm:$0xf] %vm281, %v4820
      %v5031 = vld [vmem:[%s885 + $0x80] sm:$0x1]
      %v5032 = vsel %vm292, %v4821, %v5031
      %5033 = vst [vmem:[%s885 + $0x80] sm:$0x1] %v5032
      %v5034 = vld [vmem:[%s885 + $0x84] sm:$0xf]
      %v5035 = vsel %vm4956, %v4828, %v5034
      %5036 = vst [vmem:[%s885 + $0x84] sm:$0xf] %v5035
      %5037 = vst.msk [vmem:[%s885 + $0x88] sm:$0xf] %vm281, %v4837
      %v5038 = vld [vmem:[%s885 + $0x8c] sm:$0x1]
      %v5039 = vsel %vm292, %v4838, %v5038
      %5040 = vst [vmem:[%s885 + $0x8c] sm:$0x1] %v5039
      %v5041 = vld [vmem:[%s885 + $0x90] sm:$0xf]
      %v5042 = vsel %vm4956, %v4845, %v5041
      %5043 = vst [vmem:[%s885 + $0x90] sm:$0xf] %v5042
      %5044 = vst.msk [vmem:[%s885 + $0x94] sm:$0xf] %vm281, %v4854
      %v5045 = vld [vmem:[%s885 + $0x98] sm:$0x1]
      %v5046 = vsel %vm292, %v4855, %v5045
      %5047 = vst [vmem:[%s885 + $0x98] sm:$0x1] %v5046
      %v5048 = vld [vmem:[%s885 + $0x9c] sm:$0xf]
      %v5049 = vsel %vm4956, %v4862, %v5048
      %5050 = vst [vmem:[%s885 + $0x9c] sm:$0xf] %v5049
      %5051 = vst.msk [vmem:[%s885 + $0xa0] sm:$0xf] %vm281, %v4871
      %v5052 = vld [vmem:[%s885 + $0xa4] sm:$0x1]
      %v5053 = vsel %vm292, %v4872, %v5052
      %5054 = vst [vmem:[%s885 + $0xa4] sm:$0x1] %v5053
      %v5055 = vld [vmem:[%s885 + $0xa8] sm:$0xf]
      %v5056 = vsel %vm4956, %v4879, %v5055
      %5057 = vst [vmem:[%s885 + $0xa8] sm:$0xf] %v5056
      %5058 = vst.msk [vmem:[%s885 + $0xac] sm:$0xf] %vm281, %v4888
      %v5059 = vld [vmem:[%s885 + $0xb0] sm:$0x1]
      %v5060 = vsel %vm292, %v4889, %v5059
      %5061 = vst [vmem:[%s885 + $0xb0] sm:$0x1] %v5060
      %v5062 = vld [vmem:[%s885 + $0xb4] sm:$0xf]
      %v5063 = vsel %vm4956, %v4896, %v5062
      %5064 = vst [vmem:[%s885 + $0xb4] sm:$0xf] %v5063
      %5065 = vst.msk [vmem:[%s885 + $0xb8] sm:$0xf] %vm281, %v4905
      %v5066 = vld [vmem:[%s885 + $0xbc] sm:$0x1]
      %v5067 = vsel %vm292, %v4906, %v5066
      %5068 = vst [vmem:[%s885 + $0xbc] sm:$0x1] %v5067
      %v5069 = vld [vmem:[#allocation2] sm:$0xf]
      %v5070 = vld [vmem:[#allocation2 + $0x4] sm:$0xf]
      %v5071 = vld [vmem:[#allocation2 + $0xc] sm:$0xf]
      %v5072 = vld [vmem:[#allocation2 + $0x10] sm:$0xf]
      %v5073 = vld [vmem:[#allocation2 + $0x18] sm:$0xf]
      %v5074 = vld [vmem:[#allocation2 + $0x1c] sm:$0xf]
      %v5075 = vld [vmem:[#allocation2 + $0x24] sm:$0xf]
      %v5076 = vld [vmem:[#allocation2 + $0x28] sm:$0xf]
      %v5077 = vld [vmem:[#allocation2 + $0x30] sm:$0xf]
      %v5078 = vld [vmem:[#allocation2 + $0x34] sm:$0xf]
      %v5079 = vld [vmem:[#allocation2 + $0x3c] sm:$0xf]
      %v5080 = vld [vmem:[#allocation2 + $0x40] sm:$0xf]
      %v5081 = vld [vmem:[#allocation2 + $0x48] sm:$0xf]
      %v5082 = vld [vmem:[#allocation2 + $0x4c] sm:$0xf]
      %v5083 = vld [vmem:[#allocation2 + $0x54] sm:$0xf]
      %v5084 = vld [vmem:[#allocation2 + $0x58] sm:$0xf]
      %v5085 = vld [vmem:[#allocation2 + $0x60] sm:$0xf]
      %v5086 = vld [vmem:[#allocation2 + $0x64] sm:$0xf]
      %v5087 = vld [vmem:[#allocation2 + $0x6c] sm:$0xf]
      %v5088 = vld [vmem:[#allocation2 + $0x70] sm:$0xf]
      %v5089 = vld [vmem:[#allocation2 + $0x78] sm:$0xf]
      %v5090 = vld [vmem:[#allocation2 + $0x7c] sm:$0xf]
      %v5091 = vld [vmem:[#allocation2 + $0x84] sm:$0xf]
      %v5092 = vld [vmem:[#allocation2 + $0x88] sm:$0xf]
      %v5093 = vld [vmem:[#allocation2 + $0x90] sm:$0xf]
      %v5094 = vld [vmem:[#allocation2 + $0x94] sm:$0xf]
      %v5095 = vld [vmem:[#allocation2 + $0x9c] sm:$0xf]
      %v5096 = vld [vmem:[#allocation2 + $0xa0] sm:$0xf]
      %v5097 = vld [vmem:[#allocation2 + $0xa8] sm:$0xf]
      %v5098 = vld [vmem:[#allocation2 + $0xac] sm:$0xf]
      %v5099 = vld [vmem:[#allocation2 + $0xb4] sm:$0xf]
      %v5100 = vld [vmem:[#allocation2 + $0xb8] sm:$0xf]
      %5101 = vst.msk [vmem:[#allocation3] sm:$0xf] %vm281, %v5069
      %5102 = vst.msk [vmem:[#allocation3 + $0x4] sm:$0xf] %vm281, %v5070
      %5103 = vst.msk [vmem:[#allocation3 + $0x8] sm:$0xf] %vm281, %v5071
      %5104 = vst.msk [vmem:[#allocation3 + $0xc] sm:$0xf] %vm281, %v5072
      %5105 = vst.msk [vmem:[#allocation3 + $0x10] sm:$0xf] %vm281, %v5073
      %5106 = vst.msk [vmem:[#allocation3 + $0x14] sm:$0xf] %vm281, %v5074
      %5107 = vst.msk [vmem:[#allocation3 + $0x18] sm:$0xf] %vm281, %v5075
      %5108 = vst.msk [vmem:[#allocation3 + $0x1c] sm:$0xf] %vm281, %v5076
      %5109 = vst.msk [vmem:[#allocation3 + $0x20] sm:$0xf] %vm281, %v5077
      %5110 = vst.msk [vmem:[#allocation3 + $0x24] sm:$0xf] %vm281, %v5078
      %5111 = vst.msk [vmem:[#allocation3 + $0x28] sm:$0xf] %vm281, %v5079
      %5112 = vst.msk [vmem:[#allocation3 + $0x2c] sm:$0xf] %vm281, %v5080
      %5113 = vst.msk [vmem:[#allocation3 + $0x30] sm:$0xf] %vm281, %v5081
      %5114 = vst.msk [vmem:[#allocation3 + $0x34] sm:$0xf] %vm281, %v5082
      %5115 = vst.msk [vmem:[#allocation3 + $0x38] sm:$0xf] %vm281, %v5083
      %5116 = vst.msk [vmem:[#allocation3 + $0x3c] sm:$0xf] %vm281, %v5084
      %5117 = vst.msk [vmem:[#allocation3 + $0x40] sm:$0xf] %vm281, %v5085
      %5118 = vst.msk [vmem:[#allocation3 + $0x44] sm:$0xf] %vm281, %v5086
      %5119 = vst.msk [vmem:[#allocation3 + $0x48] sm:$0xf] %vm281, %v5087
      %5120 = vst.msk [vmem:[#allocation3 + $0x4c] sm:$0xf] %vm281, %v5088
      %5121 = vst.msk [vmem:[#allocation3 + $0x50] sm:$0xf] %vm281, %v5089
      %5122 = vst.msk [vmem:[#allocation3 + $0x54] sm:$0xf] %vm281, %v5090
      %5123 = vst.msk [vmem:[#allocation3 + $0x58] sm:$0xf] %vm281, %v5091
      %5124 = vst.msk [vmem:[#allocation3 + $0x5c] sm:$0xf] %vm281, %v5092
      %5125 = vst.msk [vmem:[#allocation3 + $0x60] sm:$0xf] %vm281, %v5093
      %5126 = vst.msk [vmem:[#allocation3 + $0x64] sm:$0xf] %vm281, %v5094
      %5127 = vst.msk [vmem:[#allocation3 + $0x68] sm:$0xf] %vm281, %v5095
      %5128 = vst.msk [vmem:[#allocation3 + $0x6c] sm:$0xf] %vm281, %v5096
      %5129 = vst.msk [vmem:[#allocation3 + $0x70] sm:$0xf] %vm281, %v5097
      %5130 = vst.msk [vmem:[#allocation3 + $0x74] sm:$0xf] %vm281, %v5098
      %5131 = vst.msk [vmem:[#allocation3 + $0x78] sm:$0xf] %vm281, %v5099
      %5132 = vst.msk [vmem:[#allocation3 + $0x7c] sm:$0xf] %vm281, %v5100
      %v5133 = vld [vmem:[#allocation2] sm:$0xf]
      %v5134 = vld [vmem:[#allocation2 + $0x4] sm:$0xf]
      %v5135 = vld [vmem:[#allocation2 + $0x8] sm:$0x1]
      %v5136 = vld [vmem:[#allocation2 + $0xc] sm:$0xf]
      %v5137 = vld [vmem:[#allocation2 + $0x10] sm:$0xf]
      %v5138 = vld [vmem:[#allocation2 + $0x14] sm:$0x1]
      %v5139 = vld [vmem:[#allocation2 + $0x18] sm:$0xf]
      %v5140 = vld [vmem:[#allocation2 + $0x1c] sm:$0xf]
      %v5141 = vld [vmem:[#allocation2 + $0x20] sm:$0x1]
      %v5142 = vld [vmem:[#allocation2 + $0x24] sm:$0xf]
      %v5143 = vld [vmem:[#allocation2 + $0x28] sm:$0xf]
      %v5144 = vld [vmem:[#allocation2 + $0x2c] sm:$0x1]
      %v5145 = vld [vmem:[#allocation2 + $0x30] sm:$0xf]
      %v5146 = vld [vmem:[#allocation2 + $0x34] sm:$0xf]
      %v5147 = vld [vmem:[#allocation2 + $0x38] sm:$0x1]
      %v5148 = vld [vmem:[#allocation2 + $0x3c] sm:$0xf]
      %v5149 = vld [vmem:[#allocation2 + $0x40] sm:$0xf]
      %v5150 = vld [vmem:[#allocation2 + $0x44] sm:$0x1]
      %v5151 = vld [vmem:[#allocation2 + $0x48] sm:$0xf]
      %v5152 = vld [vmem:[#allocation2 + $0x4c] sm:$0xf]
      %v5153 = vld [vmem:[#allocation2 + $0x50] sm:$0x1]
      %v5154 = vld [vmem:[#allocation2 + $0x54] sm:$0xf]
      %v5155 = vld [vmem:[#allocation2 + $0x58] sm:$0xf]
      %v5156 = vld [vmem:[#allocation2 + $0x5c] sm:$0x1]
      %v5157 = vld [vmem:[#allocation2 + $0x60] sm:$0xf]
      %v5158 = vld [vmem:[#allocation2 + $0x64] sm:$0xf]
      %v5159 = vld [vmem:[#allocation2 + $0x68] sm:$0x1]
      %v5160 = vld [vmem:[#allocation2 + $0x6c] sm:$0xf]
      %v5161 = vld [vmem:[#allocation2 + $0x70] sm:$0xf]
      %v5162 = vld [vmem:[#allocation2 + $0x74] sm:$0x1]
      %v5163 = vld [vmem:[#allocation2 + $0x78] sm:$0xf]
      %v5164 = vld [vmem:[#allocation2 + $0x7c] sm:$0xf]
      %v5165 = vld [vmem:[#allocation2 + $0x80] sm:$0x1]
      %v5166 = vld [vmem:[#allocation2 + $0x84] sm:$0xf]
      %v5167 = vld [vmem:[#allocation2 + $0x88] sm:$0xf]
      %v5168 = vld [vmem:[#allocation2 + $0x8c] sm:$0x1]
      %v5169 = vld [vmem:[#allocation2 + $0x90] sm:$0xf]
      %v5170 = vld [vmem:[#allocation2 + $0x94] sm:$0xf]
      %v5171 = vld [vmem:[#allocation2 + $0x98] sm:$0x1]
      %v5172 = vld [vmem:[#allocation2 + $0x9c] sm:$0xf]
      %v5173 = vld [vmem:[#allocation2 + $0xa0] sm:$0xf]
      %v5174 = vld [vmem:[#allocation2 + $0xa4] sm:$0x1]
      %v5175 = vld [vmem:[#allocation2 + $0xa8] sm:$0xf]
      %v5176 = vld [vmem:[#allocation2 + $0xac] sm:$0xf]
      %v5177 = vld [vmem:[#allocation2 + $0xb0] sm:$0x1]
      %v5178 = vld [vmem:[#allocation2 + $0xb4] sm:$0xf]
      %v5179 = vld [vmem:[#allocation2 + $0xb8] sm:$0xf]
      %v5180 = vld [vmem:[#allocation2 + $0xbc] sm:$0x1]
      %v5182 = vshrl.u32 %v5133, 16
      %v5184 = vrot.slane %v5182, 4
      %v5185 = vshll.u32 %v5133, 16
      %v5187 = vrot.slane %v5185, 5
      %v5188 = vor.u32 %v5184, %v5187
      %v5189 = vrot.slane %v5188, 4
      %v5191 = vshll.u32 %v5134, 16
      %v5193 = vrot.slane %v5191, 5
      %v5194 = vsel %vm1117, %v5189, %v5193
      %v5195 = vshrl.u32 %v5134, 16
      %v5197 = vrot.slane %v5195, 4
      %v5198 = vor.u32 %v5197, %v5193
      %v5199 = vrot.slane %v5198, 4
      %v5201 = vshll.u32 %v5135, 16
      %v5203 = vrot.slane %v5201, 5
      %v5204 = vsel %vm1117, %v5199, %v5203
      %v5206 = vshrl.u32 %v5136, 16
      %v5208 = vrot.slane %v5206, 4
      %v5209 = vshll.u32 %v5136, 16
      %v5211 = vrot.slane %v5209, 5
      %v5212 = vor.u32 %v5208, %v5211
      %v5213 = vrot.slane %v5212, 4
      %v5215 = vshll.u32 %v5137, 16
      %v5217 = vrot.slane %v5215, 5
      %v5218 = vsel %vm1117, %v5213, %v5217
      %v5219 = vshrl.u32 %v5137, 16
      %v5221 = vrot.slane %v5219, 4
      %v5222 = vor.u32 %v5221, %v5217
      %v5223 = vrot.slane %v5222, 4
      %v5225 = vshll.u32 %v5138, 16
      %v5227 = vrot.slane %v5225, 5
      %v5228 = vsel %vm1117, %v5223, %v5227
      %v5230 = vshrl.u32 %v5139, 16
      %v5232 = vrot.slane %v5230, 4
      %v5233 = vshll.u32 %v5139, 16
      %v5235 = vrot.slane %v5233, 5
      %v5236 = vor.u32 %v5232, %v5235
      %v5237 = vrot.slane %v5236, 4
      %v5239 = vshll.u32 %v5140, 16
      %v5241 = vrot.slane %v5239, 5
      %v5242 = vsel %vm1117, %v5237, %v5241
      %v5243 = vshrl.u32 %v5140, 16
      %v5245 = vrot.slane %v5243, 4
      %v5246 = vor.u32 %v5245, %v5241
      %v5247 = vrot.slane %v5246, 4
      %v5249 = vshll.u32 %v5141, 16
      %v5251 = vrot.slane %v5249, 5
      %v5252 = vsel %vm1117, %v5247, %v5251
      %v5254 = vshrl.u32 %v5142, 16
      %v5256 = vrot.slane %v5254, 4
      %v5257 = vshll.u32 %v5142, 16
      %v5259 = vrot.slane %v5257, 5
      %v5260 = vor.u32 %v5256, %v5259
      %v5261 = vrot.slane %v5260, 4
      %v5263 = vshll.u32 %v5143, 16
      %v5265 = vrot.slane %v5263, 5
      %v5266 = vsel %vm1117, %v5261, %v5265
      %v5267 = vshrl.u32 %v5143, 16
      %v5269 = vrot.slane %v5267, 4
      %v5270 = vor.u32 %v5269, %v5265
      %v5271 = vrot.slane %v5270, 4
      %v5273 = vshll.u32 %v5144, 16
      %v5275 = vrot.slane %v5273, 5
      %v5276 = vsel %vm1117, %v5271, %v5275
      %v5278 = vshrl.u32 %v5145, 16
      %v5280 = vrot.slane %v5278, 4
      %v5281 = vshll.u32 %v5145, 16
      %v5283 = vrot.slane %v5281, 5
      %v5284 = vor.u32 %v5280, %v5283
      %v5285 = vrot.slane %v5284, 4
      %v5287 = vshll.u32 %v5146, 16
      %v5289 = vrot.slane %v5287, 5
      %v5290 = vsel %vm1117, %v5285, %v5289
      %v5291 = vshrl.u32 %v5146, 16
      %v5293 = vrot.slane %v5291, 4
      %v5294 = vor.u32 %v5293, %v5289
      %v5295 = vrot.slane %v5294, 4
      %v5297 = vshll.u32 %v5147, 16
      %v5299 = vrot.slane %v5297, 5
      %v5300 = vsel %vm1117, %v5295, %v5299
      %v5302 = vshrl.u32 %v5148, 16
      %v5304 = vrot.slane %v5302, 4
      %v5305 = vshll.u32 %v5148, 16
      %v5307 = vrot.slane %v5305, 5
      %v5308 = vor.u32 %v5304, %v5307
      %v5309 = vrot.slane %v5308, 4
      %v5311 = vshll.u32 %v5149, 16
      %v5313 = vrot.slane %v5311, 5
      %v5314 = vsel %vm1117, %v5309, %v5313
      %v5315 = vshrl.u32 %v5149, 16
      %v5317 = vrot.slane %v5315, 4
      %v5318 = vor.u32 %v5317, %v5313
      %v5319 = vrot.slane %v5318, 4
      %v5321 = vshll.u32 %v5150, 16
      %v5323 = vrot.slane %v5321, 5
      %v5324 = vsel %vm1117, %v5319, %v5323
      %v5326 = vshrl.u32 %v5151, 16
      %v5328 = vrot.slane %v5326, 4
      %v5329 = vshll.u32 %v5151, 16
      %v5331 = vrot.slane %v5329, 5
      %v5332 = vor.u32 %v5328, %v5331
      %v5333 = vrot.slane %v5332, 4
      %v5335 = vshll.u32 %v5152, 16
      %v5337 = vrot.slane %v5335, 5
      %v5338 = vsel %vm1117, %v5333, %v5337
      %v5339 = vshrl.u32 %v5152, 16
      %v5341 = vrot.slane %v5339, 4
      %v5342 = vor.u32 %v5341, %v5337
      %v5343 = vrot.slane %v5342, 4
      %v5345 = vshll.u32 %v5153, 16
      %v5347 = vrot.slane %v5345, 5
      %v5348 = vsel %vm1117, %v5343, %v5347
      %v5350 = vshrl.u32 %v5154, 16
      %v5352 = vrot.slane %v5350, 4
      %v5353 = vshll.u32 %v5154, 16
      %v5355 = vrot.slane %v5353, 5
      %v5356 = vor.u32 %v5352, %v5355
      %v5357 = vrot.slane %v5356, 4
      %v5359 = vshll.u32 %v5155, 16
      %v5361 = vrot.slane %v5359, 5
      %v5362 = vsel %vm1117, %v5357, %v5361
      %v5363 = vshrl.u32 %v5155, 16
      %v5365 = vrot.slane %v5363, 4
      %v5366 = vor.u32 %v5365, %v5361
      %v5367 = vrot.slane %v5366, 4
      %v5369 = vshll.u32 %v5156, 16
      %v5371 = vrot.slane %v5369, 5
      %v5372 = vsel %vm1117, %v5367, %v5371
      %v5374 = vshrl.u32 %v5157, 16
      %v5376 = vrot.slane %v5374, 4
      %v5377 = vshll.u32 %v5157, 16
      %v5379 = vrot.slane %v5377, 5
      %v5380 = vor.u32 %v5376, %v5379
      %v5381 = vrot.slane %v5380, 4
      %v5383 = vshll.u32 %v5158, 16
      %v5385 = vrot.slane %v5383, 5
      %v5386 = vsel %vm1117, %v5381, %v5385
      %v5387 = vshrl.u32 %v5158, 16
      %v5389 = vrot.slane %v5387, 4
      %v5390 = vor.u32 %v5389, %v5385
      %v5391 = vrot.slane %v5390, 4
      %v5393 = vshll.u32 %v5159, 16
      %v5395 = vrot.slane %v5393, 5
      %v5396 = vsel %vm1117, %v5391, %v5395
      %v5398 = vshrl.u32 %v5160, 16
      %v5400 = vrot.slane %v5398, 4
      %v5401 = vshll.u32 %v5160, 16
      %v5403 = vrot.slane %v5401, 5
      %v5404 = vor.u32 %v5400, %v5403
      %v5405 = vrot.slane %v5404, 4
      %v5407 = vshll.u32 %v5161, 16
      %v5409 = vrot.slane %v5407, 5
      %v5410 = vsel %vm1117, %v5405, %v5409
      %v5411 = vshrl.u32 %v5161, 16
      %v5413 = vrot.slane %v5411, 4
      %v5414 = vor.u32 %v5413, %v5409
      %v5415 = vrot.slane %v5414, 4
      %v5417 = vshll.u32 %v5162, 16
      %v5419 = vrot.slane %v5417, 5
      %v5420 = vsel %vm1117, %v5415, %v5419
      %v5422 = vshrl.u32 %v5163, 16
      %v5424 = vrot.slane %v5422, 4
      %v5425 = vshll.u32 %v5163, 16
      %v5427 = vrot.slane %v5425, 5
      %v5428 = vor.u32 %v5424, %v5427
      %v5429 = vrot.slane %v5428, 4
      %v5431 = vshll.u32 %v5164, 16
      %v5433 = vrot.slane %v5431, 5
      %v5434 = vsel %vm1117, %v5429, %v5433
      %v5435 = vshrl.u32 %v5164, 16
      %v5437 = vrot.slane %v5435, 4
      %v5438 = vor.u32 %v5437, %v5433
      %v5439 = vrot.slane %v5438, 4
      %v5441 = vshll.u32 %v5165, 16
      %v5443 = vrot.slane %v5441, 5
      %v5444 = vsel %vm1117, %v5439, %v5443
      %v5446 = vshrl.u32 %v5166, 16
      %v5448 = vrot.slane %v5446, 4
      %v5449 = vshll.u32 %v5166, 16
      %v5451 = vrot.slane %v5449, 5
      %v5452 = vor.u32 %v5448, %v5451
      %v5453 = vrot.slane %v5452, 4
      %v5455 = vshll.u32 %v5167, 16
      %v5457 = vrot.slane %v5455, 5
      %v5458 = vsel %vm1117, %v5453, %v5457
      %v5459 = vshrl.u32 %v5167, 16
      %v5461 = vrot.slane %v5459, 4
      %v5462 = vor.u32 %v5461, %v5457
      %v5463 = vrot.slane %v5462, 4
      %v5465 = vshll.u32 %v5168, 16
      %v5467 = vrot.slane %v5465, 5
      %v5468 = vsel %vm1117, %v5463, %v5467
      %v5470 = vshrl.u32 %v5169, 16
      %v5472 = vrot.slane %v5470, 4
      %v5473 = vshll.u32 %v5169, 16
      %v5475 = vrot.slane %v5473, 5
      %v5476 = vor.u32 %v5472, %v5475
      %v5477 = vrot.slane %v5476, 4
      %v5479 = vshll.u32 %v5170, 16
      %v5481 = vrot.slane %v5479, 5
      %v5482 = vsel %vm1117, %v5477, %v5481
      %v5483 = vshrl.u32 %v5170, 16
      %v5485 = vrot.slane %v5483, 4
      %v5486 = vor.u32 %v5485, %v5481
      %v5487 = vrot.slane %v5486, 4
      %v5489 = vshll.u32 %v5171, 16
      %v5491 = vrot.slane %v5489, 5
      %v5492 = vsel %vm1117, %v5487, %v5491
      %v5494 = vshrl.u32 %v5172, 16
      %v5496 = vrot.slane %v5494, 4
      %v5497 = vshll.u32 %v5172, 16
      %v5499 = vrot.slane %v5497, 5
      %v5500 = vor.u32 %v5496, %v5499
      %v5501 = vrot.slane %v5500, 4
      %v5503 = vshll.u32 %v5173, 16
      %v5505 = vrot.slane %v5503, 5
      %v5506 = vsel %vm1117, %v5501, %v5505
      %v5507 = vshrl.u32 %v5173, 16
      %v5509 = vrot.slane %v5507, 4
      %v5510 = vor.u32 %v5509, %v5505
      %v5511 = vrot.slane %v5510, 4
      %v5513 = vshll.u32 %v5174, 16
      %v5515 = vrot.slane %v5513, 5
      %v5516 = vsel %vm1117, %v5511, %v5515
      %v5518 = vshrl.u32 %v5175, 16
      %v5520 = vrot.slane %v5518, 4
      %v5521 = vshll.u32 %v5175, 16
      %v5523 = vrot.slane %v5521, 5
      %v5524 = vor.u32 %v5520, %v5523
      %v5525 = vrot.slane %v5524, 4
      %v5527 = vshll.u32 %v5176, 16
      %v5529 = vrot.slane %v5527, 5
      %v5530 = vsel %vm1117, %v5525, %v5529
      %v5531 = vshrl.u32 %v5176, 16
      %v5533 = vrot.slane %v5531, 4
      %v5534 = vor.u32 %v5533, %v5529
      %v5535 = vrot.slane %v5534, 4
      %v5537 = vshll.u32 %v5177, 16
      %v5539 = vrot.slane %v5537, 5
      %v5540 = vsel %vm1117, %v5535, %v5539
      %v5542 = vshrl.u32 %v5178, 16
      %v5544 = vrot.slane %v5542, 4
      %v5545 = vshll.u32 %v5178, 16
      %v5547 = vrot.slane %v5545, 5
      %v5548 = vor.u32 %v5544, %v5547
      %v5549 = vrot.slane %v5548, 4
      %v5551 = vshll.u32 %v5179, 16
      %v5553 = vrot.slane %v5551, 5
      %v5554 = vsel %vm1117, %v5549, %v5553
      %v5555 = vshrl.u32 %v5179, 16
      %v5557 = vrot.slane %v5555, 4
      %v5558 = vor.u32 %v5557, %v5553
      %v5559 = vrot.slane %v5558, 4
      %v5561 = vshll.u32 %v5180, 16
      %v5563 = vrot.slane %v5561, 5
      %v5564 = vsel %vm1117, %v5559, %v5563
      %5565 = vrot.lane.b32.xlu0 %v5194, 8
      %v5566 = vpop.permute.xlu0 %5565
      %5567 = vrot.lane.b32.xlu0 %v5204, 8
      %v5568 = vpop.permute.xlu0 %5567
      %5569 = vrot.lane.b32.xlu0 %v5218, 8
      %v5570 = vpop.permute.xlu0 %5569
      %5571 = vrot.lane.b32.xlu0 %v5228, 8
      %v5572 = vpop.permute.xlu0 %5571
      %5573 = vrot.lane.b32.xlu0 %v5242, 8
      %v5574 = vpop.permute.xlu0 %5573
      %5575 = vrot.lane.b32.xlu0 %v5252, 8
      %v5576 = vpop.permute.xlu0 %5575
      %5577 = vrot.lane.b32.xlu0 %v5266, 8
      %v5578 = vpop.permute.xlu0 %5577
      %5579 = vrot.lane.b32.xlu0 %v5276, 8
      %v5580 = vpop.permute.xlu0 %5579
      %5581 = vrot.lane.b32.xlu0 %v5290, 8
      %v5582 = vpop.permute.xlu0 %5581
      %5583 = vrot.lane.b32.xlu0 %v5300, 8
      %v5584 = vpop.permute.xlu0 %5583
      %5585 = vrot.lane.b32.xlu0 %v5314, 8
      %v5586 = vpop.permute.xlu0 %5585
      %5587 = vrot.lane.b32.xlu0 %v5324, 8
      %v5588 = vpop.permute.xlu0 %5587
      %5589 = vrot.lane.b32.xlu0 %v5338, 8
      %v5590 = vpop.permute.xlu0 %5589
      %5591 = vrot.lane.b32.xlu0 %v5348, 8
      %v5592 = vpop.permute.xlu0 %5591
      %5593 = vrot.lane.b32.xlu0 %v5362, 8
      %v5594 = vpop.permute.xlu0 %5593
      %5595 = vrot.lane.b32.xlu0 %v5372, 8
      %v5596 = vpop.permute.xlu0 %5595
      %5597 = vrot.lane.b32.xlu0 %v5386, 8
      %v5598 = vpop.permute.xlu0 %5597
      %5599 = vrot.lane.b32.xlu0 %v5396, 8
      %v5600 = vpop.permute.xlu0 %5599
      %5601 = vrot.lane.b32.xlu0 %v5410, 8
      %v5602 = vpop.permute.xlu0 %5601
      %5603 = vrot.lane.b32.xlu0 %v5420, 8
      %v5604 = vpop.permute.xlu0 %5603
      %5605 = vrot.lane.b32.xlu0 %v5434, 8
      %v5606 = vpop.permute.xlu0 %5605
      %5607 = vrot.lane.b32.xlu0 %v5444, 8
      %v5608 = vpop.permute.xlu0 %5607
      %5609 = vrot.lane.b32.xlu0 %v5458, 8
      %v5610 = vpop.permute.xlu0 %5609
      %5611 = vrot.lane.b32.xlu0 %v5468, 8
      %v5612 = vpop.permute.xlu0 %5611
      %5613 = vrot.lane.b32.xlu0 %v5482, 8
      %v5614 = vpop.permute.xlu0 %5613
      %5615 = vrot.lane.b32.xlu0 %v5492, 8
      %v5616 = vpop.permute.xlu0 %5615
      %5617 = vrot.lane.b32.xlu0 %v5506, 8
      %v5618 = vpop.permute.xlu0 %5617
      %5619 = vrot.lane.b32.xlu0 %v5516, 8
      %v5620 = vpop.permute.xlu0 %5619
      %5621 = vrot.lane.b32.xlu0 %v5530, 8
      %v5622 = vpop.permute.xlu0 %5621
      %5623 = vrot.lane.b32.xlu0 %v5540, 8
      %v5624 = vpop.permute.xlu0 %5623
      %5625 = vrot.lane.b32.xlu0 %v5554, 8
      %v5626 = vpop.permute.xlu0 %5625
      %5627 = vrot.lane.b32.xlu0 %v5564, 8
      %v5628 = vpop.permute.xlu0 %5627
      %vm5661 = vcmask 126016
      %5662 = vst.msk [vmem:[#allocation3] sm:$0xf] %vm5661, %v5566
      %5663 = vst.msk [vmem:[#allocation3 + $0x4] sm:$0xf] %vm5661, %v5568
      %5664 = vst.msk [vmem:[#allocation3 + $0x8] sm:$0xf] %vm5661, %v5570
      %5665 = vst.msk [vmem:[#allocation3 + $0xc] sm:$0xf] %vm5661, %v5572
      %5666 = vst.msk [vmem:[#allocation3 + $0x10] sm:$0xf] %vm5661, %v5574
      %5667 = vst.msk [vmem:[#allocation3 + $0x14] sm:$0xf] %vm5661, %v5576
      %5668 = vst.msk [vmem:[#allocation3 + $0x18] sm:$0xf] %vm5661, %v5578
      %5669 = vst.msk [vmem:[#allocation3 + $0x1c] sm:$0xf] %vm5661, %v5580
      %5670 = vst.msk [vmem:[#allocation3 + $0x20] sm:$0xf] %vm5661, %v5582
      %5671 = vst.msk [vmem:[#allocation3 + $0x24] sm:$0xf] %vm5661, %v5584
      %5672 = vst.msk [vmem:[#allocation3 + $0x28] sm:$0xf] %vm5661, %v5586
      %5673 = vst.msk [vmem:[#allocation3 + $0x2c] sm:$0xf] %vm5661, %v5588
      %5674 = vst.msk [vmem:[#allocation3 + $0x30] sm:$0xf] %vm5661, %v5590
      %5675 = vst.msk [vmem:[#allocation3 + $0x34] sm:$0xf] %vm5661, %v5592
      %5676 = vst.msk [vmem:[#allocation3 + $0x38] sm:$0xf] %vm5661, %v5594
      %5677 = vst.msk [vmem:[#allocation3 + $0x3c] sm:$0xf] %vm5661, %v5596
      %5678 = vst.msk [vmem:[#allocation3 + $0x40] sm:$0xf] %vm5661, %v5598
      %5679 = vst.msk [vmem:[#allocation3 + $0x44] sm:$0xf] %vm5661, %v5600
      %5680 = vst.msk [vmem:[#allocation3 + $0x48] sm:$0xf] %vm5661, %v5602
      %5681 = vst.msk [vmem:[#allocation3 + $0x4c] sm:$0xf] %vm5661, %v5604
      %5682 = vst.msk [vmem:[#allocation3 + $0x50] sm:$0xf] %vm5661, %v5606
      %5683 = vst.msk [vmem:[#allocation3 + $0x54] sm:$0xf] %vm5661, %v5608
      %5684 = vst.msk [vmem:[#allocation3 + $0x58] sm:$0xf] %vm5661, %v5610
      %5685 = vst.msk [vmem:[#allocation3 + $0x5c] sm:$0xf] %vm5661, %v5612
      %5686 = vst.msk [vmem:[#allocation3 + $0x60] sm:$0xf] %vm5661, %v5614
      %5687 = vst.msk [vmem:[#allocation3 + $0x64] sm:$0xf] %vm5661, %v5616
      %5688 = vst.msk [vmem:[#allocation3 + $0x68] sm:$0xf] %vm5661, %v5618
      %5689 = vst.msk [vmem:[#allocation3 + $0x6c] sm:$0xf] %vm5661, %v5620
      %5690 = vst.msk [vmem:[#allocation3 + $0x70] sm:$0xf] %vm5661, %v5622
      %5691 = vst.msk [vmem:[#allocation3 + $0x74] sm:$0xf] %vm5661, %v5624
      %5692 = vst.msk [vmem:[#allocation3 + $0x78] sm:$0xf] %vm5661, %v5626
      %5693 = vst.msk [vmem:[#allocation3 + $0x7c] sm:$0xf] %vm5661, %v5628
      %v5694 = vld [vmem:[#allocation2] sm:$0xe]
      %v5695 = vld [vmem:[#allocation2 + $0x4] sm:$0xf]
      %v5696 = vld [vmem:[#allocation2 + $0x8] sm:$0x1]
      %v5697 = vld [vmem:[#allocation2 + $0xc] sm:$0xe]
      %v5698 = vld [vmem:[#allocation2 + $0x10] sm:$0xf]
      %v5699 = vld [vmem:[#allocation2 + $0x14] sm:$0x1]
      %v5700 = vld [vmem:[#allocation2 + $0x18] sm:$0xe]
      %v5701 = vld [vmem:[#allocation2 + $0x1c] sm:$0xf]
      %v5702 = vld [vmem:[#allocation2 + $0x20] sm:$0x1]
      %v5703 = vld [vmem:[#allocation2 + $0x24] sm:$0xe]
      %v5704 = vld [vmem:[#allocation2 + $0x28] sm:$0xf]
      %v5705 = vld [vmem:[#allocation2 + $0x2c] sm:$0x1]
      %v5706 = vld [vmem:[#allocation2 + $0x30] sm:$0xe]
      %v5707 = vld [vmem:[#allocation2 + $0x34] sm:$0xf]
      %v5708 = vld [vmem:[#allocation2 + $0x38] sm:$0x1]
      %v5709 = vld [vmem:[#allocation2 + $0x3c] sm:$0xe]
      %v5710 = vld [vmem:[#allocation2 + $0x40] sm:$0xf]
      %v5711 = vld [vmem:[#allocation2 + $0x44] sm:$0x1]
      %v5712 = vld [vmem:[#allocation2 + $0x48] sm:$0xe]
      %v5713 = vld [vmem:[#allocation2 + $0x4c] sm:$0xf]
      %v5714 = vld [vmem:[#allocation2 + $0x50] sm:$0x1]
      %v5715 = vld [vmem:[#allocation2 + $0x54] sm:$0xe]
      %v5716 = vld [vmem:[#allocation2 + $0x58] sm:$0xf]
      %v5717 = vld [vmem:[#allocation2 + $0x5c] sm:$0x1]
      %v5718 = vld [vmem:[#allocation2 + $0x60] sm:$0xe]
      %v5719 = vld [vmem:[#allocation2 + $0x64] sm:$0xf]
      %v5720 = vld [vmem:[#allocation2 + $0x68] sm:$0x1]
      %v5721 = vld [vmem:[#allocation2 + $0x6c] sm:$0xe]
      %v5722 = vld [vmem:[#allocation2 + $0x70] sm:$0xf]
      %v5723 = vld [vmem:[#allocation2 + $0x74] sm:$0x1]
      %v5724 = vld [vmem:[#allocation2 + $0x78] sm:$0xe]
      %v5725 = vld [vmem:[#allocation2 + $0x7c] sm:$0xf]
      %v5726 = vld [vmem:[#allocation2 + $0x80] sm:$0x1]
      %v5727 = vld [vmem:[#allocation2 + $0x84] sm:$0xe]
      %v5728 = vld [vmem:[#allocation2 + $0x88] sm:$0xf]
      %v5729 = vld [vmem:[#allocation2 + $0x8c] sm:$0x1]
      %v5730 = vld [vmem:[#allocation2 + $0x90] sm:$0xe]
      %v5731 = vld [vmem:[#allocation2 + $0x94] sm:$0xf]
      %v5732 = vld [vmem:[#allocation2 + $0x98] sm:$0x1]
      %v5733 = vld [vmem:[#allocation2 + $0x9c] sm:$0xe]
      %v5734 = vld [vmem:[#allocation2 + $0xa0] sm:$0xf]
      %v5735 = vld [vmem:[#allocation2 + $0xa4] sm:$0x1]
      %v5736 = vld [vmem:[#allocation2 + $0xa8] sm:$0xe]
      %v5737 = vld [vmem:[#allocation2 + $0xac] sm:$0xf]
      %v5738 = vld [vmem:[#allocation2 + $0xb0] sm:$0x1]
      %v5739 = vld [vmem:[#allocation2 + $0xb4] sm:$0xe]
      %v5740 = vld [vmem:[#allocation2 + $0xb8] sm:$0xf]
      %v5741 = vld [vmem:[#allocation2 + $0xbc] sm:$0x1]
      %v5790 = vrot.slane %v5694, 5
      %v5791 = vrot.slane %v5790, 4
      %v5792 = vrot.slane %v5695, 5
      %v5793 = vsel %vm1729, %v5791, %v5792
      %v5794 = vrot.slane %v5792, 4
      %v5795 = vrot.slane %v5696, 5
      %v5796 = vsel %vm1729, %v5794, %v5795
      %v5797 = vrot.slane %v5697, 5
      %v5798 = vrot.slane %v5797, 4
      %v5799 = vrot.slane %v5698, 5
      %v5800 = vsel %vm1729, %v5798, %v5799
      %v5801 = vrot.slane %v5799, 4
      %v5802 = vrot.slane %v5699, 5
      %v5803 = vsel %vm1729, %v5801, %v5802
      %v5804 = vrot.slane %v5700, 5
      %v5805 = vrot.slane %v5804, 4
      %v5806 = vrot.slane %v5701, 5
      %v5807 = vsel %vm1729, %v5805, %v5806
      %v5808 = vrot.slane %v5806, 4
      %v5809 = vrot.slane %v5702, 5
      %v5810 = vsel %vm1729, %v5808, %v5809
      %v5811 = vrot.slane %v5703, 5
      %v5812 = vrot.slane %v5811, 4
      %v5813 = vrot.slane %v5704, 5
      %v5814 = vsel %vm1729, %v5812, %v5813
      %v5815 = vrot.slane %v5813, 4
      %v5816 = vrot.slane %v5705, 5
      %v5817 = vsel %vm1729, %v5815, %v5816
      %v5818 = vrot.slane %v5706, 5
      %v5819 = vrot.slane %v5818, 4
      %v5820 = vrot.slane %v5707, 5
      %v5821 = vsel %vm1729, %v5819, %v5820
      %v5822 = vrot.slane %v5820, 4
      %v5823 = vrot.slane %v5708, 5
      %v5824 = vsel %vm1729, %v5822, %v5823
      %v5825 = vrot.slane %v5709, 5
      %v5826 = vrot.slane %v5825, 4
      %v5827 = vrot.slane %v5710, 5
      %v5828 = vsel %vm1729, %v5826, %v5827
      %v5829 = vrot.slane %v5827, 4
      %v5830 = vrot.slane %v5711, 5
      %v5831 = vsel %vm1729, %v5829, %v5830
      %v5832 = vrot.slane %v5712, 5
      %v5833 = vrot.slane %v5832, 4
      %v5834 = vrot.slane %v5713, 5
      %v5835 = vsel %vm1729, %v5833, %v5834
      %v5836 = vrot.slane %v5834, 4
      %v5837 = vrot.slane %v5714, 5
      %v5838 = vsel %vm1729, %v5836, %v5837
      %v5839 = vrot.slane %v5715, 5
      %v5840 = vrot.slane %v5839, 4
      %v5841 = vrot.slane %v5716, 5
      %v5842 = vsel %vm1729, %v5840, %v5841
      %v5843 = vrot.slane %v5841, 4
      %v5844 = vrot.slane %v5717, 5
      %v5845 = vsel %vm1729, %v5843, %v5844
      %v5846 = vrot.slane %v5718, 5
      %v5847 = vrot.slane %v5846, 4
      %v5848 = vrot.slane %v5719, 5
      %v5849 = vsel %vm1729, %v5847, %v5848
      %v5850 = vrot.slane %v5848, 4
      %v5851 = vrot.slane %v5720, 5
      %v5852 = vsel %vm1729, %v5850, %v5851
      %v5853 = vrot.slane %v5721, 5
      %v5854 = vrot.slane %v5853, 4
      %v5855 = vrot.slane %v5722, 5
      %v5856 = vsel %vm1729, %v5854, %v5855
      %v5857 = vrot.slane %v5855, 4
      %v5858 = vrot.slane %v5723, 5
      %v5859 = vsel %vm1729, %v5857, %v5858
      %v5860 = vrot.slane %v5724, 5
      %v5861 = vrot.slane %v5860, 4
      %v5862 = vrot.slane %v5725, 5
      %v5863 = vsel %vm1729, %v5861, %v5862
      %v5864 = vrot.slane %v5862, 4
      %v5865 = vrot.slane %v5726, 5
      %v5866 = vsel %vm1729, %v5864, %v5865
      %v5867 = vrot.slane %v5727, 5
      %v5868 = vrot.slane %v5867, 4
      %v5869 = vrot.slane %v5728, 5
      %v5870 = vsel %vm1729, %v5868, %v5869
      %v5871 = vrot.slane %v5869, 4
      %v5872 = vrot.slane %v5729, 5
      %v5873 = vsel %vm1729, %v5871, %v5872
      %v5874 = vrot.slane %v5730, 5
      %v5875 = vrot.slane %v5874, 4
      %v5876 = vrot.slane %v5731, 5
      %v5877 = vsel %vm1729, %v5875, %v5876
      %v5878 = vrot.slane %v5876, 4
      %v5879 = vrot.slane %v5732, 5
      %v5880 = vsel %vm1729, %v5878, %v5879
      %v5881 = vrot.slane %v5733, 5
      %v5882 = vrot.slane %v5881, 4
      %v5883 = vrot.slane %v5734, 5
      %v5884 = vsel %vm1729, %v5882, %v5883
      %v5885 = vrot.slane %v5883, 4
      %v5886 = vrot.slane %v5735, 5
      %v5887 = vsel %vm1729, %v5885, %v5886
      %v5888 = vrot.slane %v5736, 5
      %v5889 = vrot.slane %v5888, 4
      %v5890 = vrot.slane %v5737, 5
      %v5891 = vsel %vm1729, %v5889, %v5890
      %v5892 = vrot.slane %v5890, 4
      %v5893 = vrot.slane %v5738, 5
      %v5894 = vsel %vm1729, %v5892, %v5893
      %v5895 = vrot.slane %v5739, 5
      %v5896 = vrot.slane %v5895, 4
      %v5897 = vrot.slane %v5740, 5
      %v5898 = vsel %vm1729, %v5896, %v5897
      %v5899 = vrot.slane %v5897, 4
      %v5900 = vrot.slane %v5741, 5
      %v5901 = vsel %vm1729, %v5899, %v5900
      %5902 = vrot.lane.b32.xlu0 %v5793, 16
      %v5903 = vpop.permute.xlu0 %5902
      %5904 = vrot.lane.b32.xlu0 %v5796, 16
      %v5905 = vpop.permute.xlu0 %5904
      %5906 = vrot.lane.b32.xlu0 %v5800, 16
      %v5907 = vpop.permute.xlu0 %5906
      %5908 = vrot.lane.b32.xlu0 %v5803, 16
      %v5909 = vpop.permute.xlu0 %5908
      %5910 = vrot.lane.b32.xlu0 %v5807, 16
      %v5911 = vpop.permute.xlu0 %5910
      %5912 = vrot.lane.b32.xlu0 %v5810, 16
      %v5913 = vpop.permute.xlu0 %5912
      %5914 = vrot.lane.b32.xlu0 %v5814, 16
      %v5915 = vpop.permute.xlu0 %5914
      %5916 = vrot.lane.b32.xlu0 %v5817, 16
      %v5917 = vpop.permute.xlu0 %5916
      %5918 = vrot.lane.b32.xlu0 %v5821, 16
      %v5919 = vpop.permute.xlu0 %5918
      %5920 = vrot.lane.b32.xlu0 %v5824, 16
      %v5921 = vpop.permute.xlu0 %5920
      %5922 = vrot.lane.b32.xlu0 %v5828, 16
      %v5923 = vpop.permute.xlu0 %5922
      %5924 = vrot.lane.b32.xlu0 %v5831, 16
      %v5925 = vpop.permute.xlu0 %5924
      %5926 = vrot.lane.b32.xlu0 %v5835, 16
      %v5927 = vpop.permute.xlu0 %5926
      %5928 = vrot.lane.b32.xlu0 %v5838, 16
      %v5929 = vpop.permute.xlu0 %5928
      %5930 = vrot.lane.b32.xlu0 %v5842, 16
      %v5931 = vpop.permute.xlu0 %5930
      %5932 = vrot.lane.b32.xlu0 %v5845, 16
      %v5933 = vpop.permute.xlu0 %5932
      %5934 = vrot.lane.b32.xlu0 %v5849, 16
      %v5935 = vpop.permute.xlu0 %5934
      %5936 = vrot.lane.b32.xlu0 %v5852, 16
      %v5937 = vpop.permute.xlu0 %5936
      %5938 = vrot.lane.b32.xlu0 %v5856, 16
      %v5939 = vpop.permute.xlu0 %5938
      %5940 = vrot.lane.b32.xlu0 %v5859, 16
      %v5941 = vpop.permute.xlu0 %5940
      %5942 = vrot.lane.b32.xlu0 %v5863, 16
      %v5943 = vpop.permute.xlu0 %5942
      %5944 = vrot.lane.b32.xlu0 %v5866, 16
      %v5945 = vpop.permute.xlu0 %5944
      %5946 = vrot.lane.b32.xlu0 %v5870, 16
      %v5947 = vpop.permute.xlu0 %5946
      %5948 = vrot.lane.b32.xlu0 %v5873, 16
      %v5949 = vpop.permute.xlu0 %5948
      %5950 = vrot.lane.b32.xlu0 %v5877, 16
      %v5951 = vpop.permute.xlu0 %5950
      %5952 = vrot.lane.b32.xlu0 %v5880, 16
      %v5953 = vpop.permute.xlu0 %5952
      %5954 = vrot.lane.b32.xlu0 %v5884, 16
      %v5955 = vpop.permute.xlu0 %5954
      %5956 = vrot.lane.b32.xlu0 %v5887, 16
      %v5957 = vpop.permute.xlu0 %5956
      %5958 = vrot.lane.b32.xlu0 %v5891, 16
      %v5959 = vpop.permute.xlu0 %5958
      %5960 = vrot.lane.b32.xlu0 %v5894, 16
      %v5961 = vpop.permute.xlu0 %5960
      %5962 = vrot.lane.b32.xlu0 %v5898, 16
      %v5963 = vpop.permute.xlu0 %5962
      %5964 = vrot.lane.b32.xlu0 %v5901, 16
      %v5965 = vpop.permute.xlu0 %5964
      %vm5998 = vcmask 191616
      %5999 = vst.msk [vmem:[#allocation3] sm:$0xf] %vm5998, %v5903
      %6000 = vst.msk [vmem:[#allocation3 + $0x4] sm:$0xf] %vm5998, %v5905
      %6001 = vst.msk [vmem:[#allocation3 + $0x8] sm:$0xf] %vm5998, %v5907
      %6002 = vst.msk [vmem:[#allocation3 + $0xc] sm:$0xf] %vm5998, %v5909
      %6003 = vst.msk [vmem:[#allocation3 + $0x10] sm:$0xf] %vm5998, %v5911
      %6004 = vst.msk [vmem:[#allocation3 + $0x14] sm:$0xf] %vm5998, %v5913
      %6005 = vst.msk [vmem:[#allocation3 + $0x18] sm:$0xf] %vm5998, %v5915
      %6006 = vst.msk [vmem:[#allocation3 + $0x1c] sm:$0xf] %vm5998, %v5917
      %6007 = vst.msk [vmem:[#allocation3 + $0x20] sm:$0xf] %vm5998, %v5919
      %6008 = vst.msk [vmem:[#allocation3 + $0x24] sm:$0xf] %vm5998, %v5921
      %6009 = vst.msk [vmem:[#allocation3 + $0x28] sm:$0xf] %vm5998, %v5923
      %6010 = vst.msk [vmem:[#allocation3 + $0x2c] sm:$0xf] %vm5998, %v5925
      %6011 = vst.msk [vmem:[#allocation3 + $0x30] sm:$0xf] %vm5998, %v5927
      %6012 = vst.msk [vmem:[#allocation3 + $0x34] sm:$0xf] %vm5998, %v5929
      %6013 = vst.msk [vmem:[#allocation3 + $0x38] sm:$0xf] %vm5998, %v5931
      %6014 = vst.msk [vmem:[#allocation3 + $0x3c] sm:$0xf] %vm5998, %v5933
      %6015 = vst.msk [vmem:[#allocation3 + $0x40] sm:$0xf] %vm5998, %v5935
      %6016 = vst.msk [vmem:[#allocation3 + $0x44] sm:$0xf] %vm5998, %v5937
      %6017 = vst.msk [vmem:[#allocation3 + $0x48] sm:$0xf] %vm5998, %v5939
      %6018 = vst.msk [vmem:[#allocation3 + $0x4c] sm:$0xf] %vm5998, %v5941
      %6019 = vst.msk [vmem:[#allocation3 + $0x50] sm:$0xf] %vm5998, %v5943
      %6020 = vst.msk [vmem:[#allocation3 + $0x54] sm:$0xf] %vm5998, %v5945
      %6021 = vst.msk [vmem:[#allocation3 + $0x58] sm:$0xf] %vm5998, %v5947
      %6022 = vst.msk [vmem:[#allocation3 + $0x5c] sm:$0xf] %vm5998, %v5949
      %6023 = vst.msk [vmem:[#allocation3 + $0x60] sm:$0xf] %vm5998, %v5951
      %6024 = vst.msk [vmem:[#allocation3 + $0x64] sm:$0xf] %vm5998, %v5953
      %6025 = vst.msk [vmem:[#allocation3 + $0x68] sm:$0xf] %vm5998, %v5955
      %6026 = vst.msk [vmem:[#allocation3 + $0x6c] sm:$0xf] %vm5998, %v5957
      %6027 = vst.msk [vmem:[#allocation3 + $0x70] sm:$0xf] %vm5998, %v5959
      %6028 = vst.msk [vmem:[#allocation3 + $0x74] sm:$0xf] %vm5998, %v5961
      %6029 = vst.msk [vmem:[#allocation3 + $0x78] sm:$0xf] %vm5998, %v5963
      %6030 = vst.msk [vmem:[#allocation3 + $0x7c] sm:$0xf] %vm5998, %v5965
      %v6031 = vld [vmem:[%s885] sm:$0xf]
      %v6032 = vld [vmem:[%s885 + $0x4] sm:$0xf]
      %v6033 = vld [vmem:[%s885 + $0xc] sm:$0xf]
      %v6034 = vld [vmem:[%s885 + $0x10] sm:$0xf]
      %v6035 = vld [vmem:[%s885 + $0x18] sm:$0xf]
      %v6036 = vld [vmem:[%s885 + $0x1c] sm:$0xf]
      %v6037 = vld [vmem:[%s885 + $0x24] sm:$0xf]
      %v6038 = vld [vmem:[%s885 + $0x28] sm:$0xf]
      %v6039 = vld [vmem:[%s885 + $0x30] sm:$0xf]
      %v6040 = vld [vmem:[%s885 + $0x34] sm:$0xf]
      %v6041 = vld [vmem:[%s885 + $0x3c] sm:$0xf]
      %v6042 = vld [vmem:[%s885 + $0x40] sm:$0xf]
      %v6043 = vld [vmem:[%s885 + $0x48] sm:$0xf]
      %v6044 = vld [vmem:[%s885 + $0x4c] sm:$0xf]
      %v6045 = vld [vmem:[%s885 + $0x54] sm:$0xf]
      %v6046 = vld [vmem:[%s885 + $0x58] sm:$0xf]
      %v6047 = vld [vmem:[%s885 + $0x60] sm:$0xf]
      %v6048 = vld [vmem:[%s885 + $0x64] sm:$0xf]
      %v6049 = vld [vmem:[%s885 + $0x6c] sm:$0xf]
      %v6050 = vld [vmem:[%s885 + $0x70] sm:$0xf]
      %v6051 = vld [vmem:[%s885 + $0x78] sm:$0xf]
      %v6052 = vld [vmem:[%s885 + $0x7c] sm:$0xf]
      %v6053 = vld [vmem:[%s885 + $0x84] sm:$0xf]
      %v6054 = vld [vmem:[%s885 + $0x88] sm:$0xf]
      %v6055 = vld [vmem:[%s885 + $0x90] sm:$0xf]
      %v6056 = vld [vmem:[%s885 + $0x94] sm:$0xf]
      %v6057 = vld [vmem:[%s885 + $0x9c] sm:$0xf]
      %v6058 = vld [vmem:[%s885 + $0xa0] sm:$0xf]
      %v6059 = vld [vmem:[%s885 + $0xa8] sm:$0xf]
      %v6060 = vld [vmem:[%s885 + $0xac] sm:$0xf]
      %v6061 = vld [vmem:[%s885 + $0xb4] sm:$0xf]
      %v6062 = vld [vmem:[%s885 + $0xb8] sm:$0xf]
      %6095 = vrot.lane.b32.xlu0 %v6031, 24
      %v6096 = vpop.permute.xlu0 %6095
      %6097 = vrot.lane.b32.xlu0 %v6032, 24
      %v6098 = vpop.permute.xlu0 %6097
      %6099 = vrot.lane.b32.xlu0 %v6033, 24
      %v6100 = vpop.permute.xlu0 %6099
      %6101 = vrot.lane.b32.xlu0 %v6034, 24
      %v6102 = vpop.permute.xlu0 %6101
      %6103 = vrot.lane.b32.xlu0 %v6035, 24
      %v6104 = vpop.permute.xlu0 %6103
      %6105 = vrot.lane.b32.xlu0 %v6036, 24
      %v6106 = vpop.permute.xlu0 %6105
      %6107 = vrot.lane.b32.xlu0 %v6037, 24
      %v6108 = vpop.permute.xlu0 %6107
      %6109 = vrot.lane.b32.xlu0 %v6038, 24
      %v6110 = vpop.permute.xlu0 %6109
      %6111 = vrot.lane.b32.xlu0 %v6039, 24
      %v6112 = vpop.permute.xlu0 %6111
      %6113 = vrot.lane.b32.xlu0 %v6040, 24
      %v6114 = vpop.permute.xlu0 %6113
      %6115 = vrot.lane.b32.xlu0 %v6041, 24
      %v6116 = vpop.permute.xlu0 %6115
      %6117 = vrot.lane.b32.xlu0 %v6042, 24
      %v6118 = vpop.permute.xlu0 %6117
      %6119 = vrot.lane.b32.xlu0 %v6043, 24
      %v6120 = vpop.permute.xlu0 %6119
      %6121 = vrot.lane.b32.xlu0 %v6044, 24
      %v6122 = vpop.permute.xlu0 %6121
      %6123 = vrot.lane.b32.xlu0 %v6045, 24
      %v6124 = vpop.permute.xlu0 %6123
      %6125 = vrot.lane.b32.xlu0 %v6046, 24
      %v6126 = vpop.permute.xlu0 %6125
      %6127 = vrot.lane.b32.xlu0 %v6047, 24
      %v6128 = vpop.permute.xlu0 %6127
      %6129 = vrot.lane.b32.xlu0 %v6048, 24
      %v6130 = vpop.permute.xlu0 %6129
      %6131 = vrot.lane.b32.xlu0 %v6049, 24
      %v6132 = vpop.permute.xlu0 %6131
      %6133 = vrot.lane.b32.xlu0 %v6050, 24
      %v6134 = vpop.permute.xlu0 %6133
      %6135 = vrot.lane.b32.xlu0 %v6051, 24
      %v6136 = vpop.permute.xlu0 %6135
      %6137 = vrot.lane.b32.xlu0 %v6052, 24
      %v6138 = vpop.permute.xlu0 %6137
      %6139 = vrot.lane.b32.xlu0 %v6053, 24
      %v6140 = vpop.permute.xlu0 %6139
      %6141 = vrot.lane.b32.xlu0 %v6054, 24
      %v6142 = vpop.permute.xlu0 %6141
      %6143 = vrot.lane.b32.xlu0 %v6055, 24
      %v6144 = vpop.permute.xlu0 %6143
      %6145 = vrot.lane.b32.xlu0 %v6056, 24
      %v6146 = vpop.permute.xlu0 %6145
      %6147 = vrot.lane.b32.xlu0 %v6057, 24
      %v6148 = vpop.permute.xlu0 %6147
      %6149 = vrot.lane.b32.xlu0 %v6058, 24
      %v6150 = vpop.permute.xlu0 %6149
      %6151 = vrot.lane.b32.xlu0 %v6059, 24
      %v6152 = vpop.permute.xlu0 %6151
      %6153 = vrot.lane.b32.xlu0 %v6060, 24
      %v6154 = vpop.permute.xlu0 %6153
      %6155 = vrot.lane.b32.xlu0 %v6061, 24
      %v6156 = vpop.permute.xlu0 %6155
      %6157 = vrot.lane.b32.xlu0 %v6062, 24
      %v6158 = vpop.permute.xlu0 %6157
      %vm6191 = vcmask 257216
      %6192 = vst.msk [vmem:[#allocation3] sm:$0xf] %vm6191, %v6096
      %6193 = vst.msk [vmem:[#allocation3 + $0x4] sm:$0xf] %vm6191, %v6098
      %6194 = vst.msk [vmem:[#allocation3 + $0x8] sm:$0xf] %vm6191, %v6100
      %6195 = vst.msk [vmem:[#allocation3 + $0xc] sm:$0xf] %vm6191, %v6102
      %6196 = vst.msk [vmem:[#allocation3 + $0x10] sm:$0xf] %vm6191, %v6104
      %6197 = vst.msk [vmem:[#allocation3 + $0x14] sm:$0xf] %vm6191, %v6106
      %6198 = vst.msk [vmem:[#allocation3 + $0x18] sm:$0xf] %vm6191, %v6108
      %6199 = vst.msk [vmem:[#allocation3 + $0x1c] sm:$0xf] %vm6191, %v6110
      %6200 = vst.msk [vmem:[#allocation3 + $0x20] sm:$0xf] %vm6191, %v6112
      %6201 = vst.msk [vmem:[#allocation3 + $0x24] sm:$0xf] %vm6191, %v6114
      %6202 = vst.msk [vmem:[#allocation3 + $0x28] sm:$0xf] %vm6191, %v6116
      %6203 = vst.msk [vmem:[#allocation3 + $0x2c] sm:$0xf] %vm6191, %v6118
      %6204 = vst.msk [vmem:[#allocation3 + $0x30] sm:$0xf] %vm6191, %v6120
      %6205 = vst.msk [vmem:[#allocation3 + $0x34] sm:$0xf] %vm6191, %v6122
      %6206 = vst.msk [vmem:[#allocation3 + $0x38] sm:$0xf] %vm6191, %v6124
      %6207 = vst.msk [vmem:[#allocation3 + $0x3c] sm:$0xf] %vm6191, %v6126
      %6208 = vst.msk [vmem:[#allocation3 + $0x40] sm:$0xf] %vm6191, %v6128
      %6209 = vst.msk [vmem:[#allocation3 + $0x44] sm:$0xf] %vm6191, %v6130
      %6210 = vst.msk [vmem:[#allocation3 + $0x48] sm:$0xf] %vm6191, %v6132
      %6211 = vst.msk [vmem:[#allocation3 + $0x4c] sm:$0xf] %vm6191, %v6134
      %6212 = vst.msk [vmem:[#allocation3 + $0x50] sm:$0xf] %vm6191, %v6136
      %6213 = vst.msk [vmem:[#allocation3 + $0x54] sm:$0xf] %vm6191, %v6138
      %6214 = vst.msk [vmem:[#allocation3 + $0x58] sm:$0xf] %vm6191, %v6140
      %6215 = vst.msk [vmem:[#allocation3 + $0x5c] sm:$0xf] %vm6191, %v6142
      %6216 = vst.msk [vmem:[#allocation3 + $0x60] sm:$0xf] %vm6191, %v6144
      %6217 = vst.msk [vmem:[#allocation3 + $0x64] sm:$0xf] %vm6191, %v6146
      %6218 = vst.msk [vmem:[#allocation3 + $0x68] sm:$0xf] %vm6191, %v6148
      %6219 = vst.msk [vmem:[#allocation3 + $0x6c] sm:$0xf] %vm6191, %v6150
      %6220 = vst.msk [vmem:[#allocation3 + $0x70] sm:$0xf] %vm6191, %v6152
      %6221 = vst.msk [vmem:[#allocation3 + $0x74] sm:$0xf] %vm6191, %v6154
      %6222 = vst.msk [vmem:[#allocation3 + $0x78] sm:$0xf] %vm6191, %v6156
      %6223 = vst.msk [vmem:[#allocation3 + $0x7c] sm:$0xf] %vm6191, %v6158
      %v6224 = vld [vmem:[%s885] sm:$0xf]
      %v6225 = vld [vmem:[%s885 + $0x4] sm:$0xf]
      %v6226 = vld [vmem:[%s885 + $0x8] sm:$0x1]
      %v6227 = vld [vmem:[%s885 + $0xc] sm:$0xf]
      %v6228 = vld [vmem:[%s885 + $0x10] sm:$0xf]
      %v6229 = vld [vmem:[%s885 + $0x14] sm:$0x1]
      %v6230 = vld [vmem:[%s885 + $0x18] sm:$0xf]
      %v6231 = vld [vmem:[%s885 + $0x1c] sm:$0xf]
      %v6232 = vld [vmem:[%s885 + $0x20] sm:$0x1]
      %v6233 = vld [vmem:[%s885 + $0x24] sm:$0xf]
      %v6234 = vld [vmem:[%s885 + $0x28] sm:$0xf]
      %v6235 = vld [vmem:[%s885 + $0x2c] sm:$0x1]
      %v6236 = vld [vmem:[%s885 + $0x30] sm:$0xf]
      %v6237 = vld [vmem:[%s885 + $0x34] sm:$0xf]
      %v6238 = vld [vmem:[%s885 + $0x38] sm:$0x1]
      %v6239 = vld [vmem:[%s885 + $0x3c] sm:$0xf]
      %v6240 = vld [vmem:[%s885 + $0x40] sm:$0xf]
      %v6241 = vld [vmem:[%s885 + $0x44] sm:$0x1]
      %v6242 = vld [vmem:[%s885 + $0x48] sm:$0xf]
      %v6243 = vld [vmem:[%s885 + $0x4c] sm:$0xf]
      %v6244 = vld [vmem:[%s885 + $0x50] sm:$0x1]
      %v6245 = vld [vmem:[%s885 + $0x54] sm:$0xf]
      %v6246 = vld [vmem:[%s885 + $0x58] sm:$0xf]
      %v6247 = vld [vmem:[%s885 + $0x5c] sm:$0x1]
      %v6248 = vld [vmem:[%s885 + $0x60] sm:$0xf]
      %v6249 = vld [vmem:[%s885 + $0x64] sm:$0xf]
      %v6250 = vld [vmem:[%s885 + $0x68] sm:$0x1]
      %v6251 = vld [vmem:[%s885 + $0x6c] sm:$0xf]
      %v6252 = vld [vmem:[%s885 + $0x70] sm:$0xf]
      %v6253 = vld [vmem:[%s885 + $0x74] sm:$0x1]
      %v6254 = vld [vmem:[%s885 + $0x78] sm:$0xf]
      %v6255 = vld [vmem:[%s885 + $0x7c] sm:$0xf]
      %v6256 = vld [vmem:[%s885 + $0x80] sm:$0x1]
      %v6257 = vld [vmem:[%s885 + $0x84] sm:$0xf]
      %v6258 = vld [vmem:[%s885 + $0x88] sm:$0xf]
      %v6259 = vld [vmem:[%s885 + $0x8c] sm:$0x1]
      %v6260 = vld [vmem:[%s885 + $0x90] sm:$0xf]
      %v6261 = vld [vmem:[%s885 + $0x94] sm:$0xf]
      %v6262 = vld [vmem:[%s885 + $0x98] sm:$0x1]
      %v6263 = vld [vmem:[%s885 + $0x9c] sm:$0xf]
      %v6264 = vld [vmem:[%s885 + $0xa0] sm:$0xf]
      %v6265 = vld [vmem:[%s885 + $0xa4] sm:$0x1]
      %v6266 = vld [vmem:[%s885 + $0xa8] sm:$0xf]
      %v6267 = vld [vmem:[%s885 + $0xac] sm:$0xf]
      %v6268 = vld [vmem:[%s885 + $0xb0] sm:$0x1]
      %v6269 = vld [vmem:[%s885 + $0xb4] sm:$0xf]
      %v6270 = vld [vmem:[%s885 + $0xb8] sm:$0xf]
      %v6271 = vld [vmem:[%s885 + $0xbc] sm:$0x1]
      %v6273 = vshrl.u32 %v6224, 16
      %v6275 = vrot.slane %v6273, 4
      %v6276 = vshll.u32 %v6224, 16
      %v6278 = vrot.slane %v6276, 5
      %v6279 = vor.u32 %v6275, %v6278
      %v6280 = vrot.slane %v6279, 4
      %v6282 = vshll.u32 %v6225, 16
      %v6284 = vrot.slane %v6282, 5
      %v6285 = vsel %vm1117, %v6280, %v6284
      %v6286 = vshrl.u32 %v6225, 16
      %v6288 = vrot.slane %v6286, 4
      %v6289 = vor.u32 %v6288, %v6284
      %v6290 = vrot.slane %v6289, 4
      %v6292 = vshll.u32 %v6226, 16
      %v6294 = vrot.slane %v6292, 5
      %v6295 = vsel %vm1117, %v6290, %v6294
      %v6297 = vshrl.u32 %v6227, 16
      %v6299 = vrot.slane %v6297, 4
      %v6300 = vshll.u32 %v6227, 16
      %v6302 = vrot.slane %v6300, 5
      %v6303 = vor.u32 %v6299, %v6302
      %v6304 = vrot.slane %v6303, 4
      %v6306 = vshll.u32 %v6228, 16
      %v6308 = vrot.slane %v6306, 5
      %v6309 = vsel %vm1117, %v6304, %v6308
      %v6310 = vshrl.u32 %v6228, 16
      %v6312 = vrot.slane %v6310, 4
      %v6313 = vor.u32 %v6312, %v6308
      %v6314 = vrot.slane %v6313, 4
      %v6316 = vshll.u32 %v6229, 16
      %v6318 = vrot.slane %v6316, 5
      %v6319 = vsel %vm1117, %v6314, %v6318
      %v6321 = vshrl.u32 %v6230, 16
      %v6323 = vrot.slane %v6321, 4
      %v6324 = vshll.u32 %v6230, 16
      %v6326 = vrot.slane %v6324, 5
      %v6327 = vor.u32 %v6323, %v6326
      %v6328 = vrot.slane %v6327, 4
      %v6330 = vshll.u32 %v6231, 16
      %v6332 = vrot.slane %v6330, 5
      %v6333 = vsel %vm1117, %v6328, %v6332
      %v6334 = vshrl.u32 %v6231, 16
      %v6336 = vrot.slane %v6334, 4
      %v6337 = vor.u32 %v6336, %v6332
      %v6338 = vrot.slane %v6337, 4
      %v6340 = vshll.u32 %v6232, 16
      %v6342 = vrot.slane %v6340, 5
      %v6343 = vsel %vm1117, %v6338, %v6342
      %v6345 = vshrl.u32 %v6233, 16
      %v6347 = vrot.slane %v6345, 4
      %v6348 = vshll.u32 %v6233, 16
      %v6350 = vrot.slane %v6348, 5
      %v6351 = vor.u32 %v6347, %v6350
      %v6352 = vrot.slane %v6351, 4
      %v6354 = vshll.u32 %v6234, 16
      %v6356 = vrot.slane %v6354, 5
      %v6357 = vsel %vm1117, %v6352, %v6356
      %v6358 = vshrl.u32 %v6234, 16
      %v6360 = vrot.slane %v6358, 4
      %v6361 = vor.u32 %v6360, %v6356
      %v6362 = vrot.slane %v6361, 4
      %v6364 = vshll.u32 %v6235, 16
      %v6366 = vrot.slane %v6364, 5
      %v6367 = vsel %vm1117, %v6362, %v6366
      %v6369 = vshrl.u32 %v6236, 16
      %v6371 = vrot.slane %v6369, 4
      %v6372 = vshll.u32 %v6236, 16
      %v6374 = vrot.slane %v6372, 5
      %v6375 = vor.u32 %v6371, %v6374
      %v6376 = vrot.slane %v6375, 4
      %v6378 = vshll.u32 %v6237, 16
      %v6380 = vrot.slane %v6378, 5
      %v6381 = vsel %vm1117, %v6376, %v6380
      %v6382 = vshrl.u32 %v6237, 16
      %v6384 = vrot.slane %v6382, 4
      %v6385 = vor.u32 %v6384, %v6380
      %v6386 = vrot.slane %v6385, 4
      %v6388 = vshll.u32 %v6238, 16
      %v6390 = vrot.slane %v6388, 5
      %v6391 = vsel %vm1117, %v6386, %v6390
      %v6393 = vshrl.u32 %v6239, 16
      %v6395 = vrot.slane %v6393, 4
      %v6396 = vshll.u32 %v6239, 16
      %v6398 = vrot.slane %v6396, 5
      %v6399 = vor.u32 %v6395, %v6398
      %v6400 = vrot.slane %v6399, 4
      %v6402 = vshll.u32 %v6240, 16
      %v6404 = vrot.slane %v6402, 5
      %v6405 = vsel %vm1117, %v6400, %v6404
      %v6406 = vshrl.u32 %v6240, 16
      %v6408 = vrot.slane %v6406, 4
      %v6409 = vor.u32 %v6408, %v6404
      %v6410 = vrot.slane %v6409, 4
      %v6412 = vshll.u32 %v6241, 16
      %v6414 = vrot.slane %v6412, 5
      %v6415 = vsel %vm1117, %v6410, %v6414
      %v6417 = vshrl.u32 %v6242, 16
      %v6419 = vrot.slane %v6417, 4
      %v6420 = vshll.u32 %v6242, 16
      %v6422 = vrot.slane %v6420, 5
      %v6423 = vor.u32 %v6419, %v6422
      %v6424 = vrot.slane %v6423, 4
      %v6426 = vshll.u32 %v6243, 16
      %v6428 = vrot.slane %v6426, 5
      %v6429 = vsel %vm1117, %v6424, %v6428
      %v6430 = vshrl.u32 %v6243, 16
      %v6432 = vrot.slane %v6430, 4
      %v6433 = vor.u32 %v6432, %v6428
      %v6434 = vrot.slane %v6433, 4
      %v6436 = vshll.u32 %v6244, 16
      %v6438 = vrot.slane %v6436, 5
      %v6439 = vsel %vm1117, %v6434, %v6438
      %v6441 = vshrl.u32 %v6245, 16
      %v6443 = vrot.slane %v6441, 4
      %v6444 = vshll.u32 %v6245, 16
      %v6446 = vrot.slane %v6444, 5
      %v6447 = vor.u32 %v6443, %v6446
      %v6448 = vrot.slane %v6447, 4
      %v6450 = vshll.u32 %v6246, 16
      %v6452 = vrot.slane %v6450, 5
      %v6453 = vsel %vm1117, %v6448, %v6452
      %v6454 = vshrl.u32 %v6246, 16
      %v6456 = vrot.slane %v6454, 4
      %v6457 = vor.u32 %v6456, %v6452
      %v6458 = vrot.slane %v6457, 4
      %v6460 = vshll.u32 %v6247, 16
      %v6462 = vrot.slane %v6460, 5
      %v6463 = vsel %vm1117, %v6458, %v6462
      %v6465 = vshrl.u32 %v6248, 16
      %v6467 = vrot.slane %v6465, 4
      %v6468 = vshll.u32 %v6248, 16
      %v6470 = vrot.slane %v6468, 5
      %v6471 = vor.u32 %v6467, %v6470
      %v6472 = vrot.slane %v6471, 4
      %v6474 = vshll.u32 %v6249, 16
      %v6476 = vrot.slane %v6474, 5
      %v6477 = vsel %vm1117, %v6472, %v6476
      %v6478 = vshrl.u32 %v6249, 16
      %v6480 = vrot.slane %v6478, 4
      %v6481 = vor.u32 %v6480, %v6476
      %v6482 = vrot.slane %v6481, 4
      %v6484 = vshll.u32 %v6250, 16
      %v6486 = vrot.slane %v6484, 5
      %v6487 = vsel %vm1117, %v6482, %v6486
      %v6489 = vshrl.u32 %v6251, 16
      %v6491 = vrot.slane %v6489, 4
      %v6492 = vshll.u32 %v6251, 16
      %v6494 = vrot.slane %v6492, 5
      %v6495 = vor.u32 %v6491, %v6494
      %v6496 = vrot.slane %v6495, 4
      %v6498 = vshll.u32 %v6252, 16
      %v6500 = vrot.slane %v6498, 5
      %v6501 = vsel %vm1117, %v6496, %v6500
      %v6502 = vshrl.u32 %v6252, 16
      %v6504 = vrot.slane %v6502, 4
      %v6505 = vor.u32 %v6504, %v6500
      %v6506 = vrot.slane %v6505, 4
      %v6508 = vshll.u32 %v6253, 16
      %v6510 = vrot.slane %v6508, 5
      %v6511 = vsel %vm1117, %v6506, %v6510
      %v6513 = vshrl.u32 %v6254, 16
      %v6515 = vrot.slane %v6513, 4
      %v6516 = vshll.u32 %v6254, 16
      %v6518 = vrot.slane %v6516, 5
      %v6519 = vor.u32 %v6515, %v6518
      %v6520 = vrot.slane %v6519, 4
      %v6522 = vshll.u32 %v6255, 16
      %v6524 = vrot.slane %v6522, 5
      %v6525 = vsel %vm1117, %v6520, %v6524
      %v6526 = vshrl.u32 %v6255, 16
      %v6528 = vrot.slane %v6526, 4
      %v6529 = vor.u32 %v6528, %v6524
      %v6530 = vrot.slane %v6529, 4
      %v6532 = vshll.u32 %v6256, 16
      %v6534 = vrot.slane %v6532, 5
      %v6535 = vsel %vm1117, %v6530, %v6534
      %v6537 = vshrl.u32 %v6257, 16
      %v6539 = vrot.slane %v6537, 4
      %v6540 = vshll.u32 %v6257, 16
      %v6542 = vrot.slane %v6540, 5
      %v6543 = vor.u32 %v6539, %v6542
      %v6544 = vrot.slane %v6543, 4
      %v6546 = vshll.u32 %v6258, 16
      %v6548 = vrot.slane %v6546, 5
      %v6549 = vsel %vm1117, %v6544, %v6548
      %v6550 = vshrl.u32 %v6258, 16
      %v6552 = vrot.slane %v6550, 4
      %v6553 = vor.u32 %v6552, %v6548
      %v6554 = vrot.slane %v6553, 4
      %v6556 = vshll.u32 %v6259, 16
      %v6558 = vrot.slane %v6556, 5
      %v6559 = vsel %vm1117, %v6554, %v6558
      %v6561 = vshrl.u32 %v6260, 16
      %v6563 = vrot.slane %v6561, 4
      %v6564 = vshll.u32 %v6260, 16
      %v6566 = vrot.slane %v6564, 5
      %v6567 = vor.u32 %v6563, %v6566
      %v6568 = vrot.slane %v6567, 4
      %v6570 = vshll.u32 %v6261, 16
      %v6572 = vrot.slane %v6570, 5
      %v6573 = vsel %vm1117, %v6568, %v6572
      %v6574 = vshrl.u32 %v6261, 16
      %v6576 = vrot.slane %v6574, 4
      %v6577 = vor.u32 %v6576, %v6572
      %v6578 = vrot.slane %v6577, 4
      %v6580 = vshll.u32 %v6262, 16
      %v6582 = vrot.slane %v6580, 5
      %v6583 = vsel %vm1117, %v6578, %v6582
      %v6585 = vshrl.u32 %v6263, 16
      %v6587 = vrot.slane %v6585, 4
      %v6588 = vshll.u32 %v6263, 16
      %v6590 = vrot.slane %v6588, 5
      %v6591 = vor.u32 %v6587, %v6590
      %v6592 = vrot.slane %v6591, 4
      %v6594 = vshll.u32 %v6264, 16
      %v6596 = vrot.slane %v6594, 5
      %v6597 = vsel %vm1117, %v6592, %v6596
      %v6598 = vshrl.u32 %v6264, 16
      %v6600 = vrot.slane %v6598, 4
      %v6601 = vor.u32 %v6600, %v6596
      %v6602 = vrot.slane %v6601, 4
      %v6604 = vshll.u32 %v6265, 16
      %v6606 = vrot.slane %v6604, 5
      %v6607 = vsel %vm1117, %v6602, %v6606
      %v6609 = vshrl.u32 %v6266, 16
      %v6611 = vrot.slane %v6609, 4
      %v6612 = vshll.u32 %v6266, 16
      %v6614 = vrot.slane %v6612, 5
      %v6615 = vor.u32 %v6611, %v6614
      %v6616 = vrot.slane %v6615, 4
      %v6618 = vshll.u32 %v6267, 16
      %v6620 = vrot.slane %v6618, 5
      %v6621 = vsel %vm1117, %v6616, %v6620
      %v6622 = vshrl.u32 %v6267, 16
      %v6624 = vrot.slane %v6622, 4
      %v6625 = vor.u32 %v6624, %v6620
      %v6626 = vrot.slane %v6625, 4
      %v6628 = vshll.u32 %v6268, 16
      %v6630 = vrot.slane %v6628, 5
      %v6631 = vsel %vm1117, %v6626, %v6630
      %v6633 = vshrl.u32 %v6269, 16
      %v6635 = vrot.slane %v6633, 4
      %v6636 = vshll.u32 %v6269, 16
      %v6638 = vrot.slane %v6636, 5
      %v6639 = vor.u32 %v6635, %v6638
      %v6640 = vrot.slane %v6639, 4
      %v6642 = vshll.u32 %v6270, 16
      %v6644 = vrot.slane %v6642, 5
      %v6645 = vsel %vm1117, %v6640, %v6644
      %v6646 = vshrl.u32 %v6270, 16
      %v6648 = vrot.slane %v6646, 4
      %v6649 = vor.u32 %v6648, %v6644
      %v6650 = vrot.slane %v6649, 4
      %v6652 = vshll.u32 %v6271, 16
      %v6654 = vrot.slane %v6652, 5
      %v6655 = vsel %vm1117, %v6650, %v6654
      %6656 = vrot.lane.b32.xlu0 %v6285, 32
      %v6657 = vpop.permute.xlu0 %6656
      %6658 = vrot.lane.b32.xlu0 %v6295, 32
      %v6659 = vpop.permute.xlu0 %6658
      %6660 = vrot.lane.b32.xlu0 %v6309, 32
      %v6661 = vpop.permute.xlu0 %6660
      %6662 = vrot.lane.b32.xlu0 %v6319, 32
      %v6663 = vpop.permute.xlu0 %6662
      %6664 = vrot.lane.b32.xlu0 %v6333, 32
      %v6665 = vpop.permute.xlu0 %6664
      %6666 = vrot.lane.b32.xlu0 %v6343, 32
      %v6667 = vpop.permute.xlu0 %6666
      %6668 = vrot.lane.b32.xlu0 %v6357, 32
      %v6669 = vpop.permute.xlu0 %6668
      %6670 = vrot.lane.b32.xlu0 %v6367, 32
      %v6671 = vpop.permute.xlu0 %6670
      %6672 = vrot.lane.b32.xlu0 %v6381, 32
      %v6673 = vpop.permute.xlu0 %6672
      %6674 = vrot.lane.b32.xlu0 %v6391, 32
      %v6675 = vpop.permute.xlu0 %6674
      %6676 = vrot.lane.b32.xlu0 %v6405, 32
      %v6677 = vpop.permute.xlu0 %6676
      %6678 = vrot.lane.b32.xlu0 %v6415, 32
      %v6679 = vpop.permute.xlu0 %6678
      %6680 = vrot.lane.b32.xlu0 %v6429, 32
      %v6681 = vpop.permute.xlu0 %6680
      %6682 = vrot.lane.b32.xlu0 %v6439, 32
      %v6683 = vpop.permute.xlu0 %6682
      %6684 = vrot.lane.b32.xlu0 %v6453, 32
      %v6685 = vpop.permute.xlu0 %6684
      %6686 = vrot.lane.b32.xlu0 %v6463, 32
      %v6687 = vpop.permute.xlu0 %6686
      %6688 = vrot.lane.b32.xlu0 %v6477, 32
      %v6689 = vpop.permute.xlu0 %6688
      %6690 = vrot.lane.b32.xlu0 %v6487, 32
      %v6691 = vpop.permute.xlu0 %6690
      %6692 = vrot.lane.b32.xlu0 %v6501, 32
      %v6693 = vpop.permute.xlu0 %6692
      %6694 = vrot.lane.b32.xlu0 %v6511, 32
      %v6695 = vpop.permute.xlu0 %6694
      %6696 = vrot.lane.b32.xlu0 %v6525, 32
      %v6697 = vpop.permute.xlu0 %6696
      %6698 = vrot.lane.b32.xlu0 %v6535, 32
      %v6699 = vpop.permute.xlu0 %6698
      %6700 = vrot.lane.b32.xlu0 %v6549, 32
      %v6701 = vpop.permute.xlu0 %6700
      %6702 = vrot.lane.b32.xlu0 %v6559, 32
      %v6703 = vpop.permute.xlu0 %6702
      %6704 = vrot.lane.b32.xlu0 %v6573, 32
      %v6705 = vpop.permute.xlu0 %6704
      %6706 = vrot.lane.b32.xlu0 %v6583, 32
      %v6707 = vpop.permute.xlu0 %6706
      %6708 = vrot.lane.b32.xlu0 %v6597, 32
      %v6709 = vpop.permute.xlu0 %6708
      %6710 = vrot.lane.b32.xlu0 %v6607, 32
      %v6711 = vpop.permute.xlu0 %6710
      %6712 = vrot.lane.b32.xlu0 %v6621, 32
      %v6713 = vpop.permute.xlu0 %6712
      %6714 = vrot.lane.b32.xlu0 %v6631, 32
      %v6715 = vpop.permute.xlu0 %6714
      %6716 = vrot.lane.b32.xlu0 %v6645, 32
      %v6717 = vpop.permute.xlu0 %6716
      %6718 = vrot.lane.b32.xlu0 %v6655, 32
      %v6719 = vpop.permute.xlu0 %6718
      %vm6752 = vcmask 322816
      %6753 = vst.msk [vmem:[#allocation3] sm:$0xf] %vm6752, %v6657
      %6754 = vst.msk [vmem:[#allocation3 + $0x4] sm:$0xf] %vm6752, %v6659
      %6755 = vst.msk [vmem:[#allocation3 + $0x8] sm:$0xf] %vm6752, %v6661
      %6756 = vst.msk [vmem:[#allocation3 + $0xc] sm:$0xf] %vm6752, %v6663
      %6757 = vst.msk [vmem:[#allocation3 + $0x10] sm:$0xf] %vm6752, %v6665
      %6758 = vst.msk [vmem:[#allocation3 + $0x14] sm:$0xf] %vm6752, %v6667
      %6759 = vst.msk [vmem:[#allocation3 + $0x18] sm:$0xf] %vm6752, %v6669
      %6760 = vst.msk [vmem:[#allocation3 + $0x1c] sm:$0xf] %vm6752, %v6671
      %6761 = vst.msk [vmem:[#allocation3 + $0x20] sm:$0xf] %vm6752, %v6673
      %6762 = vst.msk [vmem:[#allocation3 + $0x24] sm:$0xf] %vm6752, %v6675
      %6763 = vst.msk [vmem:[#allocation3 + $0x28] sm:$0xf] %vm6752, %v6677
      %6764 = vst.msk [vmem:[#allocation3 + $0x2c] sm:$0xf] %vm6752, %v6679
      %6765 = vst.msk [vmem:[#allocation3 + $0x30] sm:$0xf] %vm6752, %v6681
      %6766 = vst.msk [vmem:[#allocation3 + $0x34] sm:$0xf] %vm6752, %v6683
      %6767 = vst.msk [vmem:[#allocation3 + $0x38] sm:$0xf] %vm6752, %v6685
      %6768 = vst.msk [vmem:[#allocation3 + $0x3c] sm:$0xf] %vm6752, %v6687
      %6769 = vst.msk [vmem:[#allocation3 + $0x40] sm:$0xf] %vm6752, %v6689
      %6770 = vst.msk [vmem:[#allocation3 + $0x44] sm:$0xf] %vm6752, %v6691
      %6771 = vst.msk [vmem:[#allocation3 + $0x48] sm:$0xf] %vm6752, %v6693
      %6772 = vst.msk [vmem:[#allocation3 + $0x4c] sm:$0xf] %vm6752, %v6695
      %6773 = vst.msk [vmem:[#allocation3 + $0x50] sm:$0xf] %vm6752, %v6697
      %6774 = vst.msk [vmem:[#allocation3 + $0x54] sm:$0xf] %vm6752, %v6699
      %6775 = vst.msk [vmem:[#allocation3 + $0x58] sm:$0xf] %vm6752, %v6701
      %6776 = vst.msk [vmem:[#allocation3 + $0x5c] sm:$0xf] %vm6752, %v6703
      %6777 = vst.msk [vmem:[#allocation3 + $0x60] sm:$0xf] %vm6752, %v6705
      %6778 = vst.msk [vmem:[#allocation3 + $0x64] sm:$0xf] %vm6752, %v6707
      %6779 = vst.msk [vmem:[#allocation3 + $0x68] sm:$0xf] %vm6752, %v6709
      %6780 = vst.msk [vmem:[#allocation3 + $0x6c] sm:$0xf] %vm6752, %v6711
      %6781 = vst.msk [vmem:[#allocation3 + $0x70] sm:$0xf] %vm6752, %v6713
      %6782 = vst.msk [vmem:[#allocation3 + $0x74] sm:$0xf] %vm6752, %v6715
      %6783 = vst.msk [vmem:[#allocation3 + $0x78] sm:$0xf] %vm6752, %v6717
      %6784 = vst.msk [vmem:[#allocation3 + $0x7c] sm:$0xf] %vm6752, %v6719
      %v6785 = vld [vmem:[%s885] sm:$0xe]
      %v6786 = vld [vmem:[%s885 + $0x4] sm:$0xf]
      %v6787 = vld [vmem:[%s885 + $0x8] sm:$0x1]
      %v6788 = vld [vmem:[%s885 + $0xc] sm:$0xe]
      %v6789 = vld [vmem:[%s885 + $0x10] sm:$0xf]
      %v6790 = vld [vmem:[%s885 + $0x14] sm:$0x1]
      %v6791 = vld [vmem:[%s885 + $0x18] sm:$0xe]
      %v6792 = vld [vmem:[%s885 + $0x1c] sm:$0xf]
      %v6793 = vld [vmem:[%s885 + $0x20] sm:$0x1]
      %v6794 = vld [vmem:[%s885 + $0x24] sm:$0xe]
      %v6795 = vld [vmem:[%s885 + $0x28] sm:$0xf]
      %v6796 = vld [vmem:[%s885 + $0x2c] sm:$0x1]
      %v6797 = vld [vmem:[%s885 + $0x30] sm:$0xe]
      %v6798 = vld [vmem:[%s885 + $0x34] sm:$0xf]
      %v6799 = vld [vmem:[%s885 + $0x38] sm:$0x1]
      %v6800 = vld [vmem:[%s885 + $0x3c] sm:$0xe]
      %v6801 = vld [vmem:[%s885 + $0x40] sm:$0xf]
      %v6802 = vld [vmem:[%s885 + $0x44] sm:$0x1]
      %v6803 = vld [vmem:[%s885 + $0x48] sm:$0xe]
      %v6804 = vld [vmem:[%s885 + $0x4c] sm:$0xf]
      %v6805 = vld [vmem:[%s885 + $0x50] sm:$0x1]
      %v6806 = vld [vmem:[%s885 + $0x54] sm:$0xe]
      %v6807 = vld [vmem:[%s885 + $0x58] sm:$0xf]
      %v6808 = vld [vmem:[%s885 + $0x5c] sm:$0x1]
      %v6809 = vld [vmem:[%s885 + $0x60] sm:$0xe]
      %v6810 = vld [vmem:[%s885 + $0x64] sm:$0xf]
      %v6811 = vld [vmem:[%s885 + $0x68] sm:$0x1]
      %v6812 = vld [vmem:[%s885 + $0x6c] sm:$0xe]
      %v6813 = vld [vmem:[%s885 + $0x70] sm:$0xf]
      %v6814 = vld [vmem:[%s885 + $0x74] sm:$0x1]
      %v6815 = vld [vmem:[%s885 + $0x78] sm:$0xe]
      %v6816 = vld [vmem:[%s885 + $0x7c] sm:$0xf]
      %v6817 = vld [vmem:[%s885 + $0x80] sm:$0x1]
      %v6818 = vld [vmem:[%s885 + $0x84] sm:$0xe]
      %v6819 = vld [vmem:[%s885 + $0x88] sm:$0xf]
      %v6820 = vld [vmem:[%s885 + $0x8c] sm:$0x1]
      %v6821 = vld [vmem:[%s885 + $0x90] sm:$0xe]
      %v6822 = vld [vmem:[%s885 + $0x94] sm:$0xf]
      %v6823 = vld [vmem:[%s885 + $0x98] sm:$0x1]
      %v6824 = vld [vmem:[%s885 + $0x9c] sm:$0xe]
      %v6825 = vld [vmem:[%s885 + $0xa0] sm:$0xf]
      %v6826 = vld [vmem:[%s885 + $0xa4] sm:$0x1]
      %v6827 = vld [vmem:[%s885 + $0xa8] sm:$0xe]
      %v6828 = vld [vmem:[%s885 + $0xac] sm:$0xf]
      %v6829 = vld [vmem:[%s885 + $0xb0] sm:$0x1]
      %v6830 = vld [vmem:[%s885 + $0xb4] sm:$0xe]
      %v6831 = vld [vmem:[%s885 + $0xb8] sm:$0xf]
      %v6832 = vld [vmem:[%s885 + $0xbc] sm:$0x1]
      %v6881 = vrot.slane %v6785, 5
      %v6882 = vrot.slane %v6881, 4
      %v6883 = vrot.slane %v6786, 5
      %v6884 = vsel %vm1729, %v6882, %v6883
      %v6885 = vrot.slane %v6883, 4
      %v6886 = vrot.slane %v6787, 5
      %v6887 = vsel %vm1729, %v6885, %v6886
      %v6888 = vrot.slane %v6788, 5
      %v6889 = vrot.slane %v6888, 4
      %v6890 = vrot.slane %v6789, 5
      %v6891 = vsel %vm1729, %v6889, %v6890
      %v6892 = vrot.slane %v6890, 4
      %v6893 = vrot.slane %v6790, 5
      %v6894 = vsel %vm1729, %v6892, %v6893
      %v6895 = vrot.slane %v6791, 5
      %v6896 = vrot.slane %v6895, 4
      %v6897 = vrot.slane %v6792, 5
      %v6898 = vsel %vm1729, %v6896, %v6897
      %v6899 = vrot.slane %v6897, 4
      %v6900 = vrot.slane %v6793, 5
      %v6901 = vsel %vm1729, %v6899, %v6900
      %v6902 = vrot.slane %v6794, 5
      %v6903 = vrot.slane %v6902, 4
      %v6904 = vrot.slane %v6795, 5
      %v6905 = vsel %vm1729, %v6903, %v6904
      %v6906 = vrot.slane %v6904, 4
      %v6907 = vrot.slane %v6796, 5
      %v6908 = vsel %vm1729, %v6906, %v6907
      %v6909 = vrot.slane %v6797, 5
      %v6910 = vrot.slane %v6909, 4
      %v6911 = vrot.slane %v6798, 5
      %v6912 = vsel %vm1729, %v6910, %v6911
      %v6913 = vrot.slane %v6911, 4
      %v6914 = vrot.slane %v6799, 5
      %v6915 = vsel %vm1729, %v6913, %v6914
      %v6916 = vrot.slane %v6800, 5
      %v6917 = vrot.slane %v6916, 4
      %v6918 = vrot.slane %v6801, 5
      %v6919 = vsel %vm1729, %v6917, %v6918
      %v6920 = vrot.slane %v6918, 4
      %v6921 = vrot.slane %v6802, 5
      %v6922 = vsel %vm1729, %v6920, %v6921
      %v6923 = vrot.slane %v6803, 5
      %v6924 = vrot.slane %v6923, 4
      %v6925 = vrot.slane %v6804, 5
      %v6926 = vsel %vm1729, %v6924, %v6925
      %v6927 = vrot.slane %v6925, 4
      %v6928 = vrot.slane %v6805, 5
      %v6929 = vsel %vm1729, %v6927, %v6928
      %v6930 = vrot.slane %v6806, 5
      %v6931 = vrot.slane %v6930, 4
      %v6932 = vrot.slane %v6807, 5
      %v6933 = vsel %vm1729, %v6931, %v6932
      %v6934 = vrot.slane %v6932, 4
      %v6935 = vrot.slane %v6808, 5
      %v6936 = vsel %vm1729, %v6934, %v6935
      %v6937 = vrot.slane %v6809, 5
      %v6938 = vrot.slane %v6937, 4
      %v6939 = vrot.slane %v6810, 5
      %v6940 = vsel %vm1729, %v6938, %v6939
      %v6941 = vrot.slane %v6939, 4
      %v6942 = vrot.slane %v6811, 5
      %v6943 = vsel %vm1729, %v6941, %v6942
      %v6944 = vrot.slane %v6812, 5
      %v6945 = vrot.slane %v6944, 4
      %v6946 = vrot.slane %v6813, 5
      %v6947 = vsel %vm1729, %v6945, %v6946
      %v6948 = vrot.slane %v6946, 4
      %v6949 = vrot.slane %v6814, 5
      %v6950 = vsel %vm1729, %v6948, %v6949
      %v6951 = vrot.slane %v6815, 5
      %v6952 = vrot.slane %v6951, 4
      %v6953 = vrot.slane %v6816, 5
      %v6954 = vsel %vm1729, %v6952, %v6953
      %v6955 = vrot.slane %v6953, 4
      %v6956 = vrot.slane %v6817, 5
      %v6957 = vsel %vm1729, %v6955, %v6956
      %v6958 = vrot.slane %v6818, 5
      %v6959 = vrot.slane %v6958, 4
      %v6960 = vrot.slane %v6819, 5
      %v6961 = vsel %vm1729, %v6959, %v6960
      %v6962 = vrot.slane %v6960, 4
      %v6963 = vrot.slane %v6820, 5
      %v6964 = vsel %vm1729, %v6962, %v6963
      %v6965 = vrot.slane %v6821, 5
      %v6966 = vrot.slane %v6965, 4
      %v6967 = vrot.slane %v6822, 5
      %v6968 = vsel %vm1729, %v6966, %v6967
      %v6969 = vrot.slane %v6967, 4
      %v6970 = vrot.slane %v6823, 5
      %v6971 = vsel %vm1729, %v6969, %v6970
      %v6972 = vrot.slane %v6824, 5
      %v6973 = vrot.slane %v6972, 4
      %v6974 = vrot.slane %v6825, 5
      %v6975 = vsel %vm1729, %v6973, %v6974
      %v6976 = vrot.slane %v6974, 4
      %v6977 = vrot.slane %v6826, 5
      %v6978 = vsel %vm1729, %v6976, %v6977
      %v6979 = vrot.slane %v6827, 5
      %v6980 = vrot.slane %v6979, 4
      %v6981 = vrot.slane %v6828, 5
      %v6982 = vsel %vm1729, %v6980, %v6981
      %v6983 = vrot.slane %v6981, 4
      %v6984 = vrot.slane %v6829, 5
      %v6985 = vsel %vm1729, %v6983, %v6984
      %v6986 = vrot.slane %v6830, 5
      %v6987 = vrot.slane %v6986, 4
      %v6988 = vrot.slane %v6831, 5
      %v6989 = vsel %vm1729, %v6987, %v6988
      %v6990 = vrot.slane %v6988, 4
      %v6991 = vrot.slane %v6832, 5
      %v6992 = vsel %vm1729, %v6990, %v6991
      %6993 = vrot.lane.b32.xlu0 %v6884, 40
      %v6994 = vpop.permute.xlu0 %6993
      %6995 = vrot.lane.b32.xlu0 %v6887, 40
      %v6996 = vpop.permute.xlu0 %6995
      %6997 = vrot.lane.b32.xlu0 %v6891, 40
      %v6998 = vpop.permute.xlu0 %6997
      %6999 = vrot.lane.b32.xlu0 %v6894, 40
      %v7000 = vpop.permute.xlu0 %6999
      %7001 = vrot.lane.b32.xlu0 %v6898, 40
      %v7002 = vpop.permute.xlu0 %7001
      %7003 = vrot.lane.b32.xlu0 %v6901, 40
      %v7004 = vpop.permute.xlu0 %7003
      %7005 = vrot.lane.b32.xlu0 %v6905, 40
      %v7006 = vpop.permute.xlu0 %7005
      %7007 = vrot.lane.b32.xlu0 %v6908, 40
      %v7008 = vpop.permute.xlu0 %7007
      %7009 = vrot.lane.b32.xlu0 %v6912, 40
      %v7010 = vpop.permute.xlu0 %7009
      %7011 = vrot.lane.b32.xlu0 %v6915, 40
      %v7012 = vpop.permute.xlu0 %7011
      %7013 = vrot.lane.b32.xlu0 %v6919, 40
      %v7014 = vpop.permute.xlu0 %7013
      %7015 = vrot.lane.b32.xlu0 %v6922, 40
      %v7016 = vpop.permute.xlu0 %7015
      %7017 = vrot.lane.b32.xlu0 %v6926, 40
      %v7018 = vpop.permute.xlu0 %7017
      %7019 = vrot.lane.b32.xlu0 %v6929, 40
      %v7020 = vpop.permute.xlu0 %7019
      %7021 = vrot.lane.b32.xlu0 %v6933, 40
      %v7022 = vpop.permute.xlu0 %7021
      %7023 = vrot.lane.b32.xlu0 %v6936, 40
      %v7024 = vpop.permute.xlu0 %7023
      %7025 = vrot.lane.b32.xlu0 %v6940, 40
      %v7026 = vpop.permute.xlu0 %7025
      %7027 = vrot.lane.b32.xlu0 %v6943, 40
      %v7028 = vpop.permute.xlu0 %7027
      %7029 = vrot.lane.b32.xlu0 %v6947, 40
      %v7030 = vpop.permute.xlu0 %7029
      %7031 = vrot.lane.b32.xlu0 %v6950, 40
      %v7032 = vpop.permute.xlu0 %7031
      %7033 = vrot.lane.b32.xlu0 %v6954, 40
      %v7034 = vpop.permute.xlu0 %7033
      %7035 = vrot.lane.b32.xlu0 %v6957, 40
      %v7036 = vpop.permute.xlu0 %7035
      %7037 = vrot.lane.b32.xlu0 %v6961, 40
      %v7038 = vpop.permute.xlu0 %7037
      %7039 = vrot.lane.b32.xlu0 %v6964, 40
      %v7040 = vpop.permute.xlu0 %7039
      %7041 = vrot.lane.b32.xlu0 %v6968, 40
      %v7042 = vpop.permute.xlu0 %7041
      %7043 = vrot.lane.b32.xlu0 %v6971, 40
      %v7044 = vpop.permute.xlu0 %7043
      %7045 = vrot.lane.b32.xlu0 %v6975, 40
      %v7046 = vpop.permute.xlu0 %7045
      %7047 = vrot.lane.b32.xlu0 %v6978, 40
      %v7048 = vpop.permute.xlu0 %7047
      %7049 = vrot.lane.b32.xlu0 %v6982, 40
      %v7050 = vpop.permute.xlu0 %7049
      %7051 = vrot.lane.b32.xlu0 %v6985, 40
      %v7052 = vpop.permute.xlu0 %7051
      %7053 = vrot.lane.b32.xlu0 %v6989, 40
      %v7054 = vpop.permute.xlu0 %7053
      %7055 = vrot.lane.b32.xlu0 %v6992, 40
      %v7056 = vpop.permute.xlu0 %7055
      %vm7089 = vcmask 388416
      %7090 = vst.msk [vmem:[#allocation3] sm:$0xf] %vm7089, %v6994
      %7091 = vst.msk [vmem:[#allocation3 + $0x4] sm:$0xf] %vm7089, %v6996
      %7092 = vst.msk [vmem:[#allocation3 + $0x8] sm:$0xf] %vm7089, %v6998
      %7093 = vst.msk [vmem:[#allocation3 + $0xc] sm:$0xf] %vm7089, %v7000
      %7094 = vst.msk [vmem:[#allocation3 + $0x10] sm:$0xf] %vm7089, %v7002
      %7095 = vst.msk [vmem:[#allocation3 + $0x14] sm:$0xf] %vm7089, %v7004
      %7096 = vst.msk [vmem:[#allocation3 + $0x18] sm:$0xf] %vm7089, %v7006
      %7097 = vst.msk [vmem:[#allocation3 + $0x1c] sm:$0xf] %vm7089, %v7008
      %7098 = vst.msk [vmem:[#allocation3 + $0x20] sm:$0xf] %vm7089, %v7010
      %7099 = vst.msk [vmem:[#allocation3 + $0x24] sm:$0xf] %vm7089, %v7012
      %7100 = vst.msk [vmem:[#allocation3 + $0x28] sm:$0xf] %vm7089, %v7014
      %7101 = vst.msk [vmem:[#allocation3 + $0x2c] sm:$0xf] %vm7089, %v7016
      %7102 = vst.msk [vmem:[#allocation3 + $0x30] sm:$0xf] %vm7089, %v7018
      %7103 = vst.msk [vmem:[#allocation3 + $0x34] sm:$0xf] %vm7089, %v7020
      %7104 = vst.msk [vmem:[#allocation3 + $0x38] sm:$0xf] %vm7089, %v7022
      %7105 = vst.msk [vmem:[#allocation3 + $0x3c] sm:$0xf] %vm7089, %v7024
      %7106 = vst.msk [vmem:[#allocation3 + $0x40] sm:$0xf] %vm7089, %v7026
      %7107 = vst.msk [vmem:[#allocation3 + $0x44] sm:$0xf] %vm7089, %v7028
      %7108 = vst.msk [vmem:[#allocation3 + $0x48] sm:$0xf] %vm7089, %v7030
      %7109 = vst.msk [vmem:[#allocation3 + $0x4c] sm:$0xf] %vm7089, %v7032
      %7110 = vst.msk [vmem:[#allocation3 + $0x50] sm:$0xf] %vm7089, %v7034
      %7111 = vst.msk [vmem:[#allocation3 + $0x54] sm:$0xf] %vm7089, %v7036
      %7112 = vst.msk [vmem:[#allocation3 + $0x58] sm:$0xf] %vm7089, %v7038
      %7113 = vst.msk [vmem:[#allocation3 + $0x5c] sm:$0xf] %vm7089, %v7040
      %7114 = vst.msk [vmem:[#allocation3 + $0x60] sm:$0xf] %vm7089, %v7042
      %7115 = vst.msk [vmem:[#allocation3 + $0x64] sm:$0xf] %vm7089, %v7044
      %7116 = vst.msk [vmem:[#allocation3 + $0x68] sm:$0xf] %vm7089, %v7046
      %7117 = vst.msk [vmem:[#allocation3 + $0x6c] sm:$0xf] %vm7089, %v7048
      %7118 = vst.msk [vmem:[#allocation3 + $0x70] sm:$0xf] %vm7089, %v7050
      %7119 = vst.msk [vmem:[#allocation3 + $0x74] sm:$0xf] %vm7089, %v7052
      %7120 = vst.msk [vmem:[#allocation3 + $0x78] sm:$0xf] %vm7089, %v7054
      %7121 = vst.msk [vmem:[#allocation3 + $0x7c] sm:$0xf] %vm7089, %v7056
      %v7122 = vld [vmem:[%s3062] sm:$0xf]
      %v7123 = vld [vmem:[%s3062 + $0x4] sm:$0xf]
      %v7124 = vld [vmem:[%s3062 + $0xc] sm:$0xf]
      %v7125 = vld [vmem:[%s3062 + $0x10] sm:$0xf]
      %v7126 = vld [vmem:[%s3062 + $0x18] sm:$0xf]
      %v7127 = vld [vmem:[%s3062 + $0x1c] sm:$0xf]
      %v7128 = vld [vmem:[%s3062 + $0x24] sm:$0xf]
      %v7129 = vld [vmem:[%s3062 + $0x28] sm:$0xf]
      %v7130 = vld [vmem:[%s3062 + $0x30] sm:$0xf]
      %v7131 = vld [vmem:[%s3062 + $0x34] sm:$0xf]
      %v7132 = vld [vmem:[%s3062 + $0x3c] sm:$0xf]
      %v7133 = vld [vmem:[%s3062 + $0x40] sm:$0xf]
      %v7134 = vld [vmem:[%s3062 + $0x48] sm:$0xf]
      %v7135 = vld [vmem:[%s3062 + $0x4c] sm:$0xf]
      %v7136 = vld [vmem:[%s3062 + $0x54] sm:$0xf]
      %v7137 = vld [vmem:[%s3062 + $0x58] sm:$0xf]
      %v7138 = vld [vmem:[%s3062 + $0x60] sm:$0xf]
      %v7139 = vld [vmem:[%s3062 + $0x64] sm:$0xf]
      %v7140 = vld [vmem:[%s3062 + $0x6c] sm:$0xf]
      %v7141 = vld [vmem:[%s3062 + $0x70] sm:$0xf]
      %v7142 = vld [vmem:[%s3062 + $0x78] sm:$0xf]
      %v7143 = vld [vmem:[%s3062 + $0x7c] sm:$0xf]
      %v7144 = vld [vmem:[%s3062 + $0x84] sm:$0xf]
      %v7145 = vld [vmem:[%s3062 + $0x88] sm:$0xf]
      %v7146 = vld [vmem:[%s3062 + $0x90] sm:$0xf]
      %v7147 = vld [vmem:[%s3062 + $0x94] sm:$0xf]
      %v7148 = vld [vmem:[%s3062 + $0x9c] sm:$0xf]
      %v7149 = vld [vmem:[%s3062 + $0xa0] sm:$0xf]
      %v7150 = vld [vmem:[%s3062 + $0xa8] sm:$0xf]
      %v7151 = vld [vmem:[%s3062 + $0xac] sm:$0xf]
      %v7152 = vld [vmem:[%s3062 + $0xb4] sm:$0xf]
      %v7153 = vld [vmem:[%s3062 + $0xb8] sm:$0xf]
      %7186 = vrot.lane.b32.xlu0 %v7122, 48
      %v7187 = vpop.permute.xlu0 %7186
      %7188 = vrot.lane.b32.xlu0 %v7123, 48
      %v7189 = vpop.permute.xlu0 %7188
      %7190 = vrot.lane.b32.xlu0 %v7124, 48
      %v7191 = vpop.permute.xlu0 %7190
      %7192 = vrot.lane.b32.xlu0 %v7125, 48
      %v7193 = vpop.permute.xlu0 %7192
      %7194 = vrot.lane.b32.xlu0 %v7126, 48
      %v7195 = vpop.permute.xlu0 %7194
      %7196 = vrot.lane.b32.xlu0 %v7127, 48
      %v7197 = vpop.permute.xlu0 %7196
      %7198 = vrot.lane.b32.xlu0 %v7128, 48
      %v7199 = vpop.permute.xlu0 %7198
      %7200 = vrot.lane.b32.xlu0 %v7129, 48
      %v7201 = vpop.permute.xlu0 %7200
      %7202 = vrot.lane.b32.xlu0 %v7130, 48
      %v7203 = vpop.permute.xlu0 %7202
      %7204 = vrot.lane.b32.xlu0 %v7131, 48
      %v7205 = vpop.permute.xlu0 %7204
      %7206 = vrot.lane.b32.xlu0 %v7132, 48
      %v7207 = vpop.permute.xlu0 %7206
      %7208 = vrot.lane.b32.xlu0 %v7133, 48
      %v7209 = vpop.permute.xlu0 %7208
      %7210 = vrot.lane.b32.xlu0 %v7134, 48
      %v7211 = vpop.permute.xlu0 %7210
      %7212 = vrot.lane.b32.xlu0 %v7135, 48
      %v7213 = vpop.permute.xlu0 %7212
      %7214 = vrot.lane.b32.xlu0 %v7136, 48
      %v7215 = vpop.permute.xlu0 %7214
      %7216 = vrot.lane.b32.xlu0 %v7137, 48
      %v7217 = vpop.permute.xlu0 %7216
      %7218 = vrot.lane.b32.xlu0 %v7138, 48
      %v7219 = vpop.permute.xlu0 %7218
      %7220 = vrot.lane.b32.xlu0 %v7139, 48
      %v7221 = vpop.permute.xlu0 %7220
      %7222 = vrot.lane.b32.xlu0 %v7140, 48
      %v7223 = vpop.permute.xlu0 %7222
      %7224 = vrot.lane.b32.xlu0 %v7141, 48
      %v7225 = vpop.permute.xlu0 %7224
      %7226 = vrot.lane.b32.xlu0 %v7142, 48
      %v7227 = vpop.permute.xlu0 %7226
      %7228 = vrot.lane.b32.xlu0 %v7143, 48
      %v7229 = vpop.permute.xlu0 %7228
      %7230 = vrot.lane.b32.xlu0 %v7144, 48
      %v7231 = vpop.permute.xlu0 %7230
      %7232 = vrot.lane.b32.xlu0 %v7145, 48
      %v7233 = vpop.permute.xlu0 %7232
      %7234 = vrot.lane.b32.xlu0 %v7146, 48
      %v7235 = vpop.permute.xlu0 %7234
      %7236 = vrot.lane.b32.xlu0 %v7147, 48
      %v7237 = vpop.permute.xlu0 %7236
      %7238 = vrot.lane.b32.xlu0 %v7148, 48
      %v7239 = vpop.permute.xlu0 %7238
      %7240 = vrot.lane.b32.xlu0 %v7149, 48
      %v7241 = vpop.permute.xlu0 %7240
      %7242 = vrot.lane.b32.xlu0 %v7150, 48
      %v7243 = vpop.permute.xlu0 %7242
      %7244 = vrot.lane.b32.xlu0 %v7151, 48
      %v7245 = vpop.permute.xlu0 %7244
      %7246 = vrot.lane.b32.xlu0 %v7152, 48
      %v7247 = vpop.permute.xlu0 %7246
      %7248 = vrot.lane.b32.xlu0 %v7153, 48
      %v7249 = vpop.permute.xlu0 %7248
      %vm7282 = vcmask 454016
      %7283 = vst.msk [vmem:[#allocation3] sm:$0xf] %vm7282, %v7187
      %7284 = vst.msk [vmem:[#allocation3 + $0x4] sm:$0xf] %vm7282, %v7189
      %7285 = vst.msk [vmem:[#allocation3 + $0x8] sm:$0xf] %vm7282, %v7191
      %7286 = vst.msk [vmem:[#allocation3 + $0xc] sm:$0xf] %vm7282, %v7193
      %7287 = vst.msk [vmem:[#allocation3 + $0x10] sm:$0xf] %vm7282, %v7195
      %7288 = vst.msk [vmem:[#allocation3 + $0x14] sm:$0xf] %vm7282, %v7197
      %7289 = vst.msk [vmem:[#allocation3 + $0x18] sm:$0xf] %vm7282, %v7199
      %7290 = vst.msk [vmem:[#allocation3 + $0x1c] sm:$0xf] %vm7282, %v7201
      %7291 = vst.msk [vmem:[#allocation3 + $0x20] sm:$0xf] %vm7282, %v7203
      %7292 = vst.msk [vmem:[#allocation3 + $0x24] sm:$0xf] %vm7282, %v7205
      %7293 = vst.msk [vmem:[#allocation3 + $0x28] sm:$0xf] %vm7282, %v7207
      %7294 = vst.msk [vmem:[#allocation3 + $0x2c] sm:$0xf] %vm7282, %v7209
      %7295 = vst.msk [vmem:[#allocation3 + $0x30] sm:$0xf] %vm7282, %v7211
      %7296 = vst.msk [vmem:[#allocation3 + $0x34] sm:$0xf] %vm7282, %v7213
      %7297 = vst.msk [vmem:[#allocation3 + $0x38] sm:$0xf] %vm7282, %v7215
      %7298 = vst.msk [vmem:[#allocation3 + $0x3c] sm:$0xf] %vm7282, %v7217
      %7299 = vst.msk [vmem:[#allocation3 + $0x40] sm:$0xf] %vm7282, %v7219
      %7300 = vst.msk [vmem:[#allocation3 + $0x44] sm:$0xf] %vm7282, %v7221
      %7301 = vst.msk [vmem:[#allocation3 + $0x48] sm:$0xf] %vm7282, %v7223
      %7302 = vst.msk [vmem:[#allocation3 + $0x4c] sm:$0xf] %vm7282, %v7225
      %7303 = vst.msk [vmem:[#allocation3 + $0x50] sm:$0xf] %vm7282, %v7227
      %7304 = vst.msk [vmem:[#allocation3 + $0x54] sm:$0xf] %vm7282, %v7229
      %7305 = vst.msk [vmem:[#allocation3 + $0x58] sm:$0xf] %vm7282, %v7231
      %7306 = vst.msk [vmem:[#allocation3 + $0x5c] sm:$0xf] %vm7282, %v7233
      %7307 = vst.msk [vmem:[#allocation3 + $0x60] sm:$0xf] %vm7282, %v7235
      %7308 = vst.msk [vmem:[#allocation3 + $0x64] sm:$0xf] %vm7282, %v7237
      %7309 = vst.msk [vmem:[#allocation3 + $0x68] sm:$0xf] %vm7282, %v7239
      %7310 = vst.msk [vmem:[#allocation3 + $0x6c] sm:$0xf] %vm7282, %v7241
      %7311 = vst.msk [vmem:[#allocation3 + $0x70] sm:$0xf] %vm7282, %v7243
      %7312 = vst.msk [vmem:[#allocation3 + $0x74] sm:$0xf] %vm7282, %v7245
      %7313 = vst.msk [vmem:[#allocation3 + $0x78] sm:$0xf] %vm7282, %v7247
      %7314 = vst.msk [vmem:[#allocation3 + $0x7c] sm:$0xf] %vm7282, %v7249
      %v7315 = vld [vmem:[%s3062] sm:$0xf]
      %v7316 = vld [vmem:[%s3062 + $0x4] sm:$0xf]
      %v7317 = vld [vmem:[%s3062 + $0x8] sm:$0x1]
      %v7318 = vld [vmem:[%s3062 + $0xc] sm:$0xf]
      %v7319 = vld [vmem:[%s3062 + $0x10] sm:$0xf]
      %v7320 = vld [vmem:[%s3062 + $0x14] sm:$0x1]
      %v7321 = vld [vmem:[%s3062 + $0x18] sm:$0xf]
      %v7322 = vld [vmem:[%s3062 + $0x1c] sm:$0xf]
      %v7323 = vld [vmem:[%s3062 + $0x20] sm:$0x1]
      %v7324 = vld [vmem:[%s3062 + $0x24] sm:$0xf]
      %v7325 = vld [vmem:[%s3062 + $0x28] sm:$0xf]
      %v7326 = vld [vmem:[%s3062 + $0x2c] sm:$0x1]
      %v7327 = vld [vmem:[%s3062 + $0x30] sm:$0xf]
      %v7328 = vld [vmem:[%s3062 + $0x34] sm:$0xf]
      %v7329 = vld [vmem:[%s3062 + $0x38] sm:$0x1]
      %v7330 = vld [vmem:[%s3062 + $0x3c] sm:$0xf]
      %v7331 = vld [vmem:[%s3062 + $0x40] sm:$0xf]
      %v7332 = vld [vmem:[%s3062 + $0x44] sm:$0x1]
      %v7333 = vld [vmem:[%s3062 + $0x48] sm:$0xf]
      %v7334 = vld [vmem:[%s3062 + $0x4c] sm:$0xf]
      %v7335 = vld [vmem:[%s3062 + $0x50] sm:$0x1]
      %v7336 = vld [vmem:[%s3062 + $0x54] sm:$0xf]
      %v7337 = vld [vmem:[%s3062 + $0x58] sm:$0xf]
      %v7338 = vld [vmem:[%s3062 + $0x5c] sm:$0x1]
      %v7339 = vld [vmem:[%s3062 + $0x60] sm:$0xf]
      %v7340 = vld [vmem:[%s3062 + $0x64] sm:$0xf]
      %v7341 = vld [vmem:[%s3062 + $0x68] sm:$0x1]
      %v7342 = vld [vmem:[%s3062 + $0x6c] sm:$0xf]
      %v7343 = vld [vmem:[%s3062 + $0x70] sm:$0xf]
      %v7344 = vld [vmem:[%s3062 + $0x74] sm:$0x1]
      %v7345 = vld [vmem:[%s3062 + $0x78] sm:$0xf]
      %v7346 = vld [vmem:[%s3062 + $0x7c] sm:$0xf]
      %v7347 = vld [vmem:[%s3062 + $0x80] sm:$0x1]
      %v7348 = vld [vmem:[%s3062 + $0x84] sm:$0xf]
      %v7349 = vld [vmem:[%s3062 + $0x88] sm:$0xf]
      %v7350 = vld [vmem:[%s3062 + $0x8c] sm:$0x1]
      %v7351 = vld [vmem:[%s3062 + $0x90] sm:$0xf]
      %v7352 = vld [vmem:[%s3062 + $0x94] sm:$0xf]
      %v7353 = vld [vmem:[%s3062 + $0x98] sm:$0x1]
      %v7354 = vld [vmem:[%s3062 + $0x9c] sm:$0xf]
      %v7355 = vld [vmem:[%s3062 + $0xa0] sm:$0xf]
      %v7356 = vld [vmem:[%s3062 + $0xa4] sm:$0x1]
      %v7357 = vld [vmem:[%s3062 + $0xa8] sm:$0xf]
      %v7358 = vld [vmem:[%s3062 + $0xac] sm:$0xf]
      %v7359 = vld [vmem:[%s3062 + $0xb0] sm:$0x1]
      %v7360 = vld [vmem:[%s3062 + $0xb4] sm:$0xf]
      %v7361 = vld [vmem:[%s3062 + $0xb8] sm:$0xf]
      %v7362 = vld [vmem:[%s3062 + $0xbc] sm:$0x1]
      %v7364 = vshrl.u32 %v7315, 16
      %v7366 = vrot.slane %v7364, 4
      %v7367 = vshll.u32 %v7315, 16
      %v7369 = vrot.slane %v7367, 5
      %v7370 = vor.u32 %v7366, %v7369
      %v7371 = vrot.slane %v7370, 4
      %v7373 = vshll.u32 %v7316, 16
      %v7375 = vrot.slane %v7373, 5
      %v7376 = vsel %vm1117, %v7371, %v7375
      %v7377 = vshrl.u32 %v7316, 16
      %v7379 = vrot.slane %v7377, 4
      %v7380 = vor.u32 %v7379, %v7375
      %v7381 = vrot.slane %v7380, 4
      %v7383 = vshll.u32 %v7317, 16
      %v7385 = vrot.slane %v7383, 5
      %v7386 = vsel %vm1117, %v7381, %v7385
      %v7388 = vshrl.u32 %v7318, 16
      %v7390 = vrot.slane %v7388, 4
      %v7391 = vshll.u32 %v7318, 16
      %v7393 = vrot.slane %v7391, 5
      %v7394 = vor.u32 %v7390, %v7393
      %v7395 = vrot.slane %v7394, 4
      %v7397 = vshll.u32 %v7319, 16
      %v7399 = vrot.slane %v7397, 5
      %v7400 = vsel %vm1117, %v7395, %v7399
      %v7401 = vshrl.u32 %v7319, 16
      %v7403 = vrot.slane %v7401, 4
      %v7404 = vor.u32 %v7403, %v7399
      %v7405 = vrot.slane %v7404, 4
      %v7407 = vshll.u32 %v7320, 16
      %v7409 = vrot.slane %v7407, 5
      %v7410 = vsel %vm1117, %v7405, %v7409
      %v7412 = vshrl.u32 %v7321, 16
      %v7414 = vrot.slane %v7412, 4
      %v7415 = vshll.u32 %v7321, 16
      %v7417 = vrot.slane %v7415, 5
      %v7418 = vor.u32 %v7414, %v7417
      %v7419 = vrot.slane %v7418, 4
      %v7421 = vshll.u32 %v7322, 16
      %v7423 = vrot.slane %v7421, 5
      %v7424 = vsel %vm1117, %v7419, %v7423
      %v7425 = vshrl.u32 %v7322, 16
      %v7427 = vrot.slane %v7425, 4
      %v7428 = vor.u32 %v7427, %v7423
      %v7429 = vrot.slane %v7428, 4
      %v7431 = vshll.u32 %v7323, 16
      %v7433 = vrot.slane %v7431, 5
      %v7434 = vsel %vm1117, %v7429, %v7433
      %v7436 = vshrl.u32 %v7324, 16
      %v7438 = vrot.slane %v7436, 4
      %v7439 = vshll.u32 %v7324, 16
      %v7441 = vrot.slane %v7439, 5
      %v7442 = vor.u32 %v7438, %v7441
      %v7443 = vrot.slane %v7442, 4
      %v7445 = vshll.u32 %v7325, 16
      %v7447 = vrot.slane %v7445, 5
      %v7448 = vsel %vm1117, %v7443, %v7447
      %v7449 = vshrl.u32 %v7325, 16
      %v7451 = vrot.slane %v7449, 4
      %v7452 = vor.u32 %v7451, %v7447
      %v7453 = vrot.slane %v7452, 4
      %v7455 = vshll.u32 %v7326, 16
      %v7457 = vrot.slane %v7455, 5
      %v7458 = vsel %vm1117, %v7453, %v7457
      %v7460 = vshrl.u32 %v7327, 16
      %v7462 = vrot.slane %v7460, 4
      %v7463 = vshll.u32 %v7327, 16
      %v7465 = vrot.slane %v7463, 5
      %v7466 = vor.u32 %v7462, %v7465
      %v7467 = vrot.slane %v7466, 4
      %v7469 = vshll.u32 %v7328, 16
      %v7471 = vrot.slane %v7469, 5
      %v7472 = vsel %vm1117, %v7467, %v7471
      %v7473 = vshrl.u32 %v7328, 16
      %v7475 = vrot.slane %v7473, 4
      %v7476 = vor.u32 %v7475, %v7471
      %v7477 = vrot.slane %v7476, 4
      %v7479 = vshll.u32 %v7329, 16
      %v7481 = vrot.slane %v7479, 5
      %v7482 = vsel %vm1117, %v7477, %v7481
      %v7484 = vshrl.u32 %v7330, 16
      %v7486 = vrot.slane %v7484, 4
      %v7487 = vshll.u32 %v7330, 16
      %v7489 = vrot.slane %v7487, 5
      %v7490 = vor.u32 %v7486, %v7489
      %v7491 = vrot.slane %v7490, 4
      %v7493 = vshll.u32 %v7331, 16
      %v7495 = vrot.slane %v7493, 5
      %v7496 = vsel %vm1117, %v7491, %v7495
      %v7497 = vshrl.u32 %v7331, 16
      %v7499 = vrot.slane %v7497, 4
      %v7500 = vor.u32 %v7499, %v7495
      %v7501 = vrot.slane %v7500, 4
      %v7503 = vshll.u32 %v7332, 16
      %v7505 = vrot.slane %v7503, 5
      %v7506 = vsel %vm1117, %v7501, %v7505
      %v7508 = vshrl.u32 %v7333, 16
      %v7510 = vrot.slane %v7508, 4
      %v7511 = vshll.u32 %v7333, 16
      %v7513 = vrot.slane %v7511, 5
      %v7514 = vor.u32 %v7510, %v7513
      %v7515 = vrot.slane %v7514, 4
      %v7517 = vshll.u32 %v7334, 16
      %v7519 = vrot.slane %v7517, 5
      %v7520 = vsel %vm1117, %v7515, %v7519
      %v7521 = vshrl.u32 %v7334, 16
      %v7523 = vrot.slane %v7521, 4
      %v7524 = vor.u32 %v7523, %v7519
      %v7525 = vrot.slane %v7524, 4
      %v7527 = vshll.u32 %v7335, 16
      %v7529 = vrot.slane %v7527, 5
      %v7530 = vsel %vm1117, %v7525, %v7529
      %v7532 = vshrl.u32 %v7336, 16
      %v7534 = vrot.slane %v7532, 4
      %v7535 = vshll.u32 %v7336, 16
      %v7537 = vrot.slane %v7535, 5
      %v7538 = vor.u32 %v7534, %v7537
      %v7539 = vrot.slane %v7538, 4
      %v7541 = vshll.u32 %v7337, 16
      %v7543 = vrot.slane %v7541, 5
      %v7544 = vsel %vm1117, %v7539, %v7543
      %v7545 = vshrl.u32 %v7337, 16
      %v7547 = vrot.slane %v7545, 4
      %v7548 = vor.u32 %v7547, %v7543
      %v7549 = vrot.slane %v7548, 4
      %v7551 = vshll.u32 %v7338, 16
      %v7553 = vrot.slane %v7551, 5
      %v7554 = vsel %vm1117, %v7549, %v7553
      %v7556 = vshrl.u32 %v7339, 16
      %v7558 = vrot.slane %v7556, 4
      %v7559 = vshll.u32 %v7339, 16
      %v7561 = vrot.slane %v7559, 5
      %v7562 = vor.u32 %v7558, %v7561
      %v7563 = vrot.slane %v7562, 4
      %v7565 = vshll.u32 %v7340, 16
      %v7567 = vrot.slane %v7565, 5
      %v7568 = vsel %vm1117, %v7563, %v7567
      %v7569 = vshrl.u32 %v7340, 16
      %v7571 = vrot.slane %v7569, 4
      %v7572 = vor.u32 %v7571, %v7567
      %v7573 = vrot.slane %v7572, 4
      %v7575 = vshll.u32 %v7341, 16
      %v7577 = vrot.slane %v7575, 5
      %v7578 = vsel %vm1117, %v7573, %v7577
      %v7580 = vshrl.u32 %v7342, 16
      %v7582 = vrot.slane %v7580, 4
      %v7583 = vshll.u32 %v7342, 16
      %v7585 = vrot.slane %v7583, 5
      %v7586 = vor.u32 %v7582, %v7585
      %v7587 = vrot.slane %v7586, 4
      %v7589 = vshll.u32 %v7343, 16
      %v7591 = vrot.slane %v7589, 5
      %v7592 = vsel %vm1117, %v7587, %v7591
      %v7593 = vshrl.u32 %v7343, 16
      %v7595 = vrot.slane %v7593, 4
      %v7596 = vor.u32 %v7595, %v7591
      %v7597 = vrot.slane %v7596, 4
      %v7599 = vshll.u32 %v7344, 16
      %v7601 = vrot.slane %v7599, 5
      %v7602 = vsel %vm1117, %v7597, %v7601
      %v7604 = vshrl.u32 %v7345, 16
      %v7606 = vrot.slane %v7604, 4
      %v7607 = vshll.u32 %v7345, 16
      %v7609 = vrot.slane %v7607, 5
      %v7610 = vor.u32 %v7606, %v7609
      %v7611 = vrot.slane %v7610, 4
      %v7613 = vshll.u32 %v7346, 16
      %v7615 = vrot.slane %v7613, 5
      %v7616 = vsel %vm1117, %v7611, %v7615
      %v7617 = vshrl.u32 %v7346, 16
      %v7619 = vrot.slane %v7617, 4
      %v7620 = vor.u32 %v7619, %v7615
      %v7621 = vrot.slane %v7620, 4
      %v7623 = vshll.u32 %v7347, 16
      %v7625 = vrot.slane %v7623, 5
      %v7626 = vsel %vm1117, %v7621, %v7625
      %v7628 = vshrl.u32 %v7348, 16
      %v7630 = vrot.slane %v7628, 4
      %v7631 = vshll.u32 %v7348, 16
      %v7633 = vrot.slane %v7631, 5
      %v7634 = vor.u32 %v7630, %v7633
      %v7635 = vrot.slane %v7634, 4
      %v7637 = vshll.u32 %v7349, 16
      %v7639 = vrot.slane %v7637, 5
      %v7640 = vsel %vm1117, %v7635, %v7639
      %v7641 = vshrl.u32 %v7349, 16
      %v7643 = vrot.slane %v7641, 4
      %v7644 = vor.u32 %v7643, %v7639
      %v7645 = vrot.slane %v7644, 4
      %v7647 = vshll.u32 %v7350, 16
      %v7649 = vrot.slane %v7647, 5
      %v7650 = vsel %vm1117, %v7645, %v7649
      %v7652 = vshrl.u32 %v7351, 16
      %v7654 = vrot.slane %v7652, 4
      %v7655 = vshll.u32 %v7351, 16
      %v7657 = vrot.slane %v7655, 5
      %v7658 = vor.u32 %v7654, %v7657
      %v7659 = vrot.slane %v7658, 4
      %v7661 = vshll.u32 %v7352, 16
      %v7663 = vrot.slane %v7661, 5
      %v7664 = vsel %vm1117, %v7659, %v7663
      %v7665 = vshrl.u32 %v7352, 16
      %v7667 = vrot.slane %v7665, 4
      %v7668 = vor.u32 %v7667, %v7663
      %v7669 = vrot.slane %v7668, 4
      %v7671 = vshll.u32 %v7353, 16
      %v7673 = vrot.slane %v7671, 5
      %v7674 = vsel %vm1117, %v7669, %v7673
      %v7676 = vshrl.u32 %v7354, 16
      %v7678 = vrot.slane %v7676, 4
      %v7679 = vshll.u32 %v7354, 16
      %v7681 = vrot.slane %v7679, 5
      %v7682 = vor.u32 %v7678, %v7681
      %v7683 = vrot.slane %v7682, 4
      %v7685 = vshll.u32 %v7355, 16
      %v7687 = vrot.slane %v7685, 5
      %v7688 = vsel %vm1117, %v7683, %v7687
      %v7689 = vshrl.u32 %v7355, 16
      %v7691 = vrot.slane %v7689, 4
      %v7692 = vor.u32 %v7691, %v7687
      %v7693 = vrot.slane %v7692, 4
      %v7695 = vshll.u32 %v7356, 16
      %v7697 = vrot.slane %v7695, 5
      %v7698 = vsel %vm1117, %v7693, %v7697
      %v7700 = vshrl.u32 %v7357, 16
      %v7702 = vrot.slane %v7700, 4
      %v7703 = vshll.u32 %v7357, 16
      %v7705 = vrot.slane %v7703, 5
      %v7706 = vor.u32 %v7702, %v7705
      %v7707 = vrot.slane %v7706, 4
      %v7709 = vshll.u32 %v7358, 16
      %v7711 = vrot.slane %v7709, 5
      %v7712 = vsel %vm1117, %v7707, %v7711
      %v7713 = vshrl.u32 %v7358, 16
      %v7715 = vrot.slane %v7713, 4
      %v7716 = vor.u32 %v7715, %v7711
      %v7717 = vrot.slane %v7716, 4
      %v7719 = vshll.u32 %v7359, 16
      %v7721 = vrot.slane %v7719, 5
      %v7722 = vsel %vm1117, %v7717, %v7721
      %v7724 = vshrl.u32 %v7360, 16
      %v7726 = vrot.slane %v7724, 4
      %v7727 = vshll.u32 %v7360, 16
      %v7729 = vrot.slane %v7727, 5
      %v7730 = vor.u32 %v7726, %v7729
      %v7731 = vrot.slane %v7730, 4
      %v7733 = vshll.u32 %v7361, 16
      %v7735 = vrot.slane %v7733, 5
      %v7736 = vsel %vm1117, %v7731, %v7735
      %v7737 = vshrl.u32 %v7361, 16
      %v7739 = vrot.slane %v7737, 4
      %v7740 = vor.u32 %v7739, %v7735
      %v7741 = vrot.slane %v7740, 4
      %v7743 = vshll.u32 %v7362, 16
      %v7745 = vrot.slane %v7743, 5
      %v7746 = vsel %vm1117, %v7741, %v7745
      %7747 = vrot.lane.b32.xlu0 %v7376, 56
      %v7748 = vpop.permute.xlu0 %7747
      %7749 = vrot.lane.b32.xlu0 %v7386, 56
      %v7750 = vpop.permute.xlu0 %7749
      %7751 = vrot.lane.b32.xlu0 %v7400, 56
      %v7752 = vpop.permute.xlu0 %7751
      %7753 = vrot.lane.b32.xlu0 %v7410, 56
      %v7754 = vpop.permute.xlu0 %7753
      %7755 = vrot.lane.b32.xlu0 %v7424, 56
      %v7756 = vpop.permute.xlu0 %7755
      %7757 = vrot.lane.b32.xlu0 %v7434, 56
      %v7758 = vpop.permute.xlu0 %7757
      %7759 = vrot.lane.b32.xlu0 %v7448, 56
      %v7760 = vpop.permute.xlu0 %7759
      %7761 = vrot.lane.b32.xlu0 %v7458, 56
      %v7762 = vpop.permute.xlu0 %7761
      %7763 = vrot.lane.b32.xlu0 %v7472, 56
      %v7764 = vpop.permute.xlu0 %7763
      %7765 = vrot.lane.b32.xlu0 %v7482, 56
      %v7766 = vpop.permute.xlu0 %7765
      %7767 = vrot.lane.b32.xlu0 %v7496, 56
      %v7768 = vpop.permute.xlu0 %7767
      %7769 = vrot.lane.b32.xlu0 %v7506, 56
      %v7770 = vpop.permute.xlu0 %7769
      %7771 = vrot.lane.b32.xlu0 %v7520, 56
      %v7772 = vpop.permute.xlu0 %7771
      %7773 = vrot.lane.b32.xlu0 %v7530, 56
      %v7774 = vpop.permute.xlu0 %7773
      %7775 = vrot.lane.b32.xlu0 %v7544, 56
      %v7776 = vpop.permute.xlu0 %7775
      %7777 = vrot.lane.b32.xlu0 %v7554, 56
      %v7778 = vpop.permute.xlu0 %7777
      %7779 = vrot.lane.b32.xlu0 %v7568, 56
      %v7780 = vpop.permute.xlu0 %7779
      %7781 = vrot.lane.b32.xlu0 %v7578, 56
      %v7782 = vpop.permute.xlu0 %7781
      %7783 = vrot.lane.b32.xlu0 %v7592, 56
      %v7784 = vpop.permute.xlu0 %7783
      %7785 = vrot.lane.b32.xlu0 %v7602, 56
      %v7786 = vpop.permute.xlu0 %7785
      %7787 = vrot.lane.b32.xlu0 %v7616, 56
      %v7788 = vpop.permute.xlu0 %7787
      %7789 = vrot.lane.b32.xlu0 %v7626, 56
      %v7790 = vpop.permute.xlu0 %7789
      %7791 = vrot.lane.b32.xlu0 %v7640, 56
      %v7792 = vpop.permute.xlu0 %7791
      %7793 = vrot.lane.b32.xlu0 %v7650, 56
      %v7794 = vpop.permute.xlu0 %7793
      %7795 = vrot.lane.b32.xlu0 %v7664, 56
      %v7796 = vpop.permute.xlu0 %7795
      %7797 = vrot.lane.b32.xlu0 %v7674, 56
      %v7798 = vpop.permute.xlu0 %7797
      %7799 = vrot.lane.b32.xlu0 %v7688, 56
      %v7800 = vpop.permute.xlu0 %7799
      %7801 = vrot.lane.b32.xlu0 %v7698, 56
      %v7802 = vpop.permute.xlu0 %7801
      %7803 = vrot.lane.b32.xlu0 %v7712, 56
      %v7804 = vpop.permute.xlu0 %7803
      %7805 = vrot.lane.b32.xlu0 %v7722, 56
      %v7806 = vpop.permute.xlu0 %7805
      %7807 = vrot.lane.b32.xlu0 %v7736, 56
      %v7808 = vpop.permute.xlu0 %7807
      %7809 = vrot.lane.b32.xlu0 %v7746, 56
      %v7810 = vpop.permute.xlu0 %7809
      %vm7843 = vcmask 519616
      %7844 = vst.msk [vmem:[#allocation3] sm:$0xf] %vm7843, %v7748
      %7845 = vst.msk [vmem:[#allocation3 + $0x4] sm:$0xf] %vm7843, %v7750
      %7846 = vst.msk [vmem:[#allocation3 + $0x8] sm:$0xf] %vm7843, %v7752
      %7847 = vst.msk [vmem:[#allocation3 + $0xc] sm:$0xf] %vm7843, %v7754
      %7848 = vst.msk [vmem:[#allocation3 + $0x10] sm:$0xf] %vm7843, %v7756
      %7849 = vst.msk [vmem:[#allocation3 + $0x14] sm:$0xf] %vm7843, %v7758
      %7850 = vst.msk [vmem:[#allocation3 + $0x18] sm:$0xf] %vm7843, %v7760
      %7851 = vst.msk [vmem:[#allocation3 + $0x1c] sm:$0xf] %vm7843, %v7762
      %7852 = vst.msk [vmem:[#allocation3 + $0x20] sm:$0xf] %vm7843, %v7764
      %7853 = vst.msk [vmem:[#allocation3 + $0x24] sm:$0xf] %vm7843, %v7766
      %7854 = vst.msk [vmem:[#allocation3 + $0x28] sm:$0xf] %vm7843, %v7768
      %7855 = vst.msk [vmem:[#allocation3 + $0x2c] sm:$0xf] %vm7843, %v7770
      %7856 = vst.msk [vmem:[#allocation3 + $0x30] sm:$0xf] %vm7843, %v7772
      %7857 = vst.msk [vmem:[#allocation3 + $0x34] sm:$0xf] %vm7843, %v7774
      %7858 = vst.msk [vmem:[#allocation3 + $0x38] sm:$0xf] %vm7843, %v7776
      %7859 = vst.msk [vmem:[#allocation3 + $0x3c] sm:$0xf] %vm7843, %v7778
      %7860 = vst.msk [vmem:[#allocation3 + $0x40] sm:$0xf] %vm7843, %v7780
      %7861 = vst.msk [vmem:[#allocation3 + $0x44] sm:$0xf] %vm7843, %v7782
      %7862 = vst.msk [vmem:[#allocation3 + $0x48] sm:$0xf] %vm7843, %v7784
      %7863 = vst.msk [vmem:[#allocation3 + $0x4c] sm:$0xf] %vm7843, %v7786
      %7864 = vst.msk [vmem:[#allocation3 + $0x50] sm:$0xf] %vm7843, %v7788
      %7865 = vst.msk [vmem:[#allocation3 + $0x54] sm:$0xf] %vm7843, %v7790
      %7866 = vst.msk [vmem:[#allocation3 + $0x58] sm:$0xf] %vm7843, %v7792
      %7867 = vst.msk [vmem:[#allocation3 + $0x5c] sm:$0xf] %vm7843, %v7794
      %7868 = vst.msk [vmem:[#allocation3 + $0x60] sm:$0xf] %vm7843, %v7796
      %7869 = vst.msk [vmem:[#allocation3 + $0x64] sm:$0xf] %vm7843, %v7798
      %7870 = vst.msk [vmem:[#allocation3 + $0x68] sm:$0xf] %vm7843, %v7800
      %7871 = vst.msk [vmem:[#allocation3 + $0x6c] sm:$0xf] %vm7843, %v7802
      %7872 = vst.msk [vmem:[#allocation3 + $0x70] sm:$0xf] %vm7843, %v7804
      %7873 = vst.msk [vmem:[#allocation3 + $0x74] sm:$0xf] %vm7843, %v7806
      %7874 = vst.msk [vmem:[#allocation3 + $0x78] sm:$0xf] %vm7843, %v7808
      %7875 = vst.msk [vmem:[#allocation3 + $0x7c] sm:$0xf] %vm7843, %v7810
      %v7876 = vld [vmem:[%s3062] sm:$0xe]
      %v7877 = vld [vmem:[%s3062 + $0x4] sm:$0xf]
      %v7878 = vld [vmem:[%s3062 + $0x8] sm:$0x1]
      %v7879 = vld [vmem:[%s3062 + $0xc] sm:$0xe]
      %v7880 = vld [vmem:[%s3062 + $0x10] sm:$0xf]
      %v7881 = vld [vmem:[%s3062 + $0x14] sm:$0x1]
      %v7882 = vld [vmem:[%s3062 + $0x18] sm:$0xe]
      %v7883 = vld [vmem:[%s3062 + $0x1c] sm:$0xf]
      %v7884 = vld [vmem:[%s3062 + $0x20] sm:$0x1]
      %v7885 = vld [vmem:[%s3062 + $0x24] sm:$0xe]
      %v7886 = vld [vmem:[%s3062 + $0x28] sm:$0xf]
      %v7887 = vld [vmem:[%s3062 + $0x2c] sm:$0x1]
      %v7888 = vld [vmem:[%s3062 + $0x30] sm:$0xe]
      %v7889 = vld [vmem:[%s3062 + $0x34] sm:$0xf]
      %v7890 = vld [vmem:[%s3062 + $0x38] sm:$0x1]
      %v7891 = vld [vmem:[%s3062 + $0x3c] sm:$0xe]
      %v7892 = vld [vmem:[%s3062 + $0x40] sm:$0xf]
      %v7893 = vld [vmem:[%s3062 + $0x44] sm:$0x1]
      %v7894 = vld [vmem:[%s3062 + $0x48] sm:$0xe]
      %v7895 = vld [vmem:[%s3062 + $0x4c] sm:$0xf]
      %v7896 = vld [vmem:[%s3062 + $0x50] sm:$0x1]
      %v7897 = vld [vmem:[%s3062 + $0x54] sm:$0xe]
      %v7898 = vld [vmem:[%s3062 + $0x58] sm:$0xf]
      %v7899 = vld [vmem:[%s3062 + $0x5c] sm:$0x1]
      %v7900 = vld [vmem:[%s3062 + $0x60] sm:$0xe]
      %v7901 = vld [vmem:[%s3062 + $0x64] sm:$0xf]
      %v7902 = vld [vmem:[%s3062 + $0x68] sm:$0x1]
      %v7903 = vld [vmem:[%s3062 + $0x6c] sm:$0xe]
      %v7904 = vld [vmem:[%s3062 + $0x70] sm:$0xf]
      %v7905 = vld [vmem:[%s3062 + $0x74] sm:$0x1]
      %v7906 = vld [vmem:[%s3062 + $0x78] sm:$0xe]
      %v7907 = vld [vmem:[%s3062 + $0x7c] sm:$0xf]
      %v7908 = vld [vmem:[%s3062 + $0x80] sm:$0x1]
      %v7909 = vld [vmem:[%s3062 + $0x84] sm:$0xe]
      %v7910 = vld [vmem:[%s3062 + $0x88] sm:$0xf]
      %v7911 = vld [vmem:[%s3062 + $0x8c] sm:$0x1]
      %v7912 = vld [vmem:[%s3062 + $0x90] sm:$0xe]
      %v7913 = vld [vmem:[%s3062 + $0x94] sm:$0xf]
      %v7914 = vld [vmem:[%s3062 + $0x98] sm:$0x1]
      %v7915 = vld [vmem:[%s3062 + $0x9c] sm:$0xe]
      %v7916 = vld [vmem:[%s3062 + $0xa0] sm:$0xf]
      %v7917 = vld [vmem:[%s3062 + $0xa4] sm:$0x1]
      %v7918 = vld [vmem:[%s3062 + $0xa8] sm:$0xe]
      %v7919 = vld [vmem:[%s3062 + $0xac] sm:$0xf]
      %v7920 = vld [vmem:[%s3062 + $0xb0] sm:$0x1]
      %v7921 = vld [vmem:[%s3062 + $0xb4] sm:$0xe]
      %v7922 = vld [vmem:[%s3062 + $0xb8] sm:$0xf]
      %v7923 = vld [vmem:[%s3062 + $0xbc] sm:$0x1]
      %v7972 = vrot.slane %v7876, 5
      %v7973 = vrot.slane %v7972, 4
      %v7974 = vrot.slane %v7877, 5
      %v7975 = vsel %vm1729, %v7973, %v7974
      %v7976 = vrot.slane %v7974, 4
      %v7977 = vrot.slane %v7878, 5
      %v7978 = vsel %vm1729, %v7976, %v7977
      %v7979 = vrot.slane %v7879, 5
      %v7980 = vrot.slane %v7979, 4
      %v7981 = vrot.slane %v7880, 5
      %v7982 = vsel %vm1729, %v7980, %v7981
      %v7983 = vrot.slane %v7981, 4
      %v7984 = vrot.slane %v7881, 5
      %v7985 = vsel %vm1729, %v7983, %v7984
      %v7986 = vrot.slane %v7882, 5
      %v7987 = vrot.slane %v7986, 4
      %v7988 = vrot.slane %v7883, 5
      %v7989 = vsel %vm1729, %v7987, %v7988
      %v7990 = vrot.slane %v7988, 4
      %v7991 = vrot.slane %v7884, 5
      %v7992 = vsel %vm1729, %v7990, %v7991
      %v7993 = vrot.slane %v7885, 5
      %v7994 = vrot.slane %v7993, 4
      %v7995 = vrot.slane %v7886, 5
      %v7996 = vsel %vm1729, %v7994, %v7995
      %v7997 = vrot.slane %v7995, 4
      %v7998 = vrot.slane %v7887, 5
      %v7999 = vsel %vm1729, %v7997, %v7998
      %v8000 = vrot.slane %v7888, 5
      %v8001 = vrot.slane %v8000, 4
      %v8002 = vrot.slane %v7889, 5
      %v8003 = vsel %vm1729, %v8001, %v8002
      %v8004 = vrot.slane %v8002, 4
      %v8005 = vrot.slane %v7890, 5
      %v8006 = vsel %vm1729, %v8004, %v8005
      %v8007 = vrot.slane %v7891, 5
      %v8008 = vrot.slane %v8007, 4
      %v8009 = vrot.slane %v7892, 5
      %v8010 = vsel %vm1729, %v8008, %v8009
      %v8011 = vrot.slane %v8009, 4
      %v8012 = vrot.slane %v7893, 5
      %v8013 = vsel %vm1729, %v8011, %v8012
      %v8014 = vrot.slane %v7894, 5
      %v8015 = vrot.slane %v8014, 4
      %v8016 = vrot.slane %v7895, 5
      %v8017 = vsel %vm1729, %v8015, %v8016
      %v8018 = vrot.slane %v8016, 4
      %v8019 = vrot.slane %v7896, 5
      %v8020 = vsel %vm1729, %v8018, %v8019
      %v8021 = vrot.slane %v7897, 5
      %v8022 = vrot.slane %v8021, 4
      %v8023 = vrot.slane %v7898, 5
      %v8024 = vsel %vm1729, %v8022, %v8023
      %v8025 = vrot.slane %v8023, 4
      %v8026 = vrot.slane %v7899, 5
      %v8027 = vsel %vm1729, %v8025, %v8026
      %v8028 = vrot.slane %v7900, 5
      %v8029 = vrot.slane %v8028, 4
      %v8030 = vrot.slane %v7901, 5
      %v8031 = vsel %vm1729, %v8029, %v8030
      %v8032 = vrot.slane %v8030, 4
      %v8033 = vrot.slane %v7902, 5
      %v8034 = vsel %vm1729, %v8032, %v8033
      %v8035 = vrot.slane %v7903, 5
      %v8036 = vrot.slane %v8035, 4
      %v8037 = vrot.slane %v7904, 5
      %v8038 = vsel %vm1729, %v8036, %v8037
      %v8039 = vrot.slane %v8037, 4
      %v8040 = vrot.slane %v7905, 5
      %v8041 = vsel %vm1729, %v8039, %v8040
      %v8042 = vrot.slane %v7906, 5
      %v8043 = vrot.slane %v8042, 4
      %v8044 = vrot.slane %v7907, 5
      %v8045 = vsel %vm1729, %v8043, %v8044
      %v8046 = vrot.slane %v8044, 4
      %v8047 = vrot.slane %v7908, 5
      %v8048 = vsel %vm1729, %v8046, %v8047
      %v8049 = vrot.slane %v7909, 5
      %v8050 = vrot.slane %v8049, 4
      %v8051 = vrot.slane %v7910, 5
      %v8052 = vsel %vm1729, %v8050, %v8051
      %v8053 = vrot.slane %v8051, 4
      %v8054 = vrot.slane %v7911, 5
      %v8055 = vsel %vm1729, %v8053, %v8054
      %v8056 = vrot.slane %v7912, 5
      %v8057 = vrot.slane %v8056, 4
      %v8058 = vrot.slane %v7913, 5
      %v8059 = vsel %vm1729, %v8057, %v8058
      %v8060 = vrot.slane %v8058, 4
      %v8061 = vrot.slane %v7914, 5
      %v8062 = vsel %vm1729, %v8060, %v8061
      %v8063 = vrot.slane %v7915, 5
      %v8064 = vrot.slane %v8063, 4
      %v8065 = vrot.slane %v7916, 5
      %v8066 = vsel %vm1729, %v8064, %v8065
      %v8067 = vrot.slane %v8065, 4
      %v8068 = vrot.slane %v7917, 5
      %v8069 = vsel %vm1729, %v8067, %v8068
      %v8070 = vrot.slane %v7918, 5
      %v8071 = vrot.slane %v8070, 4
      %v8072 = vrot.slane %v7919, 5
      %v8073 = vsel %vm1729, %v8071, %v8072
      %v8074 = vrot.slane %v8072, 4
      %v8075 = vrot.slane %v7920, 5
      %v8076 = vsel %vm1729, %v8074, %v8075
      %v8077 = vrot.slane %v7921, 5
      %v8078 = vrot.slane %v8077, 4
      %v8079 = vrot.slane %v7922, 5
      %v8080 = vsel %vm1729, %v8078, %v8079
      %v8081 = vrot.slane %v8079, 4
      %v8082 = vrot.slane %v7923, 5
      %v8083 = vsel %vm1729, %v8081, %v8082
      %8084 = vrot.lane.b32.xlu0 %v7975, 64
      %v8085 = vpop.permute.xlu0 %8084
      %8086 = vrot.lane.b32.xlu0 %v7978, 64
      %v8087 = vpop.permute.xlu0 %8086
      %8088 = vrot.lane.b32.xlu0 %v7982, 64
      %v8089 = vpop.permute.xlu0 %8088
      %8090 = vrot.lane.b32.xlu0 %v7985, 64
      %v8091 = vpop.permute.xlu0 %8090
      %8092 = vrot.lane.b32.xlu0 %v7989, 64
      %v8093 = vpop.permute.xlu0 %8092
      %8094 = vrot.lane.b32.xlu0 %v7992, 64
      %v8095 = vpop.permute.xlu0 %8094
      %8096 = vrot.lane.b32.xlu0 %v7996, 64
      %v8097 = vpop.permute.xlu0 %8096
      %8098 = vrot.lane.b32.xlu0 %v7999, 64
      %v8099 = vpop.permute.xlu0 %8098
      %8100 = vrot.lane.b32.xlu0 %v8003, 64
      %v8101 = vpop.permute.xlu0 %8100
      %8102 = vrot.lane.b32.xlu0 %v8006, 64
      %v8103 = vpop.permute.xlu0 %8102
      %8104 = vrot.lane.b32.xlu0 %v8010, 64
      %v8105 = vpop.permute.xlu0 %8104
      %8106 = vrot.lane.b32.xlu0 %v8013, 64
      %v8107 = vpop.permute.xlu0 %8106
      %8108 = vrot.lane.b32.xlu0 %v8017, 64
      %v8109 = vpop.permute.xlu0 %8108
      %8110 = vrot.lane.b32.xlu0 %v8020, 64
      %v8111 = vpop.permute.xlu0 %8110
      %8112 = vrot.lane.b32.xlu0 %v8024, 64
      %v8113 = vpop.permute.xlu0 %8112
      %8114 = vrot.lane.b32.xlu0 %v8027, 64
      %v8115 = vpop.permute.xlu0 %8114
      %8116 = vrot.lane.b32.xlu0 %v8031, 64
      %v8117 = vpop.permute.xlu0 %8116
      %8118 = vrot.lane.b32.xlu0 %v8034, 64
      %v8119 = vpop.permute.xlu0 %8118
      %8120 = vrot.lane.b32.xlu0 %v8038, 64
      %v8121 = vpop.permute.xlu0 %8120
      %8122 = vrot.lane.b32.xlu0 %v8041, 64
      %v8123 = vpop.permute.xlu0 %8122
      %8124 = vrot.lane.b32.xlu0 %v8045, 64
      %v8125 = vpop.permute.xlu0 %8124
      %8126 = vrot.lane.b32.xlu0 %v8048, 64
      %v8127 = vpop.permute.xlu0 %8126
      %8128 = vrot.lane.b32.xlu0 %v8052, 64
      %v8129 = vpop.permute.xlu0 %8128
      %8130 = vrot.lane.b32.xlu0 %v8055, 64
      %v8131 = vpop.permute.xlu0 %8130
      %8132 = vrot.lane.b32.xlu0 %v8059, 64
      %v8133 = vpop.permute.xlu0 %8132
      %8134 = vrot.lane.b32.xlu0 %v8062, 64
      %v8135 = vpop.permute.xlu0 %8134
      %8136 = vrot.lane.b32.xlu0 %v8066, 64
      %v8137 = vpop.permute.xlu0 %8136
      %8138 = vrot.lane.b32.xlu0 %v8069, 64
      %v8139 = vpop.permute.xlu0 %8138
      %8140 = vrot.lane.b32.xlu0 %v8073, 64
      %v8141 = vpop.permute.xlu0 %8140
      %8142 = vrot.lane.b32.xlu0 %v8076, 64
      %v8143 = vpop.permute.xlu0 %8142
      %8144 = vrot.lane.b32.xlu0 %v8080, 64
      %v8145 = vpop.permute.xlu0 %8144
      %8146 = vrot.lane.b32.xlu0 %v8083, 64
      %v8147 = vpop.permute.xlu0 %8146
      %vm8180 = vcmask 585216
      %8181 = vst.msk [vmem:[#allocation3] sm:$0xf] %vm8180, %v8085
      %8182 = vst.msk [vmem:[#allocation3 + $0x4] sm:$0xf] %vm8180, %v8087
      %8183 = vst.msk [vmem:[#allocation3 + $0x8] sm:$0xf] %vm8180, %v8089
      %8184 = vst.msk [vmem:[#allocation3 + $0xc] sm:$0xf] %vm8180, %v8091
      %8185 = vst.msk [vmem:[#allocation3 + $0x10] sm:$0xf] %vm8180, %v8093
      %8186 = vst.msk [vmem:[#allocation3 + $0x14] sm:$0xf] %vm8180, %v8095
      %8187 = vst.msk [vmem:[#allocation3 + $0x18] sm:$0xf] %vm8180, %v8097
      %8188 = vst.msk [vmem:[#allocation3 + $0x1c] sm:$0xf] %vm8180, %v8099
      %8189 = vst.msk [vmem:[#allocation3 + $0x20] sm:$0xf] %vm8180, %v8101
      %8190 = vst.msk [vmem:[#allocation3 + $0x24] sm:$0xf] %vm8180, %v8103
      %8191 = vst.msk [vmem:[#allocation3 + $0x28] sm:$0xf] %vm8180, %v8105
      %8192 = vst.msk [vmem:[#allocation3 + $0x2c] sm:$0xf] %vm8180, %v8107
      %8193 = vst.msk [vmem:[#allocation3 + $0x30] sm:$0xf] %vm8180, %v8109
      %8194 = vst.msk [vmem:[#allocation3 + $0x34] sm:$0xf] %vm8180, %v8111
      %8195 = vst.msk [vmem:[#allocation3 + $0x38] sm:$0xf] %vm8180, %v8113
      %8196 = vst.msk [vmem:[#allocation3 + $0x3c] sm:$0xf] %vm8180, %v8115
      %8197 = vst.msk [vmem:[#allocation3 + $0x40] sm:$0xf] %vm8180, %v8117
      %8198 = vst.msk [vmem:[#allocation3 + $0x44] sm:$0xf] %vm8180, %v8119
      %8199 = vst.msk [vmem:[#allocation3 + $0x48] sm:$0xf] %vm8180, %v8121
      %8200 = vst.msk [vmem:[#allocation3 + $0x4c] sm:$0xf] %vm8180, %v8123
      %8201 = vst.msk [vmem:[#allocation3 + $0x50] sm:$0xf] %vm8180, %v8125
      %8202 = vst.msk [vmem:[#allocation3 + $0x54] sm:$0xf] %vm8180, %v8127
      %8203 = vst.msk [vmem:[#allocation3 + $0x58] sm:$0xf] %vm8180, %v8129
      %8204 = vst.msk [vmem:[#allocation3 + $0x5c] sm:$0xf] %vm8180, %v8131
      %8205 = vst.msk [vmem:[#allocation3 + $0x60] sm:$0xf] %vm8180, %v8133
      %8206 = vst.msk [vmem:[#allocation3 + $0x64] sm:$0xf] %vm8180, %v8135
      %8207 = vst.msk [vmem:[#allocation3 + $0x68] sm:$0xf] %vm8180, %v8137
      %8208 = vst.msk [vmem:[#allocation3 + $0x6c] sm:$0xf] %vm8180, %v8139
      %8209 = vst.msk [vmem:[#allocation3 + $0x70] sm:$0xf] %vm8180, %v8141
      %8210 = vst.msk [vmem:[#allocation3 + $0x74] sm:$0xf] %vm8180, %v8143
      %8211 = vst.msk [vmem:[#allocation3 + $0x78] sm:$0xf] %vm8180, %v8145
      %8212 = vst.msk [vmem:[#allocation3 + $0x7c] sm:$0xf] %vm8180, %v8147
      %v8213 = vld [vmem:[#allocation3] sm:$0xf]
      %v8214 = vld [vmem:[#allocation3 + $0x4] sm:$0xf]
      %v8215 = vld [vmem:[#allocation3 + $0x8] sm:$0xf]
      %v8216 = vld [vmem:[#allocation3 + $0xc] sm:$0xf]
      %v8217 = vld [vmem:[#allocation3 + $0x10] sm:$0xf]
      %v8218 = vld [vmem:[#allocation3 + $0x14] sm:$0xf]
      %v8219 = vld [vmem:[#allocation3 + $0x18] sm:$0xf]
      %v8220 = vld [vmem:[#allocation3 + $0x1c] sm:$0xf]
      %v8221 = vld [vmem:[#allocation3 + $0x20] sm:$0xf]
      %v8222 = vld [vmem:[#allocation3 + $0x24] sm:$0xf]
      %v8223 = vld [vmem:[#allocation3 + $0x28] sm:$0xf]
      %v8224 = vld [vmem:[#allocation3 + $0x2c] sm:$0xf]
      %v8225 = vld [vmem:[#allocation3 + $0x30] sm:$0xf]
      %v8226 = vld [vmem:[#allocation3 + $0x34] sm:$0xf]
      %v8227 = vld [vmem:[#allocation3 + $0x38] sm:$0xf]
      %v8228 = vld [vmem:[#allocation3 + $0x3c] sm:$0xf]
      %v8229 = vld [vmem:[#allocation3 + $0x40] sm:$0xf]
      %v8230 = vld [vmem:[#allocation3 + $0x44] sm:$0xf]
      %v8231 = vld [vmem:[#allocation3 + $0x48] sm:$0xf]
      %v8232 = vld [vmem:[#allocation3 + $0x4c] sm:$0xf]
      %v8233 = vld [vmem:[#allocation3 + $0x50] sm:$0xf]
      %v8234 = vld [vmem:[#allocation3 + $0x54] sm:$0xf]
      %v8235 = vld [vmem:[#allocation3 + $0x58] sm:$0xf]
      %v8236 = vld [vmem:[#allocation3 + $0x5c] sm:$0xf]
      %v8237 = vld [vmem:[#allocation3 + $0x60] sm:$0xf]
      %v8238 = vld [vmem:[#allocation3 + $0x64] sm:$0xf]
      %v8239 = vld [vmem:[#allocation3 + $0x68] sm:$0xf]
      %v8240 = vld [vmem:[#allocation3 + $0x6c] sm:$0xf]
      %v8241 = vld [vmem:[#allocation3 + $0x70] sm:$0xf]
      %v8242 = vld [vmem:[#allocation3 + $0x74] sm:$0xf]
      %v8243 = vld [vmem:[#allocation3 + $0x78] sm:$0xf]
      %v8244 = vld [vmem:[#allocation3 + $0x7c] sm:$0xf]
      %v8245 = vld [vmem:[%s3] sm:$0xf]
      %v8246 = vld [vmem:[%s3 + $0x4] sm:$0xf]
      %v8247 = vld [vmem:[%s3 + $0x8] sm:$0xf]
      %v8248 = vld [vmem:[%s3 + $0xc] sm:$0xf]
      %v8249 = vld [vmem:[%s3 + $0x10] sm:$0xf]
      %v8250 = vld [vmem:[%s3 + $0x14] sm:$0xf]
      %v8251 = vld [vmem:[%s3 + $0x18] sm:$0xf]
      %v8252 = vld [vmem:[%s3 + $0x1c] sm:$0xf]
      %v8253 = vld [vmem:[%s3 + $0x20] sm:$0xf]
      %v8254 = vld [vmem:[%s4] sm:$0x1]
      %v8256 = vlaneseq
      %v8257 = vshrl.u32 %v8256, 7
      %v8258 = vsub.s32 0, %v8257
      %v8259 = vrot.slane %v8254, %v8258
      %v8293 = vunpack.c.l.b16 %v8213
      %v8294 = vunpack.c.l.b16 %v8214
      %v8295 = vunpack.c.l.b16 %v8215
      %v8296 = vunpack.c.l.b16 %v8216
      %v8297 = vunpack.c.l.b16 %v8217
      %v8298 = vunpack.c.l.b16 %v8218
      %v8299 = vunpack.c.l.b16 %v8219
      %v8300 = vunpack.c.l.b16 %v8220
      %v8301 = vunpack.c.l.b16 %v8221
      %v8302 = vunpack.c.l.b16 %v8222
      %v8303 = vunpack.c.l.b16 %v8223
      %v8304 = vunpack.c.l.b16 %v8224
      %v8305 = vunpack.c.l.b16 %v8225
      %v8306 = vunpack.c.l.b16 %v8226
      %v8307 = vunpack.c.l.b16 %v8227
      %v8308 = vunpack.c.l.b16 %v8228
      %v8309 = vunpack.c.l.b16 %v8229
      %v8310 = vunpack.c.l.b16 %v8230
      %v8311 = vunpack.c.l.b16 %v8231
      %v8312 = vunpack.c.l.b16 %v8232
      %v8313 = vunpack.c.l.b16 %v8233
      %v8314 = vunpack.c.l.b16 %v8234
      %v8315 = vunpack.c.l.b16 %v8235
      %v8316 = vunpack.c.l.b16 %v8236
      %v8317 = vunpack.c.l.b16 %v8237
      %v8318 = vunpack.c.l.b16 %v8238
      %v8319 = vunpack.c.l.b16 %v8239
      %v8320 = vunpack.c.l.b16 %v8240
      %v8321 = vunpack.c.l.b16 %v8241
      %v8322 = vunpack.c.l.b16 %v8242
      %v8323 = vunpack.c.l.b16 %v8243
      %v8324 = vunpack.c.l.b16 %v8244
      %v8325 = vpack.c.b16 %v8294, %v8293
      %v8326 = vpack.c.b16 %v8296, %v8295
      %v8327 = vpack.c.b16 %v8298, %v8297
      %v8328 = vpack.c.b16 %v8300, %v8299
      %v8329 = vpack.c.b16 %v8302, %v8301
      %v8330 = vpack.c.b16 %v8304, %v8303
      %v8331 = vpack.c.b16 %v8306, %v8305
      %v8332 = vpack.c.b16 %v8308, %v8307
      %v8333 = vpack.c.b16 %v8310, %v8309
      %v8334 = vpack.c.b16 %v8312, %v8311
      %v8335 = vpack.c.b16 %v8314, %v8313
      %v8336 = vpack.c.b16 %v8316, %v8315
      %v8337 = vpack.c.b16 %v8318, %v8317
      %v8338 = vpack.c.b16 %v8320, %v8319
      %v8339 = vpack.c.b16 %v8322, %v8321
      %v8340 = vpack.c.b16 %v8324, %v8323
      %v8350 = vunpack.c.l.b16 %v8245
      %v8351 = vunpack.c.l.b16 %v8246
      %v8352 = vunpack.c.l.b16 %v8247
      %v8353 = vunpack.c.l.b16 %v8248
      %v8354 = vunpack.c.l.b16 %v8249
      %v8355 = vunpack.c.l.b16 %v8250
      %v8356 = vunpack.c.l.b16 %v8251
      %v8357 = vunpack.c.l.b16 %v8252
      %v8358 = vunpack.c.l.b16 %v8253
      %v8359 = vpack.c.b16 %v8351, %v8350
      %v8360 = vpack.c.b16 %v8353, %v8352
      %v8361 = vpack.c.b16 %v8355, %v8354
      %v8362 = vpack.c.b16 %v8357, %v8356
      %v8363 = vpack.c.b16 %v8358, %v8358
      %vm8368 = vcmask 588800
      %v8370 = vsel %vm8368, %v8325, 0
      %v8373 = vsel %vm8368, %v8326, 0
      %v8376 = vsel %vm8368, %v8327, 0
      %v8379 = vsel %vm8368, %v8328, 0
      %v8382 = vsel %vm8368, %v8329, 0
      %v8385 = vsel %vm8368, %v8330, 0
      %v8388 = vsel %vm8368, %v8331, 0
      %v8391 = vsel %vm8368, %v8332, 0
      %v8394 = vsel %vm8368, %v8333, 0
      %v8397 = vsel %vm8368, %v8334, 0
      %v8400 = vsel %vm8368, %v8335, 0
      %v8403 = vsel %vm8368, %v8336, 0
      %v8406 = vsel %vm8368, %v8337, 0
      %v8409 = vsel %vm8368, %v8338, 0
      %v8412 = vsel %vm8368, %v8339, 0
      %v8415 = vsel %vm8368, %v8340, 0
      %vm8417 = vcmask 1043456
      %v8419 = vsel %vm8417, %v8363, 0
      %8421 = vmatprep.subr.bf16.mxu0 0
      %8422 = vmatpush1.bf16.msra.mxu0 0
      %8423 = vmatprep.subr.bf16.mxu0 0
      %8424 = vmatpush1.bf16.msra.mxu0 0
      %8425 = vmatprep.subr.bf16.mxu0 0
      %8426 = vmatpush1.bf16.msra.mxu0 0
      %8427 = vmatprep.subr.bf16.mxu0 0
      %8428 = vmatpush1.bf16.msra.mxu0 %v8419
      %8429 = vmatprep.subr.bf16.mxu0 0
      %8430 = vmatpush1.bf16.msra.mxu0 %v8362
      %8431 = vmatprep.subr.bf16.mxu0 0
      %8432 = vmatpush1.bf16.msra.mxu0 %v8361
      %8433 = vmatprep.subr.bf16.mxu0 0
      %8434 = vmatpush1.bf16.msra.mxu0 %v8360
      %8435 = vmatprep.subr.bf16.mxu0 0
      %8436 = vmatpush1.bf16.msra.mxu0 %v8359
      %8437 = vmatprep.subr.bf16.mxu0 0
      %8438 = vmatpush2.bf16.msra.mxu0 0
      %8439 = vmatprep.subr.bf16.mxu0 0
      %8440 = vmatpush2.bf16.msra.mxu0 0
      %8441 = vmatprep.subr.bf16.mxu0 0
      %8442 = vmatpush2.bf16.msra.mxu0 0
      %8443 = vmatprep.subr.bf16.mxu0 0
      %8444 = vmatpush2.bf16.msra.mxu0 0
      %8445 = vmatprep.subr.bf16.mxu0 0
      %8446 = vmatpush2.bf16.msra.mxu0 0
      %8447 = vmatprep.subr.bf16.mxu0 0
      %8448 = vmatpush2.bf16.msra.mxu0 0
      %8449 = vmatprep.subr.bf16.mxu0 0
      %8450 = vmatpush2.bf16.msra.mxu0 0
      %8451 = vmatprep.subr.bf16.mxu0 0
      %8452 = vmatpush2.bf16.msra.mxu0 0
      %8453 = vmatprep.mubr.bf16.mxu0 0
      %8454 = vmatmul.mubr.bf16.gmra.mxu0 %v8370
      %v8455 = vpop.f32.mrf.mxu0
      %v8456 = vadd.f32 %v8259, %v8455
      %v8457 = vpop.f32.mrf.mxu0
      %v8458 = vpop.f32.mrf.mxu0
      %v8459 = vadd.f32 %v8259, %v8458
      %v8460 = vpop.f32.mrf.mxu0
      %8461 = vmatprep.mubr.bf16.mxu0 0
      %8462 = vmatmul.mubr.bf16.gmra.mxu0 %v8373
      %v8463 = vpop.f32.mrf.mxu0
      %v8464 = vadd.f32 %v8259, %v8463
      %v8465 = vpop.f32.mrf.mxu0
      %v8466 = vpop.f32.mrf.mxu0
      %v8467 = vadd.f32 %v8259, %v8466
      %v8468 = vpop.f32.mrf.mxu0
      %8469 = vmatprep.mubr.bf16.mxu0 0
      %8470 = vmatmul.mubr.bf16.gmra.mxu0 %v8376
      %v8471 = vpop.f32.mrf.mxu0
      %v8472 = vadd.f32 %v8259, %v8471
      %v8473 = vpop.f32.mrf.mxu0
      %v8474 = vpop.f32.mrf.mxu0
      %v8475 = vadd.f32 %v8259, %v8474
      %v8476 = vpop.f32.mrf.mxu0
      %8477 = vmatprep.mubr.bf16.mxu0 0
      %8478 = vmatmul.mubr.bf16.gmra.mxu0 %v8379
      %v8479 = vpop.f32.mrf.mxu0
      %v8480 = vadd.f32 %v8259, %v8479
      %v8481 = vpop.f32.mrf.mxu0
      %v8482 = vpop.f32.mrf.mxu0
      %v8483 = vadd.f32 %v8259, %v8482
      %v8484 = vpop.f32.mrf.mxu0
      %8485 = vmatprep.mubr.bf16.mxu0 0
      %8486 = vmatmul.mubr.bf16.gmra.mxu0 %v8382
      %v8487 = vpop.f32.mrf.mxu0
      %v8488 = vadd.f32 %v8259, %v8487
      %v8489 = vpop.f32.mrf.mxu0
      %v8490 = vpop.f32.mrf.mxu0
      %v8491 = vadd.f32 %v8259, %v8490
      %v8492 = vpop.f32.mrf.mxu0
      %8493 = vmatprep.mubr.bf16.mxu0 0
      %8494 = vmatmul.mubr.bf16.gmra.mxu0 %v8385
      %v8495 = vpop.f32.mrf.mxu0
      %v8496 = vadd.f32 %v8259, %v8495
      %v8497 = vpop.f32.mrf.mxu0
      %v8498 = vpop.f32.mrf.mxu0
      %v8499 = vadd.f32 %v8259, %v8498
      %v8500 = vpop.f32.mrf.mxu0
      %8501 = vmatprep.mubr.bf16.mxu0 0
      %8502 = vmatmul.mubr.bf16.gmra.mxu0 %v8388
      %v8503 = vpop.f32.mrf.mxu0
      %v8504 = vadd.f32 %v8259, %v8503
      %v8505 = vpop.f32.mrf.mxu0
      %v8506 = vpop.f32.mrf.mxu0
      %v8507 = vadd.f32 %v8259, %v8506
      %v8508 = vpop.f32.mrf.mxu0
      %8509 = vmatprep.mubr.bf16.mxu0 0
      %8510 = vmatmul.mubr.bf16.gmra.mxu0 %v8391
      %v8511 = vpop.f32.mrf.mxu0
      %v8512 = vadd.f32 %v8259, %v8511
      %v8513 = vpop.f32.mrf.mxu0
      %v8514 = vpop.f32.mrf.mxu0
      %v8515 = vadd.f32 %v8259, %v8514
      %v8516 = vpop.f32.mrf.mxu0
      %8517 = vmatprep.mubr.bf16.mxu0 0
      %8518 = vmatmul.mubr.bf16.gmra.mxu0 %v8394
      %v8519 = vpop.f32.mrf.mxu0
      %v8520 = vadd.f32 %v8259, %v8519
      %v8521 = vpop.f32.mrf.mxu0
      %v8522 = vpop.f32.mrf.mxu0
      %v8523 = vadd.f32 %v8259, %v8522
      %v8524 = vpop.f32.mrf.mxu0
      %8525 = vmatprep.mubr.bf16.mxu0 0
      %8526 = vmatmul.mubr.bf16.gmra.mxu0 %v8397
      %v8527 = vpop.f32.mrf.mxu0
      %v8528 = vadd.f32 %v8259, %v8527
      %v8529 = vpop.f32.mrf.mxu0
      %v8530 = vpop.f32.mrf.mxu0
      %v8531 = vadd.f32 %v8259, %v8530
      %v8532 = vpop.f32.mrf.mxu0
      %8533 = vmatprep.mubr.bf16.mxu0 0
      %8534 = vmatmul.mubr.bf16.gmra.mxu0 %v8400
      %v8535 = vpop.f32.mrf.mxu0
      %v8536 = vadd.f32 %v8259, %v8535
      %v8537 = vpop.f32.mrf.mxu0
      %v8538 = vpop.f32.mrf.mxu0
      %v8539 = vadd.f32 %v8259, %v8538
      %v8540 = vpop.f32.mrf.mxu0
      %8541 = vmatprep.mubr.bf16.mxu0 0
      %8542 = vmatmul.mubr.bf16.gmra.mxu0 %v8403
      %v8543 = vpop.f32.mrf.mxu0
      %v8544 = vadd.f32 %v8259, %v8543
      %v8545 = vpop.f32.mrf.mxu0
      %v8546 = vpop.f32.mrf.mxu0
      %v8547 = vadd.f32 %v8259, %v8546
      %v8548 = vpop.f32.mrf.mxu0
      %8549 = vmatprep.mubr.bf16.mxu0 0
      %8550 = vmatmul.mubr.bf16.gmra.mxu0 %v8406
      %v8551 = vpop.f32.mrf.mxu0
      %v8552 = vadd.f32 %v8259, %v8551
      %v8553 = vpop.f32.mrf.mxu0
      %v8554 = vpop.f32.mrf.mxu0
      %v8555 = vadd.f32 %v8259, %v8554
      %v8556 = vpop.f32.mrf.mxu0
      %8557 = vmatprep.mubr.bf16.mxu0 0
      %8558 = vmatmul.mubr.bf16.gmra.mxu0 %v8409
      %v8559 = vpop.f32.mrf.mxu0
      %v8560 = vadd.f32 %v8259, %v8559
      %v8561 = vpop.f32.mrf.mxu0
      %v8562 = vpop.f32.mrf.mxu0
      %v8563 = vadd.f32 %v8259, %v8562
      %v8564 = vpop.f32.mrf.mxu0
      %8565 = vmatprep.mubr.bf16.mxu0 0
      %8566 = vmatmul.mubr.bf16.gmra.mxu0 %v8412
      %v8567 = vpop.f32.mrf.mxu0
      %v8568 = vadd.f32 %v8259, %v8567
      %v8569 = vpop.f32.mrf.mxu0
      %v8570 = vpop.f32.mrf.mxu0
      %v8571 = vadd.f32 %v8259, %v8570
      %v8572 = vpop.f32.mrf.mxu0
      %8573 = vmatprep.mubr.bf16.mxu0 0
      %8574 = vmatmul.mubr.bf16.gmra.mxu0 %v8415
      %v8575 = vpop.f32.mrf.mxu0
      %v8576 = vadd.f32 %v8259, %v8575
      %v8577 = vpop.f32.mrf.mxu0
      %v8578 = vpop.f32.mrf.mxu0
      %v8579 = vadd.f32 %v8259, %v8578
      %v8580 = vpop.f32.mrf.mxu0
      %8581 = vdwg.mxu0
      %v8614 = vcombine.high %v8456, %v8456
      %v8616 = vunpack.c.l.s4 1983009808
      %v8617 = vunpack.c.0.s8 %v8616
      %v8618 = vlaneseq
      %v8619 = vshrl.u32 %v8618, 7
      %v8620 = vsub.s32 %v8617, %v8619
      %v8621 = vrot.slane %v8456, %v8620
      %v8623 = vunpack.c.l.s4 1983009808
      %v8624 = vunpack.c.0.s8 %v8623
      %v8625 = vlaneseq
      %v8626 = vshrl.u32 %v8625, 7
      %v8627 = vsub.s32 %v8624, %v8626
      %v8628 = vrot.slane %v8614, %v8627
      %v8629 = vcombine.high %v8621, %v8621
      %v8630 = vcombine.high %v8628, %v8628
      %v8631 = vcombine.high %v8459, %v8459
      %v8633 = vunpack.c.l.s4 1983009808
      %v8634 = vunpack.c.0.s8 %v8633
      %v8635 = vlaneseq
      %v8636 = vshrl.u32 %v8635, 7
      %v8637 = vsub.s32 %v8634, %v8636
      %v8638 = vrot.slane %v8459, %v8637
      %v8640 = vunpack.c.l.s4 1983009808
      %v8641 = vunpack.c.0.s8 %v8640
      %v8642 = vlaneseq
      %v8643 = vshrl.u32 %v8642, 7
      %v8644 = vsub.s32 %v8641, %v8643
      %v8645 = vrot.slane %v8631, %v8644
      %v8646 = vcombine.high %v8638, %v8638
      %v8647 = vcombine.high %v8645, %v8645
      %v8648 = vcombine.high %v8464, %v8464
      %v8650 = vunpack.c.l.s4 1983009808
      %v8651 = vunpack.c.0.s8 %v8650
      %v8652 = vlaneseq
      %v8653 = vshrl.u32 %v8652, 7
      %v8654 = vsub.s32 %v8651, %v8653
      %v8655 = vrot.slane %v8464, %v8654
      %v8657 = vunpack.c.l.s4 1983009808
      %v8658 = vunpack.c.0.s8 %v8657
      %v8659 = vlaneseq
      %v8660 = vshrl.u32 %v8659, 7
      %v8661 = vsub.s32 %v8658, %v8660
      %v8662 = vrot.slane %v8648, %v8661
      %v8663 = vcombine.high %v8655, %v8655
      %v8664 = vcombine.high %v8662, %v8662
      %v8665 = vcombine.high %v8467, %v8467
      %v8667 = vunpack.c.l.s4 1983009808
      %v8668 = vunpack.c.0.s8 %v8667
      %v8669 = vlaneseq
      %v8670 = vshrl.u32 %v8669, 7
      %v8671 = vsub.s32 %v8668, %v8670
      %v8672 = vrot.slane %v8467, %v8671
      %v8674 = vunpack.c.l.s4 1983009808
      %v8675 = vunpack.c.0.s8 %v8674
      %v8676 = vlaneseq
      %v8677 = vshrl.u32 %v8676, 7
      %v8678 = vsub.s32 %v8675, %v8677
      %v8679 = vrot.slane %v8665, %v8678
      %v8680 = vcombine.high %v8672, %v8672
      %v8681 = vcombine.high %v8679, %v8679
      %v8682 = vcombine.high %v8472, %v8472
      %v8684 = vunpack.c.l.s4 1983009808
      %v8685 = vunpack.c.0.s8 %v8684
      %v8686 = vlaneseq
      %v8687 = vshrl.u32 %v8686, 7
      %v8688 = vsub.s32 %v8685, %v8687
      %v8689 = vrot.slane %v8472, %v8688
      %v8691 = vunpack.c.l.s4 1983009808
      %v8692 = vunpack.c.0.s8 %v8691
      %v8693 = vlaneseq
      %v8694 = vshrl.u32 %v8693, 7
      %v8695 = vsub.s32 %v8692, %v8694
      %v8696 = vrot.slane %v8682, %v8695
      %v8697 = vcombine.high %v8689, %v8689
      %v8698 = vcombine.high %v8696, %v8696
      %v8699 = vcombine.high %v8475, %v8475
      %v8701 = vunpack.c.l.s4 1983009808
      %v8702 = vunpack.c.0.s8 %v8701
      %v8703 = vlaneseq
      %v8704 = vshrl.u32 %v8703, 7
      %v8705 = vsub.s32 %v8702, %v8704
      %v8706 = vrot.slane %v8475, %v8705
      %v8708 = vunpack.c.l.s4 1983009808
      %v8709 = vunpack.c.0.s8 %v8708
      %v8710 = vlaneseq
      %v8711 = vshrl.u32 %v8710, 7
      %v8712 = vsub.s32 %v8709, %v8711
      %v8713 = vrot.slane %v8699, %v8712
      %v8714 = vcombine.high %v8706, %v8706
      %v8715 = vcombine.high %v8713, %v8713
      %v8716 = vcombine.high %v8480, %v8480
      %v8718 = vunpack.c.l.s4 1983009808
      %v8719 = vunpack.c.0.s8 %v8718
      %v8720 = vlaneseq
      %v8721 = vshrl.u32 %v8720, 7
      %v8722 = vsub.s32 %v8719, %v8721
      %v8723 = vrot.slane %v8480, %v8722
      %v8725 = vunpack.c.l.s4 1983009808
      %v8726 = vunpack.c.0.s8 %v8725
      %v8727 = vlaneseq
      %v8728 = vshrl.u32 %v8727, 7
      %v8729 = vsub.s32 %v8726, %v8728
      %v8730 = vrot.slane %v8716, %v8729
      %v8731 = vcombine.high %v8723, %v8723
      %v8732 = vcombine.high %v8730, %v8730
      %v8733 = vcombine.high %v8483, %v8483
      %v8735 = vunpack.c.l.s4 1983009808
      %v8736 = vunpack.c.0.s8 %v8735
      %v8737 = vlaneseq
      %v8738 = vshrl.u32 %v8737, 7
      %v8739 = vsub.s32 %v8736, %v8738
      %v8740 = vrot.slane %v8483, %v8739
      %v8742 = vunpack.c.l.s4 1983009808
      %v8743 = vunpack.c.0.s8 %v8742
      %v8744 = vlaneseq
      %v8745 = vshrl.u32 %v8744, 7
      %v8746 = vsub.s32 %v8743, %v8745
      %v8747 = vrot.slane %v8733, %v8746
      %v8748 = vcombine.high %v8740, %v8740
      %v8749 = vcombine.high %v8747, %v8747
      %v8750 = vcombine.high %v8488, %v8488
      %v8752 = vunpack.c.l.s4 1983009808
      %v8753 = vunpack.c.0.s8 %v8752
      %v8754 = vlaneseq
      %v8755 = vshrl.u32 %v8754, 7
      %v8756 = vsub.s32 %v8753, %v8755
      %v8757 = vrot.slane %v8488, %v8756
      %v8759 = vunpack.c.l.s4 1983009808
      %v8760 = vunpack.c.0.s8 %v8759
      %v8761 = vlaneseq
      %v8762 = vshrl.u32 %v8761, 7
      %v8763 = vsub.s32 %v8760, %v8762
      %v8764 = vrot.slane %v8750, %v8763
      %v8765 = vcombine.high %v8757, %v8757
      %v8766 = vcombine.high %v8764, %v8764
      %v8767 = vcombine.high %v8491, %v8491
      %v8769 = vunpack.c.l.s4 1983009808
      %v8770 = vunpack.c.0.s8 %v8769
      %v8771 = vlaneseq
      %v8772 = vshrl.u32 %v8771, 7
      %v8773 = vsub.s32 %v8770, %v8772
      %v8774 = vrot.slane %v8491, %v8773
      %v8776 = vunpack.c.l.s4 1983009808
      %v8777 = vunpack.c.0.s8 %v8776
      %v8778 = vlaneseq
      %v8779 = vshrl.u32 %v8778, 7
      %v8780 = vsub.s32 %v8777, %v8779
      %v8781 = vrot.slane %v8767, %v8780
      %v8782 = vcombine.high %v8774, %v8774
      %v8783 = vcombine.high %v8781, %v8781
      %v8784 = vcombine.high %v8496, %v8496
      %v8786 = vunpack.c.l.s4 1983009808
      %v8787 = vunpack.c.0.s8 %v8786
      %v8788 = vlaneseq
      %v8789 = vshrl.u32 %v8788, 7
      %v8790 = vsub.s32 %v8787, %v8789
      %v8791 = vrot.slane %v8496, %v8790
      %v8793 = vunpack.c.l.s4 1983009808
      %v8794 = vunpack.c.0.s8 %v8793
      %v8795 = vlaneseq
      %v8796 = vshrl.u32 %v8795, 7
      %v8797 = vsub.s32 %v8794, %v8796
      %v8798 = vrot.slane %v8784, %v8797
      %v8799 = vcombine.high %v8791, %v8791
      %v8800 = vcombine.high %v8798, %v8798
      %v8801 = vcombine.high %v8499, %v8499
      %v8803 = vunpack.c.l.s4 1983009808
      %v8804 = vunpack.c.0.s8 %v8803
      %v8805 = vlaneseq
      %v8806 = vshrl.u32 %v8805, 7
      %v8807 = vsub.s32 %v8804, %v8806
      %v8808 = vrot.slane %v8499, %v8807
      %v8810 = vunpack.c.l.s4 1983009808
      %v8811 = vunpack.c.0.s8 %v8810
      %v8812 = vlaneseq
      %v8813 = vshrl.u32 %v8812, 7
      %v8814 = vsub.s32 %v8811, %v8813
      %v8815 = vrot.slane %v8801, %v8814
      %v8816 = vcombine.high %v8808, %v8808
      %v8817 = vcombine.high %v8815, %v8815
      %v8818 = vcombine.high %v8504, %v8504
      %v8820 = vunpack.c.l.s4 1983009808
      %v8821 = vunpack.c.0.s8 %v8820
      %v8822 = vlaneseq
      %v8823 = vshrl.u32 %v8822, 7
      %v8824 = vsub.s32 %v8821, %v8823
      %v8825 = vrot.slane %v8504, %v8824
      %v8827 = vunpack.c.l.s4 1983009808
      %v8828 = vunpack.c.0.s8 %v8827
      %v8829 = vlaneseq
      %v8830 = vshrl.u32 %v8829, 7
      %v8831 = vsub.s32 %v8828, %v8830
      %v8832 = vrot.slane %v8818, %v8831
      %v8833 = vcombine.high %v8825, %v8825
      %v8834 = vcombine.high %v8832, %v8832
      %v8835 = vcombine.high %v8507, %v8507
      %v8837 = vunpack.c.l.s4 1983009808
      %v8838 = vunpack.c.0.s8 %v8837
      %v8839 = vlaneseq
      %v8840 = vshrl.u32 %v8839, 7
      %v8841 = vsub.s32 %v8838, %v8840
      %v8842 = vrot.slane %v8507, %v8841
      %v8844 = vunpack.c.l.s4 1983009808
      %v8845 = vunpack.c.0.s8 %v8844
      %v8846 = vlaneseq
      %v8847 = vshrl.u32 %v8846, 7
      %v8848 = vsub.s32 %v8845, %v8847
      %v8849 = vrot.slane %v8835, %v8848
      %v8850 = vcombine.high %v8842, %v8842
      %v8851 = vcombine.high %v8849, %v8849
      %v8852 = vcombine.high %v8512, %v8512
      %v8854 = vunpack.c.l.s4 1983009808
      %v8855 = vunpack.c.0.s8 %v8854
      %v8856 = vlaneseq
      %v8857 = vshrl.u32 %v8856, 7
      %v8858 = vsub.s32 %v8855, %v8857
      %v8859 = vrot.slane %v8512, %v8858
      %v8861 = vunpack.c.l.s4 1983009808
      %v8862 = vunpack.c.0.s8 %v8861
      %v8863 = vlaneseq
      %v8864 = vshrl.u32 %v8863, 7
      %v8865 = vsub.s32 %v8862, %v8864
      %v8866 = vrot.slane %v8852, %v8865
      %v8867 = vcombine.high %v8859, %v8859
      %v8868 = vcombine.high %v8866, %v8866
      %v8869 = vcombine.high %v8515, %v8515
      %v8871 = vunpack.c.l.s4 1983009808
      %v8872 = vunpack.c.0.s8 %v8871
      %v8873 = vlaneseq
      %v8874 = vshrl.u32 %v8873, 7
      %v8875 = vsub.s32 %v8872, %v8874
      %v8876 = vrot.slane %v8515, %v8875
      %v8878 = vunpack.c.l.s4 1983009808
      %v8879 = vunpack.c.0.s8 %v8878
      %v8880 = vlaneseq
      %v8881 = vshrl.u32 %v8880, 7
      %v8882 = vsub.s32 %v8879, %v8881
      %v8883 = vrot.slane %v8869, %v8882
      %v8884 = vcombine.high %v8876, %v8876
      %v8885 = vcombine.high %v8883, %v8883
      %v8886 = vcombine.high %v8520, %v8520
      %v8888 = vunpack.c.l.s4 1983009808
      %v8889 = vunpack.c.0.s8 %v8888
      %v8890 = vlaneseq
      %v8891 = vshrl.u32 %v8890, 7
      %v8892 = vsub.s32 %v8889, %v8891
      %v8893 = vrot.slane %v8520, %v8892
      %v8895 = vunpack.c.l.s4 1983009808
      %v8896 = vunpack.c.0.s8 %v8895
      %v8897 = vlaneseq
      %v8898 = vshrl.u32 %v8897, 7
      %v8899 = vsub.s32 %v8896, %v8898
      %v8900 = vrot.slane %v8886, %v8899
      %v8901 = vcombine.high %v8893, %v8893
      %v8902 = vcombine.high %v8900, %v8900
      %v8903 = vcombine.high %v8523, %v8523
      %v8905 = vunpack.c.l.s4 1983009808
      %v8906 = vunpack.c.0.s8 %v8905
      %v8907 = vlaneseq
      %v8908 = vshrl.u32 %v8907, 7
      %v8909 = vsub.s32 %v8906, %v8908
      %v8910 = vrot.slane %v8523, %v8909
      %v8912 = vunpack.c.l.s4 1983009808
      %v8913 = vunpack.c.0.s8 %v8912
      %v8914 = vlaneseq
      %v8915 = vshrl.u32 %v8914, 7
      %v8916 = vsub.s32 %v8913, %v8915
      %v8917 = vrot.slane %v8903, %v8916
      %v8918 = vcombine.high %v8910, %v8910
      %v8919 = vcombine.high %v8917, %v8917
      %v8920 = vcombine.high %v8528, %v8528
      %v8922 = vunpack.c.l.s4 1983009808
      %v8923 = vunpack.c.0.s8 %v8922
      %v8924 = vlaneseq
      %v8925 = vshrl.u32 %v8924, 7
      %v8926 = vsub.s32 %v8923, %v8925
      %v8927 = vrot.slane %v8528, %v8926
      %v8929 = vunpack.c.l.s4 1983009808
      %v8930 = vunpack.c.0.s8 %v8929
      %v8931 = vlaneseq
      %v8932 = vshrl.u32 %v8931, 7
      %v8933 = vsub.s32 %v8930, %v8932
      %v8934 = vrot.slane %v8920, %v8933
      %v8935 = vcombine.high %v8927, %v8927
      %v8936 = vcombine.high %v8934, %v8934
      %v8937 = vcombine.high %v8531, %v8531
      %v8939 = vunpack.c.l.s4 1983009808
      %v8940 = vunpack.c.0.s8 %v8939
      %v8941 = vlaneseq
      %v8942 = vshrl.u32 %v8941, 7
      %v8943 = vsub.s32 %v8940, %v8942
      %v8944 = vrot.slane %v8531, %v8943
      %v8946 = vunpack.c.l.s4 1983009808
      %v8947 = vunpack.c.0.s8 %v8946
      %v8948 = vlaneseq
      %v8949 = vshrl.u32 %v8948, 7
      %v8950 = vsub.s32 %v8947, %v8949
      %v8951 = vrot.slane %v8937, %v8950
      %v8952 = vcombine.high %v8944, %v8944
      %v8953 = vcombine.high %v8951, %v8951
      %v8954 = vcombine.high %v8536, %v8536
      %v8956 = vunpack.c.l.s4 1983009808
      %v8957 = vunpack.c.0.s8 %v8956
      %v8958 = vlaneseq
      %v8959 = vshrl.u32 %v8958, 7
      %v8960 = vsub.s32 %v8957, %v8959
      %v8961 = vrot.slane %v8536, %v8960
      %v8963 = vunpack.c.l.s4 1983009808
      %v8964 = vunpack.c.0.s8 %v8963
      %v8965 = vlaneseq
      %v8966 = vshrl.u32 %v8965, 7
      %v8967 = vsub.s32 %v8964, %v8966
      %v8968 = vrot.slane %v8954, %v8967
      %v8969 = vcombine.high %v8961, %v8961
      %v8970 = vcombine.high %v8968, %v8968
      %v8971 = vcombine.high %v8539, %v8539
      %v8973 = vunpack.c.l.s4 1983009808
      %v8974 = vunpack.c.0.s8 %v8973
      %v8975 = vlaneseq
      %v8976 = vshrl.u32 %v8975, 7
      %v8977 = vsub.s32 %v8974, %v8976
      %v8978 = vrot.slane %v8539, %v8977
      %v8980 = vunpack.c.l.s4 1983009808
      %v8981 = vunpack.c.0.s8 %v8980
      %v8982 = vlaneseq
      %v8983 = vshrl.u32 %v8982, 7
      %v8984 = vsub.s32 %v8981, %v8983
      %v8985 = vrot.slane %v8971, %v8984
      %v8986 = vcombine.high %v8978, %v8978
      %v8987 = vcombine.high %v8985, %v8985
      %v8988 = vcombine.high %v8544, %v8544
      %v8990 = vunpack.c.l.s4 1983009808
      %v8991 = vunpack.c.0.s8 %v8990
      %v8992 = vlaneseq
      %v8993 = vshrl.u32 %v8992, 7
      %v8994 = vsub.s32 %v8991, %v8993
      %v8995 = vrot.slane %v8544, %v8994
      %v8997 = vunpack.c.l.s4 1983009808
      %v8998 = vunpack.c.0.s8 %v8997
      %v8999 = vlaneseq
      %v9000 = vshrl.u32 %v8999, 7
      %v9001 = vsub.s32 %v8998, %v9000
      %v9002 = vrot.slane %v8988, %v9001
      %v9003 = vcombine.high %v8995, %v8995
      %v9004 = vcombine.high %v9002, %v9002
      %v9005 = vcombine.high %v8547, %v8547
      %v9007 = vunpack.c.l.s4 1983009808
      %v9008 = vunpack.c.0.s8 %v9007
      %v9009 = vlaneseq
      %v9010 = vshrl.u32 %v9009, 7
      %v9011 = vsub.s32 %v9008, %v9010
      %v9012 = vrot.slane %v8547, %v9011
      %v9014 = vunpack.c.l.s4 1983009808
      %v9015 = vunpack.c.0.s8 %v9014
      %v9016 = vlaneseq
      %v9017 = vshrl.u32 %v9016, 7
      %v9018 = vsub.s32 %v9015, %v9017
      %v9019 = vrot.slane %v9005, %v9018
      %v9020 = vcombine.high %v9012, %v9012
      %v9021 = vcombine.high %v9019, %v9019
      %v9022 = vcombine.high %v8552, %v8552
      %v9024 = vunpack.c.l.s4 1983009808
      %v9025 = vunpack.c.0.s8 %v9024
      %v9026 = vlaneseq
      %v9027 = vshrl.u32 %v9026, 7
      %v9028 = vsub.s32 %v9025, %v9027
      %v9029 = vrot.slane %v8552, %v9028
      %v9031 = vunpack.c.l.s4 1983009808
      %v9032 = vunpack.c.0.s8 %v9031
      %v9033 = vlaneseq
      %v9034 = vshrl.u32 %v9033, 7
      %v9035 = vsub.s32 %v9032, %v9034
      %v9036 = vrot.slane %v9022, %v9035
      %v9037 = vcombine.high %v9029, %v9029
      %v9038 = vcombine.high %v9036, %v9036
      %v9039 = vcombine.high %v8555, %v8555
      %v9041 = vunpack.c.l.s4 1983009808
      %v9042 = vunpack.c.0.s8 %v9041
      %v9043 = vlaneseq
      %v9044 = vshrl.u32 %v9043, 7
      %v9045 = vsub.s32 %v9042, %v9044
      %v9046 = vrot.slane %v8555, %v9045
      %v9048 = vunpack.c.l.s4 1983009808
      %v9049 = vunpack.c.0.s8 %v9048
      %v9050 = vlaneseq
      %v9051 = vshrl.u32 %v9050, 7
      %v9052 = vsub.s32 %v9049, %v9051
      %v9053 = vrot.slane %v9039, %v9052
      %v9054 = vcombine.high %v9046, %v9046
      %v9055 = vcombine.high %v9053, %v9053
      %v9056 = vcombine.high %v8560, %v8560
      %v9058 = vunpack.c.l.s4 1983009808
      %v9059 = vunpack.c.0.s8 %v9058
      %v9060 = vlaneseq
      %v9061 = vshrl.u32 %v9060, 7
      %v9062 = vsub.s32 %v9059, %v9061
      %v9063 = vrot.slane %v8560, %v9062
      %v9065 = vunpack.c.l.s4 1983009808
      %v9066 = vunpack.c.0.s8 %v9065
      %v9067 = vlaneseq
      %v9068 = vshrl.u32 %v9067, 7
      %v9069 = vsub.s32 %v9066, %v9068
      %v9070 = vrot.slane %v9056, %v9069
      %v9071 = vcombine.high %v9063, %v9063
      %v9072 = vcombine.high %v9070, %v9070
      %v9073 = vcombine.high %v8563, %v8563
      %v9075 = vunpack.c.l.s4 1983009808
      %v9076 = vunpack.c.0.s8 %v9075
      %v9077 = vlaneseq
      %v9078 = vshrl.u32 %v9077, 7
      %v9079 = vsub.s32 %v9076, %v9078
      %v9080 = vrot.slane %v8563, %v9079
      %v9082 = vunpack.c.l.s4 1983009808
      %v9083 = vunpack.c.0.s8 %v9082
      %v9084 = vlaneseq
      %v9085 = vshrl.u32 %v9084, 7
      %v9086 = vsub.s32 %v9083, %v9085
      %v9087 = vrot.slane %v9073, %v9086
      %v9088 = vcombine.high %v9080, %v9080
      %v9089 = vcombine.high %v9087, %v9087
      %v9090 = vcombine.high %v8568, %v8568
      %v9092 = vunpack.c.l.s4 1983009808
      %v9093 = vunpack.c.0.s8 %v9092
      %v9094 = vlaneseq
      %v9095 = vshrl.u32 %v9094, 7
      %v9096 = vsub.s32 %v9093, %v9095
      %v9097 = vrot.slane %v8568, %v9096
      %v9099 = vunpack.c.l.s4 1983009808
      %v9100 = vunpack.c.0.s8 %v9099
      %v9101 = vlaneseq
      %v9102 = vshrl.u32 %v9101, 7
      %v9103 = vsub.s32 %v9100, %v9102
      %v9104 = vrot.slane %v9090, %v9103
      %v9105 = vcombine.high %v9097, %v9097
      %v9106 = vcombine.high %v9104, %v9104
      %v9107 = vcombine.high %v8571, %v8571
      %v9109 = vunpack.c.l.s4 1983009808
      %v9110 = vunpack.c.0.s8 %v9109
      %v9111 = vlaneseq
      %v9112 = vshrl.u32 %v9111, 7
      %v9113 = vsub.s32 %v9110, %v9112
      %v9114 = vrot.slane %v8571, %v9113
      %v9116 = vunpack.c.l.s4 1983009808
      %v9117 = vunpack.c.0.s8 %v9116
      %v9118 = vlaneseq
      %v9119 = vshrl.u32 %v9118, 7
      %v9120 = vsub.s32 %v9117, %v9119
      %v9121 = vrot.slane %v9107, %v9120
      %v9122 = vcombine.high %v9114, %v9114
      %v9123 = vcombine.high %v9121, %v9121
      %v9124 = vcombine.high %v8576, %v8576
      %v9126 = vunpack.c.l.s4 1983009808
      %v9127 = vunpack.c.0.s8 %v9126
      %v9128 = vlaneseq
      %v9129 = vshrl.u32 %v9128, 7
      %v9130 = vsub.s32 %v9127, %v9129
      %v9131 = vrot.slane %v8576, %v9130
      %v9133 = vunpack.c.l.s4 1983009808
      %v9134 = vunpack.c.0.s8 %v9133
      %v9135 = vlaneseq
      %v9136 = vshrl.u32 %v9135, 7
      %v9137 = vsub.s32 %v9134, %v9136
      %v9138 = vrot.slane %v9124, %v9137
      %v9139 = vcombine.high %v9131, %v9131
      %v9140 = vcombine.high %v9138, %v9138
      %v9141 = vcombine.high %v8579, %v8579
      %v9143 = vunpack.c.l.s4 1983009808
      %v9144 = vunpack.c.0.s8 %v9143
      %v9145 = vlaneseq
      %v9146 = vshrl.u32 %v9145, 7
      %v9147 = vsub.s32 %v9144, %v9146
      %v9148 = vrot.slane %v8579, %v9147
      %v9150 = vunpack.c.l.s4 1983009808
      %v9151 = vunpack.c.0.s8 %v9150
      %v9152 = vlaneseq
      %v9153 = vshrl.u32 %v9152, 7
      %v9154 = vsub.s32 %v9151, %v9153
      %v9155 = vrot.slane %v9141, %v9154
      %v9156 = vcombine.high %v9148, %v9148
      %v9157 = vcombine.high %v9155, %v9155
      %v9286 = vrot.slane %v8621, 7
      %v9287 = vrot.slane %v9286, 2
      %v9288 = vrot.slane %v8629, 7
      %v9289 = vrot.slane %v9288, 2
      %v9290 = vrot.slane %v8628, 7
      %v9291 = vrot.slane %v9290, 2
      %v9292 = vrot.slane %v8630, 7
      %v9293 = vrot.slane %v9292, 2
      %v9294 = vrot.slane %v8638, 7
      %v9295 = vrot.slane %v9294, 2
      %v9296 = vrot.slane %v8646, 7
      %v9297 = vrot.slane %v9296, 2
      %v9298 = vrot.slane %v8645, 7
      %v9299 = vrot.slane %v9298, 2
      %v9300 = vrot.slane %v8647, 7
      %v9301 = vrot.slane %v9300, 2
      %v9302 = vrot.slane %v8655, 7
      %v9303 = vrot.slane %v9302, 2
      %v9304 = vrot.slane %v8663, 7
      %v9305 = vrot.slane %v9304, 2
      %v9306 = vrot.slane %v8662, 7
      %v9307 = vrot.slane %v9306, 2
      %v9308 = vrot.slane %v8664, 7
      %v9309 = vrot.slane %v9308, 2
      %v9310 = vrot.slane %v8672, 7
      %v9311 = vrot.slane %v9310, 2
      %v9312 = vrot.slane %v8680, 7
      %v9313 = vrot.slane %v9312, 2
      %v9314 = vrot.slane %v8679, 7
      %v9315 = vrot.slane %v9314, 2
      %v9316 = vrot.slane %v8681, 7
      %v9317 = vrot.slane %v9316, 2
      %v9318 = vrot.slane %v8689, 7
      %v9319 = vrot.slane %v9318, 2
      %v9320 = vrot.slane %v8697, 7
      %v9321 = vrot.slane %v9320, 2
      %v9322 = vrot.slane %v8696, 7
      %v9323 = vrot.slane %v9322, 2
      %v9324 = vrot.slane %v8698, 7
      %v9325 = vrot.slane %v9324, 2
      %v9326 = vrot.slane %v8706, 7
      %v9327 = vrot.slane %v9326, 2
      %v9328 = vrot.slane %v8714, 7
      %v9329 = vrot.slane %v9328, 2
      %v9330 = vrot.slane %v8713, 7
      %v9331 = vrot.slane %v9330, 2
      %v9332 = vrot.slane %v8715, 7
      %v9333 = vrot.slane %v9332, 2
      %v9334 = vrot.slane %v8723, 7
      %v9335 = vrot.slane %v9334, 2
      %v9336 = vrot.slane %v8731, 7
      %v9337 = vrot.slane %v9336, 2
      %v9338 = vrot.slane %v8730, 7
      %v9339 = vrot.slane %v9338, 2
      %v9340 = vrot.slane %v8732, 7
      %v9341 = vrot.slane %v9340, 2
      %v9342 = vrot.slane %v8740, 7
      %v9343 = vrot.slane %v9342, 2
      %v9344 = vrot.slane %v8748, 7
      %v9345 = vrot.slane %v9344, 2
      %v9346 = vrot.slane %v8747, 7
      %v9347 = vrot.slane %v9346, 2
      %v9348 = vrot.slane %v8749, 7
      %v9349 = vrot.slane %v9348, 2
      %v9350 = vrot.slane %v8757, 7
      %v9351 = vrot.slane %v9350, 2
      %v9352 = vrot.slane %v8765, 7
      %v9353 = vrot.slane %v9352, 2
      %v9354 = vrot.slane %v8764, 7
      %v9355 = vrot.slane %v9354, 2
      %v9356 = vrot.slane %v8766, 7
      %v9357 = vrot.slane %v9356, 2
      %v9358 = vrot.slane %v8774, 7
      %v9359 = vrot.slane %v9358, 2
      %v9360 = vrot.slane %v8782, 7
      %v9361 = vrot.slane %v9360, 2
      %v9362 = vrot.slane %v8781, 7
      %v9363 = vrot.slane %v9362, 2
      %v9364 = vrot.slane %v8783, 7
      %v9365 = vrot.slane %v9364, 2
      %v9366 = vrot.slane %v8791, 7
      %v9367 = vrot.slane %v9366, 2
      %v9368 = vrot.slane %v8799, 7
      %v9369 = vrot.slane %v9368, 2
      %v9370 = vrot.slane %v8798, 7
      %v9371 = vrot.slane %v9370, 2
      %v9372 = vrot.slane %v8800, 7
      %v9373 = vrot.slane %v9372, 2
      %v9374 = vrot.slane %v8808, 7
      %v9375 = vrot.slane %v9374, 2
      %v9376 = vrot.slane %v8816, 7
      %v9377 = vrot.slane %v9376, 2
      %v9378 = vrot.slane %v8815, 7
      %v9379 = vrot.slane %v9378, 2
      %v9380 = vrot.slane %v8817, 7
      %v9381 = vrot.slane %v9380, 2
      %v9382 = vrot.slane %v8825, 7
      %v9383 = vrot.slane %v9382, 2
      %v9384 = vrot.slane %v8833, 7
      %v9385 = vrot.slane %v9384, 2
      %v9386 = vrot.slane %v8832, 7
      %v9387 = vrot.slane %v9386, 2
      %v9388 = vrot.slane %v8834, 7
      %v9389 = vrot.slane %v9388, 2
      %v9390 = vrot.slane %v8842, 7
      %v9391 = vrot.slane %v9390, 2
      %v9392 = vrot.slane %v8850, 7
      %v9393 = vrot.slane %v9392, 2
      %v9394 = vrot.slane %v8849, 7
      %v9395 = vrot.slane %v9394, 2
      %v9396 = vrot.slane %v8851, 7
      %v9397 = vrot.slane %v9396, 2
      %v9398 = vrot.slane %v8859, 7
      %v9399 = vrot.slane %v9398, 2
      %v9400 = vrot.slane %v8867, 7
      %v9401 = vrot.slane %v9400, 2
      %v9402 = vrot.slane %v8866, 7
      %v9403 = vrot.slane %v9402, 2
      %v9404 = vrot.slane %v8868, 7
      %v9405 = vrot.slane %v9404, 2
      %v9406 = vrot.slane %v8876, 7
      %v9407 = vrot.slane %v9406, 2
      %v9408 = vrot.slane %v8884, 7
      %v9409 = vrot.slane %v9408, 2
      %v9410 = vrot.slane %v8883, 7
      %v9411 = vrot.slane %v9410, 2
      %v9412 = vrot.slane %v8885, 7
      %v9413 = vrot.slane %v9412, 2
      %v9414 = vrot.slane %v8893, 7
      %v9415 = vrot.slane %v9414, 2
      %v9416 = vrot.slane %v8901, 7
      %v9417 = vrot.slane %v9416, 2
      %v9418 = vrot.slane %v8900, 7
      %v9419 = vrot.slane %v9418, 2
      %v9420 = vrot.slane %v8902, 7
      %v9421 = vrot.slane %v9420, 2
      %v9422 = vrot.slane %v8910, 7
      %v9423 = vrot.slane %v9422, 2
      %v9424 = vrot.slane %v8918, 7
      %v9425 = vrot.slane %v9424, 2
      %v9426 = vrot.slane %v8917, 7
      %v9427 = vrot.slane %v9426, 2
      %v9428 = vrot.slane %v8919, 7
      %v9429 = vrot.slane %v9428, 2
      %v9430 = vrot.slane %v8927, 7
      %v9431 = vrot.slane %v9430, 2
      %v9432 = vrot.slane %v8935, 7
      %v9433 = vrot.slane %v9432, 2
      %v9434 = vrot.slane %v8934, 7
      %v9435 = vrot.slane %v9434, 2
      %v9436 = vrot.slane %v8936, 7
      %v9437 = vrot.slane %v9436, 2
      %v9438 = vrot.slane %v8944, 7
      %v9439 = vrot.slane %v9438, 2
      %v9440 = vrot.slane %v8952, 7
      %v9441 = vrot.slane %v9440, 2
      %v9442 = vrot.slane %v8951, 7
      %v9443 = vrot.slane %v9442, 2
      %v9444 = vrot.slane %v8953, 7
      %v9445 = vrot.slane %v9444, 2
      %v9446 = vrot.slane %v8961, 7
      %v9447 = vrot.slane %v9446, 2
      %v9448 = vrot.slane %v8969, 7
      %v9449 = vrot.slane %v9448, 2
      %v9450 = vrot.slane %v8968, 7
      %v9451 = vrot.slane %v9450, 2
      %v9452 = vrot.slane %v8970, 7
      %v9453 = vrot.slane %v9452, 2
      %v9454 = vrot.slane %v8978, 7
      %v9455 = vrot.slane %v9454, 2
      %v9456 = vrot.slane %v8986, 7
      %v9457 = vrot.slane %v9456, 2
      %v9458 = vrot.slane %v8985, 7
      %v9459 = vrot.slane %v9458, 2
      %v9460 = vrot.slane %v8987, 7
      %v9461 = vrot.slane %v9460, 2
      %v9462 = vrot.slane %v8995, 7
      %v9463 = vrot.slane %v9462, 2
      %v9464 = vrot.slane %v9003, 7
      %v9465 = vrot.slane %v9464, 2
      %v9466 = vrot.slane %v9002, 7
      %v9467 = vrot.slane %v9466, 2
      %v9468 = vrot.slane %v9004, 7
      %v9469 = vrot.slane %v9468, 2
      %v9470 = vrot.slane %v9012, 7
      %v9471 = vrot.slane %v9470, 2
      %v9472 = vrot.slane %v9020, 7
      %v9473 = vrot.slane %v9472, 2
      %v9474 = vrot.slane %v9019, 7
      %v9475 = vrot.slane %v9474, 2
      %v9476 = vrot.slane %v9021, 7
      %v9477 = vrot.slane %v9476, 2
      %v9478 = vrot.slane %v9029, 7
      %v9479 = vrot.slane %v9478, 2
      %v9480 = vrot.slane %v9037, 7
      %v9481 = vrot.slane %v9480, 2
      %v9482 = vrot.slane %v9036, 7
      %v9483 = vrot.slane %v9482, 2
      %v9484 = vrot.slane %v9038, 7
      %v9485 = vrot.slane %v9484, 2
      %v9486 = vrot.slane %v9046, 7
      %v9487 = vrot.slane %v9486, 2
      %v9488 = vrot.slane %v9054, 7
      %v9489 = vrot.slane %v9488, 2
      %v9490 = vrot.slane %v9053, 7
      %v9491 = vrot.slane %v9490, 2
      %v9492 = vrot.slane %v9055, 7
      %v9493 = vrot.slane %v9492, 2
      %v9494 = vrot.slane %v9063, 7
      %v9495 = vrot.slane %v9494, 2
      %v9496 = vrot.slane %v9071, 7
      %v9497 = vrot.slane %v9496, 2
      %v9498 = vrot.slane %v9070, 7
      %v9499 = vrot.slane %v9498, 2
      %v9500 = vrot.slane %v9072, 7
      %v9501 = vrot.slane %v9500, 2
      %v9502 = vrot.slane %v9080, 7
      %v9503 = vrot.slane %v9502, 2
      %v9504 = vrot.slane %v9088, 7
      %v9505 = vrot.slane %v9504, 2
      %v9506 = vrot.slane %v9087, 7
      %v9507 = vrot.slane %v9506, 2
      %v9508 = vrot.slane %v9089, 7
      %v9509 = vrot.slane %v9508, 2
      %v9510 = vrot.slane %v9097, 7
      %v9511 = vrot.slane %v9510, 2
      %v9512 = vrot.slane %v9105, 7
      %v9513 = vrot.slane %v9512, 2
      %v9514 = vrot.slane %v9104, 7
      %v9515 = vrot.slane %v9514, 2
      %v9516 = vrot.slane %v9106, 7
      %v9517 = vrot.slane %v9516, 2
      %v9518 = vrot.slane %v9114, 7
      %v9519 = vrot.slane %v9518, 2
      %v9520 = vrot.slane %v9122, 7
      %v9521 = vrot.slane %v9520, 2
      %v9522 = vrot.slane %v9121, 7
      %v9523 = vrot.slane %v9522, 2
      %v9524 = vrot.slane %v9123, 7
      %v9525 = vrot.slane %v9524, 2
      %v9526 = vrot.slane %v9131, 7
      %v9527 = vrot.slane %v9526, 2
      %v9528 = vrot.slane %v9139, 7
      %v9529 = vrot.slane %v9528, 2
      %v9530 = vrot.slane %v9138, 7
      %v9531 = vrot.slane %v9530, 2
      %v9532 = vrot.slane %v9140, 7
      %v9533 = vrot.slane %v9532, 2
      %v9534 = vrot.slane %v9148, 7
      %v9535 = vrot.slane %v9534, 2
      %v9536 = vrot.slane %v9156, 7
      %v9537 = vrot.slane %v9536, 2
      %v9538 = vrot.slane %v9155, 7
      %v9539 = vrot.slane %v9538, 2
      %v9540 = vrot.slane %v9157, 7
      %v9541 = vrot.slane %v9540, 2
      %v9670 = vadd.f32 %v8621, %v9287
      %v9671 = vadd.f32 %v8629, %v9289
      %v9672 = vadd.f32 %v8628, %v9291
      %v9673 = vadd.f32 %v8630, %v9293
      %v9674 = vadd.f32 %v8638, %v9295
      %v9675 = vadd.f32 %v8646, %v9297
      %v9676 = vadd.f32 %v8645, %v9299
      %v9677 = vadd.f32 %v8647, %v9301
      %v9678 = vadd.f32 %v8655, %v9303
      %v9679 = vadd.f32 %v8663, %v9305
      %v9680 = vadd.f32 %v8662, %v9307
      %v9681 = vadd.f32 %v8664, %v9309
      %v9682 = vadd.f32 %v8672, %v9311
      %v9683 = vadd.f32 %v8680, %v9313
      %v9684 = vadd.f32 %v8679, %v9315
      %v9685 = vadd.f32 %v8681, %v9317
      %v9686 = vadd.f32 %v8689, %v9319
      %v9687 = vadd.f32 %v8697, %v9321
      %v9688 = vadd.f32 %v8696, %v9323
      %v9689 = vadd.f32 %v8698, %v9325
      %v9690 = vadd.f32 %v8706, %v9327
      %v9691 = vadd.f32 %v8714, %v9329
      %v9692 = vadd.f32 %v8713, %v9331
      %v9693 = vadd.f32 %v8715, %v9333
      %v9694 = vadd.f32 %v8723, %v9335
      %v9695 = vadd.f32 %v8731, %v9337
      %v9696 = vadd.f32 %v8730, %v9339
      %v9697 = vadd.f32 %v8732, %v9341
      %v9698 = vadd.f32 %v8740, %v9343
      %v9699 = vadd.f32 %v8748, %v9345
      %v9700 = vadd.f32 %v8747, %v9347
      %v9701 = vadd.f32 %v8749, %v9349
      %v9702 = vadd.f32 %v8757, %v9351
      %v9703 = vadd.f32 %v8765, %v9353
      %v9704 = vadd.f32 %v8764, %v9355
      %v9705 = vadd.f32 %v8766, %v9357
      %v9706 = vadd.f32 %v8774, %v9359
      %v9707 = vadd.f32 %v8782, %v9361
      %v9708 = vadd.f32 %v8781, %v9363
      %v9709 = vadd.f32 %v8783, %v9365
      %v9710 = vadd.f32 %v8791, %v9367
      %v9711 = vadd.f32 %v8799, %v9369
      %v9712 = vadd.f32 %v8798, %v9371
      %v9713 = vadd.f32 %v8800, %v9373
      %v9714 = vadd.f32 %v8808, %v9375
      %v9715 = vadd.f32 %v8816, %v9377
      %v9716 = vadd.f32 %v8815, %v9379
      %v9717 = vadd.f32 %v8817, %v9381
      %v9718 = vadd.f32 %v8825, %v9383
      %v9719 = vadd.f32 %v8833, %v9385
      %v9720 = vadd.f32 %v8832, %v9387
      %v9721 = vadd.f32 %v8834, %v9389
      %v9722 = vadd.f32 %v8842, %v9391
      %v9723 = vadd.f32 %v8850, %v9393
      %v9724 = vadd.f32 %v8849, %v9395
      %v9725 = vadd.f32 %v8851, %v9397
      %v9726 = vadd.f32 %v8859, %v9399
      %v9727 = vadd.f32 %v8867, %v9401
      %v9728 = vadd.f32 %v8866, %v9403
      %v9729 = vadd.f32 %v8868, %v9405
      %v9730 = vadd.f32 %v8876, %v9407
      %v9731 = vadd.f32 %v8884, %v9409
      %v9732 = vadd.f32 %v8883, %v9411
      %v9733 = vadd.f32 %v8885, %v9413
      %v9734 = vadd.f32 %v8893, %v9415
      %v9735 = vadd.f32 %v8901, %v9417
      %v9736 = vadd.f32 %v8900, %v9419
      %v9737 = vadd.f32 %v8902, %v9421
      %v9738 = vadd.f32 %v8910, %v9423
      %v9739 = vadd.f32 %v8918, %v9425
      %v9740 = vadd.f32 %v8917, %v9427
      %v9741 = vadd.f32 %v8919, %v9429
      %v9742 = vadd.f32 %v8927, %v9431
      %v9743 = vadd.f32 %v8935, %v9433
      %v9744 = vadd.f32 %v8934, %v9435
      %v9745 = vadd.f32 %v8936, %v9437
      %v9746 = vadd.f32 %v8944, %v9439
      %v9747 = vadd.f32 %v8952, %v9441
      %v9748 = vadd.f32 %v8951, %v9443
      %v9749 = vadd.f32 %v8953, %v9445
      %v9750 = vadd.f32 %v8961, %v9447
      %v9751 = vadd.f32 %v8969, %v9449
      %v9752 = vadd.f32 %v8968, %v9451
      %v9753 = vadd.f32 %v8970, %v9453
      %v9754 = vadd.f32 %v8978, %v9455
      %v9755 = vadd.f32 %v8986, %v9457
      %v9756 = vadd.f32 %v8985, %v9459
      %v9757 = vadd.f32 %v8987, %v9461
      %v9758 = vadd.f32 %v8995, %v9463
      %v9759 = vadd.f32 %v9003, %v9465
      %v9760 = vadd.f32 %v9002, %v9467
      %v9761 = vadd.f32 %v9004, %v9469
      %v9762 = vadd.f32 %v9012, %v9471
      %v9763 = vadd.f32 %v9020, %v9473
      %v9764 = vadd.f32 %v9019, %v9475
      %v9765 = vadd.f32 %v9021, %v9477
      %v9766 = vadd.f32 %v9029, %v9479
      %v9767 = vadd.f32 %v9037, %v9481
      %v9768 = vadd.f32 %v9036, %v9483
      %v9769 = vadd.f32 %v9038, %v9485
      %v9770 = vadd.f32 %v9046, %v9487
      %v9771 = vadd.f32 %v9054, %v9489
      %v9772 = vadd.f32 %v9053, %v9491
      %v9773 = vadd.f32 %v9055, %v9493
      %v9774 = vadd.f32 %v9063, %v9495
      %v9775 = vadd.f32 %v9071, %v9497
      %v9776 = vadd.f32 %v9070, %v9499
      %v9777 = vadd.f32 %v9072, %v9501
      %v9778 = vadd.f32 %v9080, %v9503
      %v9779 = vadd.f32 %v9088, %v9505
      %v9780 = vadd.f32 %v9087, %v9507
      %v9781 = vadd.f32 %v9089, %v9509
      %v9782 = vadd.f32 %v9097, %v9511
      %v9783 = vadd.f32 %v9105, %v9513
      %v9784 = vadd.f32 %v9104, %v9515
      %v9785 = vadd.f32 %v9106, %v9517
      %v9786 = vadd.f32 %v9114, %v9519
      %v9787 = vadd.f32 %v9122, %v9521
      %v9788 = vadd.f32 %v9121, %v9523
      %v9789 = vadd.f32 %v9123, %v9525
      %v9790 = vadd.f32 %v9131, %v9527
      %v9791 = vadd.f32 %v9139, %v9529
      %v9792 = vadd.f32 %v9138, %v9531
      %v9793 = vadd.f32 %v9140, %v9533
      %v9794 = vadd.f32 %v9148, %v9535
      %v9795 = vadd.f32 %v9156, %v9537
      %v9796 = vadd.f32 %v9155, %v9539
      %v9797 = vadd.f32 %v9157, %v9541
      %v9798 = vmul.f32 %v9670, 0.5
      %v9799 = vmul.f32 %v9671, 0.5
      %v9800 = vmul.f32 %v9672, 0.5
      %v9801 = vmul.f32 %v9673, 0.5
      %v9802 = vmul.f32 %v9674, 0.5
      %v9803 = vmul.f32 %v9675, 0.5
      %v9804 = vmul.f32 %v9676, 0.5
      %v9805 = vmul.f32 %v9677, 0.5
      %v9806 = vmul.f32 %v9678, 0.5
      %v9807 = vmul.f32 %v9679, 0.5
      %v9808 = vmul.f32 %v9680, 0.5
      %v9809 = vmul.f32 %v9681, 0.5
      %v9810 = vmul.f32 %v9682, 0.5
      %v9811 = vmul.f32 %v9683, 0.5
      %v9812 = vmul.f32 %v9684, 0.5
      %v9813 = vmul.f32 %v9685, 0.5
      %v9814 = vmul.f32 %v9686, 0.5
      %v9815 = vmul.f32 %v9687, 0.5
      %v9816 = vmul.f32 %v9688, 0.5
      %v9817 = vmul.f32 %v9689, 0.5
      %v9818 = vmul.f32 %v9690, 0.5
      %v9819 = vmul.f32 %v9691, 0.5
      %v9820 = vmul.f32 %v9692, 0.5
      %v9821 = vmul.f32 %v9693, 0.5
      %v9822 = vmul.f32 %v9694, 0.5
      %v9823 = vmul.f32 %v9695, 0.5
      %v9824 = vmul.f32 %v9696, 0.5
      %v9825 = vmul.f32 %v9697, 0.5
      %v9826 = vmul.f32 %v9698, 0.5
      %v9827 = vmul.f32 %v9699, 0.5
      %v9828 = vmul.f32 %v9700, 0.5
      %v9829 = vmul.f32 %v9701, 0.5
      %v9830 = vmul.f32 %v9702, 0.5
      %v9831 = vmul.f32 %v9703, 0.5
      %v9832 = vmul.f32 %v9704, 0.5
      %v9833 = vmul.f32 %v9705, 0.5
      %v9834 = vmul.f32 %v9706, 0.5
      %v9835 = vmul.f32 %v9707, 0.5
      %v9836 = vmul.f32 %v9708, 0.5
      %v9837 = vmul.f32 %v9709, 0.5
      %v9838 = vmul.f32 %v9710, 0.5
      %v9839 = vmul.f32 %v9711, 0.5
      %v9840 = vmul.f32 %v9712, 0.5
      %v9841 = vmul.f32 %v9713, 0.5
      %v9842 = vmul.f32 %v9714, 0.5
      %v9843 = vmul.f32 %v9715, 0.5
      %v9844 = vmul.f32 %v9716, 0.5
      %v9845 = vmul.f32 %v9717, 0.5
      %v9846 = vmul.f32 %v9718, 0.5
      %v9847 = vmul.f32 %v9719, 0.5
      %v9848 = vmul.f32 %v9720, 0.5
      %v9849 = vmul.f32 %v9721, 0.5
      %v9850 = vmul.f32 %v9722, 0.5
      %v9851 = vmul.f32 %v9723, 0.5
      %v9852 = vmul.f32 %v9724, 0.5
      %v9853 = vmul.f32 %v9725, 0.5
      %v9854 = vmul.f32 %v9726, 0.5
      %v9855 = vmul.f32 %v9727, 0.5
      %v9856 = vmul.f32 %v9728, 0.5
      %v9857 = vmul.f32 %v9729, 0.5
      %v9858 = vmul.f32 %v9730, 0.5
      %v9859 = vmul.f32 %v9731, 0.5
      %v9860 = vmul.f32 %v9732, 0.5
      %v9861 = vmul.f32 %v9733, 0.5
      %v9862 = vmul.f32 %v9734, 0.5
      %v9863 = vmul.f32 %v9735, 0.5
      %v9864 = vmul.f32 %v9736, 0.5
      %v9865 = vmul.f32 %v9737, 0.5
      %v9866 = vmul.f32 %v9738, 0.5
      %v9867 = vmul.f32 %v9739, 0.5
      %v9868 = vmul.f32 %v9740, 0.5
      %v9869 = vmul.f32 %v9741, 0.5
      %v9870 = vmul.f32 %v9742, 0.5
      %v9871 = vmul.f32 %v9743, 0.5
      %v9872 = vmul.f32 %v9744, 0.5
      %v9873 = vmul.f32 %v9745, 0.5
      %v9874 = vmul.f32 %v9746, 0.5
      %v9875 = vmul.f32 %v9747, 0.5
      %v9876 = vmul.f32 %v9748, 0.5
      %v9877 = vmul.f32 %v9749, 0.5
      %v9878 = vmul.f32 %v9750, 0.5
      %v9879 = vmul.f32 %v9751, 0.5
      %v9880 = vmul.f32 %v9752, 0.5
      %v9881 = vmul.f32 %v9753, 0.5
      %v9882 = vmul.f32 %v9754, 0.5
      %v9883 = vmul.f32 %v9755, 0.5
      %v9884 = vmul.f32 %v9756, 0.5
      %v9885 = vmul.f32 %v9757, 0.5
      %v9886 = vmul.f32 %v9758, 0.5
      %v9887 = vmul.f32 %v9759, 0.5
      %v9888 = vmul.f32 %v9760, 0.5
      %v9889 = vmul.f32 %v9761, 0.5
      %v9890 = vmul.f32 %v9762, 0.5
      %v9891 = vmul.f32 %v9763, 0.5
      %v9892 = vmul.f32 %v9764, 0.5
      %v9893 = vmul.f32 %v9765, 0.5
      %v9894 = vmul.f32 %v9766, 0.5
      %v9895 = vmul.f32 %v9767, 0.5
      %v9896 = vmul.f32 %v9768, 0.5
      %v9897 = vmul.f32 %v9769, 0.5
      %v9898 = vmul.f32 %v9770, 0.5
      %v9899 = vmul.f32 %v9771, 0.5
      %v9900 = vmul.f32 %v9772, 0.5
      %v9901 = vmul.f32 %v9773, 0.5
      %v9902 = vmul.f32 %v9774, 0.5
      %v9903 = vmul.f32 %v9775, 0.5
      %v9904 = vmul.f32 %v9776, 0.5
      %v9905 = vmul.f32 %v9777, 0.5
      %v9906 = vmul.f32 %v9778, 0.5
      %v9907 = vmul.f32 %v9779, 0.5
      %v9908 = vmul.f32 %v9780, 0.5
      %v9909 = vmul.f32 %v9781, 0.5
      %v9910 = vmul.f32 %v9782, 0.5
      %v9911 = vmul.f32 %v9783, 0.5
      %v9912 = vmul.f32 %v9784, 0.5
      %v9913 = vmul.f32 %v9785, 0.5
      %v9914 = vmul.f32 %v9786, 0.5
      %v9915 = vmul.f32 %v9787, 0.5
      %v9916 = vmul.f32 %v9788, 0.5
      %v9917 = vmul.f32 %v9789, 0.5
      %v9918 = vmul.f32 %v9790, 0.5
      %v9919 = vmul.f32 %v9791, 0.5
      %v9920 = vmul.f32 %v9792, 0.5
      %v9921 = vmul.f32 %v9793, 0.5
      %v9922 = vmul.f32 %v9794, 0.5
      %v9923 = vmul.f32 %v9795, 0.5
      %v9924 = vmul.f32 %v9796, 0.5
      %v9925 = vmul.f32 %v9797, 0.5
      %v9926 = vadd.f32 %v9798, %v9806
      %v9927 = vadd.f32 %v9799, %v9807
      %v9928 = vadd.f32 %v9800, %v9808
      %v9929 = vadd.f32 %v9801, %v9809
      %v9930 = vadd.f32 %v9802, %v9810
      %v9931 = vadd.f32 %v9803, %v9811
      %v9932 = vadd.f32 %v9804, %v9812
      %v9933 = vadd.f32 %v9805, %v9813
      %v9934 = vadd.f32 %v9814, %v9822
      %v9935 = vadd.f32 %v9815, %v9823
      %v9936 = vadd.f32 %v9816, %v9824
      %v9937 = vadd.f32 %v9817, %v9825
      %v9938 = vadd.f32 %v9818, %v9826
      %v9939 = vadd.f32 %v9819, %v9827
      %v9940 = vadd.f32 %v9820, %v9828
      %v9941 = vadd.f32 %v9821, %v9829
      %v9942 = vadd.f32 %v9830, %v9838
      %v9943 = vadd.f32 %v9831, %v9839
      %v9944 = vadd.f32 %v9832, %v9840
      %v9945 = vadd.f32 %v9833, %v9841
      %v9946 = vadd.f32 %v9834, %v9842
      %v9947 = vadd.f32 %v9835, %v9843
      %v9948 = vadd.f32 %v9836, %v9844
      %v9949 = vadd.f32 %v9837, %v9845
      %v9950 = vadd.f32 %v9846, %v9854
      %v9951 = vadd.f32 %v9847, %v9855
      %v9952 = vadd.f32 %v9848, %v9856
      %v9953 = vadd.f32 %v9849, %v9857
      %v9954 = vadd.f32 %v9850, %v9858
      %v9955 = vadd.f32 %v9851, %v9859
      %v9956 = vadd.f32 %v9852, %v9860
      %v9957 = vadd.f32 %v9853, %v9861
      %v9958 = vadd.f32 %v9862, %v9870
      %v9959 = vadd.f32 %v9863, %v9871
      %v9960 = vadd.f32 %v9864, %v9872
      %v9961 = vadd.f32 %v9865, %v9873
      %v9962 = vadd.f32 %v9866, %v9874
      %v9963 = vadd.f32 %v9867, %v9875
      %v9964 = vadd.f32 %v9868, %v9876
      %v9965 = vadd.f32 %v9869, %v9877
      %v9966 = vadd.f32 %v9878, %v9886
      %v9967 = vadd.f32 %v9879, %v9887
      %v9968 = vadd.f32 %v9880, %v9888
      %v9969 = vadd.f32 %v9881, %v9889
      %v9970 = vadd.f32 %v9882, %v9890
      %v9971 = vadd.f32 %v9883, %v9891
      %v9972 = vadd.f32 %v9884, %v9892
      %v9973 = vadd.f32 %v9885, %v9893
      %v9974 = vadd.f32 %v9894, %v9902
      %v9975 = vadd.f32 %v9895, %v9903
      %v9976 = vadd.f32 %v9896, %v9904
      %v9977 = vadd.f32 %v9897, %v9905
      %v9978 = vadd.f32 %v9898, %v9906
      %v9979 = vadd.f32 %v9899, %v9907
      %v9980 = vadd.f32 %v9900, %v9908
      %v9981 = vadd.f32 %v9901, %v9909
      %v9982 = vadd.f32 %v9910, %v9918
      %v9983 = vadd.f32 %v9911, %v9919
      %v9984 = vadd.f32 %v9912, %v9920
      %v9985 = vadd.f32 %v9913, %v9921
      %v9986 = vadd.f32 %v9914, %v9922
      %v9987 = vadd.f32 %v9915, %v9923
      %v9988 = vadd.f32 %v9916, %v9924
      %v9989 = vadd.f32 %v9917, %v9925
      %v9990 = vmul.f32 %v9926, 0.5
      %v9991 = vmul.f32 %v9927, 0.5
      %v9992 = vmul.f32 %v9928, 0.5
      %v9993 = vmul.f32 %v9929, 0.5
      %v9994 = vmul.f32 %v9930, 0.5
      %v9995 = vmul.f32 %v9931, 0.5
      %v9996 = vmul.f32 %v9932, 0.5
      %v9997 = vmul.f32 %v9933, 0.5
      %v9998 = vmul.f32 %v9934, 0.5
      %v9999 = vmul.f32 %v9935, 0.5
      %v10000 = vmul.f32 %v9936, 0.5
      %v10001 = vmul.f32 %v9937, 0.5
      %v10002 = vmul.f32 %v9938, 0.5
      %v10003 = vmul.f32 %v9939, 0.5
      %v10004 = vmul.f32 %v9940, 0.5
      %v10005 = vmul.f32 %v9941, 0.5
      %v10006 = vmul.f32 %v9942, 0.5
      %v10007 = vmul.f32 %v9943, 0.5
      %v10008 = vmul.f32 %v9944, 0.5
      %v10009 = vmul.f32 %v9945, 0.5
      %v10010 = vmul.f32 %v9946, 0.5
      %v10011 = vmul.f32 %v9947, 0.5
      %v10012 = vmul.f32 %v9948, 0.5
      %v10013 = vmul.f32 %v9949, 0.5
      %v10014 = vmul.f32 %v9950, 0.5
      %v10015 = vmul.f32 %v9951, 0.5
      %v10016 = vmul.f32 %v9952, 0.5
      %v10017 = vmul.f32 %v9953, 0.5
      %v10018 = vmul.f32 %v9954, 0.5
      %v10019 = vmul.f32 %v9955, 0.5
      %v10020 = vmul.f32 %v9956, 0.5
      %v10021 = vmul.f32 %v9957, 0.5
      %v10022 = vmul.f32 %v9958, 0.5
      %v10023 = vmul.f32 %v9959, 0.5
      %v10024 = vmul.f32 %v9960, 0.5
      %v10025 = vmul.f32 %v9961, 0.5
      %v10026 = vmul.f32 %v9962, 0.5
      %v10027 = vmul.f32 %v9963, 0.5
      %v10028 = vmul.f32 %v9964, 0.5
      %v10029 = vmul.f32 %v9965, 0.5
      %v10030 = vmul.f32 %v9966, 0.5
      %v10031 = vmul.f32 %v9967, 0.5
      %v10032 = vmul.f32 %v9968, 0.5
      %v10033 = vmul.f32 %v9969, 0.5
      %v10034 = vmul.f32 %v9970, 0.5
      %v10035 = vmul.f32 %v9971, 0.5
      %v10036 = vmul.f32 %v9972, 0.5
      %v10037 = vmul.f32 %v9973, 0.5
      %v10038 = vmul.f32 %v9974, 0.5
      %v10039 = vmul.f32 %v9975, 0.5
      %v10040 = vmul.f32 %v9976, 0.5
      %v10041 = vmul.f32 %v9977, 0.5
      %v10042 = vmul.f32 %v9978, 0.5
      %v10043 = vmul.f32 %v9979, 0.5
      %v10044 = vmul.f32 %v9980, 0.5
      %v10045 = vmul.f32 %v9981, 0.5
      %v10046 = vmul.f32 %v9982, 0.5
      %v10047 = vmul.f32 %v9983, 0.5
      %v10048 = vmul.f32 %v9984, 0.5
      %v10049 = vmul.f32 %v9985, 0.5
      %v10050 = vmul.f32 %v9986, 0.5
      %v10051 = vmul.f32 %v9987, 0.5
      %v10052 = vmul.f32 %v9988, 0.5
      %v10053 = vmul.f32 %v9989, 0.5
      %v10086 = vcombine.high %v403, %v403
      %v10088 = vunpack.c.l.s4 1983009808
      %v10089 = vunpack.c.0.s8 %v10088
      %v10090 = vlaneseq
      %v10091 = vshrl.u32 %v10090, 7
      %v10092 = vsub.s32 %v10089, %v10091
      %v10093 = vrot.slane %v403, %v10092
      %v10095 = vunpack.c.l.s4 1983009808
      %v10096 = vunpack.c.0.s8 %v10095
      %v10097 = vlaneseq
      %v10098 = vshrl.u32 %v10097, 7
      %v10099 = vsub.s32 %v10096, %v10098
      %v10100 = vrot.slane %v10086, %v10099
      %v10101 = vcombine.high %v10093, %v10093
      %v10102 = vcombine.high %v10100, %v10100
      %v10103 = vcombine.high %v404, %v404
      %v10105 = vunpack.c.l.s4 1983009808
      %v10106 = vunpack.c.0.s8 %v10105
      %v10107 = vlaneseq
      %v10108 = vshrl.u32 %v10107, 7
      %v10109 = vsub.s32 %v10106, %v10108
      %v10110 = vrot.slane %v404, %v10109
      %v10112 = vunpack.c.l.s4 1983009808
      %v10113 = vunpack.c.0.s8 %v10112
      %v10114 = vlaneseq
      %v10115 = vshrl.u32 %v10114, 7
      %v10116 = vsub.s32 %v10113, %v10115
      %v10117 = vrot.slane %v10103, %v10116
      %v10118 = vcombine.high %v10110, %v10110
      %v10119 = vcombine.high %v10117, %v10117
      %v10120 = vcombine.high %v405, %v405
      %v10122 = vunpack.c.l.s4 1983009808
      %v10123 = vunpack.c.0.s8 %v10122
      %v10124 = vlaneseq
      %v10125 = vshrl.u32 %v10124, 7
      %v10126 = vsub.s32 %v10123, %v10125
      %v10127 = vrot.slane %v405, %v10126
      %v10129 = vunpack.c.l.s4 1983009808
      %v10130 = vunpack.c.0.s8 %v10129
      %v10131 = vlaneseq
      %v10132 = vshrl.u32 %v10131, 7
      %v10133 = vsub.s32 %v10130, %v10132
      %v10134 = vrot.slane %v10120, %v10133
      %v10135 = vcombine.high %v10127, %v10127
      %v10136 = vcombine.high %v10134, %v10134
      %v10137 = vcombine.high %v406, %v406
      %v10139 = vunpack.c.l.s4 1983009808
      %v10140 = vunpack.c.0.s8 %v10139
      %v10141 = vlaneseq
      %v10142 = vshrl.u32 %v10141, 7
      %v10143 = vsub.s32 %v10140, %v10142
      %v10144 = vrot.slane %v406, %v10143
      %v10146 = vunpack.c.l.s4 1983009808
      %v10147 = vunpack.c.0.s8 %v10146
      %v10148 = vlaneseq
      %v10149 = vshrl.u32 %v10148, 7
      %v10150 = vsub.s32 %v10147, %v10149
      %v10151 = vrot.slane %v10137, %v10150
      %v10152 = vcombine.high %v10144, %v10144
      %v10153 = vcombine.high %v10151, %v10151
      %v10154 = vcombine.high %v407, %v407
      %v10156 = vunpack.c.l.s4 1983009808
      %v10157 = vunpack.c.0.s8 %v10156
      %v10158 = vlaneseq
      %v10159 = vshrl.u32 %v10158, 7
      %v10160 = vsub.s32 %v10157, %v10159
      %v10161 = vrot.slane %v407, %v10160
      %v10163 = vunpack.c.l.s4 1983009808
      %v10164 = vunpack.c.0.s8 %v10163
      %v10165 = vlaneseq
      %v10166 = vshrl.u32 %v10165, 7
      %v10167 = vsub.s32 %v10164, %v10166
      %v10168 = vrot.slane %v10154, %v10167
      %v10169 = vcombine.high %v10161, %v10161
      %v10170 = vcombine.high %v10168, %v10168
      %v10171 = vcombine.high %v408, %v408
      %v10173 = vunpack.c.l.s4 1983009808
      %v10174 = vunpack.c.0.s8 %v10173
      %v10175 = vlaneseq
      %v10176 = vshrl.u32 %v10175, 7
      %v10177 = vsub.s32 %v10174, %v10176
      %v10178 = vrot.slane %v408, %v10177
      %v10180 = vunpack.c.l.s4 1983009808
      %v10181 = vunpack.c.0.s8 %v10180
      %v10182 = vlaneseq
      %v10183 = vshrl.u32 %v10182, 7
      %v10184 = vsub.s32 %v10181, %v10183
      %v10185 = vrot.slane %v10171, %v10184
      %v10186 = vcombine.high %v10178, %v10178
      %v10187 = vcombine.high %v10185, %v10185
      %v10188 = vcombine.high %v409, %v409
      %v10190 = vunpack.c.l.s4 1983009808
      %v10191 = vunpack.c.0.s8 %v10190
      %v10192 = vlaneseq
      %v10193 = vshrl.u32 %v10192, 7
      %v10194 = vsub.s32 %v10191, %v10193
      %v10195 = vrot.slane %v409, %v10194
      %v10197 = vunpack.c.l.s4 1983009808
      %v10198 = vunpack.c.0.s8 %v10197
      %v10199 = vlaneseq
      %v10200 = vshrl.u32 %v10199, 7
      %v10201 = vsub.s32 %v10198, %v10200
      %v10202 = vrot.slane %v10188, %v10201
      %v10203 = vcombine.high %v10195, %v10195
      %v10204 = vcombine.high %v10202, %v10202
      %v10205 = vcombine.high %v410, %v410
      %v10207 = vunpack.c.l.s4 1983009808
      %v10208 = vunpack.c.0.s8 %v10207
      %v10209 = vlaneseq
      %v10210 = vshrl.u32 %v10209, 7
      %v10211 = vsub.s32 %v10208, %v10210
      %v10212 = vrot.slane %v410, %v10211
      %v10214 = vunpack.c.l.s4 1983009808
      %v10215 = vunpack.c.0.s8 %v10214
      %v10216 = vlaneseq
      %v10217 = vshrl.u32 %v10216, 7
      %v10218 = vsub.s32 %v10215, %v10217
      %v10219 = vrot.slane %v10205, %v10218
      %v10220 = vcombine.high %v10212, %v10212
      %v10221 = vcombine.high %v10219, %v10219
      %v10222 = vcombine.high %v411, %v411
      %v10224 = vunpack.c.l.s4 1983009808
      %v10225 = vunpack.c.0.s8 %v10224
      %v10226 = vlaneseq
      %v10227 = vshrl.u32 %v10226, 7
      %v10228 = vsub.s32 %v10225, %v10227
      %v10229 = vrot.slane %v411, %v10228
      %v10231 = vunpack.c.l.s4 1983009808
      %v10232 = vunpack.c.0.s8 %v10231
      %v10233 = vlaneseq
      %v10234 = vshrl.u32 %v10233, 7
      %v10235 = vsub.s32 %v10232, %v10234
      %v10236 = vrot.slane %v10222, %v10235
      %v10237 = vcombine.high %v10229, %v10229
      %v10238 = vcombine.high %v10236, %v10236
      %v10239 = vcombine.high %v412, %v412
      %v10241 = vunpack.c.l.s4 1983009808
      %v10242 = vunpack.c.0.s8 %v10241
      %v10243 = vlaneseq
      %v10244 = vshrl.u32 %v10243, 7
      %v10245 = vsub.s32 %v10242, %v10244
      %v10246 = vrot.slane %v412, %v10245
      %v10248 = vunpack.c.l.s4 1983009808
      %v10249 = vunpack.c.0.s8 %v10248
      %v10250 = vlaneseq
      %v10251 = vshrl.u32 %v10250, 7
      %v10252 = vsub.s32 %v10249, %v10251
      %v10253 = vrot.slane %v10239, %v10252
      %v10254 = vcombine.high %v10246, %v10246
      %v10255 = vcombine.high %v10253, %v10253
      %v10256 = vcombine.high %v413, %v413
      %v10258 = vunpack.c.l.s4 1983009808
      %v10259 = vunpack.c.0.s8 %v10258
      %v10260 = vlaneseq
      %v10261 = vshrl.u32 %v10260, 7
      %v10262 = vsub.s32 %v10259, %v10261
      %v10263 = vrot.slane %v413, %v10262
      %v10265 = vunpack.c.l.s4 1983009808
      %v10266 = vunpack.c.0.s8 %v10265
      %v10267 = vlaneseq
      %v10268 = vshrl.u32 %v10267, 7
      %v10269 = vsub.s32 %v10266, %v10268
      %v10270 = vrot.slane %v10256, %v10269
      %v10271 = vcombine.high %v10263, %v10263
      %v10272 = vcombine.high %v10270, %v10270
      %v10273 = vcombine.high %v414, %v414
      %v10275 = vunpack.c.l.s4 1983009808
      %v10276 = vunpack.c.0.s8 %v10275
      %v10277 = vlaneseq
      %v10278 = vshrl.u32 %v10277, 7
      %v10279 = vsub.s32 %v10276, %v10278
      %v10280 = vrot.slane %v414, %v10279
      %v10282 = vunpack.c.l.s4 1983009808
      %v10283 = vunpack.c.0.s8 %v10282
      %v10284 = vlaneseq
      %v10285 = vshrl.u32 %v10284, 7
      %v10286 = vsub.s32 %v10283, %v10285
      %v10287 = vrot.slane %v10273, %v10286
      %v10288 = vcombine.high %v10280, %v10280
      %v10289 = vcombine.high %v10287, %v10287
      %v10290 = vcombine.high %v415, %v415
      %v10292 = vunpack.c.l.s4 1983009808
      %v10293 = vunpack.c.0.s8 %v10292
      %v10294 = vlaneseq
      %v10295 = vshrl.u32 %v10294, 7
      %v10296 = vsub.s32 %v10293, %v10295
      %v10297 = vrot.slane %v415, %v10296
      %v10299 = vunpack.c.l.s4 1983009808
      %v10300 = vunpack.c.0.s8 %v10299
      %v10301 = vlaneseq
      %v10302 = vshrl.u32 %v10301, 7
      %v10303 = vsub.s32 %v10300, %v10302
      %v10304 = vrot.slane %v10290, %v10303
      %v10305 = vcombine.high %v10297, %v10297
      %v10306 = vcombine.high %v10304, %v10304
      %v10307 = vcombine.high %v416, %v416
      %v10309 = vunpack.c.l.s4 1983009808
      %v10310 = vunpack.c.0.s8 %v10309
      %v10311 = vlaneseq
      %v10312 = vshrl.u32 %v10311, 7
      %v10313 = vsub.s32 %v10310, %v10312
      %v10314 = vrot.slane %v416, %v10313
      %v10316 = vunpack.c.l.s4 1983009808
      %v10317 = vunpack.c.0.s8 %v10316
      %v10318 = vlaneseq
      %v10319 = vshrl.u32 %v10318, 7
      %v10320 = vsub.s32 %v10317, %v10319
      %v10321 = vrot.slane %v10307, %v10320
      %v10322 = vcombine.high %v10314, %v10314
      %v10323 = vcombine.high %v10321, %v10321
      %v10324 = vcombine.high %v417, %v417
      %v10326 = vunpack.c.l.s4 1983009808
      %v10327 = vunpack.c.0.s8 %v10326
      %v10328 = vlaneseq
      %v10329 = vshrl.u32 %v10328, 7
      %v10330 = vsub.s32 %v10327, %v10329
      %v10331 = vrot.slane %v417, %v10330
      %v10333 = vunpack.c.l.s4 1983009808
      %v10334 = vunpack.c.0.s8 %v10333
      %v10335 = vlaneseq
      %v10336 = vshrl.u32 %v10335, 7
      %v10337 = vsub.s32 %v10334, %v10336
      %v10338 = vrot.slane %v10324, %v10337
      %v10339 = vcombine.high %v10331, %v10331
      %v10340 = vcombine.high %v10338, %v10338
      %v10341 = vcombine.high %v418, %v418
      %v10343 = vunpack.c.l.s4 1983009808
      %v10344 = vunpack.c.0.s8 %v10343
      %v10345 = vlaneseq
      %v10346 = vshrl.u32 %v10345, 7
      %v10347 = vsub.s32 %v10344, %v10346
      %v10348 = vrot.slane %v418, %v10347
      %v10350 = vunpack.c.l.s4 1983009808
      %v10351 = vunpack.c.0.s8 %v10350
      %v10352 = vlaneseq
      %v10353 = vshrl.u32 %v10352, 7
      %v10354 = vsub.s32 %v10351, %v10353
      %v10355 = vrot.slane %v10341, %v10354
      %v10356 = vcombine.high %v10348, %v10348
      %v10357 = vcombine.high %v10355, %v10355
      %v10358 = vcombine.high %v419, %v419
      %v10360 = vunpack.c.l.s4 1983009808
      %v10361 = vunpack.c.0.s8 %v10360
      %v10362 = vlaneseq
      %v10363 = vshrl.u32 %v10362, 7
      %v10364 = vsub.s32 %v10361, %v10363
      %v10365 = vrot.slane %v419, %v10364
      %v10367 = vunpack.c.l.s4 1983009808
      %v10368 = vunpack.c.0.s8 %v10367
      %v10369 = vlaneseq
      %v10370 = vshrl.u32 %v10369, 7
      %v10371 = vsub.s32 %v10368, %v10370
      %v10372 = vrot.slane %v10358, %v10371
      %v10373 = vcombine.high %v10365, %v10365
      %v10374 = vcombine.high %v10372, %v10372
      %v10375 = vcombine.high %v420, %v420
      %v10377 = vunpack.c.l.s4 1983009808
      %v10378 = vunpack.c.0.s8 %v10377
      %v10379 = vlaneseq
      %v10380 = vshrl.u32 %v10379, 7
      %v10381 = vsub.s32 %v10378, %v10380
      %v10382 = vrot.slane %v420, %v10381
      %v10384 = vunpack.c.l.s4 1983009808
      %v10385 = vunpack.c.0.s8 %v10384
      %v10386 = vlaneseq
      %v10387 = vshrl.u32 %v10386, 7
      %v10388 = vsub.s32 %v10385, %v10387
      %v10389 = vrot.slane %v10375, %v10388
      %v10390 = vcombine.high %v10382, %v10382
      %v10391 = vcombine.high %v10389, %v10389
      %v10392 = vcombine.high %v421, %v421
      %v10394 = vunpack.c.l.s4 1983009808
      %v10395 = vunpack.c.0.s8 %v10394
      %v10396 = vlaneseq
      %v10397 = vshrl.u32 %v10396, 7
      %v10398 = vsub.s32 %v10395, %v10397
      %v10399 = vrot.slane %v421, %v10398
      %v10401 = vunpack.c.l.s4 1983009808
      %v10402 = vunpack.c.0.s8 %v10401
      %v10403 = vlaneseq
      %v10404 = vshrl.u32 %v10403, 7
      %v10405 = vsub.s32 %v10402, %v10404
      %v10406 = vrot.slane %v10392, %v10405
      %v10407 = vcombine.high %v10399, %v10399
      %v10408 = vcombine.high %v10406, %v10406
      %v10409 = vcombine.high %v422, %v422
      %v10411 = vunpack.c.l.s4 1983009808
      %v10412 = vunpack.c.0.s8 %v10411
      %v10413 = vlaneseq
      %v10414 = vshrl.u32 %v10413, 7
      %v10415 = vsub.s32 %v10412, %v10414
      %v10416 = vrot.slane %v422, %v10415
      %v10418 = vunpack.c.l.s4 1983009808
      %v10419 = vunpack.c.0.s8 %v10418
      %v10420 = vlaneseq
      %v10421 = vshrl.u32 %v10420, 7
      %v10422 = vsub.s32 %v10419, %v10421
      %v10423 = vrot.slane %v10409, %v10422
      %v10424 = vcombine.high %v10416, %v10416
      %v10425 = vcombine.high %v10423, %v10423
      %v10426 = vcombine.high %v423, %v423
      %v10428 = vunpack.c.l.s4 1983009808
      %v10429 = vunpack.c.0.s8 %v10428
      %v10430 = vlaneseq
      %v10431 = vshrl.u32 %v10430, 7
      %v10432 = vsub.s32 %v10429, %v10431
      %v10433 = vrot.slane %v423, %v10432
      %v10435 = vunpack.c.l.s4 1983009808
      %v10436 = vunpack.c.0.s8 %v10435
      %v10437 = vlaneseq
      %v10438 = vshrl.u32 %v10437, 7
      %v10439 = vsub.s32 %v10436, %v10438
      %v10440 = vrot.slane %v10426, %v10439
      %v10441 = vcombine.high %v10433, %v10433
      %v10442 = vcombine.high %v10440, %v10440
      %v10443 = vcombine.high %v424, %v424
      %v10445 = vunpack.c.l.s4 1983009808
      %v10446 = vunpack.c.0.s8 %v10445
      %v10447 = vlaneseq
      %v10448 = vshrl.u32 %v10447, 7
      %v10449 = vsub.s32 %v10446, %v10448
      %v10450 = vrot.slane %v424, %v10449
      %v10452 = vunpack.c.l.s4 1983009808
      %v10453 = vunpack.c.0.s8 %v10452
      %v10454 = vlaneseq
      %v10455 = vshrl.u32 %v10454, 7
      %v10456 = vsub.s32 %v10453, %v10455
      %v10457 = vrot.slane %v10443, %v10456
      %v10458 = vcombine.high %v10450, %v10450
      %v10459 = vcombine.high %v10457, %v10457
      %v10460 = vcombine.high %v425, %v425
      %v10462 = vunpack.c.l.s4 1983009808
      %v10463 = vunpack.c.0.s8 %v10462
      %v10464 = vlaneseq
      %v10465 = vshrl.u32 %v10464, 7
      %v10466 = vsub.s32 %v10463, %v10465
      %v10467 = vrot.slane %v425, %v10466
      %v10469 = vunpack.c.l.s4 1983009808
      %v10470 = vunpack.c.0.s8 %v10469
      %v10471 = vlaneseq
      %v10472 = vshrl.u32 %v10471, 7
      %v10473 = vsub.s32 %v10470, %v10472
      %v10474 = vrot.slane %v10460, %v10473
      %v10475 = vcombine.high %v10467, %v10467
      %v10476 = vcombine.high %v10474, %v10474
      %v10477 = vcombine.high %v426, %v426
      %v10479 = vunpack.c.l.s4 1983009808
      %v10480 = vunpack.c.0.s8 %v10479
      %v10481 = vlaneseq
      %v10482 = vshrl.u32 %v10481, 7
      %v10483 = vsub.s32 %v10480, %v10482
      %v10484 = vrot.slane %v426, %v10483
      %v10486 = vunpack.c.l.s4 1983009808
      %v10487 = vunpack.c.0.s8 %v10486
      %v10488 = vlaneseq
      %v10489 = vshrl.u32 %v10488, 7
      %v10490 = vsub.s32 %v10487, %v10489
      %v10491 = vrot.slane %v10477, %v10490
      %v10492 = vcombine.high %v10484, %v10484
      %v10493 = vcombine.high %v10491, %v10491
      %v10494 = vcombine.high %v427, %v427
      %v10496 = vunpack.c.l.s4 1983009808
      %v10497 = vunpack.c.0.s8 %v10496
      %v10498 = vlaneseq
      %v10499 = vshrl.u32 %v10498, 7
      %v10500 = vsub.s32 %v10497, %v10499
      %v10501 = vrot.slane %v427, %v10500
      %v10503 = vunpack.c.l.s4 1983009808
      %v10504 = vunpack.c.0.s8 %v10503
      %v10505 = vlaneseq
      %v10506 = vshrl.u32 %v10505, 7
      %v10507 = vsub.s32 %v10504, %v10506
      %v10508 = vrot.slane %v10494, %v10507
      %v10509 = vcombine.high %v10501, %v10501
      %v10510 = vcombine.high %v10508, %v10508
      %v10511 = vcombine.high %v428, %v428
      %v10513 = vunpack.c.l.s4 1983009808
      %v10514 = vunpack.c.0.s8 %v10513
      %v10515 = vlaneseq
      %v10516 = vshrl.u32 %v10515, 7
      %v10517 = vsub.s32 %v10514, %v10516
      %v10518 = vrot.slane %v428, %v10517
      %v10520 = vunpack.c.l.s4 1983009808
      %v10521 = vunpack.c.0.s8 %v10520
      %v10522 = vlaneseq
      %v10523 = vshrl.u32 %v10522, 7
      %v10524 = vsub.s32 %v10521, %v10523
      %v10525 = vrot.slane %v10511, %v10524
      %v10526 = vcombine.high %v10518, %v10518
      %v10527 = vcombine.high %v10525, %v10525
      %v10528 = vcombine.high %v429, %v429
      %v10530 = vunpack.c.l.s4 1983009808
      %v10531 = vunpack.c.0.s8 %v10530
      %v10532 = vlaneseq
      %v10533 = vshrl.u32 %v10532, 7
      %v10534 = vsub.s32 %v10531, %v10533
      %v10535 = vrot.slane %v429, %v10534
      %v10537 = vunpack.c.l.s4 1983009808
      %v10538 = vunpack.c.0.s8 %v10537
      %v10539 = vlaneseq
      %v10540 = vshrl.u32 %v10539, 7
      %v10541 = vsub.s32 %v10538, %v10540
      %v10542 = vrot.slane %v10528, %v10541
      %v10543 = vcombine.high %v10535, %v10535
      %v10544 = vcombine.high %v10542, %v10542
      %v10545 = vcombine.high %v430, %v430
      %v10547 = vunpack.c.l.s4 1983009808
      %v10548 = vunpack.c.0.s8 %v10547
      %v10549 = vlaneseq
      %v10550 = vshrl.u32 %v10549, 7
      %v10551 = vsub.s32 %v10548, %v10550
      %v10552 = vrot.slane %v430, %v10551
      %v10554 = vunpack.c.l.s4 1983009808
      %v10555 = vunpack.c.0.s8 %v10554
      %v10556 = vlaneseq
      %v10557 = vshrl.u32 %v10556, 7
      %v10558 = vsub.s32 %v10555, %v10557
      %v10559 = vrot.slane %v10545, %v10558
      %v10560 = vcombine.high %v10552, %v10552
      %v10561 = vcombine.high %v10559, %v10559
      %v10562 = vcombine.high %v431, %v431
      %v10564 = vunpack.c.l.s4 1983009808
      %v10565 = vunpack.c.0.s8 %v10564
      %v10566 = vlaneseq
      %v10567 = vshrl.u32 %v10566, 7
      %v10568 = vsub.s32 %v10565, %v10567
      %v10569 = vrot.slane %v431, %v10568
      %v10571 = vunpack.c.l.s4 1983009808
      %v10572 = vunpack.c.0.s8 %v10571
      %v10573 = vlaneseq
      %v10574 = vshrl.u32 %v10573, 7
      %v10575 = vsub.s32 %v10572, %v10574
      %v10576 = vrot.slane %v10562, %v10575
      %v10577 = vcombine.high %v10569, %v10569
      %v10578 = vcombine.high %v10576, %v10576
      %v10579 = vcombine.high %v432, %v432
      %v10581 = vunpack.c.l.s4 1983009808
      %v10582 = vunpack.c.0.s8 %v10581
      %v10583 = vlaneseq
      %v10584 = vshrl.u32 %v10583, 7
      %v10585 = vsub.s32 %v10582, %v10584
      %v10586 = vrot.slane %v432, %v10585
      %v10588 = vunpack.c.l.s4 1983009808
      %v10589 = vunpack.c.0.s8 %v10588
      %v10590 = vlaneseq
      %v10591 = vshrl.u32 %v10590, 7
      %v10592 = vsub.s32 %v10589, %v10591
      %v10593 = vrot.slane %v10579, %v10592
      %v10594 = vcombine.high %v10586, %v10586
      %v10595 = vcombine.high %v10593, %v10593
      %v10596 = vcombine.high %v433, %v433
      %v10598 = vunpack.c.l.s4 1983009808
      %v10599 = vunpack.c.0.s8 %v10598
      %v10600 = vlaneseq
      %v10601 = vshrl.u32 %v10600, 7
      %v10602 = vsub.s32 %v10599, %v10601
      %v10603 = vrot.slane %v433, %v10602
      %v10605 = vunpack.c.l.s4 1983009808
      %v10606 = vunpack.c.0.s8 %v10605
      %v10607 = vlaneseq
      %v10608 = vshrl.u32 %v10607, 7
      %v10609 = vsub.s32 %v10606, %v10608
      %v10610 = vrot.slane %v10596, %v10609
      %v10611 = vcombine.high %v10603, %v10603
      %v10612 = vcombine.high %v10610, %v10610
      %v10613 = vcombine.high %v434, %v434
      %v10615 = vunpack.c.l.s4 1983009808
      %v10616 = vunpack.c.0.s8 %v10615
      %v10617 = vlaneseq
      %v10618 = vshrl.u32 %v10617, 7
      %v10619 = vsub.s32 %v10616, %v10618
      %v10620 = vrot.slane %v434, %v10619
      %v10622 = vunpack.c.l.s4 1983009808
      %v10623 = vunpack.c.0.s8 %v10622
      %v10624 = vlaneseq
      %v10625 = vshrl.u32 %v10624, 7
      %v10626 = vsub.s32 %v10623, %v10625
      %v10627 = vrot.slane %v10613, %v10626
      %v10628 = vcombine.high %v10620, %v10620
      %v10629 = vcombine.high %v10627, %v10627
      %v10758 = vrot.slane %v10093, 7
      %v10759 = vrot.slane %v10758, 2
      %v10760 = vrot.slane %v10101, 7
      %v10761 = vrot.slane %v10760, 2
      %v10762 = vrot.slane %v10100, 7
      %v10763 = vrot.slane %v10762, 2
      %v10764 = vrot.slane %v10102, 7
      %v10765 = vrot.slane %v10764, 2
      %v10766 = vrot.slane %v10110, 7
      %v10767 = vrot.slane %v10766, 2
      %v10768 = vrot.slane %v10118, 7
      %v10769 = vrot.slane %v10768, 2
      %v10770 = vrot.slane %v10117, 7
      %v10771 = vrot.slane %v10770, 2
      %v10772 = vrot.slane %v10119, 7
      %v10773 = vrot.slane %v10772, 2
      %v10774 = vrot.slane %v10127, 7
      %v10775 = vrot.slane %v10774, 2
      %v10776 = vrot.slane %v10135, 7
      %v10777 = vrot.slane %v10776, 2
      %v10778 = vrot.slane %v10134, 7
      %v10779 = vrot.slane %v10778, 2
      %v10780 = vrot.slane %v10136, 7
      %v10781 = vrot.slane %v10780, 2
      %v10782 = vrot.slane %v10144, 7
      %v10783 = vrot.slane %v10782, 2
      %v10784 = vrot.slane %v10152, 7
      %v10785 = vrot.slane %v10784, 2
      %v10786 = vrot.slane %v10151, 7
      %v10787 = vrot.slane %v10786, 2
      %v10788 = vrot.slane %v10153, 7
      %v10789 = vrot.slane %v10788, 2
      %v10790 = vrot.slane %v10161, 7
      %v10791 = vrot.slane %v10790, 2
      %v10792 = vrot.slane %v10169, 7
      %v10793 = vrot.slane %v10792, 2
      %v10794 = vrot.slane %v10168, 7
      %v10795 = vrot.slane %v10794, 2
      %v10796 = vrot.slane %v10170, 7
      %v10797 = vrot.slane %v10796, 2
      %v10798 = vrot.slane %v10178, 7
      %v10799 = vrot.slane %v10798, 2
      %v10800 = vrot.slane %v10186, 7
      %v10801 = vrot.slane %v10800, 2
      %v10802 = vrot.slane %v10185, 7
      %v10803 = vrot.slane %v10802, 2
      %v10804 = vrot.slane %v10187, 7
      %v10805 = vrot.slane %v10804, 2
      %v10806 = vrot.slane %v10195, 7
      %v10807 = vrot.slane %v10806, 2
      %v10808 = vrot.slane %v10203, 7
      %v10809 = vrot.slane %v10808, 2
      %v10810 = vrot.slane %v10202, 7
      %v10811 = vrot.slane %v10810, 2
      %v10812 = vrot.slane %v10204, 7
      %v10813 = vrot.slane %v10812, 2
      %v10814 = vrot.slane %v10212, 7
      %v10815 = vrot.slane %v10814, 2
      %v10816 = vrot.slane %v10220, 7
      %v10817 = vrot.slane %v10816, 2
      %v10818 = vrot.slane %v10219, 7
      %v10819 = vrot.slane %v10818, 2
      %v10820 = vrot.slane %v10221, 7
      %v10821 = vrot.slane %v10820, 2
      %v10822 = vrot.slane %v10229, 7
      %v10823 = vrot.slane %v10822, 2
      %v10824 = vrot.slane %v10237, 7
      %v10825 = vrot.slane %v10824, 2
      %v10826 = vrot.slane %v10236, 7
      %v10827 = vrot.slane %v10826, 2
      %v10828 = vrot.slane %v10238, 7
      %v10829 = vrot.slane %v10828, 2
      %v10830 = vrot.slane %v10246, 7
      %v10831 = vrot.slane %v10830, 2
      %v10832 = vrot.slane %v10254, 7
      %v10833 = vrot.slane %v10832, 2
      %v10834 = vrot.slane %v10253, 7
      %v10835 = vrot.slane %v10834, 2
      %v10836 = vrot.slane %v10255, 7
      %v10837 = vrot.slane %v10836, 2
      %v10838 = vrot.slane %v10263, 7
      %v10839 = vrot.slane %v10838, 2
      %v10840 = vrot.slane %v10271, 7
      %v10841 = vrot.slane %v10840, 2
      %v10842 = vrot.slane %v10270, 7
      %v10843 = vrot.slane %v10842, 2
      %v10844 = vrot.slane %v10272, 7
      %v10845 = vrot.slane %v10844, 2
      %v10846 = vrot.slane %v10280, 7
      %v10847 = vrot.slane %v10846, 2
      %v10848 = vrot.slane %v10288, 7
      %v10849 = vrot.slane %v10848, 2
      %v10850 = vrot.slane %v10287, 7
      %v10851 = vrot.slane %v10850, 2
      %v10852 = vrot.slane %v10289, 7
      %v10853 = vrot.slane %v10852, 2
      %v10854 = vrot.slane %v10297, 7
      %v10855 = vrot.slane %v10854, 2
      %v10856 = vrot.slane %v10305, 7
      %v10857 = vrot.slane %v10856, 2
      %v10858 = vrot.slane %v10304, 7
      %v10859 = vrot.slane %v10858, 2
      %v10860 = vrot.slane %v10306, 7
      %v10861 = vrot.slane %v10860, 2
      %v10862 = vrot.slane %v10314, 7
      %v10863 = vrot.slane %v10862, 2
      %v10864 = vrot.slane %v10322, 7
      %v10865 = vrot.slane %v10864, 2
      %v10866 = vrot.slane %v10321, 7
      %v10867 = vrot.slane %v10866, 2
      %v10868 = vrot.slane %v10323, 7
      %v10869 = vrot.slane %v10868, 2
      %v10870 = vrot.slane %v10331, 7
      %v10871 = vrot.slane %v10870, 2
      %v10872 = vrot.slane %v10339, 7
      %v10873 = vrot.slane %v10872, 2
      %v10874 = vrot.slane %v10338, 7
      %v10875 = vrot.slane %v10874, 2
      %v10876 = vrot.slane %v10340, 7
      %v10877 = vrot.slane %v10876, 2
      %v10878 = vrot.slane %v10348, 7
      %v10879 = vrot.slane %v10878, 2
      %v10880 = vrot.slane %v10356, 7
      %v10881 = vrot.slane %v10880, 2
      %v10882 = vrot.slane %v10355, 7
      %v10883 = vrot.slane %v10882, 2
      %v10884 = vrot.slane %v10357, 7
      %v10885 = vrot.slane %v10884, 2
      %v10886 = vrot.slane %v10365, 7
      %v10887 = vrot.slane %v10886, 2
      %v10888 = vrot.slane %v10373, 7
      %v10889 = vrot.slane %v10888, 2
      %v10890 = vrot.slane %v10372, 7
      %v10891 = vrot.slane %v10890, 2
      %v10892 = vrot.slane %v10374, 7
      %v10893 = vrot.slane %v10892, 2
      %v10894 = vrot.slane %v10382, 7
      %v10895 = vrot.slane %v10894, 2
      %v10896 = vrot.slane %v10390, 7
      %v10897 = vrot.slane %v10896, 2
      %v10898 = vrot.slane %v10389, 7
      %v10899 = vrot.slane %v10898, 2
      %v10900 = vrot.slane %v10391, 7
      %v10901 = vrot.slane %v10900, 2
      %v10902 = vrot.slane %v10399, 7
      %v10903 = vrot.slane %v10902, 2
      %v10904 = vrot.slane %v10407, 7
      %v10905 = vrot.slane %v10904, 2
      %v10906 = vrot.slane %v10406, 7
      %v10907 = vrot.slane %v10906, 2
      %v10908 = vrot.slane %v10408, 7
      %v10909 = vrot.slane %v10908, 2
      %v10910 = vrot.slane %v10416, 7
      %v10911 = vrot.slane %v10910, 2
      %v10912 = vrot.slane %v10424, 7
      %v10913 = vrot.slane %v10912, 2
      %v10914 = vrot.slane %v10423, 7
      %v10915 = vrot.slane %v10914, 2
      %v10916 = vrot.slane %v10425, 7
      %v10917 = vrot.slane %v10916, 2
      %v10918 = vrot.slane %v10433, 7
      %v10919 = vrot.slane %v10918, 2
      %v10920 = vrot.slane %v10441, 7
      %v10921 = vrot.slane %v10920, 2
      %v10922 = vrot.slane %v10440, 7
      %v10923 = vrot.slane %v10922, 2
      %v10924 = vrot.slane %v10442, 7
      %v10925 = vrot.slane %v10924, 2
      %v10926 = vrot.slane %v10450, 7
      %v10927 = vrot.slane %v10926, 2
      %v10928 = vrot.slane %v10458, 7
      %v10929 = vrot.slane %v10928, 2
      %v10930 = vrot.slane %v10457, 7
      %v10931 = vrot.slane %v10930, 2
      %v10932 = vrot.slane %v10459, 7
      %v10933 = vrot.slane %v10932, 2
      %v10934 = vrot.slane %v10467, 7
      %v10935 = vrot.slane %v10934, 2
      %v10936 = vrot.slane %v10475, 7
      %v10937 = vrot.slane %v10936, 2
      %v10938 = vrot.slane %v10474, 7
      %v10939 = vrot.slane %v10938, 2
      %v10940 = vrot.slane %v10476, 7
      %v10941 = vrot.slane %v10940, 2
      %v10942 = vrot.slane %v10484, 7
      %v10943 = vrot.slane %v10942, 2
      %v10944 = vrot.slane %v10492, 7
      %v10945 = vrot.slane %v10944, 2
      %v10946 = vrot.slane %v10491, 7
      %v10947 = vrot.slane %v10946, 2
      %v10948 = vrot.slane %v10493, 7
      %v10949 = vrot.slane %v10948, 2
      %v10950 = vrot.slane %v10501, 7
      %v10951 = vrot.slane %v10950, 2
      %v10952 = vrot.slane %v10509, 7
      %v10953 = vrot.slane %v10952, 2
      %v10954 = vrot.slane %v10508, 7
      %v10955 = vrot.slane %v10954, 2
      %v10956 = vrot.slane %v10510, 7
      %v10957 = vrot.slane %v10956, 2
      %v10958 = vrot.slane %v10518, 7
      %v10959 = vrot.slane %v10958, 2
      %v10960 = vrot.slane %v10526, 7
      %v10961 = vrot.slane %v10960, 2
      %v10962 = vrot.slane %v10525, 7
      %v10963 = vrot.slane %v10962, 2
      %v10964 = vrot.slane %v10527, 7
      %v10965 = vrot.slane %v10964, 2
      %v10966 = vrot.slane %v10535, 7
      %v10967 = vrot.slane %v10966, 2
      %v10968 = vrot.slane %v10543, 7
      %v10969 = vrot.slane %v10968, 2
      %v10970 = vrot.slane %v10542, 7
      %v10971 = vrot.slane %v10970, 2
      %v10972 = vrot.slane %v10544, 7
      %v10973 = vrot.slane %v10972, 2
      %v10974 = vrot.slane %v10552, 7
      %v10975 = vrot.slane %v10974, 2
      %v10976 = vrot.slane %v10560, 7
      %v10977 = vrot.slane %v10976, 2
      %v10978 = vrot.slane %v10559, 7
      %v10979 = vrot.slane %v10978, 2
      %v10980 = vrot.slane %v10561, 7
      %v10981 = vrot.slane %v10980, 2
      %v10982 = vrot.slane %v10569, 7
      %v10983 = vrot.slane %v10982, 2
      %v10984 = vrot.slane %v10577, 7
      %v10985 = vrot.slane %v10984, 2
      %v10986 = vrot.slane %v10576, 7
      %v10987 = vrot.slane %v10986, 2
      %v10988 = vrot.slane %v10578, 7
      %v10989 = vrot.slane %v10988, 2
      %v10990 = vrot.slane %v10586, 7
      %v10991 = vrot.slane %v10990, 2
      %v10992 = vrot.slane %v10594, 7
      %v10993 = vrot.slane %v10992, 2
      %v10994 = vrot.slane %v10593, 7
      %v10995 = vrot.slane %v10994, 2
      %v10996 = vrot.slane %v10595, 7
      %v10997 = vrot.slane %v10996, 2
      %v10998 = vrot.slane %v10603, 7
      %v10999 = vrot.slane %v10998, 2
      %v11000 = vrot.slane %v10611, 7
      %v11001 = vrot.slane %v11000, 2
      %v11002 = vrot.slane %v10610, 7
      %v11003 = vrot.slane %v11002, 2
      %v11004 = vrot.slane %v10612, 7
      %v11005 = vrot.slane %v11004, 2
      %v11006 = vrot.slane %v10620, 7
      %v11007 = vrot.slane %v11006, 2
      %v11008 = vrot.slane %v10628, 7
      %v11009 = vrot.slane %v11008, 2
      %v11010 = vrot.slane %v10627, 7
      %v11011 = vrot.slane %v11010, 2
      %v11012 = vrot.slane %v10629, 7
      %v11013 = vrot.slane %v11012, 2
      %v11142 = vadd.f32 %v10093, %v10759
      %v11143 = vadd.f32 %v10101, %v10761
      %v11144 = vadd.f32 %v10100, %v10763
      %v11145 = vadd.f32 %v10102, %v10765
      %v11146 = vadd.f32 %v10110, %v10767
      %v11147 = vadd.f32 %v10118, %v10769
      %v11148 = vadd.f32 %v10117, %v10771
      %v11149 = vadd.f32 %v10119, %v10773
      %v11150 = vadd.f32 %v10127, %v10775
      %v11151 = vadd.f32 %v10135, %v10777
      %v11152 = vadd.f32 %v10134, %v10779
      %v11153 = vadd.f32 %v10136, %v10781
      %v11154 = vadd.f32 %v10144, %v10783
      %v11155 = vadd.f32 %v10152, %v10785
      %v11156 = vadd.f32 %v10151, %v10787
      %v11157 = vadd.f32 %v10153, %v10789
      %v11158 = vadd.f32 %v10161, %v10791
      %v11159 = vadd.f32 %v10169, %v10793
      %v11160 = vadd.f32 %v10168, %v10795
      %v11161 = vadd.f32 %v10170, %v10797
      %v11162 = vadd.f32 %v10178, %v10799
      %v11163 = vadd.f32 %v10186, %v10801
      %v11164 = vadd.f32 %v10185, %v10803
      %v11165 = vadd.f32 %v10187, %v10805
      %v11166 = vadd.f32 %v10195, %v10807
      %v11167 = vadd.f32 %v10203, %v10809
      %v11168 = vadd.f32 %v10202, %v10811
      %v11169 = vadd.f32 %v10204, %v10813
      %v11170 = vadd.f32 %v10212, %v10815
      %v11171 = vadd.f32 %v10220, %v10817
      %v11172 = vadd.f32 %v10219, %v10819
      %v11173 = vadd.f32 %v10221, %v10821
      %v11174 = vadd.f32 %v10229, %v10823
      %v11175 = vadd.f32 %v10237, %v10825
      %v11176 = vadd.f32 %v10236, %v10827
      %v11177 = vadd.f32 %v10238, %v10829
      %v11178 = vadd.f32 %v10246, %v10831
      %v11179 = vadd.f32 %v10254, %v10833
      %v11180 = vadd.f32 %v10253, %v10835
      %v11181 = vadd.f32 %v10255, %v10837
      %v11182 = vadd.f32 %v10263, %v10839
      %v11183 = vadd.f32 %v10271, %v10841
      %v11184 = vadd.f32 %v10270, %v10843
      %v11185 = vadd.f32 %v10272, %v10845
      %v11186 = vadd.f32 %v10280, %v10847
      %v11187 = vadd.f32 %v10288, %v10849
      %v11188 = vadd.f32 %v10287, %v10851
      %v11189 = vadd.f32 %v10289, %v10853
      %v11190 = vadd.f32 %v10297, %v10855
      %v11191 = vadd.f32 %v10305, %v10857
      %v11192 = vadd.f32 %v10304, %v10859
      %v11193 = vadd.f32 %v10306, %v10861
      %v11194 = vadd.f32 %v10314, %v10863
      %v11195 = vadd.f32 %v10322, %v10865
      %v11196 = vadd.f32 %v10321, %v10867
      %v11197 = vadd.f32 %v10323, %v10869
      %v11198 = vadd.f32 %v10331, %v10871
      %v11199 = vadd.f32 %v10339, %v10873
      %v11200 = vadd.f32 %v10338, %v10875
      %v11201 = vadd.f32 %v10340, %v10877
      %v11202 = vadd.f32 %v10348, %v10879
      %v11203 = vadd.f32 %v10356, %v10881
      %v11204 = vadd.f32 %v10355, %v10883
      %v11205 = vadd.f32 %v10357, %v10885
      %v11206 = vadd.f32 %v10365, %v10887
      %v11207 = vadd.f32 %v10373, %v10889
      %v11208 = vadd.f32 %v10372, %v10891
      %v11209 = vadd.f32 %v10374, %v10893
      %v11210 = vadd.f32 %v10382, %v10895
      %v11211 = vadd.f32 %v10390, %v10897
      %v11212 = vadd.f32 %v10389, %v10899
      %v11213 = vadd.f32 %v10391, %v10901
      %v11214 = vadd.f32 %v10399, %v10903
      %v11215 = vadd.f32 %v10407, %v10905
      %v11216 = vadd.f32 %v10406, %v10907
      %v11217 = vadd.f32 %v10408, %v10909
      %v11218 = vadd.f32 %v10416, %v10911
      %v11219 = vadd.f32 %v10424, %v10913
      %v11220 = vadd.f32 %v10423, %v10915
      %v11221 = vadd.f32 %v10425, %v10917
      %v11222 = vadd.f32 %v10433, %v10919
      %v11223 = vadd.f32 %v10441, %v10921
      %v11224 = vadd.f32 %v10440, %v10923
      %v11225 = vadd.f32 %v10442, %v10925
      %v11226 = vadd.f32 %v10450, %v10927
      %v11227 = vadd.f32 %v10458, %v10929
      %v11228 = vadd.f32 %v10457, %v10931
      %v11229 = vadd.f32 %v10459, %v10933
      %v11230 = vadd.f32 %v10467, %v10935
      %v11231 = vadd.f32 %v10475, %v10937
      %v11232 = vadd.f32 %v10474, %v10939
      %v11233 = vadd.f32 %v10476, %v10941
      %v11234 = vadd.f32 %v10484, %v10943
      %v11235 = vadd.f32 %v10492, %v10945
      %v11236 = vadd.f32 %v10491, %v10947
      %v11237 = vadd.f32 %v10493, %v10949
      %v11238 = vadd.f32 %v10501, %v10951
      %v11239 = vadd.f32 %v10509, %v10953
      %v11240 = vadd.f32 %v10508, %v10955
      %v11241 = vadd.f32 %v10510, %v10957
      %v11242 = vadd.f32 %v10518, %v10959
      %v11243 = vadd.f32 %v10526, %v10961
      %v11244 = vadd.f32 %v10525, %v10963
      %v11245 = vadd.f32 %v10527, %v10965
      %v11246 = vadd.f32 %v10535, %v10967
      %v11247 = vadd.f32 %v10543, %v10969
      %v11248 = vadd.f32 %v10542, %v10971
      %v11249 = vadd.f32 %v10544, %v10973
      %v11250 = vadd.f32 %v10552, %v10975
      %v11251 = vadd.f32 %v10560, %v10977
      %v11252 = vadd.f32 %v10559, %v10979
      %v11253 = vadd.f32 %v10561, %v10981
      %v11254 = vadd.f32 %v10569, %v10983
      %v11255 = vadd.f32 %v10577, %v10985
      %v11256 = vadd.f32 %v10576, %v10987
      %v11257 = vadd.f32 %v10578, %v10989
      %v11258 = vadd.f32 %v10586, %v10991
      %v11259 = vadd.f32 %v10594, %v10993
      %v11260 = vadd.f32 %v10593, %v10995
      %v11261 = vadd.f32 %v10595, %v10997
      %v11262 = vadd.f32 %v10603, %v10999
      %v11263 = vadd.f32 %v10611, %v11001
      %v11264 = vadd.f32 %v10610, %v11003
      %v11265 = vadd.f32 %v10612, %v11005
      %v11266 = vadd.f32 %v10620, %v11007
      %v11267 = vadd.f32 %v10628, %v11009
      %v11268 = vadd.f32 %v10627, %v11011
      %v11269 = vadd.f32 %v10629, %v11013
      %v11270 = vmul.f32 %v11142, 0.5
      %v11271 = vmul.f32 %v11143, 0.5
      %v11272 = vmul.f32 %v11144, 0.5
      %v11273 = vmul.f32 %v11145, 0.5
      %v11274 = vmul.f32 %v11146, 0.5
      %v11275 = vmul.f32 %v11147, 0.5
      %v11276 = vmul.f32 %v11148, 0.5
      %v11277 = vmul.f32 %v11149, 0.5
      %v11278 = vmul.f32 %v11150, 0.5
      %v11279 = vmul.f32 %v11151, 0.5
      %v11280 = vmul.f32 %v11152, 0.5
      %v11281 = vmul.f32 %v11153, 0.5
      %v11282 = vmul.f32 %v11154, 0.5
      %v11283 = vmul.f32 %v11155, 0.5
      %v11284 = vmul.f32 %v11156, 0.5
      %v11285 = vmul.f32 %v11157, 0.5
      %v11286 = vmul.f32 %v11158, 0.5
      %v11287 = vmul.f32 %v11159, 0.5
      %v11288 = vmul.f32 %v11160, 0.5
      %v11289 = vmul.f32 %v11161, 0.5
      %v11290 = vmul.f32 %v11162, 0.5
      %v11291 = vmul.f32 %v11163, 0.5
      %v11292 = vmul.f32 %v11164, 0.5
      %v11293 = vmul.f32 %v11165, 0.5
      %v11294 = vmul.f32 %v11166, 0.5
      %v11295 = vmul.f32 %v11167, 0.5
      %v11296 = vmul.f32 %v11168, 0.5
      %v11297 = vmul.f32 %v11169, 0.5
      %v11298 = vmul.f32 %v11170, 0.5
      %v11299 = vmul.f32 %v11171, 0.5
      %v11300 = vmul.f32 %v11172, 0.5
      %v11301 = vmul.f32 %v11173, 0.5
      %v11302 = vmul.f32 %v11174, 0.5
      %v11303 = vmul.f32 %v11175, 0.5
      %v11304 = vmul.f32 %v11176, 0.5
      %v11305 = vmul.f32 %v11177, 0.5
      %v11306 = vmul.f32 %v11178, 0.5
      %v11307 = vmul.f32 %v11179, 0.5
      %v11308 = vmul.f32 %v11180, 0.5
      %v11309 = vmul.f32 %v11181, 0.5
      %v11310 = vmul.f32 %v11182, 0.5
      %v11311 = vmul.f32 %v11183, 0.5
      %v11312 = vmul.f32 %v11184, 0.5
      %v11313 = vmul.f32 %v11185, 0.5
      %v11314 = vmul.f32 %v11186, 0.5
      %v11315 = vmul.f32 %v11187, 0.5
      %v11316 = vmul.f32 %v11188, 0.5
      %v11317 = vmul.f32 %v11189, 0.5
      %v11318 = vmul.f32 %v11190, 0.5
      %v11319 = vmul.f32 %v11191, 0.5
      %v11320 = vmul.f32 %v11192, 0.5
      %v11321 = vmul.f32 %v11193, 0.5
      %v11322 = vmul.f32 %v11194, 0.5
      %v11323 = vmul.f32 %v11195, 0.5
      %v11324 = vmul.f32 %v11196, 0.5
      %v11325 = vmul.f32 %v11197, 0.5
      %v11326 = vmul.f32 %v11198, 0.5
      %v11327 = vmul.f32 %v11199, 0.5
      %v11328 = vmul.f32 %v11200, 0.5
      %v11329 = vmul.f32 %v11201, 0.5
      %v11330 = vmul.f32 %v11202, 0.5
      %v11331 = vmul.f32 %v11203, 0.5
      %v11332 = vmul.f32 %v11204, 0.5
      %v11333 = vmul.f32 %v11205, 0.5
      %v11334 = vmul.f32 %v11206, 0.5
      %v11335 = vmul.f32 %v11207, 0.5
      %v11336 = vmul.f32 %v11208, 0.5
      %v11337 = vmul.f32 %v11209, 0.5
      %v11338 = vmul.f32 %v11210, 0.5
      %v11339 = vmul.f32 %v11211, 0.5
      %v11340 = vmul.f32 %v11212, 0.5
      %v11341 = vmul.f32 %v11213, 0.5
      %v11342 = vmul.f32 %v11214, 0.5
      %v11343 = vmul.f32 %v11215, 0.5
      %v11344 = vmul.f32 %v11216, 0.5
      %v11345 = vmul.f32 %v11217, 0.5
      %v11346 = vmul.f32 %v11218, 0.5
      %v11347 = vmul.f32 %v11219, 0.5
      %v11348 = vmul.f32 %v11220, 0.5
      %v11349 = vmul.f32 %v11221, 0.5
      %v11350 = vmul.f32 %v11222, 0.5
      %v11351 = vmul.f32 %v11223, 0.5
      %v11352 = vmul.f32 %v11224, 0.5
      %v11353 = vmul.f32 %v11225, 0.5
      %v11354 = vmul.f32 %v11226, 0.5
      %v11355 = vmul.f32 %v11227, 0.5
      %v11356 = vmul.f32 %v11228, 0.5
      %v11357 = vmul.f32 %v11229, 0.5
      %v11358 = vmul.f32 %v11230, 0.5
      %v11359 = vmul.f32 %v11231, 0.5
      %v11360 = vmul.f32 %v11232, 0.5
      %v11361 = vmul.f32 %v11233, 0.5
      %v11362 = vmul.f32 %v11234, 0.5
      %v11363 = vmul.f32 %v11235, 0.5
      %v11364 = vmul.f32 %v11236, 0.5
      %v11365 = vmul.f32 %v11237, 0.5
      %v11366 = vmul.f32 %v11238, 0.5
      %v11367 = vmul.f32 %v11239, 0.5
      %v11368 = vmul.f32 %v11240, 0.5
      %v11369 = vmul.f32 %v11241, 0.5
      %v11370 = vmul.f32 %v11242, 0.5
      %v11371 = vmul.f32 %v11243, 0.5
      %v11372 = vmul.f32 %v11244, 0.5
      %v11373 = vmul.f32 %v11245, 0.5
      %v11374 = vmul.f32 %v11246, 0.5
      %v11375 = vmul.f32 %v11247, 0.5
      %v11376 = vmul.f32 %v11248, 0.5
      %v11377 = vmul.f32 %v11249, 0.5
      %v11378 = vmul.f32 %v11250, 0.5
      %v11379 = vmul.f32 %v11251, 0.5
      %v11380 = vmul.f32 %v11252, 0.5
      %v11381 = vmul.f32 %v11253, 0.5
      %v11382 = vmul.f32 %v11254, 0.5
      %v11383 = vmul.f32 %v11255, 0.5
      %v11384 = vmul.f32 %v11256, 0.5
      %v11385 = vmul.f32 %v11257, 0.5
      %v11386 = vmul.f32 %v11258, 0.5
      %v11387 = vmul.f32 %v11259, 0.5
      %v11388 = vmul.f32 %v11260, 0.5
      %v11389 = vmul.f32 %v11261, 0.5
      %v11390 = vmul.f32 %v11262, 0.5
      %v11391 = vmul.f32 %v11263, 0.5
      %v11392 = vmul.f32 %v11264, 0.5
      %v11393 = vmul.f32 %v11265, 0.5
      %v11394 = vmul.f32 %v11266, 0.5
      %v11395 = vmul.f32 %v11267, 0.5
      %v11396 = vmul.f32 %v11268, 0.5
      %v11397 = vmul.f32 %v11269, 0.5
      %v11398 = vadd.f32 %v11270, %v11278
      %v11399 = vadd.f32 %v11271, %v11279
      %v11400 = vadd.f32 %v11272, %v11280
      %v11401 = vadd.f32 %v11273, %v11281
      %v11402 = vadd.f32 %v11274, %v11282
      %v11403 = vadd.f32 %v11275, %v11283
      %v11404 = vadd.f32 %v11276, %v11284
      %v11405 = vadd.f32 %v11277, %v11285
      %v11406 = vadd.f32 %v11286, %v11294
      %v11407 = vadd.f32 %v11287, %v11295
      %v11408 = vadd.f32 %v11288, %v11296
      %v11409 = vadd.f32 %v11289, %v11297
      %v11410 = vadd.f32 %v11290, %v11298
      %v11411 = vadd.f32 %v11291, %v11299
      %v11412 = vadd.f32 %v11292, %v11300
      %v11413 = vadd.f32 %v11293, %v11301
      %v11414 = vadd.f32 %v11302, %v11310
      %v11415 = vadd.f32 %v11303, %v11311
      %v11416 = vadd.f32 %v11304, %v11312
      %v11417 = vadd.f32 %v11305, %v11313
      %v11418 = vadd.f32 %v11306, %v11314
      %v11419 = vadd.f32 %v11307, %v11315
      %v11420 = vadd.f32 %v11308, %v11316
      %v11421 = vadd.f32 %v11309, %v11317
      %v11422 = vadd.f32 %v11318, %v11326
      %v11423 = vadd.f32 %v11319, %v11327
      %v11424 = vadd.f32 %v11320, %v11328
      %v11425 = vadd.f32 %v11321, %v11329
      %v11426 = vadd.f32 %v11322, %v11330
      %v11427 = vadd.f32 %v11323, %v11331
      %v11428 = vadd.f32 %v11324, %v11332
      %v11429 = vadd.f32 %v11325, %v11333
      %v11430 = vadd.f32 %v11334, %v11342
      %v11431 = vadd.f32 %v11335, %v11343
      %v11432 = vadd.f32 %v11336, %v11344
      %v11433 = vadd.f32 %v11337, %v11345
      %v11434 = vadd.f32 %v11338, %v11346
      %v11435 = vadd.f32 %v11339, %v11347
      %v11436 = vadd.f32 %v11340, %v11348
      %v11437 = vadd.f32 %v11341, %v11349
      %v11438 = vadd.f32 %v11350, %v11358
      %v11439 = vadd.f32 %v11351, %v11359
      %v11440 = vadd.f32 %v11352, %v11360
      %v11441 = vadd.f32 %v11353, %v11361
      %v11442 = vadd.f32 %v11354, %v11362
      %v11443 = vadd.f32 %v11355, %v11363
      %v11444 = vadd.f32 %v11356, %v11364
      %v11445 = vadd.f32 %v11357, %v11365
      %v11446 = vadd.f32 %v11366, %v11374
      %v11447 = vadd.f32 %v11367, %v11375
      %v11448 = vadd.f32 %v11368, %v11376
      %v11449 = vadd.f32 %v11369, %v11377
      %v11450 = vadd.f32 %v11370, %v11378
      %v11451 = vadd.f32 %v11371, %v11379
      %v11452 = vadd.f32 %v11372, %v11380
      %v11453 = vadd.f32 %v11373, %v11381
      %v11454 = vadd.f32 %v11382, %v11390
      %v11455 = vadd.f32 %v11383, %v11391
      %v11456 = vadd.f32 %v11384, %v11392
      %v11457 = vadd.f32 %v11385, %v11393
      %v11458 = vadd.f32 %v11386, %v11394
      %v11459 = vadd.f32 %v11387, %v11395
      %v11460 = vadd.f32 %v11388, %v11396
      %v11461 = vadd.f32 %v11389, %v11397
      %v11462 = vmul.f32 %v11398, 0.5
      %v11463 = vmul.f32 %v11399, 0.5
      %v11464 = vmul.f32 %v11400, 0.5
      %v11465 = vmul.f32 %v11401, 0.5
      %v11466 = vmul.f32 %v11402, 0.5
      %v11467 = vmul.f32 %v11403, 0.5
      %v11468 = vmul.f32 %v11404, 0.5
      %v11469 = vmul.f32 %v11405, 0.5
      %v11470 = vmul.f32 %v11406, 0.5
      %v11471 = vmul.f32 %v11407, 0.5
      %v11472 = vmul.f32 %v11408, 0.5
      %v11473 = vmul.f32 %v11409, 0.5
      %v11474 = vmul.f32 %v11410, 0.5
      %v11475 = vmul.f32 %v11411, 0.5
      %v11476 = vmul.f32 %v11412, 0.5
      %v11477 = vmul.f32 %v11413, 0.5
      %v11478 = vmul.f32 %v11414, 0.5
      %v11479 = vmul.f32 %v11415, 0.5
      %v11480 = vmul.f32 %v11416, 0.5
      %v11481 = vmul.f32 %v11417, 0.5
      %v11482 = vmul.f32 %v11418, 0.5
      %v11483 = vmul.f32 %v11419, 0.5
      %v11484 = vmul.f32 %v11420, 0.5
      %v11485 = vmul.f32 %v11421, 0.5
      %v11486 = vmul.f32 %v11422, 0.5
      %v11487 = vmul.f32 %v11423, 0.5
      %v11488 = vmul.f32 %v11424, 0.5
      %v11489 = vmul.f32 %v11425, 0.5
      %v11490 = vmul.f32 %v11426, 0.5
      %v11491 = vmul.f32 %v11427, 0.5
      %v11492 = vmul.f32 %v11428, 0.5
      %v11493 = vmul.f32 %v11429, 0.5
      %v11494 = vmul.f32 %v11430, 0.5
      %v11495 = vmul.f32 %v11431, 0.5
      %v11496 = vmul.f32 %v11432, 0.5
      %v11497 = vmul.f32 %v11433, 0.5
      %v11498 = vmul.f32 %v11434, 0.5
      %v11499 = vmul.f32 %v11435, 0.5
      %v11500 = vmul.f32 %v11436, 0.5
      %v11501 = vmul.f32 %v11437, 0.5
      %v11502 = vmul.f32 %v11438, 0.5
      %v11503 = vmul.f32 %v11439, 0.5
      %v11504 = vmul.f32 %v11440, 0.5
      %v11505 = vmul.f32 %v11441, 0.5
      %v11506 = vmul.f32 %v11442, 0.5
      %v11507 = vmul.f32 %v11443, 0.5
      %v11508 = vmul.f32 %v11444, 0.5
      %v11509 = vmul.f32 %v11445, 0.5
      %v11510 = vmul.f32 %v11446, 0.5
      %v11511 = vmul.f32 %v11447, 0.5
      %v11512 = vmul.f32 %v11448, 0.5
      %v11513 = vmul.f32 %v11449, 0.5
      %v11514 = vmul.f32 %v11450, 0.5
      %v11515 = vmul.f32 %v11451, 0.5
      %v11516 = vmul.f32 %v11452, 0.5
      %v11517 = vmul.f32 %v11453, 0.5
      %v11518 = vmul.f32 %v11454, 0.5
      %v11519 = vmul.f32 %v11455, 0.5
      %v11520 = vmul.f32 %v11456, 0.5
      %v11521 = vmul.f32 %v11457, 0.5
      %v11522 = vmul.f32 %v11458, 0.5
      %v11523 = vmul.f32 %v11459, 0.5
      %v11524 = vmul.f32 %v11460, 0.5
      %v11525 = vmul.f32 %v11461, 0.5
      %v11526 = vpack.c.bf16 %v11462, %v11462
      %v11527 = vpack.c.bf16 %v11463, %v11463
      %v11528 = vpack.c.bf16 %v11464, %v11464
      %v11529 = vpack.c.bf16 %v11465, %v11465
      %v11530 = vpack.c.bf16 %v11466, %v11466
      %v11531 = vpack.c.bf16 %v11467, %v11467
      %v11532 = vpack.c.bf16 %v11468, %v11468
      %v11533 = vpack.c.bf16 %v11469, %v11469
      %v11534 = vpack.c.bf16 %v11470, %v11470
      %v11535 = vpack.c.bf16 %v11471, %v11471
      %v11536 = vpack.c.bf16 %v11472, %v11472
      %v11537 = vpack.c.bf16 %v11473, %v11473
      %v11538 = vpack.c.bf16 %v11474, %v11474
      %v11539 = vpack.c.bf16 %v11475, %v11475
      %v11540 = vpack.c.bf16 %v11476, %v11476
      %v11541 = vpack.c.bf16 %v11477, %v11477
      %v11542 = vpack.c.bf16 %v11478, %v11478
      %v11543 = vpack.c.bf16 %v11479, %v11479
      %v11544 = vpack.c.bf16 %v11480, %v11480
      %v11545 = vpack.c.bf16 %v11481, %v11481
      %v11546 = vpack.c.bf16 %v11482, %v11482
      %v11547 = vpack.c.bf16 %v11483, %v11483
      %v11548 = vpack.c.bf16 %v11484, %v11484
      %v11549 = vpack.c.bf16 %v11485, %v11485
      %v11550 = vpack.c.bf16 %v11486, %v11486
      %v11551 = vpack.c.bf16 %v11487, %v11487
      %v11552 = vpack.c.bf16 %v11488, %v11488
      %v11553 = vpack.c.bf16 %v11489, %v11489
      %v11554 = vpack.c.bf16 %v11490, %v11490
      %v11555 = vpack.c.bf16 %v11491, %v11491
      %v11556 = vpack.c.bf16 %v11492, %v11492
      %v11557 = vpack.c.bf16 %v11493, %v11493
      %v11558 = vpack.c.bf16 %v11494, %v11494
      %v11559 = vpack.c.bf16 %v11495, %v11495
      %v11560 = vpack.c.bf16 %v11496, %v11496
      %v11561 = vpack.c.bf16 %v11497, %v11497
      %v11562 = vpack.c.bf16 %v11498, %v11498
      %v11563 = vpack.c.bf16 %v11499, %v11499
      %v11564 = vpack.c.bf16 %v11500, %v11500
      %v11565 = vpack.c.bf16 %v11501, %v11501
      %v11566 = vpack.c.bf16 %v11502, %v11502
      %v11567 = vpack.c.bf16 %v11503, %v11503
      %v11568 = vpack.c.bf16 %v11504, %v11504
      %v11569 = vpack.c.bf16 %v11505, %v11505
      %v11570 = vpack.c.bf16 %v11506, %v11506
      %v11571 = vpack.c.bf16 %v11507, %v11507
      %v11572 = vpack.c.bf16 %v11508, %v11508
      %v11573 = vpack.c.bf16 %v11509, %v11509
      %v11574 = vpack.c.bf16 %v11510, %v11510
      %v11575 = vpack.c.bf16 %v11511, %v11511
      %v11576 = vpack.c.bf16 %v11512, %v11512
      %v11577 = vpack.c.bf16 %v11513, %v11513
      %v11578 = vpack.c.bf16 %v11514, %v11514
      %v11579 = vpack.c.bf16 %v11515, %v11515
      %v11580 = vpack.c.bf16 %v11516, %v11516
      %v11581 = vpack.c.bf16 %v11517, %v11517
      %v11582 = vpack.c.bf16 %v11518, %v11518
      %v11583 = vpack.c.bf16 %v11519, %v11519
      %v11584 = vpack.c.bf16 %v11520, %v11520
      %v11585 = vpack.c.bf16 %v11521, %v11521
      %v11586 = vpack.c.bf16 %v11522, %v11522
      %v11587 = vpack.c.bf16 %v11523, %v11523
      %v11588 = vpack.c.bf16 %v11524, %v11524
      %v11589 = vpack.c.bf16 %v11525, %v11525
      %v11590 = vld [vmem:[%s5] sm:$0x3]
      %v11591 = vld [vmem:[%s6] sm:$0x1]
      %v11593 = vlaneseq
      %v11594 = vshrl.u32 %v11593, 7
      %v11595 = vsub.s32 0, %v11594
      %v11596 = vrot.slane %v11591, %v11595
      %v11662 = vunpack.c.l.b16 %v11526
      %v11663 = vunpack.c.l.b16 %v11527
      %v11664 = vunpack.c.l.b16 %v11528
      %v11665 = vunpack.c.l.b16 %v11529
      %v11666 = vunpack.c.l.b16 %v11530
      %v11667 = vunpack.c.l.b16 %v11531
      %v11668 = vunpack.c.l.b16 %v11532
      %v11669 = vunpack.c.l.b16 %v11533
      %v11670 = vunpack.c.l.b16 %v11534
      %v11671 = vunpack.c.l.b16 %v11535
      %v11672 = vunpack.c.l.b16 %v11536
      %v11673 = vunpack.c.l.b16 %v11537
      %v11674 = vunpack.c.l.b16 %v11538
      %v11675 = vunpack.c.l.b16 %v11539
      %v11676 = vunpack.c.l.b16 %v11540
      %v11677 = vunpack.c.l.b16 %v11541
      %v11678 = vunpack.c.l.b16 %v11542
      %v11679 = vunpack.c.l.b16 %v11543
      %v11680 = vunpack.c.l.b16 %v11544
      %v11681 = vunpack.c.l.b16 %v11545
      %v11682 = vunpack.c.l.b16 %v11546
      %v11683 = vunpack.c.l.b16 %v11547
      %v11684 = vunpack.c.l.b16 %v11548
      %v11685 = vunpack.c.l.b16 %v11549
      %v11686 = vunpack.c.l.b16 %v11550
      %v11687 = vunpack.c.l.b16 %v11551
      %v11688 = vunpack.c.l.b16 %v11552
      %v11689 = vunpack.c.l.b16 %v11553
      %v11690 = vunpack.c.l.b16 %v11554
      %v11691 = vunpack.c.l.b16 %v11555
      %v11692 = vunpack.c.l.b16 %v11556
      %v11693 = vunpack.c.l.b16 %v11557
      %v11694 = vunpack.c.l.b16 %v11558
      %v11695 = vunpack.c.l.b16 %v11559
      %v11696 = vunpack.c.l.b16 %v11560
      %v11697 = vunpack.c.l.b16 %v11561
      %v11698 = vunpack.c.l.b16 %v11562
      %v11699 = vunpack.c.l.b16 %v11563
      %v11700 = vunpack.c.l.b16 %v11564
      %v11701 = vunpack.c.l.b16 %v11565
      %v11702 = vunpack.c.l.b16 %v11566
      %v11703 = vunpack.c.l.b16 %v11567
      %v11704 = vunpack.c.l.b16 %v11568
      %v11705 = vunpack.c.l.b16 %v11569
      %v11706 = vunpack.c.l.b16 %v11570
      %v11707 = vunpack.c.l.b16 %v11571
      %v11708 = vunpack.c.l.b16 %v11572
      %v11709 = vunpack.c.l.b16 %v11573
      %v11710 = vunpack.c.l.b16 %v11574
      %v11711 = vunpack.c.l.b16 %v11575
      %v11712 = vunpack.c.l.b16 %v11576
      %v11713 = vunpack.c.l.b16 %v11577
      %v11714 = vunpack.c.l.b16 %v11578
      %v11715 = vunpack.c.l.b16 %v11579
      %v11716 = vunpack.c.l.b16 %v11580
      %v11717 = vunpack.c.l.b16 %v11581
      %v11718 = vunpack.c.l.b16 %v11582
      %v11719 = vunpack.c.l.b16 %v11583
      %v11720 = vunpack.c.l.b16 %v11584
      %v11721 = vunpack.c.l.b16 %v11585
      %v11722 = vunpack.c.l.b16 %v11586
      %v11723 = vunpack.c.l.b16 %v11587
      %v11724 = vunpack.c.l.b16 %v11588
      %v11725 = vunpack.c.l.b16 %v11589
      %v11726 = vrot.slane %v11663, 7
      %vm11727 = vcmask 1041409
      %v11728 = vsel %vm11727, %v11726, %v11662
      %v11729 = vrot.slane %v11664, 6
      %vm11730 = vcmask 1042434
      %v11731 = vsel %vm11730, %v11729, %v11728
      %v11732 = vrot.slane %v11665, 5
      %vm11733 = vcmask 1043459
      %v11734 = vsel %vm11733, %v11732, %v11731
      %v11735 = vrot.slane %v11666, 4
      %vm11736 = vcmask 1044484
      %v11737 = vsel %vm11736, %v11735, %v11734
      %v11738 = vrot.slane %v11667, 3
      %vm11739 = vcmask 1045509
      %v11740 = vsel %vm11739, %v11738, %v11737
      %v11741 = vrot.slane %v11668, 2
      %vm11742 = vcmask 1046534
      %v11743 = vsel %vm11742, %v11741, %v11740
      %v11744 = vrot.slane %v11669, 1
      %vm11745 = vcmask 1047559
      %v11746 = vsel %vm11745, %v11744, %v11743
      %v11747 = vrot.slane %v11671, 7
      %v11748 = vsel %vm11727, %v11747, %v11670
      %v11749 = vrot.slane %v11672, 6
      %v11750 = vsel %vm11730, %v11749, %v11748
      %v11751 = vrot.slane %v11673, 5
      %v11752 = vsel %vm11733, %v11751, %v11750
      %v11753 = vrot.slane %v11674, 4
      %v11754 = vsel %vm11736, %v11753, %v11752
      %v11755 = vrot.slane %v11675, 3
      %v11756 = vsel %vm11739, %v11755, %v11754
      %v11757 = vrot.slane %v11676, 2
      %v11758 = vsel %vm11742, %v11757, %v11756
      %v11759 = vrot.slane %v11677, 1
      %v11760 = vsel %vm11745, %v11759, %v11758
      %v11761 = vrot.slane %v11679, 7
      %v11762 = vsel %vm11727, %v11761, %v11678
      %v11763 = vrot.slane %v11680, 6
      %v11764 = vsel %vm11730, %v11763, %v11762
      %v11765 = vrot.slane %v11681, 5
      %v11766 = vsel %vm11733, %v11765, %v11764
      %v11767 = vrot.slane %v11682, 4
      %v11768 = vsel %vm11736, %v11767, %v11766
      %v11769 = vrot.slane %v11683, 3
      %v11770 = vsel %vm11739, %v11769, %v11768
      %v11771 = vrot.slane %v11684, 2
      %v11772 = vsel %vm11742, %v11771, %v11770
      %v11773 = vrot.slane %v11685, 1
      %v11774 = vsel %vm11745, %v11773, %v11772
      %v11775 = vrot.slane %v11687, 7
      %v11776 = vsel %vm11727, %v11775, %v11686
      %v11777 = vrot.slane %v11688, 6
      %v11778 = vsel %vm11730, %v11777, %v11776
      %v11779 = vrot.slane %v11689, 5
      %v11780 = vsel %vm11733, %v11779, %v11778
      %v11781 = vrot.slane %v11690, 4
      %v11782 = vsel %vm11736, %v11781, %v11780
      %v11783 = vrot.slane %v11691, 3
      %v11784 = vsel %vm11739, %v11783, %v11782
      %v11785 = vrot.slane %v11692, 2
      %v11786 = vsel %vm11742, %v11785, %v11784
      %v11787 = vrot.slane %v11693, 1
      %v11788 = vsel %vm11745, %v11787, %v11786
      %v11789 = vrot.slane %v11695, 7
      %v11790 = vsel %vm11727, %v11789, %v11694
      %v11791 = vrot.slane %v11696, 6
      %v11792 = vsel %vm11730, %v11791, %v11790
      %v11793 = vrot.slane %v11697, 5
      %v11794 = vsel %vm11733, %v11793, %v11792
      %v11795 = vrot.slane %v11698, 4
      %v11796 = vsel %vm11736, %v11795, %v11794
      %v11797 = vrot.slane %v11699, 3
      %v11798 = vsel %vm11739, %v11797, %v11796
      %v11799 = vrot.slane %v11700, 2
      %v11800 = vsel %vm11742, %v11799, %v11798
      %v11801 = vrot.slane %v11701, 1
      %v11802 = vsel %vm11745, %v11801, %v11800
      %v11803 = vrot.slane %v11703, 7
      %v11804 = vsel %vm11727, %v11803, %v11702
      %v11805 = vrot.slane %v11704, 6
      %v11806 = vsel %vm11730, %v11805, %v11804
      %v11807 = vrot.slane %v11705, 5
      %v11808 = vsel %vm11733, %v11807, %v11806
      %v11809 = vrot.slane %v11706, 4
      %v11810 = vsel %vm11736, %v11809, %v11808
      %v11811 = vrot.slane %v11707, 3
      %v11812 = vsel %vm11739, %v11811, %v11810
      %v11813 = vrot.slane %v11708, 2
      %v11814 = vsel %vm11742, %v11813, %v11812
      %v11815 = vrot.slane %v11709, 1
      %v11816 = vsel %vm11745, %v11815, %v11814
      %v11817 = vrot.slane %v11711, 7
      %v11818 = vsel %vm11727, %v11817, %v11710
      %v11819 = vrot.slane %v11712, 6
      %v11820 = vsel %vm11730, %v11819, %v11818
      %v11821 = vrot.slane %v11713, 5
      %v11822 = vsel %vm11733, %v11821, %v11820
      %v11823 = vrot.slane %v11714, 4
      %v11824 = vsel %vm11736, %v11823, %v11822
      %v11825 = vrot.slane %v11715, 3
      %v11826 = vsel %vm11739, %v11825, %v11824
      %v11827 = vrot.slane %v11716, 2
      %v11828 = vsel %vm11742, %v11827, %v11826
      %v11829 = vrot.slane %v11717, 1
      %v11830 = vsel %vm11745, %v11829, %v11828
      %v11831 = vrot.slane %v11719, 7
      %v11832 = vsel %vm11727, %v11831, %v11718
      %v11833 = vrot.slane %v11720, 6
      %v11834 = vsel %vm11730, %v11833, %v11832
      %v11835 = vrot.slane %v11721, 5
      %v11836 = vsel %vm11733, %v11835, %v11834
      %v11837 = vrot.slane %v11722, 4
      %v11838 = vsel %vm11736, %v11837, %v11836
      %v11839 = vrot.slane %v11723, 3
      %v11840 = vsel %vm11739, %v11839, %v11838
      %v11841 = vrot.slane %v11724, 2
      %v11842 = vsel %vm11742, %v11841, %v11840
      %v11843 = vrot.slane %v11725, 1
      %v11844 = vsel %vm11745, %v11843, %v11842
      %v11845 = vpack.c.b16 %v11760, %v11746
      %v11846 = vpack.c.b16 %v11788, %v11774
      %v11847 = vpack.c.b16 %v11816, %v11802
      %v11848 = vpack.c.b16 %v11844, %v11830
      %vm11849 = vcmask 31744
      %v11851 = vsel %vm11849, %v11845, 0
      %v11854 = vsel %vm11849, %v11846, 0
      %v11857 = vsel %vm11849, %v11847, 0
      %v11860 = vsel %vm11849, %v11848, 0
      %v11863 = vsel %vm4342, %v11590, 0
      %11865 = vmatprep.subr.bf16.mxu0 0
      %11866 = vmatpush1.bf16.msra.mxu0 0
      %11867 = vmatprep.subr.bf16.mxu0 0
      %11868 = vmatpush1.bf16.msra.mxu0 0
      %11869 = vmatprep.subr.bf16.mxu0 0
      %11870 = vmatpush1.bf16.msra.mxu0 0
      %11871 = vmatprep.subr.bf16.mxu0 0
      %11872 = vmatpush1.bf16.msra.mxu0 0
      %11873 = vmatprep.subr.bf16.mxu0 0
      %11874 = vmatpush1.bf16.msra.mxu0 0
      %11875 = vmatprep.subr.bf16.mxu0 0
      %11876 = vmatpush1.bf16.msra.mxu0 0
      %11877 = vmatprep.subr.bf16.mxu0 0
      %11878 = vmatpush1.bf16.msra.mxu0 0
      %11879 = vmatprep.subr.bf16.mxu0 0
      %11880 = vmatpush1.bf16.msra.mxu0 %v11863
      %11881 = vmatprep.subr.bf16.mxu0 0
      %11882 = vmatpush2.bf16.msra.mxu0 0
      %11883 = vmatprep.subr.bf16.mxu0 0
      %11884 = vmatpush2.bf16.msra.mxu0 0
      %11885 = vmatprep.subr.bf16.mxu0 0
      %11886 = vmatpush2.bf16.msra.mxu0 0
      %11887 = vmatprep.subr.bf16.mxu0 0
      %11888 = vmatpush2.bf16.msra.mxu0 0
      %11889 = vmatprep.subr.bf16.mxu0 0
      %11890 = vmatpush2.bf16.msra.mxu0 0
      %11891 = vmatprep.subr.bf16.mxu0 0
      %11892 = vmatpush2.bf16.msra.mxu0 0
      %11893 = vmatprep.subr.bf16.mxu0 0
      %11894 = vmatpush2.bf16.msra.mxu0 0
      %11895 = vmatprep.subr.bf16.mxu0 0
      %11896 = vmatpush2.bf16.msra.mxu0 0
      %11897 = vmatprep.mubr.bf16.mxu0 0
      %11898 = vmatmul.mubr.bf16.gmra.mxu0 %v11851
      %v11899 = vpop.f32.mrf.mxu0
      %v11900 = vadd.f32 %v11596, %v11899
      %v11901 = vpop.f32.mrf.mxu0
      %v11902 = vpop.f32.mrf.mxu0
      %v11903 = vadd.f32 %v11596, %v11902
      %v11904 = vpop.f32.mrf.mxu0
      %11905 = vmatprep.mubr.bf16.mxu0 0
      %11906 = vmatmul.mubr.bf16.gmra.mxu0 %v11854
      %v11907 = vpop.f32.mrf.mxu0
      %v11908 = vadd.f32 %v11596, %v11907
      %v11909 = vpop.f32.mrf.mxu0
      %v11910 = vpop.f32.mrf.mxu0
      %v11911 = vadd.f32 %v11596, %v11910
      %v11912 = vpop.f32.mrf.mxu0
      %11913 = vmatprep.mubr.bf16.mxu0 0
      %11914 = vmatmul.mubr.bf16.gmra.mxu0 %v11857
      %v11915 = vpop.f32.mrf.mxu0
      %v11916 = vadd.f32 %v11596, %v11915
      %v11917 = vpop.f32.mrf.mxu0
      %v11918 = vpop.f32.mrf.mxu0
      %v11919 = vadd.f32 %v11596, %v11918
      %v11920 = vpop.f32.mrf.mxu0
      %11921 = vmatprep.mubr.bf16.mxu0 0
      %11922 = vmatmul.mubr.bf16.gmra.mxu0 %v11860
      %v11923 = vpop.f32.mrf.mxu0
      %v11924 = vadd.f32 %v11596, %v11923
      %v11925 = vpop.f32.mrf.mxu0
      %v11926 = vpop.f32.mrf.mxu0
      %v11927 = vadd.f32 %v11596, %v11926
      %v11928 = vpop.f32.mrf.mxu0
      %11929 = vdwg.mxu0
      %v11938 = vcombine.high %v11900, %v11900
      %v11940 = vunpack.c.l.s4 1983009808
      %v11941 = vunpack.c.0.s8 %v11940
      %v11942 = vlaneseq
      %v11943 = vshrl.u32 %v11942, 7
      %v11944 = vsub.s32 %v11941, %v11943
      %v11945 = vrot.slane %v11900, %v11944
      %v11947 = vunpack.c.l.s4 1983009808
      %v11948 = vunpack.c.0.s8 %v11947
      %v11949 = vlaneseq
      %v11950 = vshrl.u32 %v11949, 7
      %v11951 = vsub.s32 %v11948, %v11950
      %v11952 = vrot.slane %v11938, %v11951
      %v11953 = vcombine.high %v11945, %v11945
      %v11954 = vcombine.high %v11952, %v11952
      %v11955 = vcombine.high %v11903, %v11903
      %v11957 = vunpack.c.l.s4 1983009808
      %v11958 = vunpack.c.0.s8 %v11957
      %v11959 = vlaneseq
      %v11960 = vshrl.u32 %v11959, 7
      %v11961 = vsub.s32 %v11958, %v11960
      %v11962 = vrot.slane %v11903, %v11961
      %v11964 = vunpack.c.l.s4 1983009808
      %v11965 = vunpack.c.0.s8 %v11964
      %v11966 = vlaneseq
      %v11967 = vshrl.u32 %v11966, 7
      %v11968 = vsub.s32 %v11965, %v11967
      %v11969 = vrot.slane %v11955, %v11968
      %v11970 = vcombine.high %v11962, %v11962
      %v11971 = vcombine.high %v11969, %v11969
      %v11972 = vcombine.high %v11908, %v11908
      %v11974 = vunpack.c.l.s4 1983009808
      %v11975 = vunpack.c.0.s8 %v11974
      %v11976 = vlaneseq
      %v11977 = vshrl.u32 %v11976, 7
      %v11978 = vsub.s32 %v11975, %v11977
      %v11979 = vrot.slane %v11908, %v11978
      %v11981 = vunpack.c.l.s4 1983009808
      %v11982 = vunpack.c.0.s8 %v11981
      %v11983 = vlaneseq
      %v11984 = vshrl.u32 %v11983, 7
      %v11985 = vsub.s32 %v11982, %v11984
      %v11986 = vrot.slane %v11972, %v11985
      %v11987 = vcombine.high %v11979, %v11979
      %v11988 = vcombine.high %v11986, %v11986
      %v11989 = vcombine.high %v11911, %v11911
      %v11991 = vunpack.c.l.s4 1983009808
      %v11992 = vunpack.c.0.s8 %v11991
      %v11993 = vlaneseq
      %v11994 = vshrl.u32 %v11993, 7
      %v11995 = vsub.s32 %v11992, %v11994
      %v11996 = vrot.slane %v11911, %v11995
      %v11998 = vunpack.c.l.s4 1983009808
      %v11999 = vunpack.c.0.s8 %v11998
      %v12000 = vlaneseq
      %v12001 = vshrl.u32 %v12000, 7
      %v12002 = vsub.s32 %v11999, %v12001
      %v12003 = vrot.slane %v11989, %v12002
      %v12004 = vcombine.high %v11996, %v11996
      %v12005 = vcombine.high %v12003, %v12003
      %v12006 = vcombine.high %v11916, %v11916
      %v12008 = vunpack.c.l.s4 1983009808
      %v12009 = vunpack.c.0.s8 %v12008
      %v12010 = vlaneseq
      %v12011 = vshrl.u32 %v12010, 7
      %v12012 = vsub.s32 %v12009, %v12011
      %v12013 = vrot.slane %v11916, %v12012
      %v12015 = vunpack.c.l.s4 1983009808
      %v12016 = vunpack.c.0.s8 %v12015
      %v12017 = vlaneseq
      %v12018 = vshrl.u32 %v12017, 7
      %v12019 = vsub.s32 %v12016, %v12018
      %v12020 = vrot.slane %v12006, %v12019
      %v12021 = vcombine.high %v12013, %v12013
      %v12022 = vcombine.high %v12020, %v12020
      %v12023 = vcombine.high %v11919, %v11919
      %v12025 = vunpack.c.l.s4 1983009808
      %v12026 = vunpack.c.0.s8 %v12025
      %v12027 = vlaneseq
      %v12028 = vshrl.u32 %v12027, 7
      %v12029 = vsub.s32 %v12026, %v12028
      %v12030 = vrot.slane %v11919, %v12029
      %v12032 = vunpack.c.l.s4 1983009808
      %v12033 = vunpack.c.0.s8 %v12032
      %v12034 = vlaneseq
      %v12035 = vshrl.u32 %v12034, 7
      %v12036 = vsub.s32 %v12033, %v12035
      %v12037 = vrot.slane %v12023, %v12036
      %v12038 = vcombine.high %v12030, %v12030
      %v12039 = vcombine.high %v12037, %v12037
      %v12040 = vcombine.high %v11924, %v11924
      %v12042 = vunpack.c.l.s4 1983009808
      %v12043 = vunpack.c.0.s8 %v12042
      %v12044 = vlaneseq
      %v12045 = vshrl.u32 %v12044, 7
      %v12046 = vsub.s32 %v12043, %v12045
      %v12047 = vrot.slane %v11924, %v12046
      %v12049 = vunpack.c.l.s4 1983009808
      %v12050 = vunpack.c.0.s8 %v12049
      %v12051 = vlaneseq
      %v12052 = vshrl.u32 %v12051, 7
      %v12053 = vsub.s32 %v12050, %v12052
      %v12054 = vrot.slane %v12040, %v12053
      %v12055 = vcombine.high %v12047, %v12047
      %v12056 = vcombine.high %v12054, %v12054
      %v12057 = vcombine.high %v11927, %v11927
      %v12059 = vunpack.c.l.s4 1983009808
      %v12060 = vunpack.c.0.s8 %v12059
      %v12061 = vlaneseq
      %v12062 = vshrl.u32 %v12061, 7
      %v12063 = vsub.s32 %v12060, %v12062
      %v12064 = vrot.slane %v11927, %v12063
      %v12066 = vunpack.c.l.s4 1983009808
      %v12067 = vunpack.c.0.s8 %v12066
      %v12068 = vlaneseq
      %v12069 = vshrl.u32 %v12068, 7
      %v12070 = vsub.s32 %v12067, %v12069
      %v12071 = vrot.slane %v12057, %v12070
      %v12072 = vcombine.high %v12064, %v12064
      %v12073 = vcombine.high %v12071, %v12071
      %v12074 = vrot.slane %v11945, 1
      %v12075 = vrot.slane %v11953, 1
      %v12076 = vrot.slane %v11952, 1
      %v12077 = vrot.slane %v11954, 1
      %v12078 = vrot.slane %v11962, 1
      %v12079 = vrot.slane %v11970, 1
      %v12080 = vrot.slane %v11969, 1
      %v12081 = vrot.slane %v11971, 1
      %v12082 = vrot.slane %v11979, 1
      %v12083 = vrot.slane %v11987, 1
      %v12084 = vrot.slane %v11986, 1
      %v12085 = vrot.slane %v11988, 1
      %v12086 = vrot.slane %v11996, 1
      %v12087 = vrot.slane %v12004, 1
      %v12088 = vrot.slane %v12003, 1
      %v12089 = vrot.slane %v12005, 1
      %v12090 = vrot.slane %v12013, 1
      %v12091 = vrot.slane %v12021, 1
      %v12092 = vrot.slane %v12020, 1
      %v12093 = vrot.slane %v12022, 1
      %v12094 = vrot.slane %v12030, 1
      %v12095 = vrot.slane %v12038, 1
      %v12096 = vrot.slane %v12037, 1
      %v12097 = vrot.slane %v12039, 1
      %v12098 = vrot.slane %v12047, 1
      %v12099 = vrot.slane %v12055, 1
      %v12100 = vrot.slane %v12054, 1
      %v12101 = vrot.slane %v12056, 1
      %v12102 = vrot.slane %v12064, 1
      %v12103 = vrot.slane %v12072, 1
      %v12104 = vrot.slane %v12071, 1
      %v12105 = vrot.slane %v12073, 1
      %v12170 = vadd.f32 %v9990, %v11945
      %v12171 = vadd.f32 %v9991, %v12074
      %v12172 = vadd.f32 %v9992, %v11953
      %v12173 = vadd.f32 %v9993, %v12075
      %v12174 = vadd.f32 %v9994, %v11952
      %v12175 = vadd.f32 %v9995, %v12076
      %v12176 = vadd.f32 %v9996, %v11954
      %v12177 = vadd.f32 %v9997, %v12077
      %v12178 = vadd.f32 %v9998, %v11962
      %v12179 = vadd.f32 %v9999, %v12078
      %v12180 = vadd.f32 %v10000, %v11970
      %v12181 = vadd.f32 %v10001, %v12079
      %v12182 = vadd.f32 %v10002, %v11969
      %v12183 = vadd.f32 %v10003, %v12080
      %v12184 = vadd.f32 %v10004, %v11971
      %v12185 = vadd.f32 %v10005, %v12081
      %v12186 = vadd.f32 %v10006, %v11979
      %v12187 = vadd.f32 %v10007, %v12082
      %v12188 = vadd.f32 %v10008, %v11987
      %v12189 = vadd.f32 %v10009, %v12083
      %v12190 = vadd.f32 %v10010, %v11986
      %v12191 = vadd.f32 %v10011, %v12084
      %v12192 = vadd.f32 %v10012, %v11988
      %v12193 = vadd.f32 %v10013, %v12085
      %v12194 = vadd.f32 %v10014, %v11996
      %v12195 = vadd.f32 %v10015, %v12086
      %v12196 = vadd.f32 %v10016, %v12004
      %v12197 = vadd.f32 %v10017, %v12087
      %v12198 = vadd.f32 %v10018, %v12003
      %v12199 = vadd.f32 %v10019, %v12088
      %v12200 = vadd.f32 %v10020, %v12005
      %v12201 = vadd.f32 %v10021, %v12089
      %v12202 = vadd.f32 %v10022, %v12013
      %v12203 = vadd.f32 %v10023, %v12090
      %v12204 = vadd.f32 %v10024, %v12021
      %v12205 = vadd.f32 %v10025, %v12091
      %v12206 = vadd.f32 %v10026, %v12020
      %v12207 = vadd.f32 %v10027, %v12092
      %v12208 = vadd.f32 %v10028, %v12022
      %v12209 = vadd.f32 %v10029, %v12093
      %v12210 = vadd.f32 %v10030, %v12030
      %v12211 = vadd.f32 %v10031, %v12094
      %v12212 = vadd.f32 %v10032, %v12038
      %v12213 = vadd.f32 %v10033, %v12095
      %v12214 = vadd.f32 %v10034, %v12037
      %v12215 = vadd.f32 %v10035, %v12096
      %v12216 = vadd.f32 %v10036, %v12039
      %v12217 = vadd.f32 %v10037, %v12097
      %v12218 = vadd.f32 %v10038, %v12047
      %v12219 = vadd.f32 %v10039, %v12098
      %v12220 = vadd.f32 %v10040, %v12055
      %v12221 = vadd.f32 %v10041, %v12099
      %v12222 = vadd.f32 %v10042, %v12054
      %v12223 = vadd.f32 %v10043, %v12100
      %v12224 = vadd.f32 %v10044, %v12056
      %v12225 = vadd.f32 %v10045, %v12101
      %v12226 = vadd.f32 %v10046, %v12064
      %v12227 = vadd.f32 %v10047, %v12102
      %v12228 = vadd.f32 %v10048, %v12072
      %v12229 = vadd.f32 %v10049, %v12103
      %v12230 = vadd.f32 %v10050, %v12071
      %v12231 = vadd.f32 %v10051, %v12104
      %v12232 = vadd.f32 %v10052, %v12073
      %v12233 = vadd.f32 %v10053, %v12105
      %v12298 = vlaneseq
      %v12299 = vshrl.u32 %v12298, 7
      %v12300 = vsub.s32 0, %v12299
      %v12301 = vrot.slane %v12170, %v12300
      %v12302 = vlaneseq
      %v12303 = vshrl.u32 %v12302, 7
      %v12304 = vsub.s32 0, %v12303
      %v12305 = vrot.slane %v12171, %v12304
      %v12306 = vlaneseq
      %v12307 = vshrl.u32 %v12306, 7
      %v12308 = vsub.s32 0, %v12307
      %v12309 = vrot.slane %v12172, %v12308
      %v12310 = vlaneseq
      %v12311 = vshrl.u32 %v12310, 7
      %v12312 = vsub.s32 0, %v12311
      %v12313 = vrot.slane %v12173, %v12312
      %v12314 = vlaneseq
      %v12315 = vshrl.u32 %v12314, 7
      %v12316 = vsub.s32 0, %v12315
      %v12317 = vrot.slane %v12174, %v12316
      %v12318 = vlaneseq
      %v12319 = vshrl.u32 %v12318, 7
      %v12320 = vsub.s32 0, %v12319
      %v12321 = vrot.slane %v12175, %v12320
      %v12322 = vlaneseq
      %v12323 = vshrl.u32 %v12322, 7
      %v12324 = vsub.s32 0, %v12323
      %v12325 = vrot.slane %v12176, %v12324
      %v12326 = vlaneseq
      %v12327 = vshrl.u32 %v12326, 7
      %v12328 = vsub.s32 0, %v12327
      %v12329 = vrot.slane %v12177, %v12328
      %v12330 = vlaneseq
      %v12331 = vshrl.u32 %v12330, 7
      %v12332 = vsub.s32 0, %v12331
      %v12333 = vrot.slane %v12178, %v12332
      %v12334 = vlaneseq
      %v12335 = vshrl.u32 %v12334, 7
      %v12336 = vsub.s32 0, %v12335
      %v12337 = vrot.slane %v12179, %v12336
      %v12338 = vlaneseq
      %v12339 = vshrl.u32 %v12338, 7
      %v12340 = vsub.s32 0, %v12339
      %v12341 = vrot.slane %v12180, %v12340
      %v12342 = vlaneseq
      %v12343 = vshrl.u32 %v12342, 7
      %v12344 = vsub.s32 0, %v12343
      %v12345 = vrot.slane %v12181, %v12344
      %v12346 = vlaneseq
      %v12347 = vshrl.u32 %v12346, 7
      %v12348 = vsub.s32 0, %v12347
      %v12349 = vrot.slane %v12182, %v12348
      %v12350 = vlaneseq
      %v12351 = vshrl.u32 %v12350, 7
      %v12352 = vsub.s32 0, %v12351
      %v12353 = vrot.slane %v12183, %v12352
      %v12354 = vlaneseq
      %v12355 = vshrl.u32 %v12354, 7
      %v12356 = vsub.s32 0, %v12355
      %v12357 = vrot.slane %v12184, %v12356
      %v12358 = vlaneseq
      %v12359 = vshrl.u32 %v12358, 7
      %v12360 = vsub.s32 0, %v12359
      %v12361 = vrot.slane %v12185, %v12360
      %v12362 = vlaneseq
      %v12363 = vshrl.u32 %v12362, 7
      %v12364 = vsub.s32 0, %v12363
      %v12365 = vrot.slane %v12186, %v12364
      %v12366 = vlaneseq
      %v12367 = vshrl.u32 %v12366, 7
      %v12368 = vsub.s32 0, %v12367
      %v12369 = vrot.slane %v12187, %v12368
      %v12370 = vlaneseq
      %v12371 = vshrl.u32 %v12370, 7
      %v12372 = vsub.s32 0, %v12371
      %v12373 = vrot.slane %v12188, %v12372
      %v12374 = vlaneseq
      %v12375 = vshrl.u32 %v12374, 7
      %v12376 = vsub.s32 0, %v12375
      %v12377 = vrot.slane %v12189, %v12376
      %v12378 = vlaneseq
      %v12379 = vshrl.u32 %v12378, 7
      %v12380 = vsub.s32 0, %v12379
      %v12381 = vrot.slane %v12190, %v12380
      %v12382 = vlaneseq
      %v12383 = vshrl.u32 %v12382, 7
      %v12384 = vsub.s32 0, %v12383
      %v12385 = vrot.slane %v12191, %v12384
      %v12386 = vlaneseq
      %v12387 = vshrl.u32 %v12386, 7
      %v12388 = vsub.s32 0, %v12387
      %v12389 = vrot.slane %v12192, %v12388
      %v12390 = vlaneseq
      %v12391 = vshrl.u32 %v12390, 7
      %v12392 = vsub.s32 0, %v12391
      %v12393 = vrot.slane %v12193, %v12392
      %v12394 = vlaneseq
      %v12395 = vshrl.u32 %v12394, 7
      %v12396 = vsub.s32 0, %v12395
      %v12397 = vrot.slane %v12194, %v12396
      %v12398 = vlaneseq
      %v12399 = vshrl.u32 %v12398, 7
      %v12400 = vsub.s32 0, %v12399
      %v12401 = vrot.slane %v12195, %v12400
      %v12402 = vlaneseq
      %v12403 = vshrl.u32 %v12402, 7
      %v12404 = vsub.s32 0, %v12403
      %v12405 = vrot.slane %v12196, %v12404
      %v12406 = vlaneseq
      %v12407 = vshrl.u32 %v12406, 7
      %v12408 = vsub.s32 0, %v12407
      %v12409 = vrot.slane %v12197, %v12408
      %v12410 = vlaneseq
      %v12411 = vshrl.u32 %v12410, 7
      %v12412 = vsub.s32 0, %v12411
      %v12413 = vrot.slane %v12198, %v12412
      %v12414 = vlaneseq
      %v12415 = vshrl.u32 %v12414, 7
      %v12416 = vsub.s32 0, %v12415
      %v12417 = vrot.slane %v12199, %v12416
      %v12418 = vlaneseq
      %v12419 = vshrl.u32 %v12418, 7
      %v12420 = vsub.s32 0, %v12419
      %v12421 = vrot.slane %v12200, %v12420
      %v12422 = vlaneseq
      %v12423 = vshrl.u32 %v12422, 7
      %v12424 = vsub.s32 0, %v12423
      %v12425 = vrot.slane %v12201, %v12424
      %v12426 = vlaneseq
      %v12427 = vshrl.u32 %v12426, 7
      %v12428 = vsub.s32 0, %v12427
      %v12429 = vrot.slane %v12202, %v12428
      %v12430 = vlaneseq
      %v12431 = vshrl.u32 %v12430, 7
      %v12432 = vsub.s32 0, %v12431
      %v12433 = vrot.slane %v12203, %v12432
      %v12434 = vlaneseq
      %v12435 = vshrl.u32 %v12434, 7
      %v12436 = vsub.s32 0, %v12435
      %v12437 = vrot.slane %v12204, %v12436
      %v12438 = vlaneseq
      %v12439 = vshrl.u32 %v12438, 7
      %v12440 = vsub.s32 0, %v12439
      %v12441 = vrot.slane %v12205, %v12440
      %v12442 = vlaneseq
      %v12443 = vshrl.u32 %v12442, 7
      %v12444 = vsub.s32 0, %v12443
      %v12445 = vrot.slane %v12206, %v12444
      %v12446 = vlaneseq
      %v12447 = vshrl.u32 %v12446, 7
      %v12448 = vsub.s32 0, %v12447
      %v12449 = vrot.slane %v12207, %v12448
      %v12450 = vlaneseq
      %v12451 = vshrl.u32 %v12450, 7
      %v12452 = vsub.s32 0, %v12451
      %v12453 = vrot.slane %v12208, %v12452
      %v12454 = vlaneseq
      %v12455 = vshrl.u32 %v12454, 7
      %v12456 = vsub.s32 0, %v12455
      %v12457 = vrot.slane %v12209, %v12456
      %v12458 = vlaneseq
      %v12459 = vshrl.u32 %v12458, 7
      %v12460 = vsub.s32 0, %v12459
      %v12461 = vrot.slane %v12210, %v12460
      %v12462 = vlaneseq
      %v12463 = vshrl.u32 %v12462, 7
      %v12464 = vsub.s32 0, %v12463
      %v12465 = vrot.slane %v12211, %v12464
      %v12466 = vlaneseq
      %v12467 = vshrl.u32 %v12466, 7
      %v12468 = vsub.s32 0, %v12467
      %v12469 = vrot.slane %v12212, %v12468
      %v12470 = vlaneseq
      %v12471 = vshrl.u32 %v12470, 7
      %v12472 = vsub.s32 0, %v12471
      %v12473 = vrot.slane %v12213, %v12472
      %v12474 = vlaneseq
      %v12475 = vshrl.u32 %v12474, 7
      %v12476 = vsub.s32 0, %v12475
      %v12477 = vrot.slane %v12214, %v12476
      %v12478 = vlaneseq
      %v12479 = vshrl.u32 %v12478, 7
      %v12480 = vsub.s32 0, %v12479
      %v12481 = vrot.slane %v12215, %v12480
      %v12482 = vlaneseq
      %v12483 = vshrl.u32 %v12482, 7
      %v12484 = vsub.s32 0, %v12483
      %v12485 = vrot.slane %v12216, %v12484
      %v12486 = vlaneseq
      %v12487 = vshrl.u32 %v12486, 7
      %v12488 = vsub.s32 0, %v12487
      %v12489 = vrot.slane %v12217, %v12488
      %v12490 = vlaneseq
      %v12491 = vshrl.u32 %v12490, 7
      %v12492 = vsub.s32 0, %v12491
      %v12493 = vrot.slane %v12218, %v12492
      %v12494 = vlaneseq
      %v12495 = vshrl.u32 %v12494, 7
      %v12496 = vsub.s32 0, %v12495
      %v12497 = vrot.slane %v12219, %v12496
      %v12498 = vlaneseq
      %v12499 = vshrl.u32 %v12498, 7
      %v12500 = vsub.s32 0, %v12499
      %v12501 = vrot.slane %v12220, %v12500
      %v12502 = vlaneseq
      %v12503 = vshrl.u32 %v12502, 7
      %v12504 = vsub.s32 0, %v12503
      %v12505 = vrot.slane %v12221, %v12504
      %v12506 = vlaneseq
      %v12507 = vshrl.u32 %v12506, 7
      %v12508 = vsub.s32 0, %v12507
      %v12509 = vrot.slane %v12222, %v12508
      %v12510 = vlaneseq
      %v12511 = vshrl.u32 %v12510, 7
      %v12512 = vsub.s32 0, %v12511
      %v12513 = vrot.slane %v12223, %v12512
      %v12514 = vlaneseq
      %v12515 = vshrl.u32 %v12514, 7
      %v12516 = vsub.s32 0, %v12515
      %v12517 = vrot.slane %v12224, %v12516
      %v12518 = vlaneseq
      %v12519 = vshrl.u32 %v12518, 7
      %v12520 = vsub.s32 0, %v12519
      %v12521 = vrot.slane %v12225, %v12520
      %v12522 = vlaneseq
      %v12523 = vshrl.u32 %v12522, 7
      %v12524 = vsub.s32 0, %v12523
      %v12525 = vrot.slane %v12226, %v12524
      %v12526 = vlaneseq
      %v12527 = vshrl.u32 %v12526, 7
      %v12528 = vsub.s32 0, %v12527
      %v12529 = vrot.slane %v12227, %v12528
      %v12530 = vlaneseq
      %v12531 = vshrl.u32 %v12530, 7
      %v12532 = vsub.s32 0, %v12531
      %v12533 = vrot.slane %v12228, %v12532
      %v12534 = vlaneseq
      %v12535 = vshrl.u32 %v12534, 7
      %v12536 = vsub.s32 0, %v12535
      %v12537 = vrot.slane %v12229, %v12536
      %v12538 = vlaneseq
      %v12539 = vshrl.u32 %v12538, 7
      %v12540 = vsub.s32 0, %v12539
      %v12541 = vrot.slane %v12230, %v12540
      %v12542 = vlaneseq
      %v12543 = vshrl.u32 %v12542, 7
      %v12544 = vsub.s32 0, %v12543
      %v12545 = vrot.slane %v12231, %v12544
      %v12546 = vlaneseq
      %v12547 = vshrl.u32 %v12546, 7
      %v12548 = vsub.s32 0, %v12547
      %v12549 = vrot.slane %v12232, %v12548
      %v12550 = vlaneseq
      %v12551 = vshrl.u32 %v12550, 7
      %v12552 = vsub.s32 0, %v12551
      %v12553 = vrot.slane %v12233, %v12552
      %v12554 = vsel %vm11727, %v12305, %v12301
      %v12555 = vsel %vm11730, %v12309, %v12554
      %v12556 = vsel %vm11733, %v12313, %v12555
      %v12557 = vsel %vm11736, %v12317, %v12556
      %v12558 = vsel %vm11739, %v12321, %v12557
      %v12559 = vsel %vm11742, %v12325, %v12558
      %v12560 = vsel %vm11745, %v12329, %v12559
      %v12561 = vsel %vm11727, %v12337, %v12333
      %v12562 = vsel %vm11730, %v12341, %v12561
      %v12563 = vsel %vm11733, %v12345, %v12562
      %v12564 = vsel %vm11736, %v12349, %v12563
      %v12565 = vsel %vm11739, %v12353, %v12564
      %v12566 = vsel %vm11742, %v12357, %v12565
      %v12567 = vsel %vm11745, %v12361, %v12566
      %v12568 = vsel %vm11727, %v12369, %v12365
      %v12569 = vsel %vm11730, %v12373, %v12568
      %v12570 = vsel %vm11733, %v12377, %v12569
      %v12571 = vsel %vm11736, %v12381, %v12570
      %v12572 = vsel %vm11739, %v12385, %v12571
      %v12573 = vsel %vm11742, %v12389, %v12572
      %v12574 = vsel %vm11745, %v12393, %v12573
      %v12575 = vsel %vm11727, %v12401, %v12397
      %v12576 = vsel %vm11730, %v12405, %v12575
      %v12577 = vsel %vm11733, %v12409, %v12576
      %v12578 = vsel %vm11736, %v12413, %v12577
      %v12579 = vsel %vm11739, %v12417, %v12578
      %v12580 = vsel %vm11742, %v12421, %v12579
      %v12581 = vsel %vm11745, %v12425, %v12580
      %v12582 = vsel %vm11727, %v12433, %v12429
      %v12583 = vsel %vm11730, %v12437, %v12582
      %v12584 = vsel %vm11733, %v12441, %v12583
      %v12585 = vsel %vm11736, %v12445, %v12584
      %v12586 = vsel %vm11739, %v12449, %v12585
      %v12587 = vsel %vm11742, %v12453, %v12586
      %v12588 = vsel %vm11745, %v12457, %v12587
      %v12589 = vsel %vm11727, %v12465, %v12461
      %v12590 = vsel %vm11730, %v12469, %v12589
      %v12591 = vsel %vm11733, %v12473, %v12590
      %v12592 = vsel %vm11736, %v12477, %v12591
      %v12593 = vsel %vm11739, %v12481, %v12592
      %v12594 = vsel %vm11742, %v12485, %v12593
      %v12595 = vsel %vm11745, %v12489, %v12594
      %v12596 = vsel %vm11727, %v12497, %v12493
      %v12597 = vsel %vm11730, %v12501, %v12596
      %v12598 = vsel %vm11733, %v12505, %v12597
      %v12599 = vsel %vm11736, %v12509, %v12598
      %v12600 = vsel %vm11739, %v12513, %v12599
      %v12601 = vsel %vm11742, %v12517, %v12600
      %v12602 = vsel %vm11745, %v12521, %v12601
      %v12603 = vsel %vm11727, %v12529, %v12525
      %v12604 = vsel %vm11730, %v12533, %v12603
      %v12605 = vsel %vm11733, %v12537, %v12604
      %v12606 = vsel %vm11736, %v12541, %v12605
      %v12607 = vsel %vm11739, %v12545, %v12606
      %v12608 = vsel %vm11742, %v12549, %v12607
      %v12609 = vsel %vm11745, %v12553, %v12608
      %vm12618 = vcmask 64512
      %12619 = vst.msk [vmem:[%s278] sm:$0xff] %vm12618, %v12560
      %12620 = vst.msk [vmem:[%s278 + $0x8] sm:$0xff] %vm12618, %v12567
      %12621 = vst.msk [vmem:[%s278 + $0x10] sm:$0xff] %vm12618, %v12574
      %12622 = vst.msk [vmem:[%s278 + $0x18] sm:$0xff] %vm12618, %v12581
      %12623 = vst.msk [vmem:[%s278 + $0x20] sm:$0xff] %vm12618, %v12588
      %12624 = vst.msk [vmem:[%s278 + $0x28] sm:$0xff] %vm12618, %v12595
      %12625 = vst.msk [vmem:[%s278 + $0x30] sm:$0xff] %vm12618, %v12602
      %12626 = vst.msk [vmem:[%s278 + $0x38] sm:$0xff] %vm12618, %v12609
      %s12627 = smul.u32 8, %s18
      %p12628 = scmp.lt.s32.totalorder %s12627, 15
      %s12629 = scalar_select %p12628, %s12627, 15
      %s12630 = smul.addr %s12629, 8
      %s12631 = scalar_lea.vmem %s7, %s12630
      // Predicated region
      $region49: #{tpu_custom_call.1} parent=47 // pred_check
        %p12632 = pneg %p188
      $region50: #{tpu_custom_call.1} parent=47 // pred_check_branch
        %12634 = sbr.rel (%p12632) target = $region52
      $region51: #{tpu_custom_call.1} parent=47 // pred_region
        %s12635 = smul.u32 8, %s18
      $region52: #{tpu_custom_call.1} parent=47 // pred_fallthru
        _
    $region48: #{tpu_custom_call.1} parent=5 // pred_fallthru
      _
    %p12636 = scmp.le.s32.totalorder 2, %s13
    // Predicated region
    $region53: #{tpu_custom_call.1} parent=5 // pred_check
      %p12637 = pneg %p12636
    $region54: #{tpu_custom_call.1} parent=5 // pred_check_branch
      %12639 = sbr.rel (%p12637) target = $region56
    $region55: #{tpu_custom_call.1} parent=5 // pred_region
      %s12640 = ssub.s32 %s13, 2
      // Predicated region
      $region57: #{tpu_custom_call.1} parent=55 // pred_check
        %p12641 = pneg %p194
      $region58: #{tpu_custom_call.1} parent=55 // pred_check_branch
        %12643 = sbr.rel (%p12641) target = $region60
      $region59: #{tpu_custom_call.1} parent=55 // pred_region
        %s12644 = smul.u32 8, %s19
        %p12645 = scmp.lt.s32.totalorder %s12644, 15
        %s12646 = scalar_select %p12645, %s12644, 15
        %s12647 = smul.addr %s12646, 8
        %s12648 = scalar_lea.vmem %s7, %s12647
      $region60: #{tpu_custom_call.1} parent=55 // pred_fallthru
        _
    $region56: #{tpu_custom_call.1} parent=5 // pred_fallthru
      _
  $region6: #{tpu_custom_call.1} parent=0 // loop_footer
    %s17 = sadd.s32 1, %s13
  $region7: #{tpu_custom_call.1} parent=0 // loop_footer_branch
    %12 = sbr.rel target = $region3
  $region8: #{tpu_custom_call.1} parent=0 // loop_exit
    _

</llo_original>
